<compile_context>
chip_gen: v6e
topology: v6e:2x2x1
jax: 0.10.0
libtpu: 0.0.40
codegen_flags: <defaults>
</compile_context>

<pallas_src>
import jax
import jax.numpy as jnp
from jax import lax
from jax.experimental import pallas as pl
from jax.experimental.pallas import tpu as pltpu

CP = 128    # channel padding (lane width) used end-to-end inside the kernel
K1P = 256   # conv1 contraction dim: 7*7*3 = 147, zero-padded up to a lane multiple


# ---------------------------------------------------------------------------
# The single fused Pallas kernel (one grid step == one image)
# ---------------------------------------------------------------------------
def _stem_kernel(p1_ref, w1_ref, b1_ref,
                 w10a_ref, b10a_ref, w10b_ref, b10b_ref,
                 w11a_ref, b11a_ref, w11b_ref, b11b_ref,
                 wc20_ref, bc20_ref, w20b_ref, b20b_ref,
                 w21a_ref, b21a_ref, w21b_ref, b21b_ref,
                 o_ref, pad_a, pad_b):
    f32 = jnp.float32

    def write_padded(pad_ref, x, h, w):
        # x: (h*w, CP) f32 activation, spatial row-major.  Store the zero-padded image
        # as a flat ((h+2)*(w+2), CP) row-major slab in pad_ref (unused rows stay zero).
        wp = w + 2
        pad_ref[...] = jnp.zeros(pad_ref.shape, f32)
        for r in range(h):
            base = (r + 1) * wp + 1
            pad_ref[base:base + w, :] = x[r * w:(r + 1) * w, :]

    def conv3x3(pad_ref, w_ref, h, w, n_out):
        # 3x3 conv over the flat zero-padded image via per-tap MXU accumulation
        # (in-kernel im2col).  Returns the raw (L, n_out) f32 accumulator in
        # "flat-shift" row space (row r*wp + c; only c < w are valid output columns).
        wp = w + 2
        L = (h - 1) * wp + w
        acc = None
        for i in range(3):
            for j in range(3):
                t = i * 3 + j
                tap = pad_ref[i * wp + j:i * wp + j + L, :].astype(jnp.bfloat16)
                d = jnp.dot(tap, w_ref[t * CP:(t + 1) * CP, :],
                            preferred_element_type=f32)
                acc = d if acc is None else acc + d
        return acc

    def take_s1(acc, h, w):
        # keep the w valid columns of each of the h output rows -> (h*w, n)
        wp = w + 2
        return jnp.concatenate([acc[r * wp:r * wp + w, :] for r in range(h)], axis=0)

    def take_s2(acc, h, w):
        # stride-2 output positions of the stride-1 accumulator -> (h//2 * w//2, n)
        wp = w + 2
        rows = [acc[2 * r * wp + 2 * c:2 * r * wp + 2 * c + 1, :]
                for r in range(h // 2) for c in range(w // 2)]
        return jnp.concatenate(rows, axis=0)

    def basic_block_s1(x, wa_ref, ba_ref, wb_ref, bb_ref, h, w):
        # conv-bn-relu -> conv-bn -> (+x) -> relu  (stride 1, f32 epilogues)
        write_padded(pad_a, x, h, w)
        h1 = take_s1(conv3x3(pad_a, wa_ref, h, w, CP), h, w) + ba_ref[...]
        h1 = jnp.maximum(h1, 0.0)
        write_padded(pad_b, h1, h, w)
        h2 = take_s1(conv3x3(pad_b, wb_ref, h, w, CP), h, w) + bb_ref[...]
        return jnp.maximum(h2 + x, 0.0)

    # ---- conv1 + bn1 + relu: one (64, K1P) @ (K1P, 128) MXU matmul ----
    a1 = jnp.dot(p1_ref[0], w1_ref[...], preferred_element_type=f32) + b1_ref[...]
    a1 = jnp.maximum(a1, 0.0)                         # (64, 128) == 8x8 spatial

    # ---- 3x3 / stride-2 / pad-1 maxpool, fused (post-ReLU => 0-pad == -inf-pad) ----
    row = lambda r: a1[r * 8:(r + 1) * 8, :]          # one H row: (W=8, CP)
    hmax = [jnp.maximum(row(0), row(1)),
            jnp.maximum(jnp.maximum(row(1), row(2)), row(3)),
            jnp.maximum(jnp.maximum(row(3), row(4)), row(5)),
            jnp.maximum(jnp.maximum(row(5), row(6)), row(7))]

    def wpool(hm):
        c0 = jnp.maximum(hm[0:1, :], hm[1:2, :])
        c1 = jnp.maximum(jnp.maximum(hm[1:2, :], hm[2:3, :]), hm[3:4, :])
        c2 = jnp.maximum(jnp.maximum(hm[3:4, :], hm[4:5, :]), hm[5:6, :])
        c3 = jnp.maximum(jnp.maximum(hm[5:6, :], hm[6:7, :]), hm[7:8, :])
        return jnp.concatenate([c0, c1, c2, c3], axis=0)

    x = jnp.concatenate([wpool(hm) for hm in hmax], axis=0)   # (16, 128) == 4x4

    # ---- layer1: two stride-1 basic blocks on 4x4 ----
    x = basic_block_s1(x, w10a_ref, b10a_ref, w10b_ref, b10b_ref, 4, 4)
    x = basic_block_s1(x, w11a_ref, b11a_ref, w11b_ref, b11b_ref, 4, 4)

    # ---- layer2_0: stride-2 block; 3x3 conv1 and 1x1 downsample share one
    #      (1152, 256) matmul (downsample == centre tap), filling the MXU ----
    write_padded(pad_a, x, 4, 4)
    acc = conv3x3(pad_a, wc20_ref, 4, 4, 2 * CP)       # (22, 256)
    y = take_s2(acc, 4, 4) + bc20_ref[...]             # (4, 256) == 2x2 spatial
    h1 = jnp.maximum(y[:, :CP], 0.0)                   # conv1 branch (ReLU)
    identity = y[:, CP:]                               # downsample branch (no ReLU)
    write_padded(pad_b, h1, 2, 2)
    h2 = take_s1(conv3x3(pad_b, w20b_ref, 2, 2, CP), 2, 2) + b20b_ref[...]
    x = jnp.maximum(h2 + identity, 0.0)                # (4, 128) == 2x2

    # ---- layer2_1: stride-1 block on 2x2 ----
    x = basic_block_s1(x, w21a_ref, b21a_ref, w21b_ref, b21b_ref, 2, 2)

    o_ref[0] = x                                       # final layer output stays f32


# ---------------------------------------------------------------------------
# One-time weight pre-packing (outside jit): BN fold, 128-pad, bf16
# ---------------------------------------------------------------------------
def _pack_bias(bias):
    c = bias.shape[0]
    return jnp.pad(bias.astype(jnp.float32), (0, CP - c)).reshape(1, CP)


def _pack_w3x3(w, scale):
    # w: (Cout, Cin, 3, 3) -> (9*CP, CP) bf16, BN scale folded; row = tap*CP + cin
    cout, cin = w.shape[0], w.shape[1]
    wm = jnp.transpose(w, (2, 3, 1, 0)).reshape(9, cin, cout) * scale[None, None, :]
    wm = jnp.pad(wm, ((0, 0), (0, CP - cin), (0, CP - cout)))
    return wm.reshape(9 * CP, CP).astype(jnp.bfloat16)


def _pack_w7x7(w, scale):
    # w: (Cout, Cin, 7, 7) -> (K1P, CP) bf16; row = (i*7+j)*Cin + cin (matches im2col)
    cout, cin, kh, kw = w.shape
    wm = jnp.transpose(w, (2, 3, 1, 0)).reshape(kh * kw * cin, cout) * scale[None, :]
    wm = jnp.pad(wm, ((0, K1P - kh * kw * cin), (0, CP - cout)))
    return wm.astype(jnp.bfloat16)


def _pack_l20_combined(w3, s3, b3, w1, s1, b1):
    # Fuse layer2_0's 3x3 conv1 (cols 0:128) with its 1x1 stride-2 downsample
    # (cols 128:256); the 1x1 conv is exactly the centre tap (t = 4) of the 3x3.
    wa = _pack_w3x3(w3, s3)                                        # (9*CP, CP)
    cout, cin = w1.shape[0], w1.shape[1]
    w1m = w1[:, :, 0, 0].T * s1[None, :]                           # (cin, cout)
    wd = jnp.zeros((9, CP, CP), jnp.float32).at[4, :cin, :cout].set(w1m)
    wd = wd.reshape(9 * CP, CP).astype(jnp.bfloat16)
    wc = jnp.concatenate([wa, wd], axis=1)                         # (9*CP, 2*CP)
    bc = jnp.concatenate([_pack_bias(b3), _pack_bias(b1)], axis=1)  # (1, 2*CP)
    return wc, bc


def prepack_params(params):
    pk = [_pack_w7x7(params["conv1_w"], params["bn1_s"]), _pack_bias(params["bn1_b"])]
    for blk in ("layer1_0", "layer1_1"):
        p = params[blk]
        pk += [_pack_w3x3(p["conv1_w"], p["bn1_s"]), _pack_bias(p["bn1_b"]),
               _pack_w3x3(p["conv2_w"], p["bn2_s"]), _pack_bias(p["bn2_b"])]
    p = params["layer2_0"]
    wc, bc = _pack_l20_combined(p["conv1_w"], p["bn1_s"], p["bn1_b"],
                                p["down_w"], p["dbn_s"], p["dbn_b"])
    pk += [wc, bc, _pack_w3x3(p["conv2_w"], p["bn2_s"]), _pack_bias(p["bn2_b"])]
    p = params["layer2_1"]
    pk += [_pack_w3x3(p["conv1_w"], p["bn1_s"]), _pack_bias(p["bn1_b"]),
           _pack_w3x3(p["conv2_w"], p["bn2_s"]), _pack_bias(p["bn2_b"])]
    return pk


# ---------------------------------------------------------------------------
# Forward wrapper
# ---------------------------------------------------------------------------
def _conv1_patches(x_nhwc):
    # 7x7 / stride 2 / pad 3 im2col on the raw input -> (N, 64, K1P) bf16
    xp = jnp.pad(x_nhwc, ((0, 0), (3, 3), (3, 3), (0, 0)))
    n = xp.shape[0]
    cols = [xp[:, i:i + 16:2, j:j + 16:2, :] for i in range(7) for j in range(7)]
    p = jnp.concatenate(cols, axis=-1).reshape(n, 64, 7 * 7 * 3)
    p = jnp.pad(p, ((0, 0), (0, 0), (0, K1P - 7 * 7 * 3)))
    return p.astype(jnp.bfloat16)


def stem_forward(x_nchw, packed, c1=16, c2=32):
    print(tuple(x_nchw.shape))
    assert x_nchw.shape[1:] == (3, 16, 16), "kernel is specialized to 3x16x16 inputs"
    n = x_nchw.shape[0]
    x = jnp.transpose(x_nchw, (0, 2, 3, 1))          # NCHW -> NHWC
    p1 = _conv1_patches(x)

    in_specs = [pl.BlockSpec((1, 64, K1P), lambda i: (i, 0, 0))]
    in_specs += [pl.BlockSpec(a.shape, lambda i: (0, 0)) for a in packed]

    out = pl.pallas_call(
        _stem_kernel,
        grid=(n,),
        in_specs=in_specs,
        out_specs=pl.BlockSpec((1, 4, CP), lambda i: (i, 0, 0)),
        out_shape=jax.ShapeDtypeStruct((n, 4, CP), jnp.float32),
        scratch_shapes=[pltpu.VMEM((36, CP), jnp.float32),   # padded-activation slabs
                        pltpu.VMEM((36, CP), jnp.float32)],
        compiler_params=pltpu.CompilerParams(
            dimension_semantics=("parallel",),               # batch over v7x's two TCs
            vmem_limit_bytes=32 * 1024 * 1024),
    )(p1, *packed)

    print((n, c1, 4, 4))    # after maxpool
    print((n, c1, 4, 4))    # after layer1
    print((n, c2, 2, 2))    # after layer2
    y = out[:, :, :c2].reshape(n, 2, 2, c2)
    return jnp.transpose(y, (0, 3, 1, 2))            # NHWC -> NCHW


# ---------------------------------------------------------------------------
# Deterministic parameters (eval-mode BN folded to scale/bias) + f32 reference
# ---------------------------------------------------------------------------
def init_params(key, c_in=3, c1=16, c2=32):
    keys = iter(jax.random.split(key, 128))

    def conv(cout, cin, kh, kw):
        return 0.05 * jax.random.normal(next(keys), (cout, cin, kh, kw), jnp.float32)

    def bn(c):
        eps = 1e-5
        gamma = 1.0 + 0.1 * jax.random.normal(next(keys), (c,), jnp.float32)
        beta = 0.1 * jax.random.normal(next(keys), (c,), jnp.float32)
        mean = 0.1 * jax.random.normal(next(keys), (c,), jnp.float32)
        var = 1.0 + jnp.abs(jax.random.normal(next(keys), (c,), jnp.float32))
        scale = gamma / jnp.sqrt(var + eps)
        return scale, beta - mean * scale

    def block(cin, cout, downsample):
        p = {"conv1_w": conv(cout, cin, 3, 3)}
        p["bn1_s"], p["bn1_b"] = bn(cout)
        p["conv2_w"] = conv(cout, cout, 3, 3)
        p["bn2_s"], p["bn2_b"] = bn(cout)
        if downsample:
            p["down_w"] = conv(cout, cin, 1, 1)
            p["dbn_s"], p["dbn_b"] = bn(cout)
        return p

    params = {"conv1_w": conv(c1, c_in, 7, 7)}
    params["bn1_s"], params["bn1_b"] = bn(c1)
    params["layer1_0"] = block(c1, c1, False)
    params["layer1_1"] = block(c1, c1, False)
    params["layer2_0"] = block(c1, c2, True)
    params["layer2_1"] = block(c2, c2, False)
    return params


def _reference_forward(x, params):
    # pure-XLA f32 reference (eval-mode BN already folded into scale/bias)
    def conv(x, w, stride, pad):
        return lax.conv_general_dilated(x, w, (stride, stride), [(pad, pad)] * 2,
                                        dimension_numbers=("NCHW", "OIHW", "NCHW"))

    def bn(x, s, b):
        return x * s[None, :, None, None] + b[None, :, None, None]

    def block(x, p, stride):
        out = jax.nn.relu(bn(conv(x, p["conv1_w"], stride, 1), p["bn1_s"], p["bn1_b"]))
        out = bn(conv(out, p["conv2_w"], 1, 1), p["bn2_s"], p["bn2_b"])
        idn = (bn(conv(x, p["down_w"], stride, 0), p["dbn_s"], p["dbn_b"])
               if "down_w" in p else x)
        return jax.nn.relu(out + idn)

    x = jax.nn.relu(bn(conv(x, params["conv1_w"], 2, 3), params["bn1_s"], params["bn1_b"]))
    x = lax.reduce_window(x, -jnp.inf, lax.max, (1, 1, 3, 3), (1, 1, 2, 2),
                          [(0, 0), (0, 0), (1, 1), (1, 1)])
    x = block(x, params["layer1_0"], 1)
    x = block(x, params["layer1_1"], 1)
    x = block(x, params["layer2_0"], 2)
    x = block(x, params["layer2_1"], 1)
    return x


if __name__ == "__main__":
    key = jax.random.PRNGKey(0)
    k_x, k_p = jax.random.split(key)
    x = jax.random.normal(k_x, (2, 3, 16, 16), jnp.float32)
    params = init_params(k_p)
    packed = prepack_params(params)          # one-time weight packing, outside jit

    forward = jax.jit(stem_forward)
    out = jax.block_until_ready(forward(x, packed))
    assert out.shape == (2, 32, 2, 2), out.shape
    assert out.dtype == jnp.float32

    # loose tolerance: MXU inputs are bf16 (precision choice), reference is f32
    ref = _reference_forward(x, params)
    err = float(jnp.max(jnp.abs(out - ref)))
    assert err < 0.1, f"max abs error vs f32 reference: {err}"
    print("KERNEL_OK")
</pallas_src>

<mosaic_0001>
module attributes {stable_mosaic.version = 11 : i64} {
  func.func @_stem_kernel(%arg0: i32, %arg1: memref<1x64x256xbf16, #tpu.memory_space<vmem>>, %arg2: memref<256x128xbf16, #tpu.memory_space<vmem>>, %arg3: memref<1x128xf32, #tpu.memory_space<vmem>>, %arg4: memref<1152x128xbf16, #tpu.memory_space<vmem>>, %arg5: memref<1x128xf32, #tpu.memory_space<vmem>>, %arg6: memref<1152x128xbf16, #tpu.memory_space<vmem>>, %arg7: memref<1x128xf32, #tpu.memory_space<vmem>>, %arg8: memref<1152x128xbf16, #tpu.memory_space<vmem>>, %arg9: memref<1x128xf32, #tpu.memory_space<vmem>>, %arg10: memref<1152x128xbf16, #tpu.memory_space<vmem>>, %arg11: memref<1x128xf32, #tpu.memory_space<vmem>>, %arg12: memref<1152x256xbf16, #tpu.memory_space<vmem>>, %arg13: memref<1x256xf32, #tpu.memory_space<vmem>>, %arg14: memref<1152x128xbf16, #tpu.memory_space<vmem>>, %arg15: memref<1x128xf32, #tpu.memory_space<vmem>>, %arg16: memref<1152x128xbf16, #tpu.memory_space<vmem>>, %arg17: memref<1x128xf32, #tpu.memory_space<vmem>>, %arg18: memref<1152x128xbf16, #tpu.memory_space<vmem>>, %arg19: memref<1x128xf32, #tpu.memory_space<vmem>>, %arg20: memref<1x4x128xf32, #tpu.memory_space<vmem>>, %arg21: memref<36x128xf32, #tpu.memory_space<vmem>>, %arg22: memref<36x128xf32, #tpu.memory_space<vmem>>) attributes {dimension_semantics = [#tpu.dimension_semantics<parallel>], iteration_bounds = array<i64: 2>, scalar_prefetch = 0 : i64, scratch_operands = 2 : i64, tpu.core_type = #tpu.core_type<tc>, window_params = [{transform_indices = @transform_0, window_bounds = array<i64: 1, 64, 256>}, {pipeline_mode = #tpu.pipeline_mode<synchronous>, transform_indices = @transform_1, window_bounds = array<i64: 256, 128>}, {pipeline_mode = #tpu.pipeline_mode<synchronous>, transform_indices = @transform_2, window_bounds = array<i64: 1, 128>}, {pipeline_mode = #tpu.pipeline_mode<synchronous>, transform_indices = @transform_3, window_bounds = array<i64: 1152, 128>}, {pipeline_mode = #tpu.pipeline_mode<synchronous>, transform_indices = @transform_4, window_bounds = array<i64: 1, 128>}, {pipeline_mode = #tpu.pipeline_mode<synchronous>, transform_indices = @transform_5, window_bounds = array<i64: 1152, 128>}, {pipeline_mode = #tpu.pipeline_mode<synchronous>, transform_indices = @transform_6, window_bounds = array<i64: 1, 128>}, {pipeline_mode = #tpu.pipeline_mode<synchronous>, transform_indices = @transform_7, window_bounds = array<i64: 1152, 128>}, {pipeline_mode = #tpu.pipeline_mode<synchronous>, transform_indices = @transform_8, window_bounds = array<i64: 1, 128>}, {pipeline_mode = #tpu.pipeline_mode<synchronous>, transform_indices = @transform_9, window_bounds = array<i64: 1152, 128>}, {pipeline_mode = #tpu.pipeline_mode<synchronous>, transform_indices = @transform_10, window_bounds = array<i64: 1, 128>}, {pipeline_mode = #tpu.pipeline_mode<synchronous>, transform_indices = @transform_11, window_bounds = array<i64: 1152, 256>}, {pipeline_mode = #tpu.pipeline_mode<synchronous>, transform_indices = @transform_12, window_bounds = array<i64: 1, 256>}, {pipeline_mode = #tpu.pipeline_mode<synchronous>, transform_indices = @transform_13, window_bounds = array<i64: 1152, 128>}, {pipeline_mode = #tpu.pipeline_mode<synchronous>, transform_indices = @transform_14, window_bounds = array<i64: 1, 128>}, {pipeline_mode = #tpu.pipeline_mode<synchronous>, transform_indices = @transform_15, window_bounds = array<i64: 1152, 128>}, {pipeline_mode = #tpu.pipeline_mode<synchronous>, transform_indices = @transform_16, window_bounds = array<i64: 1, 128>}, {pipeline_mode = #tpu.pipeline_mode<synchronous>, transform_indices = @transform_17, window_bounds = array<i64: 1152, 128>}, {pipeline_mode = #tpu.pipeline_mode<synchronous>, transform_indices = @transform_18, window_bounds = array<i64: 1, 128>}, {transform_indices = @transform_19, window_bounds = array<i64: 1, 4, 128>}]} {
    %c0 = arith.constant 0 : index
    %c0_0 = arith.constant 0 : index
    %c0_1 = arith.constant 0 : index
    %0 = vector.load %arg1[%c0, %c0_0, %c0_1] : memref<1x64x256xbf16, #tpu.memory_space<vmem>>, vector<1x64x256xbf16>
    %1 = vector.shape_cast %0 : vector<1x64x256xbf16> to vector<64x256xbf16>
    %c0_2 = arith.constant 0 : index
    %c0_3 = arith.constant 0 : index
    %2 = vector.load %arg2[%c0_2, %c0_3] : memref<256x128xbf16, #tpu.memory_space<vmem>>, vector<256x128xbf16>
    %cst = arith.constant dense<0.000000e+00> : vector<64x128xf32>
    %3 = tpu.matmul %1, %2, %cst {dimension_numbers = #tpu.dot_dimension_numbers<[1], [0], [0], [1], [0, 0, 1, 1], [], []>} : vector<64x256xbf16>, vector<256x128xbf16>, vector<64x128xf32> -> vector<64x128xf32>
    %c0_4 = arith.constant 0 : index
    %c0_5 = arith.constant 0 : index
    %4 = vector.load %arg3[%c0_4, %c0_5] : memref<1x128xf32, #tpu.memory_space<vmem>>, vector<1x128xf32>
    %5 = vector.broadcast %4 : vector<1x128xf32> to vector<64x128xf32>
    %6 = arith.addf %3, %5 : vector<64x128xf32>
    %cst_6 = arith.constant 0.000000e+00 : f32
    %7 = vector.broadcast %cst_6 : f32 to vector<64x128xf32>
    %8 = arith.maximumf %6, %7 : vector<64x128xf32>
    %9 = vector.extract_strided_slice %8 {offsets = [0, 0], sizes = [8, 128], strides = [1, 1]} : vector<64x128xf32> to vector<8x128xf32>
    %10 = vector.extract_strided_slice %8 {offsets = [8, 0], sizes = [8, 128], strides = [1, 1]} : vector<64x128xf32> to vector<8x128xf32>
    %11 = arith.maximumf %9, %10 : vector<8x128xf32>
    %12 = vector.extract_strided_slice %8 {offsets = [8, 0], sizes = [8, 128], strides = [1, 1]} : vector<64x128xf32> to vector<8x128xf32>
    %13 = vector.extract_strided_slice %8 {offsets = [16, 0], sizes = [8, 128], strides = [1, 1]} : vector<64x128xf32> to vector<8x128xf32>
    %14 = arith.maximumf %12, %13 : vector<8x128xf32>
    %15 = vector.extract_strided_slice %8 {offsets = [24, 0], sizes = [8, 128], strides = [1, 1]} : vector<64x128xf32> to vector<8x128xf32>
    %16 = arith.maximumf %14, %15 : vector<8x128xf32>
    %17 = vector.extract_strided_slice %8 {offsets = [24, 0], sizes = [8, 128], strides = [1, 1]} : vector<64x128xf32> to vector<8x128xf32>
    %18 = vector.extract_strided_slice %8 {offsets = [32, 0], sizes = [8, 128], strides = [1, 1]} : vector<64x128xf32> to vector<8x128xf32>
    %19 = arith.maximumf %17, %18 : vector<8x128xf32>
    %20 = vector.extract_strided_slice %8 {offsets = [40, 0], sizes = [8, 128], strides = [1, 1]} : vector<64x128xf32> to vector<8x128xf32>
    %21 = arith.maximumf %19, %20 : vector<8x128xf32>
    %22 = vector.extract_strided_slice %8 {offsets = [40, 0], sizes = [8, 128], strides = [1, 1]} : vector<64x128xf32> to vector<8x128xf32>
    %23 = vector.extract_strided_slice %8 {offsets = [48, 0], sizes = [8, 128], strides = [1, 1]} : vector<64x128xf32> to vector<8x128xf32>
    %24 = arith.maximumf %22, %23 : vector<8x128xf32>
    %25 = vector.extract_strided_slice %8 {offsets = [56, 0], sizes = [8, 128], strides = [1, 1]} : vector<64x128xf32> to vector<8x128xf32>
    %26 = arith.maximumf %24, %25 : vector<8x128xf32>
    %27 = vector.extract_strided_slice %11 {offsets = [0, 0], sizes = [1, 128], strides = [1, 1]} : vector<8x128xf32> to vector<1x128xf32>
    %28 = vector.extract_strided_slice %11 {offsets = [1, 0], sizes = [1, 128], strides = [1, 1]} : vector<8x128xf32> to vector<1x128xf32>
    %29 = arith.maximumf %27, %28 : vector<1x128xf32>
    %30 = vector.extract_strided_slice %11 {offsets = [1, 0], sizes = [1, 128], strides = [1, 1]} : vector<8x128xf32> to vector<1x128xf32>
    %31 = vector.extract_strided_slice %11 {offsets = [2, 0], sizes = [1, 128], strides = [1, 1]} : vector<8x128xf32> to vector<1x128xf32>
    %32 = arith.maximumf %30, %31 : vector<1x128xf32>
    %33 = vector.extract_strided_slice %11 {offsets = [3, 0], sizes = [1, 128], strides = [1, 1]} : vector<8x128xf32> to vector<1x128xf32>
    %34 = arith.maximumf %32, %33 : vector<1x128xf32>
    %35 = vector.extract_strided_slice %11 {offsets = [3, 0], sizes = [1, 128], strides = [1, 1]} : vector<8x128xf32> to vector<1x128xf32>
    %36 = vector.extract_strided_slice %11 {offsets = [4, 0], sizes = [1, 128], strides = [1, 1]} : vector<8x128xf32> to vector<1x128xf32>
    %37 = arith.maximumf %35, %36 : vector<1x128xf32>
    %38 = vector.extract_strided_slice %11 {offsets = [5, 0], sizes = [1, 128], strides = [1, 1]} : vector<8x128xf32> to vector<1x128xf32>
    %39 = arith.maximumf %37, %38 : vector<1x128xf32>
    %40 = vector.extract_strided_slice %11 {offsets = [5, 0], sizes = [1, 128], strides = [1, 1]} : vector<8x128xf32> to vector<1x128xf32>
    %41 = vector.extract_strided_slice %11 {offsets = [6, 0], sizes = [1, 128], strides = [1, 1]} : vector<8x128xf32> to vector<1x128xf32>
    %42 = arith.maximumf %40, %41 : vector<1x128xf32>
    %43 = vector.extract_strided_slice %11 {offsets = [7, 0], sizes = [1, 128], strides = [1, 1]} : vector<8x128xf32> to vector<1x128xf32>
    %44 = arith.maximumf %42, %43 : vector<1x128xf32>
    %45 = tpu.concatenate %29, %34, %39, %44 in 0 : vector<1x128xf32>, vector<1x128xf32>, vector<1x128xf32>, vector<1x128xf32> -> vector<4x128xf32>
    %46 = vector.extract_strided_slice %16 {offsets = [0, 0], sizes = [1, 128], strides = [1, 1]} : vector<8x128xf32> to vector<1x128xf32>
    %47 = vector.extract_strided_slice %16 {offsets = [1, 0], sizes = [1, 128], strides = [1, 1]} : vector<8x128xf32> to vector<1x128xf32>
    %48 = arith.maximumf %46, %47 : vector<1x128xf32>
    %49 = vector.extract_strided_slice %16 {offsets = [1, 0], sizes = [1, 128], strides = [1, 1]} : vector<8x128xf32> to vector<1x128xf32>
    %50 = vector.extract_strided_slice %16 {offsets = [2, 0], sizes = [1, 128], strides = [1, 1]} : vector<8x128xf32> to vector<1x128xf32>
    %51 = arith.maximumf %49, %50 : vector<1x128xf32>
    %52 = vector.extract_strided_slice %16 {offsets = [3, 0], sizes = [1, 128], strides = [1, 1]} : vector<8x128xf32> to vector<1x128xf32>
    %53 = arith.maximumf %51, %52 : vector<1x128xf32>
    %54 = vector.extract_strided_slice %16 {offsets = [3, 0], sizes = [1, 128], strides = [1, 1]} : vector<8x128xf32> to vector<1x128xf32>
    %55 = vector.extract_strided_slice %16 {offsets = [4, 0], sizes = [1, 128], strides = [1, 1]} : vector<8x128xf32> to vector<1x128xf32>
    %56 = arith.maximumf %54, %55 : vector<1x128xf32>
    %57 = vector.extract_strided_slice %16 {offsets = [5, 0], sizes = [1, 128], strides = [1, 1]} : vector<8x128xf32> to vector<1x128xf32>
    %58 = arith.maximumf %56, %57 : vector<1x128xf32>
    %59 = vector.extract_strided_slice %16 {offsets = [5, 0], sizes = [1, 128], strides = [1, 1]} : vector<8x128xf32> to vector<1x128xf32>
    %60 = vector.extract_strided_slice %16 {offsets = [6, 0], sizes = [1, 128], strides = [1, 1]} : vector<8x128xf32> to vector<1x128xf32>
    %61 = arith.maximumf %59, %60 : vector<1x128xf32>
    %62 = vector.extract_strided_slice %16 {offsets = [7, 0], sizes = [1, 128], strides = [1, 1]} : vector<8x128xf32> to vector<1x128xf32>
    %63 = arith.maximumf %61, %62 : vector<1x128xf32>
    %64 = tpu.concatenate %48, %53, %58, %63 in 0 : vector<1x128xf32>, vector<1x128xf32>, vector<1x128xf32>, vector<1x128xf32> -> vector<4x128xf32>
    %65 = vector.extract_strided_slice %21 {offsets = [0, 0], sizes = [1, 128], strides = [1, 1]} : vector<8x128xf32> to vector<1x128xf32>
    %66 = vector.extract_strided_slice %21 {offsets = [1, 0], sizes = [1, 128], strides = [1, 1]} : vector<8x128xf32> to vector<1x128xf32>
    %67 = arith.maximumf %65, %66 : vector<1x128xf32>
    %68 = vector.extract_strided_slice %21 {offsets = [1, 0], sizes = [1, 128], strides = [1, 1]} : vector<8x128xf32> to vector<1x128xf32>
    %69 = vector.extract_strided_slice %21 {offsets = [2, 0], sizes = [1, 128], strides = [1, 1]} : vector<8x128xf32> to vector<1x128xf32>
    %70 = arith.maximumf %68, %69 : vector<1x128xf32>
    %71 = vector.extract_strided_slice %21 {offsets = [3, 0], sizes = [1, 128], strides = [1, 1]} : vector<8x128xf32> to vector<1x128xf32>
    %72 = arith.maximumf %70, %71 : vector<1x128xf32>
    %73 = vector.extract_strided_slice %21 {offsets = [3, 0], sizes = [1, 128], strides = [1, 1]} : vector<8x128xf32> to vector<1x128xf32>
    %74 = vector.extract_strided_slice %21 {offsets = [4, 0], sizes = [1, 128], strides = [1, 1]} : vector<8x128xf32> to vector<1x128xf32>
    %75 = arith.maximumf %73, %74 : vector<1x128xf32>
    %76 = vector.extract_strided_slice %21 {offsets = [5, 0], sizes = [1, 128], strides = [1, 1]} : vector<8x128xf32> to vector<1x128xf32>
    %77 = arith.maximumf %75, %76 : vector<1x128xf32>
    %78 = vector.extract_strided_slice %21 {offsets = [5, 0], sizes = [1, 128], strides = [1, 1]} : vector<8x128xf32> to vector<1x128xf32>
    %79 = vector.extract_strided_slice %21 {offsets = [6, 0], sizes = [1, 128], strides = [1, 1]} : vector<8x128xf32> to vector<1x128xf32>
    %80 = arith.maximumf %78, %79 : vector<1x128xf32>
    %81 = vector.extract_strided_slice %21 {offsets = [7, 0], sizes = [1, 128], strides = [1, 1]} : vector<8x128xf32> to vector<1x128xf32>
    %82 = arith.maximumf %80, %81 : vector<1x128xf32>
    %83 = tpu.concatenate %67, %72, %77, %82 in 0 : vector<1x128xf32>, vector<1x128xf32>, vector<1x128xf32>, vector<1x128xf32> -> vector<4x128xf32>
    %84 = vector.extract_strided_slice %26 {offsets = [0, 0], sizes = [1, 128], strides = [1, 1]} : vector<8x128xf32> to vector<1x128xf32>
    %85 = vector.extract_strided_slice %26 {offsets = [1, 0], sizes = [1, 128], strides = [1, 1]} : vector<8x128xf32> to vector<1x128xf32>
    %86 = arith.maximumf %84, %85 : vector<1x128xf32>
    %87 = vector.extract_strided_slice %26 {offsets = [1, 0], sizes = [1, 128], strides = [1, 1]} : vector<8x128xf32> to vector<1x128xf32>
    %88 = vector.extract_strided_slice %26 {offsets = [2, 0], sizes = [1, 128], strides = [1, 1]} : vector<8x128xf32> to vector<1x128xf32>
    %89 = arith.maximumf %87, %88 : vector<1x128xf32>
    %90 = vector.extract_strided_slice %26 {offsets = [3, 0], sizes = [1, 128], strides = [1, 1]} : vector<8x128xf32> to vector<1x128xf32>
    %91 = arith.maximumf %89, %90 : vector<1x128xf32>
    %92 = vector.extract_strided_slice %26 {offsets = [3, 0], sizes = [1, 128], strides = [1, 1]} : vector<8x128xf32> to vector<1x128xf32>
    %93 = vector.extract_strided_slice %26 {offsets = [4, 0], sizes = [1, 128], strides = [1, 1]} : vector<8x128xf32> to vector<1x128xf32>
    %94 = arith.maximumf %92, %93 : vector<1x128xf32>
    %95 = vector.extract_strided_slice %26 {offsets = [5, 0], sizes = [1, 128], strides = [1, 1]} : vector<8x128xf32> to vector<1x128xf32>
    %96 = arith.maximumf %94, %95 : vector<1x128xf32>
    %97 = vector.extract_strided_slice %26 {offsets = [5, 0], sizes = [1, 128], strides = [1, 1]} : vector<8x128xf32> to vector<1x128xf32>
    %98 = vector.extract_strided_slice %26 {offsets = [6, 0], sizes = [1, 128], strides = [1, 1]} : vector<8x128xf32> to vector<1x128xf32>
    %99 = arith.maximumf %97, %98 : vector<1x128xf32>
    %100 = vector.extract_strided_slice %26 {offsets = [7, 0], sizes = [1, 128], strides = [1, 1]} : vector<8x128xf32> to vector<1x128xf32>
    %101 = arith.maximumf %99, %100 : vector<1x128xf32>
    %102 = tpu.concatenate %86, %91, %96, %101 in 0 : vector<1x128xf32>, vector<1x128xf32>, vector<1x128xf32>, vector<1x128xf32> -> vector<4x128xf32>
    %103 = tpu.concatenate %45, %64, %83, %102 in 0 : vector<4x128xf32>, vector<4x128xf32>, vector<4x128xf32>, vector<4x128xf32> -> vector<16x128xf32>
    %cst_7 = arith.constant 0.000000e+00 : f32
    %104 = vector.broadcast %cst_7 : f32 to vector<36x128xf32>
    %c0_8 = arith.constant 0 : index
    %c0_9 = arith.constant 0 : index
    %105 = vector.load %arg21[%c0_8, %c0_9] : memref<36x128xf32, #tpu.memory_space<vmem>>, vector<36x128xf32>
    tpu.vector_store %arg21[%c0_8, %c0_9], %104 {strides = array<i32>} : memref<36x128xf32, #tpu.memory_space<vmem>>, vector<36x128xf32>,
    %106 = vector.extract_strided_slice %103 {offsets = [0, 0], sizes = [4, 128], strides = [1, 1]} : vector<16x128xf32> to vector<4x128xf32>
    %c7 = arith.constant 7 : index
    %c0_10 = arith.constant 0 : index
    %107 = vector.load %arg21[%c7, %c0_10] : memref<36x128xf32, #tpu.memory_space<vmem>>, vector<4x128xf32>
    tpu.vector_store %arg21[%c7, %c0_10], %106 {strides = array<i32>} : memref<36x128xf32, #tpu.memory_space<vmem>>, vector<4x128xf32>,
    %108 = vector.extract_strided_slice %103 {offsets = [4, 0], sizes = [4, 128], strides = [1, 1]} : vector<16x128xf32> to vector<4x128xf32>
    %c13 = arith.constant 13 : index
    %c0_11 = arith.constant 0 : index
    %109 = vector.load %arg21[%c13, %c0_11] : memref<36x128xf32, #tpu.memory_space<vmem>>, vector<4x128xf32>
    tpu.vector_store %arg21[%c13, %c0_11], %108 {strides = array<i32>} : memref<36x128xf32, #tpu.memory_space<vmem>>, vector<4x128xf32>,
    %110 = vector.extract_strided_slice %103 {offsets = [8, 0], sizes = [4, 128], strides = [1, 1]} : vector<16x128xf32> to vector<4x128xf32>
    %c19 = arith.constant 19 : index
    %c0_12 = arith.constant 0 : index
    %111 = vector.load %arg21[%c19, %c0_12] : memref<36x128xf32, #tpu.memory_space<vmem>>, vector<4x128xf32>
    tpu.vector_store %arg21[%c19, %c0_12], %110 {strides = array<i32>} : memref<36x128xf32, #tpu.memory_space<vmem>>, vector<4x128xf32>,
    %112 = vector.extract_strided_slice %103 {offsets = [12, 0], sizes = [4, 128], strides = [1, 1]} : vector<16x128xf32> to vector<4x128xf32>
    %c25 = arith.constant 25 : index
    %c0_13 = arith.constant 0 : index
    %113 = vector.load %arg21[%c25, %c0_13] : memref<36x128xf32, #tpu.memory_space<vmem>>, vector<4x128xf32>
    tpu.vector_store %arg21[%c25, %c0_13], %112 {strides = array<i32>} : memref<36x128xf32, #tpu.memory_space<vmem>>, vector<4x128xf32>,
    %c0_14 = arith.constant 0 : index
    %c0_15 = arith.constant 0 : index
    %114 = vector.load %arg21[%c0_14, %c0_15] : memref<36x128xf32, #tpu.memory_space<vmem>>, vector<22x128xf32>
    %115 = arith.truncf %114 : vector<22x128xf32> to vector<22x128xbf16>
    %c0_16 = arith.constant 0 : index
    %c0_17 = arith.constant 0 : index
    %116 = vector.load %arg4[%c0_16, %c0_17] : memref<1152x128xbf16, #tpu.memory_space<vmem>>, vector<128x128xbf16>
    %cst_18 = arith.constant dense<0.000000e+00> : vector<22x128xf32>
    %117 = tpu.matmul %115, %116, %cst_18 {dimension_numbers = #tpu.dot_dimension_numbers<[1], [0], [0], [1], [0, 0, 1, 1], [], []>} : vector<22x128xbf16>, vector<128x128xbf16>, vector<22x128xf32> -> vector<22x128xf32>
    %c1 = arith.constant 1 : index
    %c0_19 = arith.constant 0 : index
    %118 = vector.load %arg21[%c1, %c0_19] : memref<36x128xf32, #tpu.memory_space<vmem>>, vector<22x128xf32>
    %119 = arith.truncf %118 : vector<22x128xf32> to vector<22x128xbf16>
    %c128 = arith.constant 128 : index
    %c0_20 = arith.constant 0 : index
    %120 = vector.load %arg4[%c128, %c0_20] : memref<1152x128xbf16, #tpu.memory_space<vmem>>, vector<128x128xbf16>
    %cst_21 = arith.constant dense<0.000000e+00> : vector<22x128xf32>
    %121 = tpu.matmul %119, %120, %cst_21 {dimension_numbers = #tpu.dot_dimension_numbers<[1], [0], [0], [1], [0, 0, 1, 1], [], []>} : vector<22x128xbf16>, vector<128x128xbf16>, vector<22x128xf32> -> vector<22x128xf32>
    %122 = arith.addf %117, %121 : vector<22x128xf32>
    %c2 = arith.constant 2 : index
    %c0_22 = arith.constant 0 : index
    %123 = vector.load %arg21[%c2, %c0_22] : memref<36x128xf32, #tpu.memory_space<vmem>>, vector<22x128xf32>
    %124 = arith.truncf %123 : vector<22x128xf32> to vector<22x128xbf16>
    %c256 = arith.constant 256 : index
    %c0_23 = arith.constant 0 : index
    %125 = vector.load %arg4[%c256, %c0_23] : memref<1152x128xbf16, #tpu.memory_space<vmem>>, vector<128x128xbf16>
    %cst_24 = arith.constant dense<0.000000e+00> : vector<22x128xf32>
    %126 = tpu.matmul %124, %125, %cst_24 {dimension_numbers = #tpu.dot_dimension_numbers<[1], [0], [0], [1], [0, 0, 1, 1], [], []>} : vector<22x128xbf16>, vector<128x128xbf16>, vector<22x128xf32> -> vector<22x128xf32>
    %127 = arith.addf %122, %126 : vector<22x128xf32>
    %c6 = arith.constant 6 : index
    %c0_25 = arith.constant 0 : index
    %128 = vector.load %arg21[%c6, %c0_25] : memref<36x128xf32, #tpu.memory_space<vmem>>, vector<22x128xf32>
    %129 = arith.truncf %128 : vector<22x128xf32> to vector<22x128xbf16>
    %c384 = arith.constant 384 : index
    %c0_26 = arith.constant 0 : index
    %130 = vector.load %arg4[%c384, %c0_26] : memref<1152x128xbf16, #tpu.memory_space<vmem>>, vector<128x128xbf16>
    %cst_27 = arith.constant dense<0.000000e+00> : vector<22x128xf32>
    %131 = tpu.matmul %129, %130, %cst_27 {dimension_numbers = #tpu.dot_dimension_numbers<[1], [0], [0], [1], [0, 0, 1, 1], [], []>} : vector<22x128xbf16>, vector<128x128xbf16>, vector<22x128xf32> -> vector<22x128xf32>
    %132 = arith.addf %127, %131 : vector<22x128xf32>
    %c7_28 = arith.constant 7 : index
    %c0_29 = arith.constant 0 : index
    %133 = vector.load %arg21[%c7_28, %c0_29] : memref<36x128xf32, #tpu.memory_space<vmem>>, vector<22x128xf32>
    %134 = arith.truncf %133 : vector<22x128xf32> to vector<22x128xbf16>
    %c512 = arith.constant 512 : index
    %c0_30 = arith.constant 0 : index
    %135 = vector.load %arg4[%c512, %c0_30] : memref<1152x128xbf16, #tpu.memory_space<vmem>>, vector<128x128xbf16>
    %cst_31 = arith.constant dense<0.000000e+00> : vector<22x128xf32>
    %136 = tpu.matmul %134, %135, %cst_31 {dimension_numbers = #tpu.dot_dimension_numbers<[1], [0], [0], [1], [0, 0, 1, 1], [], []>} : vector<22x128xbf16>, vector<128x128xbf16>, vector<22x128xf32> -> vector<22x128xf32>
    %137 = arith.addf %132, %136 : vector<22x128xf32>
    %c8 = arith.constant 8 : index
    %c0_32 = arith.constant 0 : index
    %138 = vector.load %arg21[%c8, %c0_32] : memref<36x128xf32, #tpu.memory_space<vmem>>, vector<22x128xf32>
    %139 = arith.truncf %138 : vector<22x128xf32> to vector<22x128xbf16>
    %c640 = arith.constant 640 : index
    %c0_33 = arith.constant 0 : index
    %140 = vector.load %arg4[%c640, %c0_33] : memref<1152x128xbf16, #tpu.memory_space<vmem>>, vector<128x128xbf16>
    %cst_34 = arith.constant dense<0.000000e+00> : vector<22x128xf32>
    %141 = tpu.matmul %139, %140, %cst_34 {dimension_numbers = #tpu.dot_dimension_numbers<[1], [0], [0], [1], [0, 0, 1, 1], [], []>} : vector<22x128xbf16>, vector<128x128xbf16>, vector<22x128xf32> -> vector<22x128xf32>
    %142 = arith.addf %137, %141 : vector<22x128xf32>
    %c12 = arith.constant 12 : index
    %c0_35 = arith.constant 0 : index
    %143 = vector.load %arg21[%c12, %c0_35] : memref<36x128xf32, #tpu.memory_space<vmem>>, vector<22x128xf32>
    %144 = arith.truncf %143 : vector<22x128xf32> to vector<22x128xbf16>
    %c768 = arith.constant 768 : index
    %c0_36 = arith.constant 0 : index
    %145 = vector.load %arg4[%c768, %c0_36] : memref<1152x128xbf16, #tpu.memory_space<vmem>>, vector<128x128xbf16>
    %cst_37 = arith.constant dense<0.000000e+00> : vector<22x128xf32>
    %146 = tpu.matmul %144, %145, %cst_37 {dimension_numbers = #tpu.dot_dimension_numbers<[1], [0], [0], [1], [0, 0, 1, 1], [], []>} : vector<22x128xbf16>, vector<128x128xbf16>, vector<22x128xf32> -> vector<22x128xf32>
    %147 = arith.addf %142, %146 : vector<22x128xf32>
    %c13_38 = arith.constant 13 : index
    %c0_39 = arith.constant 0 : index
    %148 = vector.load %arg21[%c13_38, %c0_39] : memref<36x128xf32, #tpu.memory_space<vmem>>, vector<22x128xf32>
    %149 = arith.truncf %148 : vector<22x128xf32> to vector<22x128xbf16>
    %c896 = arith.constant 896 : index
    %c0_40 = arith.constant 0 : index
    %150 = vector.load %arg4[%c896, %c0_40] : memref<1152x128xbf16, #tpu.memory_space<vmem>>, vector<128x128xbf16>
    %cst_41 = arith.constant dense<0.000000e+00> : vector<22x128xf32>
    %151 = tpu.matmul %149, %150, %cst_41 {dimension_numbers = #tpu.dot_dimension_numbers<[1], [0], [0], [1], [0, 0, 1, 1], [], []>} : vector<22x128xbf16>, vector<128x128xbf16>, vector<22x128xf32> -> vector<22x128xf32>
    %152 = arith.addf %147, %151 : vector<22x128xf32>
    %c14 = arith.constant 14 : index
    %c0_42 = arith.constant 0 : index
    %153 = vector.load %arg21[%c14, %c0_42] : memref<36x128xf32, #tpu.memory_space<vmem>>, vector<22x128xf32>
    %154 = arith.truncf %153 : vector<22x128xf32> to vector<22x128xbf16>
    %c1024 = arith.constant 1024 : index
    %c0_43 = arith.constant 0 : index
    %155 = vector.load %arg4[%c1024, %c0_43] : memref<1152x128xbf16, #tpu.memory_space<vmem>>, vector<128x128xbf16>
    %cst_44 = arith.constant dense<0.000000e+00> : vector<22x128xf32>
    %156 = tpu.matmul %154, %155, %cst_44 {dimension_numbers = #tpu.dot_dimension_numbers<[1], [0], [0], [1], [0, 0, 1, 1], [], []>} : vector<22x128xbf16>, vector<128x128xbf16>, vector<22x128xf32> -> vector<22x128xf32>
    %157 = arith.addf %152, %156 : vector<22x128xf32>
    %158 = vector.extract_strided_slice %157 {offsets = [0, 0], sizes = [4, 128], strides = [1, 1]} : vector<22x128xf32> to vector<4x128xf32>
    %159 = vector.extract_strided_slice %157 {offsets = [6, 0], sizes = [4, 128], strides = [1, 1]} : vector<22x128xf32> to vector<4x128xf32>
    %160 = vector.extract_strided_slice %157 {offsets = [12, 0], sizes = [4, 128], strides = [1, 1]} : vector<22x128xf32> to vector<4x128xf32>
    %161 = vector.extract_strided_slice %157 {offsets = [18, 0], sizes = [4, 128], strides = [1, 1]} : vector<22x128xf32> to vector<4x128xf32>
    %162 = tpu.concatenate %158, %159, %160, %161 in 0 : vector<4x128xf32>, vector<4x128xf32>, vector<4x128xf32>, vector<4x128xf32> -> vector<16x128xf32>
    %c0_45 = arith.constant 0 : index
    %c0_46 = arith.constant 0 : index
    %163 = vector.load %arg5[%c0_45, %c0_46] : memref<1x128xf32, #tpu.memory_space<vmem>>, vector<1x128xf32>
    %164 = vector.broadcast %163 : vector<1x128xf32> to vector<16x128xf32>
    %165 = arith.addf %162, %164 : vector<16x128xf32>
    %cst_47 = arith.constant 0.000000e+00 : f32
    %166 = vector.broadcast %cst_47 : f32 to vector<16x128xf32>
    %167 = arith.maximumf %165, %166 : vector<16x128xf32>
    %cst_48 = arith.constant 0.000000e+00 : f32
    %168 = vector.broadcast %cst_48 : f32 to vector<36x128xf32>
    %c0_49 = arith.constant 0 : index
    %c0_50 = arith.constant 0 : index
    %169 = vector.load %arg22[%c0_49, %c0_50] : memref<36x128xf32, #tpu.memory_space<vmem>>, vector<36x128xf32>
    tpu.vector_store %arg22[%c0_49, %c0_50], %168 {strides = array<i32>} : memref<36x128xf32, #tpu.memory_space<vmem>>, vector<36x128xf32>,
    %170 = vector.extract_strided_slice %167 {offsets = [0, 0], sizes = [4, 128], strides = [1, 1]} : vector<16x128xf32> to vector<4x128xf32>
    %c7_51 = arith.constant 7 : index
    %c0_52 = arith.constant 0 : index
    %171 = vector.load %arg22[%c7_51, %c0_52] : memref<36x128xf32, #tpu.memory_space<vmem>>, vector<4x128xf32>
    tpu.vector_store %arg22[%c7_51, %c0_52], %170 {strides = array<i32>} : memref<36x128xf32, #tpu.memory_space<vmem>>, vector<4x128xf32>,
    %172 = vector.extract_strided_slice %167 {offsets = [4, 0], sizes = [4, 128], strides = [1, 1]} : vector<16x128xf32> to vector<4x128xf32>
    %c13_53 = arith.constant 13 : index
    %c0_54 = arith.constant 0 : index
    %173 = vector.load %arg22[%c13_53, %c0_54] : memref<36x128xf32, #tpu.memory_space<vmem>>, vector<4x128xf32>
    tpu.vector_store %arg22[%c13_53, %c0_54], %172 {strides = array<i32>} : memref<36x128xf32, #tpu.memory_space<vmem>>, vector<4x128xf32>,
    %174 = vector.extract_strided_slice %167 {offsets = [8, 0], sizes = [4, 128], strides = [1, 1]} : vector<16x128xf32> to vector<4x128xf32>
    %c19_55 = arith.constant 19 : index
    %c0_56 = arith.constant 0 : index
    %175 = vector.load %arg22[%c19_55, %c0_56] : memref<36x128xf32, #tpu.memory_space<vmem>>, vector<4x128xf32>
    tpu.vector_store %arg22[%c19_55, %c0_56], %174 {strides = array<i32>} : memref<36x128xf32, #tpu.memory_space<vmem>>, vector<4x128xf32>,
    %176 = vector.extract_strided_slice %167 {offsets = [12, 0], sizes = [4, 128], strides = [1, 1]} : vector<16x128xf32> to vector<4x128xf32>
    %c25_57 = arith.constant 25 : index
    %c0_58 = arith.constant 0 : index
    %177 = vector.load %arg22[%c25_57, %c0_58] : memref<36x128xf32, #tpu.memory_space<vmem>>, vector<4x128xf32>
    tpu.vector_store %arg22[%c25_57, %c0_58], %176 {strides = array<i32>} : memref<36x128xf32, #tpu.memory_space<vmem>>, vector<4x128xf32>,
    %c0_59 = arith.constant 0 : index
    %c0_60 = arith.constant 0 : index
    %178 = vector.load %arg22[%c0_59, %c0_60] : memref<36x128xf32, #tpu.memory_space<vmem>>, vector<22x128xf32>
    %179 = arith.truncf %178 : vector<22x128xf32> to vector<22x128xbf16>
    %c0_61 = arith.constant 0 : index
    %c0_62 = arith.constant 0 : index
    %180 = vector.load %arg6[%c0_61, %c0_62] : memref<1152x128xbf16, #tpu.memory_space<vmem>>, vector<128x128xbf16>
    %cst_63 = arith.constant dense<0.000000e+00> : vector<22x128xf32>
    %181 = tpu.matmul %179, %180, %cst_63 {dimension_numbers = #tpu.dot_dimension_numbers<[1], [0], [0], [1], [0, 0, 1, 1], [], []>} : vector<22x128xbf16>, vector<128x128xbf16>, vector<22x128xf32> -> vector<22x128xf32>
    %c1_64 = arith.constant 1 : index
    %c0_65 = arith.constant 0 : index
    %182 = vector.load %arg22[%c1_64, %c0_65] : memref<36x128xf32, #tpu.memory_space<vmem>>, vector<22x128xf32>
    %183 = arith.truncf %182 : vector<22x128xf32> to vector<22x128xbf16>
    %c128_66 = arith.constant 128 : index
    %c0_67 = arith.constant 0 : index
    %184 = vector.load %arg6[%c128_66, %c0_67] : memref<1152x128xbf16, #tpu.memory_space<vmem>>, vector<128x128xbf16>
    %cst_68 = arith.constant dense<0.000000e+00> : vector<22x128xf32>
    %185 = tpu.matmul %183, %184, %cst_68 {dimension_numbers = #tpu.dot_dimension_numbers<[1], [0], [0], [1], [0, 0, 1, 1], [], []>} : vector<22x128xbf16>, vector<128x128xbf16>, vector<22x128xf32> -> vector<22x128xf32>
    %186 = arith.addf %181, %185 : vector<22x128xf32>
    %c2_69 = arith.constant 2 : index
    %c0_70 = arith.constant 0 : index
    %187 = vector.load %arg22[%c2_69, %c0_70] : memref<36x128xf32, #tpu.memory_space<vmem>>, vector<22x128xf32>
    %188 = arith.truncf %187 : vector<22x128xf32> to vector<22x128xbf16>
    %c256_71 = arith.constant 256 : index
    %c0_72 = arith.constant 0 : index
    %189 = vector.load %arg6[%c256_71, %c0_72] : memref<1152x128xbf16, #tpu.memory_space<vmem>>, vector<128x128xbf16>
    %cst_73 = arith.constant dense<0.000000e+00> : vector<22x128xf32>
    %190 = tpu.matmul %188, %189, %cst_73 {dimension_numbers = #tpu.dot_dimension_numbers<[1], [0], [0], [1], [0, 0, 1, 1], [], []>} : vector<22x128xbf16>, vector<128x128xbf16>, vector<22x128xf32> -> vector<22x128xf32>
    %191 = arith.addf %186, %190 : vector<22x128xf32>
    %c6_74 = arith.constant 6 : index
    %c0_75 = arith.constant 0 : index
    %192 = vector.load %arg22[%c6_74, %c0_75] : memref<36x128xf32, #tpu.memory_space<vmem>>, vector<22x128xf32>
    %193 = arith.truncf %192 : vector<22x128xf32> to vector<22x128xbf16>
    %c384_76 = arith.constant 384 : index
    %c0_77 = arith.constant 0 : index
    %194 = vector.load %arg6[%c384_76, %c0_77] : memref<1152x128xbf16, #tpu.memory_space<vmem>>, vector<128x128xbf16>
    %cst_78 = arith.constant dense<0.000000e+00> : vector<22x128xf32>
    %195 = tpu.matmul %193, %194, %cst_78 {dimension_numbers = #tpu.dot_dimension_numbers<[1], [0], [0], [1], [0, 0, 1, 1], [], []>} : vector<22x128xbf16>, vector<128x128xbf16>, vector<22x128xf32> -> vector<22x128xf32>
    %196 = arith.addf %191, %195 : vector<22x128xf32>
    %c7_79 = arith.constant 7 : index
    %c0_80 = arith.constant 0 : index
    %197 = vector.load %arg22[%c7_79, %c0_80] : memref<36x128xf32, #tpu.memory_space<vmem>>, vector<22x128xf32>
    %198 = arith.truncf %197 : vector<22x128xf32> to vector<22x128xbf16>
    %c512_81 = arith.constant 512 : index
    %c0_82 = arith.constant 0 : index
    %199 = vector.load %arg6[%c512_81, %c0_82] : memref<1152x128xbf16, #tpu.memory_space<vmem>>, vector<128x128xbf16>
    %cst_83 = arith.constant dense<0.000000e+00> : vector<22x128xf32>
    %200 = tpu.matmul %198, %199, %cst_83 {dimension_numbers = #tpu.dot_dimension_numbers<[1], [0], [0], [1], [0, 0, 1, 1], [], []>} : vector<22x128xbf16>, vector<128x128xbf16>, vector<22x128xf32> -> vector<22x128xf32>
    %201 = arith.addf %196, %200 : vector<22x128xf32>
    %c8_84 = arith.constant 8 : index
    %c0_85 = arith.constant 0 : index
    %202 = vector.load %arg22[%c8_84, %c0_85] : memref<36x128xf32, #tpu.memory_space<vmem>>, vector<22x128xf32>
    %203 = arith.truncf %202 : vector<22x128xf32> to vector<22x128xbf16>
    %c640_86 = arith.constant 640 : index
    %c0_87 = arith.constant 0 : index
    %204 = vector.load %arg6[%c640_86, %c0_87] : memref<1152x128xbf16, #tpu.memory_space<vmem>>, vector<128x128xbf16>
    %cst_88 = arith.constant dense<0.000000e+00> : vector<22x128xf32>
    %205 = tpu.matmul %203, %204, %cst_88 {dimension_numbers = #tpu.dot_dimension_numbers<[1], [0], [0], [1], [0, 0, 1, 1], [], []>} : vector<22x128xbf16>, vector<128x128xbf16>, vector<22x128xf32> -> vector<22x128xf32>
    %206 = arith.addf %201, %205 : vector<22x128xf32>
    %c12_89 = arith.constant 12 : index
    %c0_90 = arith.constant 0 : index
    %207 = vector.load %arg22[%c12_89, %c0_90] : memref<36x128xf32, #tpu.memory_space<vmem>>, vector<22x128xf32>
    %208 = arith.truncf %207 : vector<22x128xf32> to vector<22x128xbf16>
    %c768_91 = arith.constant 768 : index
    %c0_92 = arith.constant 0 : index
    %209 = vector.load %arg6[%c768_91, %c0_92] : memref<1152x128xbf16, #tpu.memory_space<vmem>>, vector<128x128xbf16>
    %cst_93 = arith.constant dense<0.000000e+00> : vector<22x128xf32>
    %210 = tpu.matmul %208, %209, %cst_93 {dimension_numbers = #tpu.dot_dimension_numbers<[1], [0], [0], [1], [0, 0, 1, 1], [], []>} : vector<22x128xbf16>, vector<128x128xbf16>, vector<22x128xf32> -> vector<22x128xf32>
    %211 = arith.addf %206, %210 : vector<22x128xf32>
    %c13_94 = arith.constant 13 : index
    %c0_95 = arith.constant 0 : index
    %212 = vector.load %arg22[%c13_94, %c0_95] : memref<36x128xf32, #tpu.memory_space<vmem>>, vector<22x128xf32>
    %213 = arith.truncf %212 : vector<22x128xf32> to vector<22x128xbf16>
    %c896_96 = arith.constant 896 : index
    %c0_97 = arith.constant 0 : index
    %214 = vector.load %arg6[%c896_96, %c0_97] : memref<1152x128xbf16, #tpu.memory_space<vmem>>, vector<128x128xbf16>
    %cst_98 = arith.constant dense<0.000000e+00> : vector<22x128xf32>
    %215 = tpu.matmul %213, %214, %cst_98 {dimension_numbers = #tpu.dot_dimension_numbers<[1], [0], [0], [1], [0, 0, 1, 1], [], []>} : vector<22x128xbf16>, vector<128x128xbf16>, vector<22x128xf32> -> vector<22x128xf32>
    %216 = arith.addf %211, %215 : vector<22x128xf32>
    %c14_99 = arith.constant 14 : index
    %c0_100 = arith.constant 0 : index
    %217 = vector.load %arg22[%c14_99, %c0_100] : memref<36x128xf32, #tpu.memory_space<vmem>>, vector<22x128xf32>
    %218 = arith.truncf %217 : vector<22x128xf32> to vector<22x128xbf16>
    %c1024_101 = arith.constant 1024 : index
    %c0_102 = arith.constant 0 : index
    %219 = vector.load %arg6[%c1024_101, %c0_102] : memref<1152x128xbf16, #tpu.memory_space<vmem>>, vector<128x128xbf16>
    %cst_103 = arith.constant dense<0.000000e+00> : vector<22x128xf32>
    %220 = tpu.matmul %218, %219, %cst_103 {dimension_numbers = #tpu.dot_dimension_numbers<[1], [0], [0], [1], [0, 0, 1, 1], [], []>} : vector<22x128xbf16>, vector<128x128xbf16>, vector<22x128xf32> -> vector<22x128xf32>
    %221 = arith.addf %216, %220 : vector<22x128xf32>
    %222 = vector.extract_strided_slice %221 {offsets = [0, 0], sizes = [4, 128], strides = [1, 1]} : vector<22x128xf32> to vector<4x128xf32>
    %223 = vector.extract_strided_slice %221 {offsets = [6, 0], sizes = [4, 128], strides = [1, 1]} : vector<22x128xf32> to vector<4x128xf32>
    %224 = vector.extract_strided_slice %221 {offsets = [12, 0], sizes = [4, 128], strides = [1, 1]} : vector<22x128xf32> to vector<4x128xf32>
    %225 = vector.extract_strided_slice %221 {offsets = [18, 0], sizes = [4, 128], strides = [1, 1]} : vector<22x128xf32> to vector<4x128xf32>
    %226 = tpu.concatenate %222, %223, %224, %225 in 0 : vector<4x128xf32>, vector<4x128xf32>, vector<4x128xf32>, vector<4x128xf32> -> vector<16x128xf32>
    %c0_104 = arith.constant 0 : index
    %c0_105 = arith.constant 0 : index
    %227 = vector.load %arg7[%c0_104, %c0_105] : memref<1x128xf32, #tpu.memory_space<vmem>>, vector<1x128xf32>
    %228 = vector.broadcast %227 : vector<1x128xf32> to vector<16x128xf32>
    %229 = arith.addf %226, %228 : vector<16x128xf32>
    %230 = arith.addf %229, %103 : vector<16x128xf32>
    %cst_106 = arith.constant 0.000000e+00 : f32
    %231 = vector.broadcast %cst_106 : f32 to vector<16x128xf32>
    %232 = arith.maximumf %230, %231 : vector<16x128xf32>
    %cst_107 = arith.constant 0.000000e+00 : f32
    %233 = vector.broadcast %cst_107 : f32 to vector<36x128xf32>
    %c0_108 = arith.constant 0 : index
    %c0_109 = arith.constant 0 : index
    %234 = vector.load %arg21[%c0_108, %c0_109] : memref<36x128xf32, #tpu.memory_space<vmem>>, vector<36x128xf32>
    tpu.vector_store %arg21[%c0_108, %c0_109], %233 {strides = array<i32>} : memref<36x128xf32, #tpu.memory_space<vmem>>, vector<36x128xf32>,
    %235 = vector.extract_strided_slice %232 {offsets = [0, 0], sizes = [4, 128], strides = [1, 1]} : vector<16x128xf32> to vector<4x128xf32>
    %c7_110 = arith.constant 7 : index
    %c0_111 = arith.constant 0 : index
    %236 = vector.load %arg21[%c7_110, %c0_111] : memref<36x128xf32, #tpu.memory_space<vmem>>, vector<4x128xf32>
    tpu.vector_store %arg21[%c7_110, %c0_111], %235 {strides = array<i32>} : memref<36x128xf32, #tpu.memory_space<vmem>>, vector<4x128xf32>,
    %237 = vector.extract_strided_slice %232 {offsets = [4, 0], sizes = [4, 128], strides = [1, 1]} : vector<16x128xf32> to vector<4x128xf32>
    %c13_112 = arith.constant 13 : index
    %c0_113 = arith.constant 0 : index
    %238 = vector.load %arg21[%c13_112, %c0_113] : memref<36x128xf32, #tpu.memory_space<vmem>>, vector<4x128xf32>
    tpu.vector_store %arg21[%c13_112, %c0_113], %237 {strides = array<i32>} : memref<36x128xf32, #tpu.memory_space<vmem>>, vector<4x128xf32>,
    %239 = vector.extract_strided_slice %232 {offsets = [8, 0], sizes = [4, 128], strides = [1, 1]} : vector<16x128xf32> to vector<4x128xf32>
    %c19_114 = arith.constant 19 : index
    %c0_115 = arith.constant 0 : index
    %240 = vector.load %arg21[%c19_114, %c0_115] : memref<36x128xf32, #tpu.memory_space<vmem>>, vector<4x128xf32>
    tpu.vector_store %arg21[%c19_114, %c0_115], %239 {strides = array<i32>} : memref<36x128xf32, #tpu.memory_space<vmem>>, vector<4x128xf32>,
    %241 = vector.extract_strided_slice %232 {offsets = [12, 0], sizes = [4, 128], strides = [1, 1]} : vector<16x128xf32> to vector<4x128xf32>
    %c25_116 = arith.constant 25 : index
    %c0_117 = arith.constant 0 : index
    %242 = vector.load %arg21[%c25_116, %c0_117] : memref<36x128xf32, #tpu.memory_space<vmem>>, vector<4x128xf32>
    tpu.vector_store %arg21[%c25_116, %c0_117], %241 {strides = array<i32>} : memref<36x128xf32, #tpu.memory_space<vmem>>, vector<4x128xf32>,
    %c0_118 = arith.constant 0 : index
    %c0_119 = arith.constant 0 : index
    %243 = vector.load %arg21[%c0_118, %c0_119] : memref<36x128xf32, #tpu.memory_space<vmem>>, vector<22x128xf32>
    %244 = arith.truncf %243 : vector<22x128xf32> to vector<22x128xbf16>
    %c0_120 = arith.constant 0 : index
    %c0_121 = arith.constant 0 : index
    %245 = vector.load %arg8[%c0_120, %c0_121] : memref<1152x128xbf16, #tpu.memory_space<vmem>>, vector<128x128xbf16>
    %cst_122 = arith.constant dense<0.000000e+00> : vector<22x128xf32>
    %246 = tpu.matmul %244, %245, %cst_122 {dimension_numbers = #tpu.dot_dimension_numbers<[1], [0], [0], [1], [0, 0, 1, 1], [], []>} : vector<22x128xbf16>, vector<128x128xbf16>, vector<22x128xf32> -> vector<22x128xf32>
    %c1_123 = arith.constant 1 : index
    %c0_124 = arith.constant 0 : index
    %247 = vector.load %arg21[%c1_123, %c0_124] : memref<36x128xf32, #tpu.memory_space<vmem>>, vector<22x128xf32>
    %248 = arith.truncf %247 : vector<22x128xf32> to vector<22x128xbf16>
    %c128_125 = arith.constant 128 : index
    %c0_126 = arith.constant 0 : index
    %249 = vector.load %arg8[%c128_125, %c0_126] : memref<1152x128xbf16, #tpu.memory_space<vmem>>, vector<128x128xbf16>
    %cst_127 = arith.constant dense<0.000000e+00> : vector<22x128xf32>
    %250 = tpu.matmul %248, %249, %cst_127 {dimension_numbers = #tpu.dot_dimension_numbers<[1], [0], [0], [1], [0, 0, 1, 1], [], []>} : vector<22x128xbf16>, vector<128x128xbf16>, vector<22x128xf32> -> vector<22x128xf32>
    %251 = arith.addf %246, %250 : vector<22x128xf32>
    %c2_128 = arith.constant 2 : index
    %c0_129 = arith.constant 0 : index
    %252 = vector.load %arg21[%c2_128, %c0_129] : memref<36x128xf32, #tpu.memory_space<vmem>>, vector<22x128xf32>
    %253 = arith.truncf %252 : vector<22x128xf32> to vector<22x128xbf16>
    %c256_130 = arith.constant 256 : index
    %c0_131 = arith.constant 0 : index
    %254 = vector.load %arg8[%c256_130, %c0_131] : memref<1152x128xbf16, #tpu.memory_space<vmem>>, vector<128x128xbf16>
    %cst_132 = arith.constant dense<0.000000e+00> : vector<22x128xf32>
    %255 = tpu.matmul %253, %254, %cst_132 {dimension_numbers = #tpu.dot_dimension_numbers<[1], [0], [0], [1], [0, 0, 1, 1], [], []>} : vector<22x128xbf16>, vector<128x128xbf16>, vector<22x128xf32> -> vector<22x128xf32>
    %256 = arith.addf %251, %255 : vector<22x128xf32>
    %c6_133 = arith.constant 6 : index
    %c0_134 = arith.constant 0 : index
    %257 = vector.load %arg21[%c6_133, %c0_134] : memref<36x128xf32, #tpu.memory_space<vmem>>, vector<22x128xf32>
    %258 = arith.truncf %257 : vector<22x128xf32> to vector<22x128xbf16>
    %c384_135 = arith.constant 384 : index
    %c0_136 = arith.constant 0 : index
    %259 = vector.load %arg8[%c384_135, %c0_136] : memref<1152x128xbf16, #tpu.memory_space<vmem>>, vector<128x128xbf16>
    %cst_137 = arith.constant dense<0.000000e+00> : vector<22x128xf32>
    %260 = tpu.matmul %258, %259, %cst_137 {dimension_numbers = #tpu.dot_dimension_numbers<[1], [0], [0], [1], [0, 0, 1, 1], [], []>} : vector<22x128xbf16>, vector<128x128xbf16>, vector<22x128xf32> -> vector<22x128xf32>
    %261 = arith.addf %256, %260 : vector<22x128xf32>
    %c7_138 = arith.constant 7 : index
    %c0_139 = arith.constant 0 : index
    %262 = vector.load %arg21[%c7_138, %c0_139] : memref<36x128xf32, #tpu.memory_space<vmem>>, vector<22x128xf32>
    %263 = arith.truncf %262 : vector<22x128xf32> to vector<22x128xbf16>
    %c512_140 = arith.constant 512 : index
    %c0_141 = arith.constant 0 : index
    %264 = vector.load %arg8[%c512_140, %c0_141] : memref<1152x128xbf16, #tpu.memory_space<vmem>>, vector<128x128xbf16>
    %cst_142 = arith.constant dense<0.000000e+00> : vector<22x128xf32>
    %265 = tpu.matmul %263, %264, %cst_142 {dimension_numbers = #tpu.dot_dimension_numbers<[1], [0], [0], [1], [0, 0, 1, 1], [], []>} : vector<22x128xbf16>, vector<128x128xbf16>, vector<22x128xf32> -> vector<22x128xf32>
    %266 = arith.addf %261, %265 : vector<22x128xf32>
    %c8_143 = arith.constant 8 : index
    %c0_144 = arith.constant 0 : index
    %267 = vector.load %arg21[%c8_143, %c0_144] : memref<36x128xf32, #tpu.memory_space<vmem>>, vector<22x128xf32>
    %268 = arith.truncf %267 : vector<22x128xf32> to vector<22x128xbf16>
    %c640_145 = arith.constant 640 : index
    %c0_146 = arith.constant 0 : index
    %269 = vector.load %arg8[%c640_145, %c0_146] : memref<1152x128xbf16, #tpu.memory_space<vmem>>, vector<128x128xbf16>
    %cst_147 = arith.constant dense<0.000000e+00> : vector<22x128xf32>
    %270 = tpu.matmul %268, %269, %cst_147 {dimension_numbers = #tpu.dot_dimension_numbers<[1], [0], [0], [1], [0, 0, 1, 1], [], []>} : vector<22x128xbf16>, vector<128x128xbf16>, vector<22x128xf32> -> vector<22x128xf32>
    %271 = arith.addf %266, %270 : vector<22x128xf32>
    %c12_148 = arith.constant 12 : index
    %c0_149 = arith.constant 0 : index
    %272 = vector.load %arg21[%c12_148, %c0_149] : memref<36x128xf32, #tpu.memory_space<vmem>>, vector<22x128xf32>
    %273 = arith.truncf %272 : vector<22x128xf32> to vector<22x128xbf16>
    %c768_150 = arith.constant 768 : index
    %c0_151 = arith.constant 0 : index
    %274 = vector.load %arg8[%c768_150, %c0_151] : memref<1152x128xbf16, #tpu.memory_space<vmem>>, vector<128x128xbf16>
    %cst_152 = arith.constant dense<0.000000e+00> : vector<22x128xf32>
    %275 = tpu.matmul %273, %274, %cst_152 {dimension_numbers = #tpu.dot_dimension_numbers<[1], [0], [0], [1], [0, 0, 1, 1], [], []>} : vector<22x128xbf16>, vector<128x128xbf16>, vector<22x128xf32> -> vector<22x128xf32>
    %276 = arith.addf %271, %275 : vector<22x128xf32>
    %c13_153 = arith.constant 13 : index
    %c0_154 = arith.constant 0 : index
    %277 = vector.load %arg21[%c13_153, %c0_154] : memref<36x128xf32, #tpu.memory_space<vmem>>, vector<22x128xf32>
    %278 = arith.truncf %277 : vector<22x128xf32> to vector<22x128xbf16>
    %c896_155 = arith.constant 896 : index
    %c0_156 = arith.constant 0 : index
    %279 = vector.load %arg8[%c896_155, %c0_156] : memref<1152x128xbf16, #tpu.memory_space<vmem>>, vector<128x128xbf16>
    %cst_157 = arith.constant dense<0.000000e+00> : vector<22x128xf32>
    %280 = tpu.matmul %278, %279, %cst_157 {dimension_numbers = #tpu.dot_dimension_numbers<[1], [0], [0], [1], [0, 0, 1, 1], [], []>} : vector<22x128xbf16>, vector<128x128xbf16>, vector<22x128xf32> -> vector<22x128xf32>
    %281 = arith.addf %276, %280 : vector<22x128xf32>
    %c14_158 = arith.constant 14 : index
    %c0_159 = arith.constant 0 : index
    %282 = vector.load %arg21[%c14_158, %c0_159] : memref<36x128xf32, #tpu.memory_space<vmem>>, vector<22x128xf32>
    %283 = arith.truncf %282 : vector<22x128xf32> to vector<22x128xbf16>
    %c1024_160 = arith.constant 1024 : index
    %c0_161 = arith.constant 0 : index
    %284 = vector.load %arg8[%c1024_160, %c0_161] : memref<1152x128xbf16, #tpu.memory_space<vmem>>, vector<128x128xbf16>
    %cst_162 = arith.constant dense<0.000000e+00> : vector<22x128xf32>
    %285 = tpu.matmul %283, %284, %cst_162 {dimension_numbers = #tpu.dot_dimension_numbers<[1], [0], [0], [1], [0, 0, 1, 1], [], []>} : vector<22x128xbf16>, vector<128x128xbf16>, vector<22x128xf32> -> vector<22x128xf32>
    %286 = arith.addf %281, %285 : vector<22x128xf32>
    %287 = vector.extract_strided_slice %286 {offsets = [0, 0], sizes = [4, 128], strides = [1, 1]} : vector<22x128xf32> to vector<4x128xf32>
    %288 = vector.extract_strided_slice %286 {offsets = [6, 0], sizes = [4, 128], strides = [1, 1]} : vector<22x128xf32> to vector<4x128xf32>
    %289 = vector.extract_strided_slice %286 {offsets = [12, 0], sizes = [4, 128], strides = [1, 1]} : vector<22x128xf32> to vector<4x128xf32>
    %290 = vector.extract_strided_slice %286 {offsets = [18, 0], sizes = [4, 128], strides = [1, 1]} : vector<22x128xf32> to vector<4x128xf32>
    %291 = tpu.concatenate %287, %288, %289, %290 in 0 : vector<4x128xf32>, vector<4x128xf32>, vector<4x128xf32>, vector<4x128xf32> -> vector<16x128xf32>
    %c0_163 = arith.constant 0 : index
    %c0_164 = arith.constant 0 : index
    %292 = vector.load %arg9[%c0_163, %c0_164] : memref<1x128xf32, #tpu.memory_space<vmem>>, vector<1x128xf32>
    %293 = vector.broadcast %292 : vector<1x128xf32> to vector<16x128xf32>
    %294 = arith.addf %291, %293 : vector<16x128xf32>
    %cst_165 = arith.constant 0.000000e+00 : f32
    %295 = vector.broadcast %cst_165 : f32 to vector<16x128xf32>
    %296 = arith.maximumf %294, %295 : vector<16x128xf32>
    %cst_166 = arith.constant 0.000000e+00 : f32
    %297 = vector.broadcast %cst_166 : f32 to vector<36x128xf32>
    %c0_167 = arith.constant 0 : index
    %c0_168 = arith.constant 0 : index
    %298 = vector.load %arg22[%c0_167, %c0_168] : memref<36x128xf32, #tpu.memory_space<vmem>>, vector<36x128xf32>
    tpu.vector_store %arg22[%c0_167, %c0_168], %297 {strides = array<i32>} : memref<36x128xf32, #tpu.memory_space<vmem>>, vector<36x128xf32>,
    %299 = vector.extract_strided_slice %296 {offsets = [0, 0], sizes = [4, 128], strides = [1, 1]} : vector<16x128xf32> to vector<4x128xf32>
    %c7_169 = arith.constant 7 : index
    %c0_170 = arith.constant 0 : index
    %300 = vector.load %arg22[%c7_169, %c0_170] : memref<36x128xf32, #tpu.memory_space<vmem>>, vector<4x128xf32>
    tpu.vector_store %arg22[%c7_169, %c0_170], %299 {strides = array<i32>} : memref<36x128xf32, #tpu.memory_space<vmem>>, vector<4x128xf32>,
    %301 = vector.extract_strided_slice %296 {offsets = [4, 0], sizes = [4, 128], strides = [1, 1]} : vector<16x128xf32> to vector<4x128xf32>
    %c13_171 = arith.constant 13 : index
    %c0_172 = arith.constant 0 : index
    %302 = vector.load %arg22[%c13_171, %c0_172] : memref<36x128xf32, #tpu.memory_space<vmem>>, vector<4x128xf32>
    tpu.vector_store %arg22[%c13_171, %c0_172], %301 {strides = array<i32>} : memref<36x128xf32, #tpu.memory_space<vmem>>, vector<4x128xf32>,
    %303 = vector.extract_strided_slice %296 {offsets = [8, 0], sizes = [4, 128], strides = [1, 1]} : vector<16x128xf32> to vector<4x128xf32>
    %c19_173 = arith.constant 19 : index
    %c0_174 = arith.constant 0 : index
    %304 = vector.load %arg22[%c19_173, %c0_174] : memref<36x128xf32, #tpu.memory_space<vmem>>, vector<4x128xf32>
    tpu.vector_store %arg22[%c19_173, %c0_174], %303 {strides = array<i32>} : memref<36x128xf32, #tpu.memory_space<vmem>>, vector<4x128xf32>,
    %305 = vector.extract_strided_slice %296 {offsets = [12, 0], sizes = [4, 128], strides = [1, 1]} : vector<16x128xf32> to vector<4x128xf32>
    %c25_175 = arith.constant 25 : index
    %c0_176 = arith.constant 0 : index
    %306 = vector.load %arg22[%c25_175, %c0_176] : memref<36x128xf32, #tpu.memory_space<vmem>>, vector<4x128xf32>
    tpu.vector_store %arg22[%c25_175, %c0_176], %305 {strides = array<i32>} : memref<36x128xf32, #tpu.memory_space<vmem>>, vector<4x128xf32>,
    %c0_177 = arith.constant 0 : index
    %c0_178 = arith.constant 0 : index
    %307 = vector.load %arg22[%c0_177, %c0_178] : memref<36x128xf32, #tpu.memory_space<vmem>>, vector<22x128xf32>
    %308 = arith.truncf %307 : vector<22x128xf32> to vector<22x128xbf16>
    %c0_179 = arith.constant 0 : index
    %c0_180 = arith.constant 0 : index
    %309 = vector.load %arg10[%c0_179, %c0_180] : memref<1152x128xbf16, #tpu.memory_space<vmem>>, vector<128x128xbf16>
    %cst_181 = arith.constant dense<0.000000e+00> : vector<22x128xf32>
    %310 = tpu.matmul %308, %309, %cst_181 {dimension_numbers = #tpu.dot_dimension_numbers<[1], [0], [0], [1], [0, 0, 1, 1], [], []>} : vector<22x128xbf16>, vector<128x128xbf16>, vector<22x128xf32> -> vector<22x128xf32>
    %c1_182 = arith.constant 1 : index
    %c0_183 = arith.constant 0 : index
    %311 = vector.load %arg22[%c1_182, %c0_183] : memref<36x128xf32, #tpu.memory_space<vmem>>, vector<22x128xf32>
    %312 = arith.truncf %311 : vector<22x128xf32> to vector<22x128xbf16>
    %c128_184 = arith.constant 128 : index
    %c0_185 = arith.constant 0 : index
    %313 = vector.load %arg10[%c128_184, %c0_185] : memref<1152x128xbf16, #tpu.memory_space<vmem>>, vector<128x128xbf16>
    %cst_186 = arith.constant dense<0.000000e+00> : vector<22x128xf32>
    %314 = tpu.matmul %312, %313, %cst_186 {dimension_numbers = #tpu.dot_dimension_numbers<[1], [0], [0], [1], [0, 0, 1, 1], [], []>} : vector<22x128xbf16>, vector<128x128xbf16>, vector<22x128xf32> -> vector<22x128xf32>
    %315 = arith.addf %310, %314 : vector<22x128xf32>
    %c2_187 = arith.constant 2 : index
    %c0_188 = arith.constant 0 : index
    %316 = vector.load %arg22[%c2_187, %c0_188] : memref<36x128xf32, #tpu.memory_space<vmem>>, vector<22x128xf32>
    %317 = arith.truncf %316 : vector<22x128xf32> to vector<22x128xbf16>
    %c256_189 = arith.constant 256 : index
    %c0_190 = arith.constant 0 : index
    %318 = vector.load %arg10[%c256_189, %c0_190] : memref<1152x128xbf16, #tpu.memory_space<vmem>>, vector<128x128xbf16>
    %cst_191 = arith.constant dense<0.000000e+00> : vector<22x128xf32>
    %319 = tpu.matmul %317, %318, %cst_191 {dimension_numbers = #tpu.dot_dimension_numbers<[1], [0], [0], [1], [0, 0, 1, 1], [], []>} : vector<22x128xbf16>, vector<128x128xbf16>, vector<22x128xf32> -> vector<22x128xf32>
    %320 = arith.addf %315, %319 : vector<22x128xf32>
    %c6_192 = arith.constant 6 : index
    %c0_193 = arith.constant 0 : index
    %321 = vector.load %arg22[%c6_192, %c0_193] : memref<36x128xf32, #tpu.memory_space<vmem>>, vector<22x128xf32>
    %322 = arith.truncf %321 : vector<22x128xf32> to vector<22x128xbf16>
    %c384_194 = arith.constant 384 : index
    %c0_195 = arith.constant 0 : index
    %323 = vector.load %arg10[%c384_194, %c0_195] : memref<1152x128xbf16, #tpu.memory_space<vmem>>, vector<128x128xbf16>
    %cst_196 = arith.constant dense<0.000000e+00> : vector<22x128xf32>
    %324 = tpu.matmul %322, %323, %cst_196 {dimension_numbers = #tpu.dot_dimension_numbers<[1], [0], [0], [1], [0, 0, 1, 1], [], []>} : vector<22x128xbf16>, vector<128x128xbf16>, vector<22x128xf32> -> vector<22x128xf32>
    %325 = arith.addf %320, %324 : vector<22x128xf32>
    %c7_197 = arith.constant 7 : index
    %c0_198 = arith.constant 0 : index
    %326 = vector.load %arg22[%c7_197, %c0_198] : memref<36x128xf32, #tpu.memory_space<vmem>>, vector<22x128xf32>
    %327 = arith.truncf %326 : vector<22x128xf32> to vector<22x128xbf16>
    %c512_199 = arith.constant 512 : index
    %c0_200 = arith.constant 0 : index
    %328 = vector.load %arg10[%c512_199, %c0_200] : memref<1152x128xbf16, #tpu.memory_space<vmem>>, vector<128x128xbf16>
    %cst_201 = arith.constant dense<0.000000e+00> : vector<22x128xf32>
    %329 = tpu.matmul %327, %328, %cst_201 {dimension_numbers = #tpu.dot_dimension_numbers<[1], [0], [0], [1], [0, 0, 1, 1], [], []>} : vector<22x128xbf16>, vector<128x128xbf16>, vector<22x128xf32> -> vector<22x128xf32>
    %330 = arith.addf %325, %329 : vector<22x128xf32>
    %c8_202 = arith.constant 8 : index
    %c0_203 = arith.constant 0 : index
    %331 = vector.load %arg22[%c8_202, %c0_203] : memref<36x128xf32, #tpu.memory_space<vmem>>, vector<22x128xf32>
    %332 = arith.truncf %331 : vector<22x128xf32> to vector<22x128xbf16>
    %c640_204 = arith.constant 640 : index
    %c0_205 = arith.constant 0 : index
    %333 = vector.load %arg10[%c640_204, %c0_205] : memref<1152x128xbf16, #tpu.memory_space<vmem>>, vector<128x128xbf16>
    %cst_206 = arith.constant dense<0.000000e+00> : vector<22x128xf32>
    %334 = tpu.matmul %332, %333, %cst_206 {dimension_numbers = #tpu.dot_dimension_numbers<[1], [0], [0], [1], [0, 0, 1, 1], [], []>} : vector<22x128xbf16>, vector<128x128xbf16>, vector<22x128xf32> -> vector<22x128xf32>
    %335 = arith.addf %330, %334 : vector<22x128xf32>
    %c12_207 = arith.constant 12 : index
    %c0_208 = arith.constant 0 : index
    %336 = vector.load %arg22[%c12_207, %c0_208] : memref<36x128xf32, #tpu.memory_space<vmem>>, vector<22x128xf32>
    %337 = arith.truncf %336 : vector<22x128xf32> to vector<22x128xbf16>
    %c768_209 = arith.constant 768 : index
    %c0_210 = arith.constant 0 : index
    %338 = vector.load %arg10[%c768_209, %c0_210] : memref<1152x128xbf16, #tpu.memory_space<vmem>>, vector<128x128xbf16>
    %cst_211 = arith.constant dense<0.000000e+00> : vector<22x128xf32>
    %339 = tpu.matmul %337, %338, %cst_211 {dimension_numbers = #tpu.dot_dimension_numbers<[1], [0], [0], [1], [0, 0, 1, 1], [], []>} : vector<22x128xbf16>, vector<128x128xbf16>, vector<22x128xf32> -> vector<22x128xf32>
    %340 = arith.addf %335, %339 : vector<22x128xf32>
    %c13_212 = arith.constant 13 : index
    %c0_213 = arith.constant 0 : index
    %341 = vector.load %arg22[%c13_212, %c0_213] : memref<36x128xf32, #tpu.memory_space<vmem>>, vector<22x128xf32>
    %342 = arith.truncf %341 : vector<22x128xf32> to vector<22x128xbf16>
    %c896_214 = arith.constant 896 : index
    %c0_215 = arith.constant 0 : index
    %343 = vector.load %arg10[%c896_214, %c0_215] : memref<1152x128xbf16, #tpu.memory_space<vmem>>, vector<128x128xbf16>
    %cst_216 = arith.constant dense<0.000000e+00> : vector<22x128xf32>
    %344 = tpu.matmul %342, %343, %cst_216 {dimension_numbers = #tpu.dot_dimension_numbers<[1], [0], [0], [1], [0, 0, 1, 1], [], []>} : vector<22x128xbf16>, vector<128x128xbf16>, vector<22x128xf32> -> vector<22x128xf32>
    %345 = arith.addf %340, %344 : vector<22x128xf32>
    %c14_217 = arith.constant 14 : index
    %c0_218 = arith.constant 0 : index
    %346 = vector.load %arg22[%c14_217, %c0_218] : memref<36x128xf32, #tpu.memory_space<vmem>>, vector<22x128xf32>
    %347 = arith.truncf %346 : vector<22x128xf32> to vector<22x128xbf16>
    %c1024_219 = arith.constant 1024 : index
    %c0_220 = arith.constant 0 : index
    %348 = vector.load %arg10[%c1024_219, %c0_220] : memref<1152x128xbf16, #tpu.memory_space<vmem>>, vector<128x128xbf16>
    %cst_221 = arith.constant dense<0.000000e+00> : vector<22x128xf32>
    %349 = tpu.matmul %347, %348, %cst_221 {dimension_numbers = #tpu.dot_dimension_numbers<[1], [0], [0], [1], [0, 0, 1, 1], [], []>} : vector<22x128xbf16>, vector<128x128xbf16>, vector<22x128xf32> -> vector<22x128xf32>
    %350 = arith.addf %345, %349 : vector<22x128xf32>
    %351 = vector.extract_strided_slice %350 {offsets = [0, 0], sizes = [4, 128], strides = [1, 1]} : vector<22x128xf32> to vector<4x128xf32>
    %352 = vector.extract_strided_slice %350 {offsets = [6, 0], sizes = [4, 128], strides = [1, 1]} : vector<22x128xf32> to vector<4x128xf32>
    %353 = vector.extract_strided_slice %350 {offsets = [12, 0], sizes = [4, 128], strides = [1, 1]} : vector<22x128xf32> to vector<4x128xf32>
    %354 = vector.extract_strided_slice %350 {offsets = [18, 0], sizes = [4, 128], strides = [1, 1]} : vector<22x128xf32> to vector<4x128xf32>
    %355 = tpu.concatenate %351, %352, %353, %354 in 0 : vector<4x128xf32>, vector<4x128xf32>, vector<4x128xf32>, vector<4x128xf32> -> vector<16x128xf32>
    %c0_222 = arith.constant 0 : index
    %c0_223 = arith.constant 0 : index
    %356 = vector.load %arg11[%c0_222, %c0_223] : memref<1x128xf32, #tpu.memory_space<vmem>>, vector<1x128xf32>
    %357 = vector.broadcast %356 : vector<1x128xf32> to vector<16x128xf32>
    %358 = arith.addf %355, %357 : vector<16x128xf32>
    %359 = arith.addf %358, %232 : vector<16x128xf32>
    %cst_224 = arith.constant 0.000000e+00 : f32
    %360 = vector.broadcast %cst_224 : f32 to vector<16x128xf32>
    %361 = arith.maximumf %359, %360 : vector<16x128xf32>
    %cst_225 = arith.constant 0.000000e+00 : f32
    %362 = vector.broadcast %cst_225 : f32 to vector<36x128xf32>
    %c0_226 = arith.constant 0 : index
    %c0_227 = arith.constant 0 : index
    %363 = vector.load %arg21[%c0_226, %c0_227] : memref<36x128xf32, #tpu.memory_space<vmem>>, vector<36x128xf32>
    tpu.vector_store %arg21[%c0_226, %c0_227], %362 {strides = array<i32>} : memref<36x128xf32, #tpu.memory_space<vmem>>, vector<36x128xf32>,
    %364 = vector.extract_strided_slice %361 {offsets = [0, 0], sizes = [4, 128], strides = [1, 1]} : vector<16x128xf32> to vector<4x128xf32>
    %c7_228 = arith.constant 7 : index
    %c0_229 = arith.constant 0 : index
    %365 = vector.load %arg21[%c7_228, %c0_229] : memref<36x128xf32, #tpu.memory_space<vmem>>, vector<4x128xf32>
    tpu.vector_store %arg21[%c7_228, %c0_229], %364 {strides = array<i32>} : memref<36x128xf32, #tpu.memory_space<vmem>>, vector<4x128xf32>,
    %366 = vector.extract_strided_slice %361 {offsets = [4, 0], sizes = [4, 128], strides = [1, 1]} : vector<16x128xf32> to vector<4x128xf32>
    %c13_230 = arith.constant 13 : index
    %c0_231 = arith.constant 0 : index
    %367 = vector.load %arg21[%c13_230, %c0_231] : memref<36x128xf32, #tpu.memory_space<vmem>>, vector<4x128xf32>
    tpu.vector_store %arg21[%c13_230, %c0_231], %366 {strides = array<i32>} : memref<36x128xf32, #tpu.memory_space<vmem>>, vector<4x128xf32>,
    %368 = vector.extract_strided_slice %361 {offsets = [8, 0], sizes = [4, 128], strides = [1, 1]} : vector<16x128xf32> to vector<4x128xf32>
    %c19_232 = arith.constant 19 : index
    %c0_233 = arith.constant 0 : index
    %369 = vector.load %arg21[%c19_232, %c0_233] : memref<36x128xf32, #tpu.memory_space<vmem>>, vector<4x128xf32>
    tpu.vector_store %arg21[%c19_232, %c0_233], %368 {strides = array<i32>} : memref<36x128xf32, #tpu.memory_space<vmem>>, vector<4x128xf32>,
    %370 = vector.extract_strided_slice %361 {offsets = [12, 0], sizes = [4, 128], strides = [1, 1]} : vector<16x128xf32> to vector<4x128xf32>
    %c25_234 = arith.constant 25 : index
    %c0_235 = arith.constant 0 : index
    %371 = vector.load %arg21[%c25_234, %c0_235] : memref<36x128xf32, #tpu.memory_space<vmem>>, vector<4x128xf32>
    tpu.vector_store %arg21[%c25_234, %c0_235], %370 {strides = array<i32>} : memref<36x128xf32, #tpu.memory_space<vmem>>, vector<4x128xf32>,
    %c0_236 = arith.constant 0 : index
    %c0_237 = arith.constant 0 : index
    %372 = vector.load %arg21[%c0_236, %c0_237] : memref<36x128xf32, #tpu.memory_space<vmem>>, vector<22x128xf32>
    %373 = arith.truncf %372 : vector<22x128xf32> to vector<22x128xbf16>
    %c0_238 = arith.constant 0 : index
    %c0_239 = arith.constant 0 : index
    %374 = vector.load %arg12[%c0_238, %c0_239] : memref<1152x256xbf16, #tpu.memory_space<vmem>>, vector<128x256xbf16>
    %cst_240 = arith.constant dense<0.000000e+00> : vector<22x256xf32>
    %375 = tpu.matmul %373, %374, %cst_240 {dimension_numbers = #tpu.dot_dimension_numbers<[1], [0], [0], [1], [0, 0, 1, 1], [], []>} : vector<22x128xbf16>, vector<128x256xbf16>, vector<22x256xf32> -> vector<22x256xf32>
    %c1_241 = arith.constant 1 : index
    %c0_242 = arith.constant 0 : index
    %376 = vector.load %arg21[%c1_241, %c0_242] : memref<36x128xf32, #tpu.memory_space<vmem>>, vector<22x128xf32>
    %377 = arith.truncf %376 : vector<22x128xf32> to vector<22x128xbf16>
    %c128_243 = arith.constant 128 : index
    %c0_244 = arith.constant 0 : index
    %378 = vector.load %arg12[%c128_243, %c0_244] : memref<1152x256xbf16, #tpu.memory_space<vmem>>, vector<128x256xbf16>
    %cst_245 = arith.constant dense<0.000000e+00> : vector<22x256xf32>
    %379 = tpu.matmul %377, %378, %cst_245 {dimension_numbers = #tpu.dot_dimension_numbers<[1], [0], [0], [1], [0, 0, 1, 1], [], []>} : vector<22x128xbf16>, vector<128x256xbf16>, vector<22x256xf32> -> vector<22x256xf32>
    %380 = arith.addf %375, %379 : vector<22x256xf32>
    %c2_246 = arith.constant 2 : index
    %c0_247 = arith.constant 0 : index
    %381 = vector.load %arg21[%c2_246, %c0_247] : memref<36x128xf32, #tpu.memory_space<vmem>>, vector<22x128xf32>
    %382 = arith.truncf %381 : vector<22x128xf32> to vector<22x128xbf16>
    %c256_248 = arith.constant 256 : index
    %c0_249 = arith.constant 0 : index
    %383 = vector.load %arg12[%c256_248, %c0_249] : memref<1152x256xbf16, #tpu.memory_space<vmem>>, vector<128x256xbf16>
    %cst_250 = arith.constant dense<0.000000e+00> : vector<22x256xf32>
    %384 = tpu.matmul %382, %383, %cst_250 {dimension_numbers = #tpu.dot_dimension_numbers<[1], [0], [0], [1], [0, 0, 1, 1], [], []>} : vector<22x128xbf16>, vector<128x256xbf16>, vector<22x256xf32> -> vector<22x256xf32>
    %385 = arith.addf %380, %384 : vector<22x256xf32>
    %c6_251 = arith.constant 6 : index
    %c0_252 = arith.constant 0 : index
    %386 = vector.load %arg21[%c6_251, %c0_252] : memref<36x128xf32, #tpu.memory_space<vmem>>, vector<22x128xf32>
    %387 = arith.truncf %386 : vector<22x128xf32> to vector<22x128xbf16>
    %c384_253 = arith.constant 384 : index
    %c0_254 = arith.constant 0 : index
    %388 = vector.load %arg12[%c384_253, %c0_254] : memref<1152x256xbf16, #tpu.memory_space<vmem>>, vector<128x256xbf16>
    %cst_255 = arith.constant dense<0.000000e+00> : vector<22x256xf32>
    %389 = tpu.matmul %387, %388, %cst_255 {dimension_numbers = #tpu.dot_dimension_numbers<[1], [0], [0], [1], [0, 0, 1, 1], [], []>} : vector<22x128xbf16>, vector<128x256xbf16>, vector<22x256xf32> -> vector<22x256xf32>
    %390 = arith.addf %385, %389 : vector<22x256xf32>
    %c7_256 = arith.constant 7 : index
    %c0_257 = arith.constant 0 : index
    %391 = vector.load %arg21[%c7_256, %c0_257] : memref<36x128xf32, #tpu.memory_space<vmem>>, vector<22x128xf32>
    %392 = arith.truncf %391 : vector<22x128xf32> to vector<22x128xbf16>
    %c512_258 = arith.constant 512 : index
    %c0_259 = arith.constant 0 : index
    %393 = vector.load %arg12[%c512_258, %c0_259] : memref<1152x256xbf16, #tpu.memory_space<vmem>>, vector<128x256xbf16>
    %cst_260 = arith.constant dense<0.000000e+00> : vector<22x256xf32>
    %394 = tpu.matmul %392, %393, %cst_260 {dimension_numbers = #tpu.dot_dimension_numbers<[1], [0], [0], [1], [0, 0, 1, 1], [], []>} : vector<22x128xbf16>, vector<128x256xbf16>, vector<22x256xf32> -> vector<22x256xf32>
    %395 = arith.addf %390, %394 : vector<22x256xf32>
    %c8_261 = arith.constant 8 : index
    %c0_262 = arith.constant 0 : index
    %396 = vector.load %arg21[%c8_261, %c0_262] : memref<36x128xf32, #tpu.memory_space<vmem>>, vector<22x128xf32>
    %397 = arith.truncf %396 : vector<22x128xf32> to vector<22x128xbf16>
    %c640_263 = arith.constant 640 : index
    %c0_264 = arith.constant 0 : index
    %398 = vector.load %arg12[%c640_263, %c0_264] : memref<1152x256xbf16, #tpu.memory_space<vmem>>, vector<128x256xbf16>
    %cst_265 = arith.constant dense<0.000000e+00> : vector<22x256xf32>
    %399 = tpu.matmul %397, %398, %cst_265 {dimension_numbers = #tpu.dot_dimension_numbers<[1], [0], [0], [1], [0, 0, 1, 1], [], []>} : vector<22x128xbf16>, vector<128x256xbf16>, vector<22x256xf32> -> vector<22x256xf32>
    %400 = arith.addf %395, %399 : vector<22x256xf32>
    %c12_266 = arith.constant 12 : index
    %c0_267 = arith.constant 0 : index
    %401 = vector.load %arg21[%c12_266, %c0_267] : memref<36x128xf32, #tpu.memory_space<vmem>>, vector<22x128xf32>
    %402 = arith.truncf %401 : vector<22x128xf32> to vector<22x128xbf16>
    %c768_268 = arith.constant 768 : index
    %c0_269 = arith.constant 0 : index
    %403 = vector.load %arg12[%c768_268, %c0_269] : memref<1152x256xbf16, #tpu.memory_space<vmem>>, vector<128x256xbf16>
    %cst_270 = arith.constant dense<0.000000e+00> : vector<22x256xf32>
    %404 = tpu.matmul %402, %403, %cst_270 {dimension_numbers = #tpu.dot_dimension_numbers<[1], [0], [0], [1], [0, 0, 1, 1], [], []>} : vector<22x128xbf16>, vector<128x256xbf16>, vector<22x256xf32> -> vector<22x256xf32>
    %405 = arith.addf %400, %404 : vector<22x256xf32>
    %c13_271 = arith.constant 13 : index
    %c0_272 = arith.constant 0 : index
    %406 = vector.load %arg21[%c13_271, %c0_272] : memref<36x128xf32, #tpu.memory_space<vmem>>, vector<22x128xf32>
    %407 = arith.truncf %406 : vector<22x128xf32> to vector<22x128xbf16>
    %c896_273 = arith.constant 896 : index
    %c0_274 = arith.constant 0 : index
    %408 = vector.load %arg12[%c896_273, %c0_274] : memref<1152x256xbf16, #tpu.memory_space<vmem>>, vector<128x256xbf16>
    %cst_275 = arith.constant dense<0.000000e+00> : vector<22x256xf32>
    %409 = tpu.matmul %407, %408, %cst_275 {dimension_numbers = #tpu.dot_dimension_numbers<[1], [0], [0], [1], [0, 0, 1, 1], [], []>} : vector<22x128xbf16>, vector<128x256xbf16>, vector<22x256xf32> -> vector<22x256xf32>
    %410 = arith.addf %405, %409 : vector<22x256xf32>
    %c14_276 = arith.constant 14 : index
    %c0_277 = arith.constant 0 : index
    %411 = vector.load %arg21[%c14_276, %c0_277] : memref<36x128xf32, #tpu.memory_space<vmem>>, vector<22x128xf32>
    %412 = arith.truncf %411 : vector<22x128xf32> to vector<22x128xbf16>
    %c1024_278 = arith.constant 1024 : index
    %c0_279 = arith.constant 0 : index
    %413 = vector.load %arg12[%c1024_278, %c0_279] : memref<1152x256xbf16, #tpu.memory_space<vmem>>, vector<128x256xbf16>
    %cst_280 = arith.constant dense<0.000000e+00> : vector<22x256xf32>
    %414 = tpu.matmul %412, %413, %cst_280 {dimension_numbers = #tpu.dot_dimension_numbers<[1], [0], [0], [1], [0, 0, 1, 1], [], []>} : vector<22x128xbf16>, vector<128x256xbf16>, vector<22x256xf32> -> vector<22x256xf32>
    %415 = arith.addf %410, %414 : vector<22x256xf32>
    %416 = vector.extract_strided_slice %415 {offsets = [0, 0], sizes = [1, 256], strides = [1, 1]} : vector<22x256xf32> to vector<1x256xf32>
    %417 = vector.extract_strided_slice %415 {offsets = [2, 0], sizes = [1, 256], strides = [1, 1]} : vector<22x256xf32> to vector<1x256xf32>
    %418 = vector.extract_strided_slice %415 {offsets = [12, 0], sizes = [1, 256], strides = [1, 1]} : vector<22x256xf32> to vector<1x256xf32>
    %419 = vector.extract_strided_slice %415 {offsets = [14, 0], sizes = [1, 256], strides = [1, 1]} : vector<22x256xf32> to vector<1x256xf32>
    %420 = tpu.concatenate %416, %417, %418, %419 in 0 : vector<1x256xf32>, vector<1x256xf32>, vector<1x256xf32>, vector<1x256xf32> -> vector<4x256xf32>
    %c0_281 = arith.constant 0 : index
    %c0_282 = arith.constant 0 : index
    %421 = vector.load %arg13[%c0_281, %c0_282] : memref<1x256xf32, #tpu.memory_space<vmem>>, vector<1x256xf32>
    %422 = vector.broadcast %421 : vector<1x256xf32> to vector<4x256xf32>
    %423 = arith.addf %420, %422 : vector<4x256xf32>
    %424 = vector.extract_strided_slice %423 {offsets = [0, 0], sizes = [4, 128], strides = [1, 1]} : vector<4x256xf32> to vector<4x128xf32>
    %cst_283 = arith.constant 0.000000e+00 : f32
    %425 = vector.broadcast %cst_283 : f32 to vector<4x128xf32>
    %426 = arith.maximumf %424, %425 : vector<4x128xf32>
    %427 = vector.extract_strided_slice %423 {offsets = [0, 128], sizes = [4, 128], strides = [1, 1]} : vector<4x256xf32> to vector<4x128xf32>
    %cst_284 = arith.constant 0.000000e+00 : f32
    %428 = vector.broadcast %cst_284 : f32 to vector<36x128xf32>
    %c0_285 = arith.constant 0 : index
    %c0_286 = arith.constant 0 : index
    %429 = vector.load %arg22[%c0_285, %c0_286] : memref<36x128xf32, #tpu.memory_space<vmem>>, vector<36x128xf32>
    tpu.vector_store %arg22[%c0_285, %c0_286], %428 {strides = array<i32>} : memref<36x128xf32, #tpu.memory_space<vmem>>, vector<36x128xf32>,
    %430 = vector.extract_strided_slice %426 {offsets = [0, 0], sizes = [2, 128], strides = [1, 1]} : vector<4x128xf32> to vector<2x128xf32>
    %c5 = arith.constant 5 : index
    %c0_287 = arith.constant 0 : index
    %431 = vector.load %arg22[%c5, %c0_287] : memref<36x128xf32, #tpu.memory_space<vmem>>, vector<2x128xf32>
    tpu.vector_store %arg22[%c5, %c0_287], %430 {strides = array<i32>} : memref<36x128xf32, #tpu.memory_space<vmem>>, vector<2x128xf32>,
    %432 = vector.extract_strided_slice %426 {offsets = [2, 0], sizes = [2, 128], strides = [1, 1]} : vector<4x128xf32> to vector<2x128xf32>
    %c9 = arith.constant 9 : index
    %c0_288 = arith.constant 0 : index
    %433 = vector.load %arg22[%c9, %c0_288] : memref<36x128xf32, #tpu.memory_space<vmem>>, vector<2x128xf32>
    tpu.vector_store %arg22[%c9, %c0_288], %432 {strides = array<i32>} : memref<36x128xf32, #tpu.memory_space<vmem>>, vector<2x128xf32>,
    %c0_289 = arith.constant 0 : index
    %c0_290 = arith.constant 0 : index
    %434 = vector.load %arg22[%c0_289, %c0_290] : memref<36x128xf32, #tpu.memory_space<vmem>>, vector<6x128xf32>
    %435 = arith.truncf %434 : vector<6x128xf32> to vector<6x128xbf16>
    %c0_291 = arith.constant 0 : index
    %c0_292 = arith.constant 0 : index
    %436 = vector.load %arg14[%c0_291, %c0_292] : memref<1152x128xbf16, #tpu.memory_space<vmem>>, vector<128x128xbf16>
    %cst_293 = arith.constant dense<0.000000e+00> : vector<6x128xf32>
    %437 = tpu.matmul %435, %436, %cst_293 {dimension_numbers = #tpu.dot_dimension_numbers<[1], [0], [0], [1], [0, 0, 1, 1], [], []>} : vector<6x128xbf16>, vector<128x128xbf16>, vector<6x128xf32> -> vector<6x128xf32>
    %c1_294 = arith.constant 1 : index
    %c0_295 = arith.constant 0 : index
    %438 = vector.load %arg22[%c1_294, %c0_295] : memref<36x128xf32, #tpu.memory_space<vmem>>, vector<6x128xf32>
    %439 = arith.truncf %438 : vector<6x128xf32> to vector<6x128xbf16>
    %c128_296 = arith.constant 128 : index
    %c0_297 = arith.constant 0 : index
    %440 = vector.load %arg14[%c128_296, %c0_297] : memref<1152x128xbf16, #tpu.memory_space<vmem>>, vector<128x128xbf16>
    %cst_298 = arith.constant dense<0.000000e+00> : vector<6x128xf32>
    %441 = tpu.matmul %439, %440, %cst_298 {dimension_numbers = #tpu.dot_dimension_numbers<[1], [0], [0], [1], [0, 0, 1, 1], [], []>} : vector<6x128xbf16>, vector<128x128xbf16>, vector<6x128xf32> -> vector<6x128xf32>
    %442 = arith.addf %437, %441 : vector<6x128xf32>
    %c2_299 = arith.constant 2 : index
    %c0_300 = arith.constant 0 : index
    %443 = vector.load %arg22[%c2_299, %c0_300] : memref<36x128xf32, #tpu.memory_space<vmem>>, vector<6x128xf32>
    %444 = arith.truncf %443 : vector<6x128xf32> to vector<6x128xbf16>
    %c256_301 = arith.constant 256 : index
    %c0_302 = arith.constant 0 : index
    %445 = vector.load %arg14[%c256_301, %c0_302] : memref<1152x128xbf16, #tpu.memory_space<vmem>>, vector<128x128xbf16>
    %cst_303 = arith.constant dense<0.000000e+00> : vector<6x128xf32>
    %446 = tpu.matmul %444, %445, %cst_303 {dimension_numbers = #tpu.dot_dimension_numbers<[1], [0], [0], [1], [0, 0, 1, 1], [], []>} : vector<6x128xbf16>, vector<128x128xbf16>, vector<6x128xf32> -> vector<6x128xf32>
    %447 = arith.addf %442, %446 : vector<6x128xf32>
    %c4 = arith.constant 4 : index
    %c0_304 = arith.constant 0 : index
    %448 = vector.load %arg22[%c4, %c0_304] : memref<36x128xf32, #tpu.memory_space<vmem>>, vector<6x128xf32>
    %449 = arith.truncf %448 : vector<6x128xf32> to vector<6x128xbf16>
    %c384_305 = arith.constant 384 : index
    %c0_306 = arith.constant 0 : index
    %450 = vector.load %arg14[%c384_305, %c0_306] : memref<1152x128xbf16, #tpu.memory_space<vmem>>, vector<128x128xbf16>
    %cst_307 = arith.constant dense<0.000000e+00> : vector<6x128xf32>
    %451 = tpu.matmul %449, %450, %cst_307 {dimension_numbers = #tpu.dot_dimension_numbers<[1], [0], [0], [1], [0, 0, 1, 1], [], []>} : vector<6x128xbf16>, vector<128x128xbf16>, vector<6x128xf32> -> vector<6x128xf32>
    %452 = arith.addf %447, %451 : vector<6x128xf32>
    %c5_308 = arith.constant 5 : index
    %c0_309 = arith.constant 0 : index
    %453 = vector.load %arg22[%c5_308, %c0_309] : memref<36x128xf32, #tpu.memory_space<vmem>>, vector<6x128xf32>
    %454 = arith.truncf %453 : vector<6x128xf32> to vector<6x128xbf16>
    %c512_310 = arith.constant 512 : index
    %c0_311 = arith.constant 0 : index
    %455 = vector.load %arg14[%c512_310, %c0_311] : memref<1152x128xbf16, #tpu.memory_space<vmem>>, vector<128x128xbf16>
    %cst_312 = arith.constant dense<0.000000e+00> : vector<6x128xf32>
    %456 = tpu.matmul %454, %455, %cst_312 {dimension_numbers = #tpu.dot_dimension_numbers<[1], [0], [0], [1], [0, 0, 1, 1], [], []>} : vector<6x128xbf16>, vector<128x128xbf16>, vector<6x128xf32> -> vector<6x128xf32>
    %457 = arith.addf %452, %456 : vector<6x128xf32>
    %c6_313 = arith.constant 6 : index
    %c0_314 = arith.constant 0 : index
    %458 = vector.load %arg22[%c6_313, %c0_314] : memref<36x128xf32, #tpu.memory_space<vmem>>, vector<6x128xf32>
    %459 = arith.truncf %458 : vector<6x128xf32> to vector<6x128xbf16>
    %c640_315 = arith.constant 640 : index
    %c0_316 = arith.constant 0 : index
    %460 = vector.load %arg14[%c640_315, %c0_316] : memref<1152x128xbf16, #tpu.memory_space<vmem>>, vector<128x128xbf16>
    %cst_317 = arith.constant dense<0.000000e+00> : vector<6x128xf32>
    %461 = tpu.matmul %459, %460, %cst_317 {dimension_numbers = #tpu.dot_dimension_numbers<[1], [0], [0], [1], [0, 0, 1, 1], [], []>} : vector<6x128xbf16>, vector<128x128xbf16>, vector<6x128xf32> -> vector<6x128xf32>
    %462 = arith.addf %457, %461 : vector<6x128xf32>
    %c8_318 = arith.constant 8 : index
    %c0_319 = arith.constant 0 : index
    %463 = vector.load %arg22[%c8_318, %c0_319] : memref<36x128xf32, #tpu.memory_space<vmem>>, vector<6x128xf32>
    %464 = arith.truncf %463 : vector<6x128xf32> to vector<6x128xbf16>
    %c768_320 = arith.constant 768 : index
    %c0_321 = arith.constant 0 : index
    %465 = vector.load %arg14[%c768_320, %c0_321] : memref<1152x128xbf16, #tpu.memory_space<vmem>>, vector<128x128xbf16>
    %cst_322 = arith.constant dense<0.000000e+00> : vector<6x128xf32>
    %466 = tpu.matmul %464, %465, %cst_322 {dimension_numbers = #tpu.dot_dimension_numbers<[1], [0], [0], [1], [0, 0, 1, 1], [], []>} : vector<6x128xbf16>, vector<128x128xbf16>, vector<6x128xf32> -> vector<6x128xf32>
    %467 = arith.addf %462, %466 : vector<6x128xf32>
    %c9_323 = arith.constant 9 : index
    %c0_324 = arith.constant 0 : index
    %468 = vector.load %arg22[%c9_323, %c0_324] : memref<36x128xf32, #tpu.memory_space<vmem>>, vector<6x128xf32>
    %469 = arith.truncf %468 : vector<6x128xf32> to vector<6x128xbf16>
    %c896_325 = arith.constant 896 : index
    %c0_326 = arith.constant 0 : index
    %470 = vector.load %arg14[%c896_325, %c0_326] : memref<1152x128xbf16, #tpu.memory_space<vmem>>, vector<128x128xbf16>
    %cst_327 = arith.constant dense<0.000000e+00> : vector<6x128xf32>
    %471 = tpu.matmul %469, %470, %cst_327 {dimension_numbers = #tpu.dot_dimension_numbers<[1], [0], [0], [1], [0, 0, 1, 1], [], []>} : vector<6x128xbf16>, vector<128x128xbf16>, vector<6x128xf32> -> vector<6x128xf32>
    %472 = arith.addf %467, %471 : vector<6x128xf32>
    %c10 = arith.constant 10 : index
    %c0_328 = arith.constant 0 : index
    %473 = vector.load %arg22[%c10, %c0_328] : memref<36x128xf32, #tpu.memory_space<vmem>>, vector<6x128xf32>
    %474 = arith.truncf %473 : vector<6x128xf32> to vector<6x128xbf16>
    %c1024_329 = arith.constant 1024 : index
    %c0_330 = arith.constant 0 : index
    %475 = vector.load %arg14[%c1024_329, %c0_330] : memref<1152x128xbf16, #tpu.memory_space<vmem>>, vector<128x128xbf16>
    %cst_331 = arith.constant dense<0.000000e+00> : vector<6x128xf32>
    %476 = tpu.matmul %474, %475, %cst_331 {dimension_numbers = #tpu.dot_dimension_numbers<[1], [0], [0], [1], [0, 0, 1, 1], [], []>} : vector<6x128xbf16>, vector<128x128xbf16>, vector<6x128xf32> -> vector<6x128xf32>
    %477 = arith.addf %472, %476 : vector<6x128xf32>
    %478 = vector.extract_strided_slice %477 {offsets = [0, 0], sizes = [2, 128], strides = [1, 1]} : vector<6x128xf32> to vector<2x128xf32>
    %479 = vector.extract_strided_slice %477 {offsets = [4, 0], sizes = [2, 128], strides = [1, 1]} : vector<6x128xf32> to vector<2x128xf32>
    %480 = tpu.concatenate %478, %479 in 0 : vector<2x128xf32>, vector<2x128xf32> -> vector<4x128xf32>
    %c0_332 = arith.constant 0 : index
    %c0_333 = arith.constant 0 : index
    %481 = vector.load %arg15[%c0_332, %c0_333] : memref<1x128xf32, #tpu.memory_space<vmem>>, vector<1x128xf32>
    %482 = vector.broadcast %481 : vector<1x128xf32> to vector<4x128xf32>
    %483 = arith.addf %480, %482 : vector<4x128xf32>
    %484 = arith.addf %483, %427 : vector<4x128xf32>
    %cst_334 = arith.constant 0.000000e+00 : f32
    %485 = vector.broadcast %cst_334 : f32 to vector<4x128xf32>
    %486 = arith.maximumf %484, %485 : vector<4x128xf32>
    %cst_335 = arith.constant 0.000000e+00 : f32
    %487 = vector.broadcast %cst_335 : f32 to vector<36x128xf32>
    %c0_336 = arith.constant 0 : index
    %c0_337 = arith.constant 0 : index
    %488 = vector.load %arg21[%c0_336, %c0_337] : memref<36x128xf32, #tpu.memory_space<vmem>>, vector<36x128xf32>
    tpu.vector_store %arg21[%c0_336, %c0_337], %487 {strides = array<i32>} : memref<36x128xf32, #tpu.memory_space<vmem>>, vector<36x128xf32>,
    %489 = vector.extract_strided_slice %486 {offsets = [0, 0], sizes = [2, 128], strides = [1, 1]} : vector<4x128xf32> to vector<2x128xf32>
    %c5_338 = arith.constant 5 : index
    %c0_339 = arith.constant 0 : index
    %490 = vector.load %arg21[%c5_338, %c0_339] : memref<36x128xf32, #tpu.memory_space<vmem>>, vector<2x128xf32>
    tpu.vector_store %arg21[%c5_338, %c0_339], %489 {strides = array<i32>} : memref<36x128xf32, #tpu.memory_space<vmem>>, vector<2x128xf32>,
    %491 = vector.extract_strided_slice %486 {offsets = [2, 0], sizes = [2, 128], strides = [1, 1]} : vector<4x128xf32> to vector<2x128xf32>
    %c9_340 = arith.constant 9 : index
    %c0_341 = arith.constant 0 : index
    %492 = vector.load %arg21[%c9_340, %c0_341] : memref<36x128xf32, #tpu.memory_space<vmem>>, vector<2x128xf32>
    tpu.vector_store %arg21[%c9_340, %c0_341], %491 {strides = array<i32>} : memref<36x128xf32, #tpu.memory_space<vmem>>, vector<2x128xf32>,
    %c0_342 = arith.constant 0 : index
    %c0_343 = arith.constant 0 : index
    %493 = vector.load %arg21[%c0_342, %c0_343] : memref<36x128xf32, #tpu.memory_space<vmem>>, vector<6x128xf32>
    %494 = arith.truncf %493 : vector<6x128xf32> to vector<6x128xbf16>
    %c0_344 = arith.constant 0 : index
    %c0_345 = arith.constant 0 : index
    %495 = vector.load %arg16[%c0_344, %c0_345] : memref<1152x128xbf16, #tpu.memory_space<vmem>>, vector<128x128xbf16>
    %cst_346 = arith.constant dense<0.000000e+00> : vector<6x128xf32>
    %496 = tpu.matmul %494, %495, %cst_346 {dimension_numbers = #tpu.dot_dimension_numbers<[1], [0], [0], [1], [0, 0, 1, 1], [], []>} : vector<6x128xbf16>, vector<128x128xbf16>, vector<6x128xf32> -> vector<6x128xf32>
    %c1_347 = arith.constant 1 : index
    %c0_348 = arith.constant 0 : index
    %497 = vector.load %arg21[%c1_347, %c0_348] : memref<36x128xf32, #tpu.memory_space<vmem>>, vector<6x128xf32>
    %498 = arith.truncf %497 : vector<6x128xf32> to vector<6x128xbf16>
    %c128_349 = arith.constant 128 : index
    %c0_350 = arith.constant 0 : index
    %499 = vector.load %arg16[%c128_349, %c0_350] : memref<1152x128xbf16, #tpu.memory_space<vmem>>, vector<128x128xbf16>
    %cst_351 = arith.constant dense<0.000000e+00> : vector<6x128xf32>
    %500 = tpu.matmul %498, %499, %cst_351 {dimension_numbers = #tpu.dot_dimension_numbers<[1], [0], [0], [1], [0, 0, 1, 1], [], []>} : vector<6x128xbf16>, vector<128x128xbf16>, vector<6x128xf32> -> vector<6x128xf32>
    %501 = arith.addf %496, %500 : vector<6x128xf32>
    %c2_352 = arith.constant 2 : index
    %c0_353 = arith.constant 0 : index
    %502 = vector.load %arg21[%c2_352, %c0_353] : memref<36x128xf32, #tpu.memory_space<vmem>>, vector<6x128xf32>
    %503 = arith.truncf %502 : vector<6x128xf32> to vector<6x128xbf16>
    %c256_354 = arith.constant 256 : index
    %c0_355 = arith.constant 0 : index
    %504 = vector.load %arg16[%c256_354, %c0_355] : memref<1152x128xbf16, #tpu.memory_space<vmem>>, vector<128x128xbf16>
    %cst_356 = arith.constant dense<0.000000e+00> : vector<6x128xf32>
    %505 = tpu.matmul %503, %504, %cst_356 {dimension_numbers = #tpu.dot_dimension_numbers<[1], [0], [0], [1], [0, 0, 1, 1], [], []>} : vector<6x128xbf16>, vector<128x128xbf16>, vector<6x128xf32> -> vector<6x128xf32>
    %506 = arith.addf %501, %505 : vector<6x128xf32>
    %c4_357 = arith.constant 4 : index
    %c0_358 = arith.constant 0 : index
    %507 = vector.load %arg21[%c4_357, %c0_358] : memref<36x128xf32, #tpu.memory_space<vmem>>, vector<6x128xf32>
    %508 = arith.truncf %507 : vector<6x128xf32> to vector<6x128xbf16>
    %c384_359 = arith.constant 384 : index
    %c0_360 = arith.constant 0 : index
    %509 = vector.load %arg16[%c384_359, %c0_360] : memref<1152x128xbf16, #tpu.memory_space<vmem>>, vector<128x128xbf16>
    %cst_361 = arith.constant dense<0.000000e+00> : vector<6x128xf32>
    %510 = tpu.matmul %508, %509, %cst_361 {dimension_numbers = #tpu.dot_dimension_numbers<[1], [0], [0], [1], [0, 0, 1, 1], [], []>} : vector<6x128xbf16>, vector<128x128xbf16>, vector<6x128xf32> -> vector<6x128xf32>
    %511 = arith.addf %506, %510 : vector<6x128xf32>
    %c5_362 = arith.constant 5 : index
    %c0_363 = arith.constant 0 : index
    %512 = vector.load %arg21[%c5_362, %c0_363] : memref<36x128xf32, #tpu.memory_space<vmem>>, vector<6x128xf32>
    %513 = arith.truncf %512 : vector<6x128xf32> to vector<6x128xbf16>
    %c512_364 = arith.constant 512 : index
    %c0_365 = arith.constant 0 : index
    %514 = vector.load %arg16[%c512_364, %c0_365] : memref<1152x128xbf16, #tpu.memory_space<vmem>>, vector<128x128xbf16>
    %cst_366 = arith.constant dense<0.000000e+00> : vector<6x128xf32>
    %515 = tpu.matmul %513, %514, %cst_366 {dimension_numbers = #tpu.dot_dimension_numbers<[1], [0], [0], [1], [0, 0, 1, 1], [], []>} : vector<6x128xbf16>, vector<128x128xbf16>, vector<6x128xf32> -> vector<6x128xf32>
    %516 = arith.addf %511, %515 : vector<6x128xf32>
    %c6_367 = arith.constant 6 : index
    %c0_368 = arith.constant 0 : index
    %517 = vector.load %arg21[%c6_367, %c0_368] : memref<36x128xf32, #tpu.memory_space<vmem>>, vector<6x128xf32>
    %518 = arith.truncf %517 : vector<6x128xf32> to vector<6x128xbf16>
    %c640_369 = arith.constant 640 : index
    %c0_370 = arith.constant 0 : index
    %519 = vector.load %arg16[%c640_369, %c0_370] : memref<1152x128xbf16, #tpu.memory_space<vmem>>, vector<128x128xbf16>
    %cst_371 = arith.constant dense<0.000000e+00> : vector<6x128xf32>
    %520 = tpu.matmul %518, %519, %cst_371 {dimension_numbers = #tpu.dot_dimension_numbers<[1], [0], [0], [1], [0, 0, 1, 1], [], []>} : vector<6x128xbf16>, vector<128x128xbf16>, vector<6x128xf32> -> vector<6x128xf32>
    %521 = arith.addf %516, %520 : vector<6x128xf32>
    %c8_372 = arith.constant 8 : index
    %c0_373 = arith.constant 0 : index
    %522 = vector.load %arg21[%c8_372, %c0_373] : memref<36x128xf32, #tpu.memory_space<vmem>>, vector<6x128xf32>
    %523 = arith.truncf %522 : vector<6x128xf32> to vector<6x128xbf16>
    %c768_374 = arith.constant 768 : index
    %c0_375 = arith.constant 0 : index
    %524 = vector.load %arg16[%c768_374, %c0_375] : memref<1152x128xbf16, #tpu.memory_space<vmem>>, vector<128x128xbf16>
    %cst_376 = arith.constant dense<0.000000e+00> : vector<6x128xf32>
    %525 = tpu.matmul %523, %524, %cst_376 {dimension_numbers = #tpu.dot_dimension_numbers<[1], [0], [0], [1], [0, 0, 1, 1], [], []>} : vector<6x128xbf16>, vector<128x128xbf16>, vector<6x128xf32> -> vector<6x128xf32>
    %526 = arith.addf %521, %525 : vector<6x128xf32>
    %c9_377 = arith.constant 9 : index
    %c0_378 = arith.constant 0 : index
    %527 = vector.load %arg21[%c9_377, %c0_378] : memref<36x128xf32, #tpu.memory_space<vmem>>, vector<6x128xf32>
    %528 = arith.truncf %527 : vector<6x128xf32> to vector<6x128xbf16>
    %c896_379 = arith.constant 896 : index
    %c0_380 = arith.constant 0 : index
    %529 = vector.load %arg16[%c896_379, %c0_380] : memref<1152x128xbf16, #tpu.memory_space<vmem>>, vector<128x128xbf16>
    %cst_381 = arith.constant dense<0.000000e+00> : vector<6x128xf32>
    %530 = tpu.matmul %528, %529, %cst_381 {dimension_numbers = #tpu.dot_dimension_numbers<[1], [0], [0], [1], [0, 0, 1, 1], [], []>} : vector<6x128xbf16>, vector<128x128xbf16>, vector<6x128xf32> -> vector<6x128xf32>
    %531 = arith.addf %526, %530 : vector<6x128xf32>
    %c10_382 = arith.constant 10 : index
    %c0_383 = arith.constant 0 : index
    %532 = vector.load %arg21[%c10_382, %c0_383] : memref<36x128xf32, #tpu.memory_space<vmem>>, vector<6x128xf32>
    %533 = arith.truncf %532 : vector<6x128xf32> to vector<6x128xbf16>
    %c1024_384 = arith.constant 1024 : index
    %c0_385 = arith.constant 0 : index
    %534 = vector.load %arg16[%c1024_384, %c0_385] : memref<1152x128xbf16, #tpu.memory_space<vmem>>, vector<128x128xbf16>
    %cst_386 = arith.constant dense<0.000000e+00> : vector<6x128xf32>
    %535 = tpu.matmul %533, %534, %cst_386 {dimension_numbers = #tpu.dot_dimension_numbers<[1], [0], [0], [1], [0, 0, 1, 1], [], []>} : vector<6x128xbf16>, vector<128x128xbf16>, vector<6x128xf32> -> vector<6x128xf32>
    %536 = arith.addf %531, %535 : vector<6x128xf32>
    %537 = vector.extract_strided_slice %536 {offsets = [0, 0], sizes = [2, 128], strides = [1, 1]} : vector<6x128xf32> to vector<2x128xf32>
    %538 = vector.extract_strided_slice %536 {offsets = [4, 0], sizes = [2, 128], strides = [1, 1]} : vector<6x128xf32> to vector<2x128xf32>
    %539 = tpu.concatenate %537, %538 in 0 : vector<2x128xf32>, vector<2x128xf32> -> vector<4x128xf32>
    %c0_387 = arith.constant 0 : index
    %c0_388 = arith.constant 0 : index
    %540 = vector.load %arg17[%c0_387, %c0_388] : memref<1x128xf32, #tpu.memory_space<vmem>>, vector<1x128xf32>
    %541 = vector.broadcast %540 : vector<1x128xf32> to vector<4x128xf32>
    %542 = arith.addf %539, %541 : vector<4x128xf32>
    %cst_389 = arith.constant 0.000000e+00 : f32
    %543 = vector.broadcast %cst_389 : f32 to vector<4x128xf32>
    %544 = arith.maximumf %542, %543 : vector<4x128xf32>
    %cst_390 = arith.constant 0.000000e+00 : f32
    %545 = vector.broadcast %cst_390 : f32 to vector<36x128xf32>
    %c0_391 = arith.constant 0 : index
    %c0_392 = arith.constant 0 : index
    %546 = vector.load %arg22[%c0_391, %c0_392] : memref<36x128xf32, #tpu.memory_space<vmem>>, vector<36x128xf32>
    tpu.vector_store %arg22[%c0_391, %c0_392], %545 {strides = array<i32>} : memref<36x128xf32, #tpu.memory_space<vmem>>, vector<36x128xf32>,
    %547 = vector.extract_strided_slice %544 {offsets = [0, 0], sizes = [2, 128], strides = [1, 1]} : vector<4x128xf32> to vector<2x128xf32>
    %c5_393 = arith.constant 5 : index
    %c0_394 = arith.constant 0 : index
    %548 = vector.load %arg22[%c5_393, %c0_394] : memref<36x128xf32, #tpu.memory_space<vmem>>, vector<2x128xf32>
    tpu.vector_store %arg22[%c5_393, %c0_394], %547 {strides = array<i32>} : memref<36x128xf32, #tpu.memory_space<vmem>>, vector<2x128xf32>,
    %549 = vector.extract_strided_slice %544 {offsets = [2, 0], sizes = [2, 128], strides = [1, 1]} : vector<4x128xf32> to vector<2x128xf32>
    %c9_395 = arith.constant 9 : index
    %c0_396 = arith.constant 0 : index
    %550 = vector.load %arg22[%c9_395, %c0_396] : memref<36x128xf32, #tpu.memory_space<vmem>>, vector<2x128xf32>
    tpu.vector_store %arg22[%c9_395, %c0_396], %549 {strides = array<i32>} : memref<36x128xf32, #tpu.memory_space<vmem>>, vector<2x128xf32>,
    %c0_397 = arith.constant 0 : index
    %c0_398 = arith.constant 0 : index
    %551 = vector.load %arg22[%c0_397, %c0_398] : memref<36x128xf32, #tpu.memory_space<vmem>>, vector<6x128xf32>
    %552 = arith.truncf %551 : vector<6x128xf32> to vector<6x128xbf16>
    %c0_399 = arith.constant 0 : index
    %c0_400 = arith.constant 0 : index
    %553 = vector.load %arg18[%c0_399, %c0_400] : memref<1152x128xbf16, #tpu.memory_space<vmem>>, vector<128x128xbf16>
    %cst_401 = arith.constant dense<0.000000e+00> : vector<6x128xf32>
    %554 = tpu.matmul %552, %553, %cst_401 {dimension_numbers = #tpu.dot_dimension_numbers<[1], [0], [0], [1], [0, 0, 1, 1], [], []>} : vector<6x128xbf16>, vector<128x128xbf16>, vector<6x128xf32> -> vector<6x128xf32>
    %c1_402 = arith.constant 1 : index
    %c0_403 = arith.constant 0 : index
    %555 = vector.load %arg22[%c1_402, %c0_403] : memref<36x128xf32, #tpu.memory_space<vmem>>, vector<6x128xf32>
    %556 = arith.truncf %555 : vector<6x128xf32> to vector<6x128xbf16>
    %c128_404 = arith.constant 128 : index
    %c0_405 = arith.constant 0 : index
    %557 = vector.load %arg18[%c128_404, %c0_405] : memref<1152x128xbf16, #tpu.memory_space<vmem>>, vector<128x128xbf16>
    %cst_406 = arith.constant dense<0.000000e+00> : vector<6x128xf32>
    %558 = tpu.matmul %556, %557, %cst_406 {dimension_numbers = #tpu.dot_dimension_numbers<[1], [0], [0], [1], [0, 0, 1, 1], [], []>} : vector<6x128xbf16>, vector<128x128xbf16>, vector<6x128xf32> -> vector<6x128xf32>
    %559 = arith.addf %554, %558 : vector<6x128xf32>
    %c2_407 = arith.constant 2 : index
    %c0_408 = arith.constant 0 : index
    %560 = vector.load %arg22[%c2_407, %c0_408] : memref<36x128xf32, #tpu.memory_space<vmem>>, vector<6x128xf32>
    %561 = arith.truncf %560 : vector<6x128xf32> to vector<6x128xbf16>
    %c256_409 = arith.constant 256 : index
    %c0_410 = arith.constant 0 : index
    %562 = vector.load %arg18[%c256_409, %c0_410] : memref<1152x128xbf16, #tpu.memory_space<vmem>>, vector<128x128xbf16>
    %cst_411 = arith.constant dense<0.000000e+00> : vector<6x128xf32>
    %563 = tpu.matmul %561, %562, %cst_411 {dimension_numbers = #tpu.dot_dimension_numbers<[1], [0], [0], [1], [0, 0, 1, 1], [], []>} : vector<6x128xbf16>, vector<128x128xbf16>, vector<6x128xf32> -> vector<6x128xf32>
    %564 = arith.addf %559, %563 : vector<6x128xf32>
    %c4_412 = arith.constant 4 : index
    %c0_413 = arith.constant 0 : index
    %565 = vector.load %arg22[%c4_412, %c0_413] : memref<36x128xf32, #tpu.memory_space<vmem>>, vector<6x128xf32>
    %566 = arith.truncf %565 : vector<6x128xf32> to vector<6x128xbf16>
    %c384_414 = arith.constant 384 : index
    %c0_415 = arith.constant 0 : index
    %567 = vector.load %arg18[%c384_414, %c0_415] : memref<1152x128xbf16, #tpu.memory_space<vmem>>, vector<128x128xbf16>
    %cst_416 = arith.constant dense<0.000000e+00> : vector<6x128xf32>
    %568 = tpu.matmul %566, %567, %cst_416 {dimension_numbers = #tpu.dot_dimension_numbers<[1], [0], [0], [1], [0, 0, 1, 1], [], []>} : vector<6x128xbf16>, vector<128x128xbf16>, vector<6x128xf32> -> vector<6x128xf32>
    %569 = arith.addf %564, %568 : vector<6x128xf32>
    %c5_417 = arith.constant 5 : index
    %c0_418 = arith.constant 0 : index
    %570 = vector.load %arg22[%c5_417, %c0_418] : memref<36x128xf32, #tpu.memory_space<vmem>>, vector<6x128xf32>
    %571 = arith.truncf %570 : vector<6x128xf32> to vector<6x128xbf16>
    %c512_419 = arith.constant 512 : index
    %c0_420 = arith.constant 0 : index
    %572 = vector.load %arg18[%c512_419, %c0_420] : memref<1152x128xbf16, #tpu.memory_space<vmem>>, vector<128x128xbf16>
    %cst_421 = arith.constant dense<0.000000e+00> : vector<6x128xf32>
    %573 = tpu.matmul %571, %572, %cst_421 {dimension_numbers = #tpu.dot_dimension_numbers<[1], [0], [0], [1], [0, 0, 1, 1], [], []>} : vector<6x128xbf16>, vector<128x128xbf16>, vector<6x128xf32> -> vector<6x128xf32>
    %574 = arith.addf %569, %573 : vector<6x128xf32>
    %c6_422 = arith.constant 6 : index
    %c0_423 = arith.constant 0 : index
    %575 = vector.load %arg22[%c6_422, %c0_423] : memref<36x128xf32, #tpu.memory_space<vmem>>, vector<6x128xf32>
    %576 = arith.truncf %575 : vector<6x128xf32> to vector<6x128xbf16>
    %c640_424 = arith.constant 640 : index
    %c0_425 = arith.constant 0 : index
    %577 = vector.load %arg18[%c640_424, %c0_425] : memref<1152x128xbf16, #tpu.memory_space<vmem>>, vector<128x128xbf16>
    %cst_426 = arith.constant dense<0.000000e+00> : vector<6x128xf32>
    %578 = tpu.matmul %576, %577, %cst_426 {dimension_numbers = #tpu.dot_dimension_numbers<[1], [0], [0], [1], [0, 0, 1, 1], [], []>} : vector<6x128xbf16>, vector<128x128xbf16>, vector<6x128xf32> -> vector<6x128xf32>
    %579 = arith.addf %574, %578 : vector<6x128xf32>
    %c8_427 = arith.constant 8 : index
    %c0_428 = arith.constant 0 : index
    %580 = vector.load %arg22[%c8_427, %c0_428] : memref<36x128xf32, #tpu.memory_space<vmem>>, vector<6x128xf32>
    %581 = arith.truncf %580 : vector<6x128xf32> to vector<6x128xbf16>
    %c768_429 = arith.constant 768 : index
    %c0_430 = arith.constant 0 : index
    %582 = vector.load %arg18[%c768_429, %c0_430] : memref<1152x128xbf16, #tpu.memory_space<vmem>>, vector<128x128xbf16>
    %cst_431 = arith.constant dense<0.000000e+00> : vector<6x128xf32>
    %583 = tpu.matmul %581, %582, %cst_431 {dimension_numbers = #tpu.dot_dimension_numbers<[1], [0], [0], [1], [0, 0, 1, 1], [], []>} : vector<6x128xbf16>, vector<128x128xbf16>, vector<6x128xf32> -> vector<6x128xf32>
    %584 = arith.addf %579, %583 : vector<6x128xf32>
    %c9_432 = arith.constant 9 : index
    %c0_433 = arith.constant 0 : index
    %585 = vector.load %arg22[%c9_432, %c0_433] : memref<36x128xf32, #tpu.memory_space<vmem>>, vector<6x128xf32>
    %586 = arith.truncf %585 : vector<6x128xf32> to vector<6x128xbf16>
    %c896_434 = arith.constant 896 : index
    %c0_435 = arith.constant 0 : index
    %587 = vector.load %arg18[%c896_434, %c0_435] : memref<1152x128xbf16, #tpu.memory_space<vmem>>, vector<128x128xbf16>
    %cst_436 = arith.constant dense<0.000000e+00> : vector<6x128xf32>
    %588 = tpu.matmul %586, %587, %cst_436 {dimension_numbers = #tpu.dot_dimension_numbers<[1], [0], [0], [1], [0, 0, 1, 1], [], []>} : vector<6x128xbf16>, vector<128x128xbf16>, vector<6x128xf32> -> vector<6x128xf32>
    %589 = arith.addf %584, %588 : vector<6x128xf32>
    %c10_437 = arith.constant 10 : index
    %c0_438 = arith.constant 0 : index
    %590 = vector.load %arg22[%c10_437, %c0_438] : memref<36x128xf32, #tpu.memory_space<vmem>>, vector<6x128xf32>
    %591 = arith.truncf %590 : vector<6x128xf32> to vector<6x128xbf16>
    %c1024_439 = arith.constant 1024 : index
    %c0_440 = arith.constant 0 : index
    %592 = vector.load %arg18[%c1024_439, %c0_440] : memref<1152x128xbf16, #tpu.memory_space<vmem>>, vector<128x128xbf16>
    %cst_441 = arith.constant dense<0.000000e+00> : vector<6x128xf32>
    %593 = tpu.matmul %591, %592, %cst_441 {dimension_numbers = #tpu.dot_dimension_numbers<[1], [0], [0], [1], [0, 0, 1, 1], [], []>} : vector<6x128xbf16>, vector<128x128xbf16>, vector<6x128xf32> -> vector<6x128xf32>
    %594 = arith.addf %589, %593 : vector<6x128xf32>
    %595 = vector.extract_strided_slice %594 {offsets = [0, 0], sizes = [2, 128], strides = [1, 1]} : vector<6x128xf32> to vector<2x128xf32>
    %596 = vector.extract_strided_slice %594 {offsets = [4, 0], sizes = [2, 128], strides = [1, 1]} : vector<6x128xf32> to vector<2x128xf32>
    %597 = tpu.concatenate %595, %596 in 0 : vector<2x128xf32>, vector<2x128xf32> -> vector<4x128xf32>
    %c0_442 = arith.constant 0 : index
    %c0_443 = arith.constant 0 : index
    %598 = vector.load %arg19[%c0_442, %c0_443] : memref<1x128xf32, #tpu.memory_space<vmem>>, vector<1x128xf32>
    %599 = vector.broadcast %598 : vector<1x128xf32> to vector<4x128xf32>
    %600 = arith.addf %597, %599 : vector<4x128xf32>
    %601 = arith.addf %600, %486 : vector<4x128xf32>
    %cst_444 = arith.constant 0.000000e+00 : f32
    %602 = vector.broadcast %cst_444 : f32 to vector<4x128xf32>
    %603 = arith.maximumf %601, %602 : vector<4x128xf32>
    %c0_445 = arith.constant 0 : index
    %c0_446 = arith.constant 0 : index
    %c0_447 = arith.constant 0 : index
    %604 = vector.load %arg20[%c0_445, %c0_446, %c0_447] : memref<1x4x128xf32, #tpu.memory_space<vmem>>, vector<1x4x128xf32>
    %605 = vector.shape_cast %604 : vector<1x4x128xf32> to vector<4x128xf32>
    %606 = vector.shape_cast %603 : vector<4x128xf32> to vector<1x4x128xf32>
    tpu.vector_store %arg20[%c0_445, %c0_446, %c0_447], %606 {strides = array<i32>} : memref<1x4x128xf32, #tpu.memory_space<vmem>>, vector<1x4x128xf32>,
    return
  }
  func.func @transform_0(%arg0: i32) -> (i32, i32, i32) {
    %c0_i32 = arith.constant 0 : i32
    %c0_i32_0 = arith.constant 0 : i32
    %c0_i32_1 = arith.constant 0 : i32
    return %arg0, %c0_i32, %c0_i32_0 : i32, i32, i32
  }
  func.func @transform_1(%arg0: i32) -> (i32, i32) {
    %c0_i32 = arith.constant 0 : i32
    %c0_i32_0 = arith.constant 0 : i32
    %c0_i32_1 = arith.constant 0 : i32
    return %c0_i32, %c0_i32_0 : i32, i32
  }
  func.func @transform_2(%arg0: i32) -> (i32, i32) {
    %c0_i32 = arith.constant 0 : i32
    %c0_i32_0 = arith.constant 0 : i32
    %c0_i32_1 = arith.constant 0 : i32
    return %c0_i32, %c0_i32_0 : i32, i32
  }
  func.func @transform_3(%arg0: i32) -> (i32, i32) {
    %c0_i32 = arith.constant 0 : i32
    %c0_i32_0 = arith.constant 0 : i32
    %c0_i32_1 = arith.constant 0 : i32
    return %c0_i32, %c0_i32_0 : i32, i32
  }
  func.func @transform_4(%arg0: i32) -> (i32, i32) {
    %c0_i32 = arith.constant 0 : i32
    %c0_i32_0 = arith.constant 0 : i32
    %c0_i32_1 = arith.constant 0 : i32
    return %c0_i32, %c0_i32_0 : i32, i32
  }
  func.func @transform_5(%arg0: i32) -> (i32, i32) {
    %c0_i32 = arith.constant 0 : i32
    %c0_i32_0 = arith.constant 0 : i32
    %c0_i32_1 = arith.constant 0 : i32
    return %c0_i32, %c0_i32_0 : i32, i32
  }
  func.func @transform_6(%arg0: i32) -> (i32, i32) {
    %c0_i32 = arith.constant 0 : i32
    %c0_i32_0 = arith.constant 0 : i32
    %c0_i32_1 = arith.constant 0 : i32
    return %c0_i32, %c0_i32_0 : i32, i32
  }
  func.func @transform_7(%arg0: i32) -> (i32, i32) {
    %c0_i32 = arith.constant 0 : i32
    %c0_i32_0 = arith.constant 0 : i32
    %c0_i32_1 = arith.constant 0 : i32
    return %c0_i32, %c0_i32_0 : i32, i32
  }
  func.func @transform_8(%arg0: i32) -> (i32, i32) {
    %c0_i32 = arith.constant 0 : i32
    %c0_i32_0 = arith.constant 0 : i32
    %c0_i32_1 = arith.constant 0 : i32
    return %c0_i32, %c0_i32_0 : i32, i32
  }
  func.func @transform_9(%arg0: i32) -> (i32, i32) {
    %c0_i32 = arith.constant 0 : i32
    %c0_i32_0 = arith.constant 0 : i32
    %c0_i32_1 = arith.constant 0 : i32
    return %c0_i32, %c0_i32_0 : i32, i32
  }
  func.func @transform_10(%arg0: i32) -> (i32, i32) {
    %c0_i32 = arith.constant 0 : i32
    %c0_i32_0 = arith.constant 0 : i32
    %c0_i32_1 = arith.constant 0 : i32
    return %c0_i32, %c0_i32_0 : i32, i32
  }
  func.func @transform_11(%arg0: i32) -> (i32, i32) {
    %c0_i32 = arith.constant 0 : i32
    %c0_i32_0 = arith.constant 0 : i32
    %c0_i32_1 = arith.constant 0 : i32
    return %c0_i32, %c0_i32_0 : i32, i32
  }
  func.func @transform_12(%arg0: i32) -> (i32, i32) {
    %c0_i32 = arith.constant 0 : i32
    %c0_i32_0 = arith.constant 0 : i32
    %c0_i32_1 = arith.constant 0 : i32
    return %c0_i32, %c0_i32_0 : i32, i32
  }
  func.func @transform_13(%arg0: i32) -> (i32, i32) {
    %c0_i32 = arith.constant 0 : i32
    %c0_i32_0 = arith.constant 0 : i32
    %c0_i32_1 = arith.constant 0 : i32
    return %c0_i32, %c0_i32_0 : i32, i32
  }
  func.func @transform_14(%arg0: i32) -> (i32, i32) {
    %c0_i32 = arith.constant 0 : i32
    %c0_i32_0 = arith.constant 0 : i32
    %c0_i32_1 = arith.constant 0 : i32
    return %c0_i32, %c0_i32_0 : i32, i32
  }
  func.func @transform_15(%arg0: i32) -> (i32, i32) {
    %c0_i32 = arith.constant 0 : i32
    %c0_i32_0 = arith.constant 0 : i32
    %c0_i32_1 = arith.constant 0 : i32
    return %c0_i32, %c0_i32_0 : i32, i32
  }
  func.func @transform_16(%arg0: i32) -> (i32, i32) {
    %c0_i32 = arith.constant 0 : i32
    %c0_i32_0 = arith.constant 0 : i32
    %c0_i32_1 = arith.constant 0 : i32
    return %c0_i32, %c0_i32_0 : i32, i32
  }
  func.func @transform_17(%arg0: i32) -> (i32, i32) {
    %c0_i32 = arith.constant 0 : i32
    %c0_i32_0 = arith.constant 0 : i32
    %c0_i32_1 = arith.constant 0 : i32
    return %c0_i32, %c0_i32_0 : i32, i32
  }
  func.func @transform_18(%arg0: i32) -> (i32, i32) {
    %c0_i32 = arith.constant 0 : i32
    %c0_i32_0 = arith.constant 0 : i32
    %c0_i32_1 = arith.constant 0 : i32
    return %c0_i32, %c0_i32_0 : i32, i32
  }
  func.func @transform_19(%arg0: i32) -> (i32, i32, i32) {
    %c0_i32 = arith.constant 0 : i32
    %c0_i32_0 = arith.constant 0 : i32
    %c0_i32_1 = arith.constant 0 : i32
    return %arg0, %c0_i32, %c0_i32_0 : i32, i32, i32
  }
}

</mosaic_0001>

<llo_original>
// kernel: stem_forward.1
$region0: #{stem_forward.1}
  #allocation0 [shape = 'u32[]', space=smem, size = 0x4, offset = 0x4, fixed_abs, tag = 'smem constant byte address 0x4 - core index']
  #allocation1 [shape = 'u32[144,128]{1,0:T(1,128)}', space=vmem, size = 0x12000, scoped, tag = 'internal scratch']
  #allocation2 [shape = 'f32[36,128]{1,0:T(8,128)}', space=vmem, size = 0x5000, scoped, tag = 'scratch operand']
  #allocation3 [shape = 'f32[36,128]{1,0:T(8,128)}', space=vmem, size = 0x5000, scoped, tag = 'scratch operand']
  %s0 = inlined_call_operand.vmem [shape: bf16[2,64,256], index: 0, kind: input, shape index: {}]
  %s1 = inlined_call_operand.vmem [shape: bf16[256,128], index: 1, kind: input, shape index: {}]
  %s2 = inlined_call_operand.vmem [shape: f32[1,128], index: 2, kind: input, shape index: {}]
  %s3 = inlined_call_operand.vmem [shape: bf16[1152,128], index: 3, kind: input, shape index: {}]
  %s4 = inlined_call_operand.vmem [shape: f32[1,128], index: 4, kind: input, shape index: {}]
  %s5 = inlined_call_operand.vmem [shape: bf16[1152,128], index: 5, kind: input, shape index: {}]
  %s6 = inlined_call_operand.vmem [shape: f32[1,128], index: 6, kind: input, shape index: {}]
  %s7 = inlined_call_operand.vmem [shape: bf16[1152,128], index: 7, kind: input, shape index: {}]
  %s8 = inlined_call_operand.vmem [shape: f32[1,128], index: 8, kind: input, shape index: {}]
  %s9 = inlined_call_operand.vmem [shape: bf16[1152,128], index: 9, kind: input, shape index: {}]
  %s10 = inlined_call_operand.vmem [shape: f32[1,128], index: 10, kind: input, shape index: {}]
  %s11 = inlined_call_operand.vmem [shape: bf16[1152,256], index: 11, kind: input, shape index: {}]
  %s12 = inlined_call_operand.vmem [shape: f32[1,256], index: 12, kind: input, shape index: {}]
  %s13 = inlined_call_operand.vmem [shape: bf16[1152,128], index: 13, kind: input, shape index: {}]
  %s14 = inlined_call_operand.vmem [shape: f32[1,128], index: 14, kind: input, shape index: {}]
  %s15 = inlined_call_operand.vmem [shape: bf16[1152,128], index: 15, kind: input, shape index: {}]
  %s16 = inlined_call_operand.vmem [shape: f32[1,128], index: 16, kind: input, shape index: {}]
  %s17 = inlined_call_operand.vmem [shape: bf16[1152,128], index: 17, kind: input, shape index: {}]
  %s18 = inlined_call_operand.vmem [shape: f32[1,128], index: 18, kind: input, shape index: {}]
  %s19 = inlined_call_operand.hbm [shape: f32[2,4,128], index: 19, kind: output, shape index: {}]
  %s20 = sld [smem:[#allocation0]]
  $region109: #{stem_forward.1} parent=0
    _
  %s22 = ssub.s32 1, %s20
  %s23 = scalar_select 0, %s22, %s20
  $region1: #{stem_forward.1} parent=0
    #allocation4 [shape = 'u8[4096]{0}', space=vmem, size = 0x1000, scoped, tag = 'output window, operand 0']
    #allocation5 [shape = 's32[2]{0}', space=sflag, size = 0x8, scoped, tag = 'scoped memory for stem_forward.1']
    %24 = vsyncpa [#allocation5], 0
    %s25 = scalar_lea.sflag [#allocation5], 1
    %26 = vsyncpa %s25, 0
    loop: start=0, step=1, limit=4
    $region2: #{stem_forward.1} parent=1 // loop_pre_header
      _
    $region3: #{stem_forward.1} parent=1 // loop_header
      %s28 = sphi 0, %s32
      %p29 = scmp.ge.s32.totalorder %s28, 4
      %s38 = sphi 0, %s40
      %s41 = sphi 0, %s38
      %s42 = sphi 0, %s41
      %s58 = sphi 0, %s42
      %s62 = sphi 0, %s62
      %s64 = sphi 0, %s62
      %s65 = sphi 0, %s64
      %s79 = sphi 0, %s65
      %s83 = sphi 0, %s83
      %s85 = sphi 0, %s83
      %s86 = sphi 0, %s85
      %s100 = sphi 0, %s86
      %s104 = sphi 0, %s104
      %s106 = sphi 0, %s104
      %s107 = sphi 0, %s106
      %s121 = sphi 0, %s107
      %s125 = sphi 0, %s125
      %s127 = sphi 0, %s125
      %s128 = sphi 0, %s127
      %s142 = sphi 0, %s128
      %s146 = sphi 0, %s146
      %s148 = sphi 0, %s146
      %s149 = sphi 0, %s148
      %s163 = sphi 0, %s149
      %s167 = sphi 0, %s167
      %s169 = sphi 0, %s167
      %s170 = sphi 0, %s169
      %s184 = sphi 0, %s170
      %s188 = sphi 0, %s188
      %s190 = sphi 0, %s188
      %s191 = sphi 0, %s190
      %s205 = sphi 0, %s191
      %s209 = sphi 0, %s209
      %s211 = sphi 0, %s209
      %s212 = sphi 0, %s211
      %s226 = sphi 0, %s212
      %s230 = sphi 0, %s230
      %s232 = sphi 0, %s230
      %s233 = sphi 0, %s232
      %s247 = sphi 0, %s233
      %s251 = sphi 0, %s251
      %s253 = sphi 0, %s251
      %s254 = sphi 0, %s253
      %s268 = sphi 0, %s254
      %s272 = sphi 0, %s272
      %s274 = sphi 0, %s272
      %s275 = sphi 0, %s274
      %s289 = sphi 0, %s275
      %s293 = sphi 0, %s293
      %s295 = sphi 0, %s293
      %s296 = sphi 0, %s295
      %s310 = sphi 0, %s296
      %s314 = sphi 0, %s314
      %s316 = sphi 0, %s314
      %s317 = sphi 0, %s316
      %s331 = sphi 0, %s317
      %s335 = sphi 0, %s335
      %s337 = sphi 0, %s335
      %s338 = sphi 0, %s337
      %s352 = sphi 0, %s338
      %s356 = sphi 0, %s356
      %s358 = sphi 0, %s356
      %s359 = sphi 0, %s358
      %s373 = sphi 0, %s359
      %s377 = sphi 0, %s377
      %s379 = sphi 0, %s377
      %s380 = sphi 0, %s379
      %s394 = sphi 0, %s380
      %s398 = sphi 0, %s398
      %s400 = sphi 0, %s398
      %s401 = sphi 0, %s400
      %s415 = sphi 0, %s401
      %s419 = sphi 0, %s419
      %s421 = sphi 0, %s419
      %s422 = sphi 0, %s421
      %s436 = sphi 0, %s422
      %s442 = sphi 0, %s444
      %s445 = sphi 0, %s442
      %s446 = sphi 0, %s445
      %s462 = sphi 0, %s446
    $region4: #{stem_forward.1} parent=1 // loop_header_branch
      %31 = sbr.rel (%p29) target = $region8
    $region5: #{stem_forward.1} parent=1 // loop_body
      %s33 = ssub.s32 %s28, 1
      %s34 = ssub.s32 %s28, 2
      %s35 = sadd.s32 %s28, 1
      %s36 = ssub.s32 %s28, %s35
      %p37 = scmp.eq.s32.totalorder %s36, 0
      %s39 = sadd.s32 %s38, 1
      %s40 = scalar_select %p37, %s38, %s39
      %p43 = pneg %p37
      %p44 = scmp.eq.s32.totalorder %s28, 1
      %p45 = por %p43, %p44
      %p46 = scmp.ne.s32.totalorder %s38, %s41
      %p47 = scmp.eq.s32.totalorder %s28, 0
      %p48 = por %p46, %p47
      %p49 = scmp.ne.s32.totalorder %s38, %s41
      %p50 = scmp.eq.s32.totalorder %s33, 1
      %p51 = por %p49, %p50
      %p52 = scmp.ne.s32.totalorder %s41, %s42
      %p53 = scmp.eq.s32.totalorder %s33, 0
      %p54 = por %p52, %p53
      %p55 = scmp.ne.s32.totalorder %s41, %s42
      %p56 = scmp.eq.s32.totalorder %s34, 1
      %p57 = por %p55, %p56
      %p59 = scmp.ne.s32.totalorder %s42, %s58
      %p60 = scmp.eq.s32.totalorder %s34, 0
      %p61 = por %p59, %p60
      %s63 = sadd.s32 %s62, 1
      %p66 = scmp.eq.s32.totalorder %s28, 1
      %p67 = scmp.ne.s32.totalorder %s62, %s64
      %p68 = scmp.eq.s32.totalorder %s28, 0
      %p69 = por %p67, %p68
      %p70 = scmp.ne.s32.totalorder %s62, %s64
      %p71 = scmp.eq.s32.totalorder %s33, 1
      %p72 = por %p70, %p71
      %p73 = scmp.ne.s32.totalorder %s64, %s65
      %p74 = scmp.eq.s32.totalorder %s33, 0
      %p75 = por %p73, %p74
      %p76 = scmp.ne.s32.totalorder %s64, %s65
      %p77 = scmp.eq.s32.totalorder %s34, 1
      %p78 = por %p76, %p77
      %p80 = scmp.ne.s32.totalorder %s65, %s79
      %p81 = scmp.eq.s32.totalorder %s34, 0
      %p82 = por %p80, %p81
      %s84 = sadd.s32 %s83, 1
      %p87 = scmp.eq.s32.totalorder %s28, 1
      %p88 = scmp.ne.s32.totalorder %s83, %s85
      %p89 = scmp.eq.s32.totalorder %s28, 0
      %p90 = por %p88, %p89
      %p91 = scmp.ne.s32.totalorder %s83, %s85
      %p92 = scmp.eq.s32.totalorder %s33, 1
      %p93 = por %p91, %p92
      %p94 = scmp.ne.s32.totalorder %s85, %s86
      %p95 = scmp.eq.s32.totalorder %s33, 0
      %p96 = por %p94, %p95
      %p97 = scmp.ne.s32.totalorder %s85, %s86
      %p98 = scmp.eq.s32.totalorder %s34, 1
      %p99 = por %p97, %p98
      %p101 = scmp.ne.s32.totalorder %s86, %s100
      %p102 = scmp.eq.s32.totalorder %s34, 0
      %p103 = por %p101, %p102
      %s105 = sadd.s32 %s104, 1
      %p108 = scmp.eq.s32.totalorder %s28, 1
      %p109 = scmp.ne.s32.totalorder %s104, %s106
      %p110 = scmp.eq.s32.totalorder %s28, 0
      %p111 = por %p109, %p110
      %p112 = scmp.ne.s32.totalorder %s104, %s106
      %p113 = scmp.eq.s32.totalorder %s33, 1
      %p114 = por %p112, %p113
      %p115 = scmp.ne.s32.totalorder %s106, %s107
      %p116 = scmp.eq.s32.totalorder %s33, 0
      %p117 = por %p115, %p116
      %p118 = scmp.ne.s32.totalorder %s106, %s107
      %p119 = scmp.eq.s32.totalorder %s34, 1
      %p120 = por %p118, %p119
      %p122 = scmp.ne.s32.totalorder %s107, %s121
      %p123 = scmp.eq.s32.totalorder %s34, 0
      %p124 = por %p122, %p123
      %s126 = sadd.s32 %s125, 1
      %p129 = scmp.eq.s32.totalorder %s28, 1
      %p130 = scmp.ne.s32.totalorder %s125, %s127
      %p131 = scmp.eq.s32.totalorder %s28, 0
      %p132 = por %p130, %p131
      %p133 = scmp.ne.s32.totalorder %s125, %s127
      %p134 = scmp.eq.s32.totalorder %s33, 1
      %p135 = por %p133, %p134
      %p136 = scmp.ne.s32.totalorder %s127, %s128
      %p137 = scmp.eq.s32.totalorder %s33, 0
      %p138 = por %p136, %p137
      %p139 = scmp.ne.s32.totalorder %s127, %s128
      %p140 = scmp.eq.s32.totalorder %s34, 1
      %p141 = por %p139, %p140
      %p143 = scmp.ne.s32.totalorder %s128, %s142
      %p144 = scmp.eq.s32.totalorder %s34, 0
      %p145 = por %p143, %p144
      %s147 = sadd.s32 %s146, 1
      %p150 = scmp.eq.s32.totalorder %s28, 1
      %p151 = scmp.ne.s32.totalorder %s146, %s148
      %p152 = scmp.eq.s32.totalorder %s28, 0
      %p153 = por %p151, %p152
      %p154 = scmp.ne.s32.totalorder %s146, %s148
      %p155 = scmp.eq.s32.totalorder %s33, 1
      %p156 = por %p154, %p155
      %p157 = scmp.ne.s32.totalorder %s148, %s149
      %p158 = scmp.eq.s32.totalorder %s33, 0
      %p159 = por %p157, %p158
      %p160 = scmp.ne.s32.totalorder %s148, %s149
      %p161 = scmp.eq.s32.totalorder %s34, 1
      %p162 = por %p160, %p161
      %p164 = scmp.ne.s32.totalorder %s149, %s163
      %p165 = scmp.eq.s32.totalorder %s34, 0
      %p166 = por %p164, %p165
      %s168 = sadd.s32 %s167, 1
      %p171 = scmp.eq.s32.totalorder %s28, 1
      %p172 = scmp.ne.s32.totalorder %s167, %s169
      %p173 = scmp.eq.s32.totalorder %s28, 0
      %p174 = por %p172, %p173
      %p175 = scmp.ne.s32.totalorder %s167, %s169
      %p176 = scmp.eq.s32.totalorder %s33, 1
      %p177 = por %p175, %p176
      %p178 = scmp.ne.s32.totalorder %s169, %s170
      %p179 = scmp.eq.s32.totalorder %s33, 0
      %p180 = por %p178, %p179
      %p181 = scmp.ne.s32.totalorder %s169, %s170
      %p182 = scmp.eq.s32.totalorder %s34, 1
      %p183 = por %p181, %p182
      %p185 = scmp.ne.s32.totalorder %s170, %s184
      %p186 = scmp.eq.s32.totalorder %s34, 0
      %p187 = por %p185, %p186
      %s189 = sadd.s32 %s188, 1
      %p192 = scmp.eq.s32.totalorder %s28, 1
      %p193 = scmp.ne.s32.totalorder %s188, %s190
      %p194 = scmp.eq.s32.totalorder %s28, 0
      %p195 = por %p193, %p194
      %p196 = scmp.ne.s32.totalorder %s188, %s190
      %p197 = scmp.eq.s32.totalorder %s33, 1
      %p198 = por %p196, %p197
      %p199 = scmp.ne.s32.totalorder %s190, %s191
      %p200 = scmp.eq.s32.totalorder %s33, 0
      %p201 = por %p199, %p200
      %p202 = scmp.ne.s32.totalorder %s190, %s191
      %p203 = scmp.eq.s32.totalorder %s34, 1
      %p204 = por %p202, %p203
      %p206 = scmp.ne.s32.totalorder %s191, %s205
      %p207 = scmp.eq.s32.totalorder %s34, 0
      %p208 = por %p206, %p207
      %s210 = sadd.s32 %s209, 1
      %p213 = scmp.eq.s32.totalorder %s28, 1
      %p214 = scmp.ne.s32.totalorder %s209, %s211
      %p215 = scmp.eq.s32.totalorder %s28, 0
      %p216 = por %p214, %p215
      %p217 = scmp.ne.s32.totalorder %s209, %s211
      %p218 = scmp.eq.s32.totalorder %s33, 1
      %p219 = por %p217, %p218
      %p220 = scmp.ne.s32.totalorder %s211, %s212
      %p221 = scmp.eq.s32.totalorder %s33, 0
      %p222 = por %p220, %p221
      %p223 = scmp.ne.s32.totalorder %s211, %s212
      %p224 = scmp.eq.s32.totalorder %s34, 1
      %p225 = por %p223, %p224
      %p227 = scmp.ne.s32.totalorder %s212, %s226
      %p228 = scmp.eq.s32.totalorder %s34, 0
      %p229 = por %p227, %p228
      %s231 = sadd.s32 %s230, 1
      %p234 = scmp.eq.s32.totalorder %s28, 1
      %p235 = scmp.ne.s32.totalorder %s230, %s232
      %p236 = scmp.eq.s32.totalorder %s28, 0
      %p237 = por %p235, %p236
      %p238 = scmp.ne.s32.totalorder %s230, %s232
      %p239 = scmp.eq.s32.totalorder %s33, 1
      %p240 = por %p238, %p239
      %p241 = scmp.ne.s32.totalorder %s232, %s233
      %p242 = scmp.eq.s32.totalorder %s33, 0
      %p243 = por %p241, %p242
      %p244 = scmp.ne.s32.totalorder %s232, %s233
      %p245 = scmp.eq.s32.totalorder %s34, 1
      %p246 = por %p244, %p245
      %p248 = scmp.ne.s32.totalorder %s233, %s247
      %p249 = scmp.eq.s32.totalorder %s34, 0
      %p250 = por %p248, %p249
      %s252 = sadd.s32 %s251, 1
      %p255 = scmp.eq.s32.totalorder %s28, 1
      %p256 = scmp.ne.s32.totalorder %s251, %s253
      %p257 = scmp.eq.s32.totalorder %s28, 0
      %p258 = por %p256, %p257
      %p259 = scmp.ne.s32.totalorder %s251, %s253
      %p260 = scmp.eq.s32.totalorder %s33, 1
      %p261 = por %p259, %p260
      %p262 = scmp.ne.s32.totalorder %s253, %s254
      %p263 = scmp.eq.s32.totalorder %s33, 0
      %p264 = por %p262, %p263
      %p265 = scmp.ne.s32.totalorder %s253, %s254
      %p266 = scmp.eq.s32.totalorder %s34, 1
      %p267 = por %p265, %p266
      %p269 = scmp.ne.s32.totalorder %s254, %s268
      %p270 = scmp.eq.s32.totalorder %s34, 0
      %p271 = por %p269, %p270
      %s273 = sadd.s32 %s272, 1
      %p276 = scmp.eq.s32.totalorder %s28, 1
      %p277 = scmp.ne.s32.totalorder %s272, %s274
      %p278 = scmp.eq.s32.totalorder %s28, 0
      %p279 = por %p277, %p278
      %p280 = scmp.ne.s32.totalorder %s272, %s274
      %p281 = scmp.eq.s32.totalorder %s33, 1
      %p282 = por %p280, %p281
      %p283 = scmp.ne.s32.totalorder %s274, %s275
      %p284 = scmp.eq.s32.totalorder %s33, 0
      %p285 = por %p283, %p284
      %p286 = scmp.ne.s32.totalorder %s274, %s275
      %p287 = scmp.eq.s32.totalorder %s34, 1
      %p288 = por %p286, %p287
      %p290 = scmp.ne.s32.totalorder %s275, %s289
      %p291 = scmp.eq.s32.totalorder %s34, 0
      %p292 = por %p290, %p291
      %s294 = sadd.s32 %s293, 1
      %p297 = scmp.eq.s32.totalorder %s28, 1
      %p298 = scmp.ne.s32.totalorder %s293, %s295
      %p299 = scmp.eq.s32.totalorder %s28, 0
      %p300 = por %p298, %p299
      %p301 = scmp.ne.s32.totalorder %s293, %s295
      %p302 = scmp.eq.s32.totalorder %s33, 1
      %p303 = por %p301, %p302
      %p304 = scmp.ne.s32.totalorder %s295, %s296
      %p305 = scmp.eq.s32.totalorder %s33, 0
      %p306 = por %p304, %p305
      %p307 = scmp.ne.s32.totalorder %s295, %s296
      %p308 = scmp.eq.s32.totalorder %s34, 1
      %p309 = por %p307, %p308
      %p311 = scmp.ne.s32.totalorder %s296, %s310
      %p312 = scmp.eq.s32.totalorder %s34, 0
      %p313 = por %p311, %p312
      %s315 = sadd.s32 %s314, 1
      %p318 = scmp.eq.s32.totalorder %s28, 1
      %p319 = scmp.ne.s32.totalorder %s314, %s316
      %p320 = scmp.eq.s32.totalorder %s28, 0
      %p321 = por %p319, %p320
      %p322 = scmp.ne.s32.totalorder %s314, %s316
      %p323 = scmp.eq.s32.totalorder %s33, 1
      %p324 = por %p322, %p323
      %p325 = scmp.ne.s32.totalorder %s316, %s317
      %p326 = scmp.eq.s32.totalorder %s33, 0
      %p327 = por %p325, %p326
      %p328 = scmp.ne.s32.totalorder %s316, %s317
      %p329 = scmp.eq.s32.totalorder %s34, 1
      %p330 = por %p328, %p329
      %p332 = scmp.ne.s32.totalorder %s317, %s331
      %p333 = scmp.eq.s32.totalorder %s34, 0
      %p334 = por %p332, %p333
      %s336 = sadd.s32 %s335, 1
      %p339 = scmp.eq.s32.totalorder %s28, 1
      %p340 = scmp.ne.s32.totalorder %s335, %s337
      %p341 = scmp.eq.s32.totalorder %s28, 0
      %p342 = por %p340, %p341
      %p343 = scmp.ne.s32.totalorder %s335, %s337
      %p344 = scmp.eq.s32.totalorder %s33, 1
      %p345 = por %p343, %p344
      %p346 = scmp.ne.s32.totalorder %s337, %s338
      %p347 = scmp.eq.s32.totalorder %s33, 0
      %p348 = por %p346, %p347
      %p349 = scmp.ne.s32.totalorder %s337, %s338
      %p350 = scmp.eq.s32.totalorder %s34, 1
      %p351 = por %p349, %p350
      %p353 = scmp.ne.s32.totalorder %s338, %s352
      %p354 = scmp.eq.s32.totalorder %s34, 0
      %p355 = por %p353, %p354
      %s357 = sadd.s32 %s356, 1
      %p360 = scmp.eq.s32.totalorder %s28, 1
      %p361 = scmp.ne.s32.totalorder %s356, %s358
      %p362 = scmp.eq.s32.totalorder %s28, 0
      %p363 = por %p361, %p362
      %p364 = scmp.ne.s32.totalorder %s356, %s358
      %p365 = scmp.eq.s32.totalorder %s33, 1
      %p366 = por %p364, %p365
      %p367 = scmp.ne.s32.totalorder %s358, %s359
      %p368 = scmp.eq.s32.totalorder %s33, 0
      %p369 = por %p367, %p368
      %p370 = scmp.ne.s32.totalorder %s358, %s359
      %p371 = scmp.eq.s32.totalorder %s34, 1
      %p372 = por %p370, %p371
      %p374 = scmp.ne.s32.totalorder %s359, %s373
      %p375 = scmp.eq.s32.totalorder %s34, 0
      %p376 = por %p374, %p375
      %s378 = sadd.s32 %s377, 1
      %p381 = scmp.eq.s32.totalorder %s28, 1
      %p382 = scmp.ne.s32.totalorder %s377, %s379
      %p383 = scmp.eq.s32.totalorder %s28, 0
      %p384 = por %p382, %p383
      %p385 = scmp.ne.s32.totalorder %s377, %s379
      %p386 = scmp.eq.s32.totalorder %s33, 1
      %p387 = por %p385, %p386
      %p388 = scmp.ne.s32.totalorder %s379, %s380
      %p389 = scmp.eq.s32.totalorder %s33, 0
      %p390 = por %p388, %p389
      %p391 = scmp.ne.s32.totalorder %s379, %s380
      %p392 = scmp.eq.s32.totalorder %s34, 1
      %p393 = por %p391, %p392
      %p395 = scmp.ne.s32.totalorder %s380, %s394
      %p396 = scmp.eq.s32.totalorder %s34, 0
      %p397 = por %p395, %p396
      %s399 = sadd.s32 %s398, 1
      %p402 = scmp.eq.s32.totalorder %s28, 1
      %p403 = scmp.ne.s32.totalorder %s398, %s400
      %p404 = scmp.eq.s32.totalorder %s28, 0
      %p405 = por %p403, %p404
      %p406 = scmp.ne.s32.totalorder %s398, %s400
      %p407 = scmp.eq.s32.totalorder %s33, 1
      %p408 = por %p406, %p407
      %p409 = scmp.ne.s32.totalorder %s400, %s401
      %p410 = scmp.eq.s32.totalorder %s33, 0
      %p411 = por %p409, %p410
      %p412 = scmp.ne.s32.totalorder %s400, %s401
      %p413 = scmp.eq.s32.totalorder %s34, 1
      %p414 = por %p412, %p413
      %p416 = scmp.ne.s32.totalorder %s401, %s415
      %p417 = scmp.eq.s32.totalorder %s34, 0
      %p418 = por %p416, %p417
      %s420 = sadd.s32 %s419, 1
      %p423 = scmp.eq.s32.totalorder %s28, 1
      %p424 = scmp.ne.s32.totalorder %s419, %s421
      %p425 = scmp.eq.s32.totalorder %s28, 0
      %p426 = por %p424, %p425
      %p427 = scmp.ne.s32.totalorder %s419, %s421
      %p428 = scmp.eq.s32.totalorder %s33, 1
      %p429 = por %p427, %p428
      %p430 = scmp.ne.s32.totalorder %s421, %s422
      %p431 = scmp.eq.s32.totalorder %s33, 0
      %p432 = por %p430, %p431
      %p433 = scmp.ne.s32.totalorder %s421, %s422
      %p434 = scmp.eq.s32.totalorder %s34, 1
      %p435 = por %p433, %p434
      %p437 = scmp.ne.s32.totalorder %s422, %s436
      %p438 = scmp.eq.s32.totalorder %s34, 0
      %p439 = por %p437, %p438
      %s440 = ssub.s32 %s28, %s35
      %p441 = scmp.eq.s32.totalorder %s440, 0
      %s443 = sadd.s32 %s442, 1
      %s444 = scalar_select %p441, %s442, %s443
      %p447 = pneg %p441
      %p448 = scmp.eq.s32.totalorder %s28, 1
      %p449 = por %p447, %p448
      %p450 = scmp.ne.s32.totalorder %s442, %s445
      %p451 = scmp.eq.s32.totalorder %s28, 0
      %p452 = por %p450, %p451
      %p453 = scmp.ne.s32.totalorder %s442, %s445
      %p454 = scmp.eq.s32.totalorder %s33, 1
      %p455 = por %p453, %p454
      %p456 = scmp.ne.s32.totalorder %s445, %s446
      %p457 = scmp.eq.s32.totalorder %s33, 0
      %p458 = por %p456, %p457
      %p459 = scmp.ne.s32.totalorder %s445, %s446
      %p460 = scmp.eq.s32.totalorder %s34, 1
      %p461 = por %p459, %p460
      %p463 = scmp.ne.s32.totalorder %s446, %s462
      %p464 = scmp.eq.s32.totalorder %s34, 0
      %p465 = por %p463, %p464
      %p466 = scmp.le.s32.totalorder 1, %s28
      %p467 = scmp.lt.s32.totalorder %s28, 3
      %p468 = pnand %p466, %p467
      %p469 = pneg %p468
      // Predicated region
      $region9: #{stem_forward.1} parent=5 // pred_check
        _
      $region10: #{stem_forward.1} parent=5 // pred_check_branch
        %471 = sbr.rel (%p468) target = $region12
      $region11: #{stem_forward.1} parent=5 // pred_region
        %s472 = ssub.s32 %s28, 1
        // Predicated region
        $region13: #{stem_forward.1} parent=11 // pred_check
          %p473 = pneg %p75
        $region14: #{stem_forward.1} parent=11 // pred_check_branch
          %475 = sbr.rel (%p473) target = $region16
        $region15: #{stem_forward.1} parent=11 // pred_region
          _
        $region16: #{stem_forward.1} parent=11 // pred_fallthru
          _
        // Predicated region
        $region17: #{stem_forward.1} parent=11 // pred_check
          %p476 = pneg %p96
        $region18: #{stem_forward.1} parent=11 // pred_check_branch
          %478 = sbr.rel (%p476) target = $region20
        $region19: #{stem_forward.1} parent=11 // pred_region
          _
        $region20: #{stem_forward.1} parent=11 // pred_fallthru
          _
        // Predicated region
        $region21: #{stem_forward.1} parent=11 // pred_check
          %p479 = pneg %p117
        $region22: #{stem_forward.1} parent=11 // pred_check_branch
          %481 = sbr.rel (%p479) target = $region24
        $region23: #{stem_forward.1} parent=11 // pred_region
          _
        $region24: #{stem_forward.1} parent=11 // pred_fallthru
          _
        // Predicated region
        $region25: #{stem_forward.1} parent=11 // pred_check
          %p482 = pneg %p138
        $region26: #{stem_forward.1} parent=11 // pred_check_branch
          %484 = sbr.rel (%p482) target = $region28
        $region27: #{stem_forward.1} parent=11 // pred_region
          _
        $region28: #{stem_forward.1} parent=11 // pred_fallthru
          _
        // Predicated region
        $region29: #{stem_forward.1} parent=11 // pred_check
          %p485 = pneg %p159
        $region30: #{stem_forward.1} parent=11 // pred_check_branch
          %487 = sbr.rel (%p485) target = $region32
        $region31: #{stem_forward.1} parent=11 // pred_region
          _
        $region32: #{stem_forward.1} parent=11 // pred_fallthru
          _
        // Predicated region
        $region33: #{stem_forward.1} parent=11 // pred_check
          %p488 = pneg %p180
        $region34: #{stem_forward.1} parent=11 // pred_check_branch
          %490 = sbr.rel (%p488) target = $region36
        $region35: #{stem_forward.1} parent=11 // pred_region
          _
        $region36: #{stem_forward.1} parent=11 // pred_fallthru
          _
        // Predicated region
        $region37: #{stem_forward.1} parent=11 // pred_check
          %p491 = pneg %p201
        $region38: #{stem_forward.1} parent=11 // pred_check_branch
          %493 = sbr.rel (%p491) target = $region40
        $region39: #{stem_forward.1} parent=11 // pred_region
          _
        $region40: #{stem_forward.1} parent=11 // pred_fallthru
          _
        // Predicated region
        $region41: #{stem_forward.1} parent=11 // pred_check
          %p494 = pneg %p222
        $region42: #{stem_forward.1} parent=11 // pred_check_branch
          %496 = sbr.rel (%p494) target = $region44
        $region43: #{stem_forward.1} parent=11 // pred_region
          _
        $region44: #{stem_forward.1} parent=11 // pred_fallthru
          _
        // Predicated region
        $region45: #{stem_forward.1} parent=11 // pred_check
          %p497 = pneg %p243
        $region46: #{stem_forward.1} parent=11 // pred_check_branch
          %499 = sbr.rel (%p497) target = $region48
        $region47: #{stem_forward.1} parent=11 // pred_region
          _
        $region48: #{stem_forward.1} parent=11 // pred_fallthru
          _
        // Predicated region
        $region49: #{stem_forward.1} parent=11 // pred_check
          %p500 = pneg %p264
        $region50: #{stem_forward.1} parent=11 // pred_check_branch
          %502 = sbr.rel (%p500) target = $region52
        $region51: #{stem_forward.1} parent=11 // pred_region
          _
        $region52: #{stem_forward.1} parent=11 // pred_fallthru
          _
        // Predicated region
        $region53: #{stem_forward.1} parent=11 // pred_check
          %p503 = pneg %p285
        $region54: #{stem_forward.1} parent=11 // pred_check_branch
          %505 = sbr.rel (%p503) target = $region56
        $region55: #{stem_forward.1} parent=11 // pred_region
          _
        $region56: #{stem_forward.1} parent=11 // pred_fallthru
          _
        // Predicated region
        $region57: #{stem_forward.1} parent=11 // pred_check
          %p506 = pneg %p306
        $region58: #{stem_forward.1} parent=11 // pred_check_branch
          %508 = sbr.rel (%p506) target = $region60
        $region59: #{stem_forward.1} parent=11 // pred_region
          _
        $region60: #{stem_forward.1} parent=11 // pred_fallthru
          _
        // Predicated region
        $region61: #{stem_forward.1} parent=11 // pred_check
          %p509 = pneg %p327
        $region62: #{stem_forward.1} parent=11 // pred_check_branch
          %511 = sbr.rel (%p509) target = $region64
        $region63: #{stem_forward.1} parent=11 // pred_region
          _
        $region64: #{stem_forward.1} parent=11 // pred_fallthru
          _
        // Predicated region
        $region65: #{stem_forward.1} parent=11 // pred_check
          %p512 = pneg %p348
        $region66: #{stem_forward.1} parent=11 // pred_check_branch
          %514 = sbr.rel (%p512) target = $region68
        $region67: #{stem_forward.1} parent=11 // pred_region
          _
        $region68: #{stem_forward.1} parent=11 // pred_fallthru
          _
        // Predicated region
        $region69: #{stem_forward.1} parent=11 // pred_check
          %p515 = pneg %p369
        $region70: #{stem_forward.1} parent=11 // pred_check_branch
          %517 = sbr.rel (%p515) target = $region72
        $region71: #{stem_forward.1} parent=11 // pred_region
          _
        $region72: #{stem_forward.1} parent=11 // pred_fallthru
          _
        // Predicated region
        $region73: #{stem_forward.1} parent=11 // pred_check
          %p518 = pneg %p390
        $region74: #{stem_forward.1} parent=11 // pred_check_branch
          %520 = sbr.rel (%p518) target = $region76
        $region75: #{stem_forward.1} parent=11 // pred_region
          _
        $region76: #{stem_forward.1} parent=11 // pred_fallthru
          _
        // Predicated region
        $region77: #{stem_forward.1} parent=11 // pred_check
          %p521 = pneg %p411
        $region78: #{stem_forward.1} parent=11 // pred_check_branch
          %523 = sbr.rel (%p521) target = $region80
        $region79: #{stem_forward.1} parent=11 // pred_region
          _
        $region80: #{stem_forward.1} parent=11 // pred_fallthru
          _
        // Predicated region
        $region81: #{stem_forward.1} parent=11 // pred_check
          %p524 = pneg %p432
        $region82: #{stem_forward.1} parent=11 // pred_check_branch
          %526 = sbr.rel (%p524) target = $region84
        $region83: #{stem_forward.1} parent=11 // pred_region
          _
        $region84: #{stem_forward.1} parent=11 // pred_fallthru
          _
      $region12: #{stem_forward.1} parent=5 // pred_fallthru
        _
      %p527 = scmp.lt.s32.totalorder %s28, 2
      // Predicated region
      $region85: #{stem_forward.1} parent=5 // pred_check
        %p528 = pneg %p527
      $region86: #{stem_forward.1} parent=5 // pred_check_branch
        %530 = sbr.rel (%p528) target = $region88
      $region87: #{stem_forward.1} parent=5 // pred_region
        // Predicated region
        $region89: #{stem_forward.1} parent=87 // pred_check
          %p531 = pneg %p48
        $region90: #{stem_forward.1} parent=87 // pred_check_branch
          %533 = sbr.rel (%p531) target = $region92
        $region91: #{stem_forward.1} parent=87 // pred_region
          %p534 = scmp.lt.s32.totalorder %s28, 1
          %s535 = scalar_select %p534, %s28, 1
          %s536 = smul.addr %s535, 16
          %s537 = smul.addr %s536, 4
          %s538 = scalar_lea.vmem %s0, %s537
        $region92: #{stem_forward.1} parent=87 // pred_fallthru
          _
      $region88: #{stem_forward.1} parent=5 // pred_fallthru
        _
      %p539 = scmp.le.s32.totalorder 1, %s28
      %p540 = scmp.lt.s32.totalorder %s28, 3
      %p541 = pnand %p539, %p540
      %p542 = pneg %p541
      // Predicated region
      $region93: #{stem_forward.1} parent=5 // pred_check
        _
      $region94: #{stem_forward.1} parent=5 // pred_check_branch
        %544 = sbr.rel (%p541) target = $region96
      $region95: #{stem_forward.1} parent=5 // pred_region
        %s545 = ssub.s32 %s28, 1
        %p546 = scmp.lt.s32.totalorder %s33, 1
        %s547 = scalar_select %p546, %s33, 1
        %s548 = smul.addr %s547, 16
        %s549 = smul.addr %s548, 4
        %s550 = scalar_lea.vmem %s0, %s549
        %p551 = pneg %p54
        %p552 = pneg %p51
        %p553 = pneg %p75
        %p554 = pneg %p72
        %p555 = pneg %p96
        %p556 = pneg %p93
        %p557 = pneg %p117
        %p558 = pneg %p114
        %p559 = pneg %p138
        %p560 = pneg %p135
        %p561 = pneg %p159
        %p562 = pneg %p156
        %p563 = pneg %p180
        %p564 = pneg %p177
        %p565 = pneg %p201
        %p566 = pneg %p198
        %p567 = pneg %p222
        %p568 = pneg %p219
        %p569 = pneg %p243
        %p570 = pneg %p240
        %p571 = pneg %p264
        %p572 = pneg %p261
        %p573 = pneg %p285
        %p574 = pneg %p282
        %p575 = pneg %p306
        %p576 = pneg %p303
        %p577 = pneg %p327
        %p578 = pneg %p324
        %p579 = pneg %p348
        %p580 = pneg %p345
        %p581 = pneg %p369
        %p582 = pneg %p366
        %p583 = pneg %p390
        %p584 = pneg %p387
        %p585 = pneg %p411
        %p586 = pneg %p408
        %p587 = pneg %p432
        %p588 = pneg %p429
        %p589 = pneg %p458
        %p590 = pneg %p455
        %s591 = sand.u32 %s445, 1
        %s592 = scalar_lea.sflag [#allocation5], %s591
        %s593 = sand.u32 %s445, 1
        %s594 = smul.addr %s593, 4
        %s595 = scalar_lea.vmem [#allocation4], %s594
        %p596 = scmp.lt.s32.totalorder %s33, 1
        %s597 = scalar_select %p596, %s33, 1
        %s598 = smul.addr %s597, 16
        %s599 = smul.addr %s598, 4
        %s600 = scalar_lea.vmem %s0, %s599
        %v602 = vld [vmem:[%s600] sm:$0xff]
        %v603 = vld [vmem:[%s600 + $0x8] sm:$0xff]
        %v604 = vld [vmem:[%s600 + $0x10] sm:$0xff]
        %v605 = vld [vmem:[%s600 + $0x18] sm:$0xff]
        %v606 = vld [vmem:[%s600 + $0x20] sm:$0xff]
        %v607 = vld [vmem:[%s600 + $0x28] sm:$0xff]
        %v608 = vld [vmem:[%s600 + $0x30] sm:$0xff]
        %v609 = vld [vmem:[%s600 + $0x38] sm:$0xff]
        %v610 = vld [vmem:[%s1] sm:$0xf]
        %v611 = vld [vmem:[%s1 + $0x4] sm:$0xf]
        %v612 = vld [vmem:[%s1 + $0x8] sm:$0xf]
        %v613 = vld [vmem:[%s1 + $0xc] sm:$0xf]
        %v614 = vld [vmem:[%s1 + $0x10] sm:$0xf]
        %v615 = vld [vmem:[%s1 + $0x14] sm:$0xf]
        %v616 = vld [vmem:[%s1 + $0x18] sm:$0xf]
        %v617 = vld [vmem:[%s1 + $0x1c] sm:$0xf]
        %v618 = vld [vmem:[%s1 + $0x20] sm:$0xf]
        %v619 = vld [vmem:[%s1 + $0x24] sm:$0xf]
        %v620 = vld [vmem:[%s1 + $0x28] sm:$0xf]
        %v621 = vld [vmem:[%s1 + $0x2c] sm:$0xf]
        %v622 = vld [vmem:[%s1 + $0x30] sm:$0xf]
        %v623 = vld [vmem:[%s1 + $0x34] sm:$0xf]
        %v624 = vld [vmem:[%s1 + $0x38] sm:$0xf]
        %v625 = vld [vmem:[%s1 + $0x3c] sm:$0xf]
        %v626 = vld [vmem:[%s1 + $0x40] sm:$0xf]
        %v627 = vld [vmem:[%s1 + $0x44] sm:$0xf]
        %v628 = vld [vmem:[%s1 + $0x48] sm:$0xf]
        %v629 = vld [vmem:[%s1 + $0x4c] sm:$0xf]
        %v630 = vld [vmem:[%s1 + $0x50] sm:$0xf]
        %v631 = vld [vmem:[%s1 + $0x54] sm:$0xf]
        %v632 = vld [vmem:[%s1 + $0x58] sm:$0xf]
        %v633 = vld [vmem:[%s1 + $0x5c] sm:$0xf]
        %v634 = vld [vmem:[%s1 + $0x60] sm:$0xf]
        %v635 = vld [vmem:[%s1 + $0x64] sm:$0xf]
        %v636 = vld [vmem:[%s1 + $0x68] sm:$0xf]
        %v637 = vld [vmem:[%s1 + $0x6c] sm:$0xf]
        %v638 = vld [vmem:[%s1 + $0x70] sm:$0xf]
        %v639 = vld [vmem:[%s1 + $0x74] sm:$0xf]
        %v640 = vld [vmem:[%s1 + $0x78] sm:$0xf]
        %v641 = vld [vmem:[%s1 + $0x7c] sm:$0xf]
        %v642 = vld [vmem:[%s2] sm:$0x1]
        %v644 = vlaneseq
        %v645 = vshrl.u32 %v644, 7
        %v646 = vsub.s32 0, %v645
        %v647 = vrot.slane %v642, %v646
        %v657 = vunpack.c.l.b16 %v602
        %v658 = vunpack.c.h.b16 %v602
        %v659 = vunpack.c.l.b16 %v603
        %v660 = vunpack.c.h.b16 %v603
        %v661 = vunpack.c.l.b16 %v604
        %v662 = vunpack.c.h.b16 %v604
        %v663 = vunpack.c.l.b16 %v605
        %v664 = vunpack.c.h.b16 %v605
        %v665 = vunpack.c.l.b16 %v606
        %v666 = vunpack.c.h.b16 %v606
        %v667 = vunpack.c.l.b16 %v607
        %v668 = vunpack.c.h.b16 %v607
        %v669 = vunpack.c.l.b16 %v608
        %v670 = vunpack.c.h.b16 %v608
        %v671 = vunpack.c.l.b16 %v609
        %v672 = vunpack.c.h.b16 %v609
        %v673 = vpack.c.b16 %v659, %v657
        %v674 = vpack.c.b16 %v660, %v658
        %v675 = vpack.c.b16 %v663, %v661
        %v676 = vpack.c.b16 %v664, %v662
        %v677 = vpack.c.b16 %v667, %v665
        %v678 = vpack.c.b16 %v668, %v666
        %v679 = vpack.c.b16 %v671, %v669
        %v680 = vpack.c.b16 %v672, %v670
        %v721 = vunpack.c.l.b16 %v610
        %v722 = vunpack.c.l.b16 %v611
        %v723 = vunpack.c.l.b16 %v612
        %v724 = vunpack.c.l.b16 %v613
        %v725 = vunpack.c.l.b16 %v614
        %v726 = vunpack.c.l.b16 %v615
        %v727 = vunpack.c.l.b16 %v616
        %v728 = vunpack.c.l.b16 %v617
        %v729 = vunpack.c.l.b16 %v618
        %v730 = vunpack.c.l.b16 %v619
        %v731 = vunpack.c.l.b16 %v620
        %v732 = vunpack.c.l.b16 %v621
        %v733 = vunpack.c.l.b16 %v622
        %v734 = vunpack.c.l.b16 %v623
        %v735 = vunpack.c.l.b16 %v624
        %v736 = vunpack.c.l.b16 %v625
        %v737 = vunpack.c.l.b16 %v626
        %v738 = vunpack.c.l.b16 %v627
        %v739 = vunpack.c.l.b16 %v628
        %v740 = vunpack.c.l.b16 %v629
        %v741 = vunpack.c.l.b16 %v630
        %v742 = vunpack.c.l.b16 %v631
        %v743 = vunpack.c.l.b16 %v632
        %v744 = vunpack.c.l.b16 %v633
        %v745 = vunpack.c.l.b16 %v634
        %v746 = vunpack.c.l.b16 %v635
        %v747 = vunpack.c.l.b16 %v636
        %v748 = vunpack.c.l.b16 %v637
        %v749 = vunpack.c.l.b16 %v638
        %v750 = vunpack.c.l.b16 %v639
        %v751 = vunpack.c.l.b16 %v640
        %v752 = vunpack.c.l.b16 %v641
        %v753 = vpack.c.b16 %v722, %v721
        %v754 = vpack.c.b16 %v724, %v723
        %v755 = vpack.c.b16 %v726, %v725
        %v756 = vpack.c.b16 %v728, %v727
        %v757 = vpack.c.b16 %v730, %v729
        %v758 = vpack.c.b16 %v732, %v731
        %v759 = vpack.c.b16 %v734, %v733
        %v760 = vpack.c.b16 %v736, %v735
        %v761 = vpack.c.b16 %v738, %v737
        %v762 = vpack.c.b16 %v740, %v739
        %v763 = vpack.c.b16 %v742, %v741
        %v764 = vpack.c.b16 %v744, %v743
        %v765 = vpack.c.b16 %v746, %v745
        %v766 = vpack.c.b16 %v748, %v747
        %v767 = vpack.c.b16 %v750, %v749
        %v768 = vpack.c.b16 %v752, %v751
        %785 = vmatprep.subr.bf16.mxu0 0
        %786 = vmatpush1.bf16.msra.mxu0 %v760
        %787 = vmatprep.subr.bf16.mxu0 0
        %788 = vmatpush1.bf16.msra.mxu0 %v759
        %789 = vmatprep.subr.bf16.mxu0 0
        %790 = vmatpush1.bf16.msra.mxu0 %v758
        %791 = vmatprep.subr.bf16.mxu0 0
        %792 = vmatpush1.bf16.msra.mxu0 %v757
        %793 = vmatprep.subr.bf16.mxu0 0
        %794 = vmatpush1.bf16.msra.mxu0 %v756
        %795 = vmatprep.subr.bf16.mxu0 0
        %796 = vmatpush1.bf16.msra.mxu0 %v755
        %797 = vmatprep.subr.bf16.mxu0 0
        %798 = vmatpush1.bf16.msra.mxu0 %v754
        %799 = vmatprep.subr.bf16.mxu0 0
        %800 = vmatpush1.bf16.msra.mxu0 %v753
        %801 = vmatprep.subr.bf16.mxu0 0
        %802 = vmatpush2.bf16.msra.mxu0 %v768
        %803 = vmatprep.subr.bf16.mxu0 0
        %804 = vmatpush2.bf16.msra.mxu0 %v767
        %805 = vmatprep.subr.bf16.mxu0 0
        %806 = vmatpush2.bf16.msra.mxu0 %v766
        %807 = vmatprep.subr.bf16.mxu0 0
        %808 = vmatpush2.bf16.msra.mxu0 %v765
        %809 = vmatprep.subr.bf16.mxu0 0
        %810 = vmatpush2.bf16.msra.mxu0 %v764
        %811 = vmatprep.subr.bf16.mxu0 0
        %812 = vmatpush2.bf16.msra.mxu0 %v763
        %813 = vmatprep.subr.bf16.mxu0 0
        %814 = vmatpush2.bf16.msra.mxu0 %v762
        %815 = vmatprep.subr.bf16.mxu0 0
        %816 = vmatpush2.bf16.msra.mxu0 %v761
        %817 = vmatprep.mubr.bf16.mxu0 %v674
        %818 = vmatmul.mubr.bf16.gmra.mxu0 %v673
        %v819 = vpop.f32.mrf.mxu0
        %v820 = vadd.f32 %v647, %v819
        %v821 = vpop.f32.mrf.mxu0
        %v822 = vpop.f32.mrf.mxu0
        %v823 = vadd.f32 %v647, %v822
        %v824 = vpop.f32.mrf.mxu0
        %825 = vmatprep.mubr.bf16.mxu0 %v676
        %826 = vmatmul.mubr.bf16.gmra.mxu0 %v675
        %v827 = vpop.f32.mrf.mxu0
        %v828 = vadd.f32 %v647, %v827
        %v829 = vpop.f32.mrf.mxu0
        %v830 = vpop.f32.mrf.mxu0
        %v831 = vadd.f32 %v647, %v830
        %v832 = vpop.f32.mrf.mxu0
        %833 = vmatprep.mubr.bf16.mxu0 %v678
        %834 = vmatmul.mubr.bf16.gmra.mxu0 %v677
        %v835 = vpop.f32.mrf.mxu0
        %v836 = vadd.f32 %v647, %v835
        %v837 = vpop.f32.mrf.mxu0
        %v838 = vpop.f32.mrf.mxu0
        %v839 = vadd.f32 %v647, %v838
        %v840 = vpop.f32.mrf.mxu0
        %841 = vmatprep.mubr.bf16.mxu0 %v680
        %842 = vmatmul.mubr.bf16.gmra.mxu0 %v679
        %v843 = vpop.f32.mrf.mxu0
        %v844 = vadd.f32 %v647, %v843
        %v845 = vpop.f32.mrf.mxu0
        %v846 = vpop.f32.mrf.mxu0
        %v847 = vadd.f32 %v647, %v846
        %v848 = vpop.f32.mrf.mxu0
        %849 = vdwg.mxu0
        %v850 = vmax.f32 %v820, 0.0
        %v851 = vmax.f32 %v823, 0.0
        %v852 = vmax.f32 %v828, 0.0
        %v853 = vmax.f32 %v831, 0.0
        %v854 = vmax.f32 %v836, 0.0
        %v855 = vmax.f32 %v839, 0.0
        %v856 = vmax.f32 %v844, 0.0
        %v857 = vmax.f32 %v847, 0.0
        %v858 = vmax.f32 %v850, %v851
        %v859 = vmax.f32 %v851, %v852
        %v860 = vmax.f32 %v859, %v853
        %v861 = vmax.f32 %v853, %v854
        %v862 = vmax.f32 %v861, %v855
        %v863 = vmax.f32 %v855, %v856
        %v864 = vmax.f32 %v863, %v857
        %v866 = vrot.slane %v858, 1
        %v868 = vmax.f32 %v858, %v866
        %v869 = vrot.slane %v858, 2
        %v871 = vmax.f32 %v868, %v869
        %v873 = vrot.slane %v871, 1
        %v875 = vrot.slane %v871, 2
        %vm877 = vcmask 1040384
        %v878 = vsel %vm877, %v868, %v871
        %vm879 = vcmask 1041408
        %v880 = vsel %vm879, %v878, %v873
        %vm881 = vcmask 1042432
        %v882 = vsel %vm881, %v880, %v875
        %v884 = vrot.slane %v860, 1
        %v886 = vmax.f32 %v860, %v884
        %v887 = vrot.slane %v860, 2
        %v889 = vmax.f32 %v886, %v887
        %v891 = vrot.slane %v889, 1
        %v893 = vrot.slane %v889, 2
        %v895 = vsel %vm877, %v886, %v889
        %v896 = vsel %vm879, %v895, %v891
        %v897 = vsel %vm881, %v896, %v893
        %v899 = vrot.slane %v862, 1
        %v901 = vmax.f32 %v862, %v899
        %v902 = vrot.slane %v862, 2
        %v904 = vmax.f32 %v901, %v902
        %v906 = vrot.slane %v904, 1
        %v908 = vrot.slane %v904, 2
        %v910 = vsel %vm877, %v901, %v904
        %v911 = vsel %vm879, %v910, %v906
        %v912 = vsel %vm881, %v911, %v908
        %v914 = vrot.slane %v864, 1
        %v916 = vmax.f32 %v864, %v914
        %v917 = vrot.slane %v864, 2
        %v919 = vmax.f32 %v916, %v917
        %v921 = vrot.slane %v919, 1
        %v923 = vrot.slane %v919, 2
        %v925 = vsel %vm877, %v916, %v919
        %v926 = vsel %vm879, %v925, %v921
        %v927 = vsel %vm881, %v926, %v923
        %v929 = vrot.slane %v897, 4
        %v932 = vrot.slane %v927, 4
        %vm934 = vcmask 1043456
        %v935 = vsel %vm934, %v882, %v929
        %v936 = vsel %vm934, %v912, %v932
        %937 = vst [vmem:[#allocation2] sm:$0xff] 0.0
        %938 = vst [vmem:[#allocation2 + $0x8] sm:$0xff] 0.0
        %939 = vst [vmem:[#allocation2 + $0x10] sm:$0xff] 0.0
        %940 = vst [vmem:[#allocation2 + $0x18] sm:$0xff] 0.0
        %941 = vst [vmem:[#allocation2 + $0x20] sm:$0xf] 0.0
        %942 = vst [vmem:[#allocation2 + $0x7] sm:$0xf] %v935
        %943 = vst [vmem:[#allocation2 + $0x9] sm:$0xf0] %v935
        %944 = vst [vmem:[#allocation2 + $0x13] sm:$0xf] %v936
        %945 = vst [vmem:[#allocation2 + $0x15] sm:$0xf0] %v936
        %v946 = vld [vmem:[#allocation2] sm:$0xff]
        %v947 = vld [vmem:[#allocation2 + $0x8] sm:$0xff]
        %v948 = vld [vmem:[#allocation2 + $0x10] sm:$0x3f]
        %v949 = vpack.c.bf16 %v947, %v946
        %v950 = vpack.c.bf16 %v948, %v948
        %v951 = vld [vmem:[%s3] sm:$0xf]
        %v952 = vld [vmem:[%s3 + $0x4] sm:$0xf]
        %v953 = vld [vmem:[%s3 + $0x8] sm:$0xf]
        %v954 = vld [vmem:[%s3 + $0xc] sm:$0xf]
        %v955 = vld [vmem:[%s3 + $0x10] sm:$0xf]
        %v956 = vld [vmem:[%s3 + $0x14] sm:$0xf]
        %v957 = vld [vmem:[%s3 + $0x18] sm:$0xf]
        %v958 = vld [vmem:[%s3 + $0x1c] sm:$0xf]
        %v959 = vld [vmem:[%s3 + $0x20] sm:$0xf]
        %v960 = vld [vmem:[%s3 + $0x24] sm:$0xf]
        %v961 = vld [vmem:[%s3 + $0x28] sm:$0xf]
        %v962 = vld [vmem:[%s3 + $0x2c] sm:$0xf]
        %v963 = vld [vmem:[%s3 + $0x30] sm:$0xf]
        %v964 = vld [vmem:[%s3 + $0x34] sm:$0xf]
        %v965 = vld [vmem:[%s3 + $0x38] sm:$0xf]
        %v966 = vld [vmem:[%s3 + $0x3c] sm:$0xf]
        %v967 = vld [vmem:[#allocation2 + $0x1] sm:$0xff]
        %v968 = vld [vmem:[#allocation2 + $0x9] sm:$0xff]
        %v969 = vld [vmem:[#allocation2 + $0x11] sm:$0x3f]
        %v970 = vpack.c.bf16 %v968, %v967
        %v971 = vpack.c.bf16 %v969, %v969
        %v972 = vld [vmem:[%s3 + $0x40] sm:$0xf]
        %v973 = vld [vmem:[%s3 + $0x44] sm:$0xf]
        %v974 = vld [vmem:[%s3 + $0x48] sm:$0xf]
        %v975 = vld [vmem:[%s3 + $0x4c] sm:$0xf]
        %v976 = vld [vmem:[%s3 + $0x50] sm:$0xf]
        %v977 = vld [vmem:[%s3 + $0x54] sm:$0xf]
        %v978 = vld [vmem:[%s3 + $0x58] sm:$0xf]
        %v979 = vld [vmem:[%s3 + $0x5c] sm:$0xf]
        %v980 = vld [vmem:[%s3 + $0x60] sm:$0xf]
        %v981 = vld [vmem:[%s3 + $0x64] sm:$0xf]
        %v982 = vld [vmem:[%s3 + $0x68] sm:$0xf]
        %v983 = vld [vmem:[%s3 + $0x6c] sm:$0xf]
        %v984 = vld [vmem:[%s3 + $0x70] sm:$0xf]
        %v985 = vld [vmem:[%s3 + $0x74] sm:$0xf]
        %v986 = vld [vmem:[%s3 + $0x78] sm:$0xf]
        %v987 = vld [vmem:[%s3 + $0x7c] sm:$0xf]
        %v1004 = vunpack.c.l.b16 %v972
        %v1005 = vunpack.c.l.b16 %v973
        %v1006 = vunpack.c.l.b16 %v974
        %v1007 = vunpack.c.l.b16 %v975
        %v1008 = vunpack.c.l.b16 %v976
        %v1009 = vunpack.c.l.b16 %v977
        %v1010 = vunpack.c.l.b16 %v978
        %v1011 = vunpack.c.l.b16 %v979
        %v1012 = vunpack.c.l.b16 %v980
        %v1013 = vunpack.c.l.b16 %v981
        %v1014 = vunpack.c.l.b16 %v982
        %v1015 = vunpack.c.l.b16 %v983
        %v1016 = vunpack.c.l.b16 %v984
        %v1017 = vunpack.c.l.b16 %v985
        %v1018 = vunpack.c.l.b16 %v986
        %v1019 = vunpack.c.l.b16 %v987
        %v1020 = vpack.c.b16 %v1005, %v1004
        %v1021 = vpack.c.b16 %v1007, %v1006
        %v1022 = vpack.c.b16 %v1009, %v1008
        %v1023 = vpack.c.b16 %v1011, %v1010
        %v1024 = vpack.c.b16 %v1013, %v1012
        %v1025 = vpack.c.b16 %v1015, %v1014
        %v1026 = vpack.c.b16 %v1017, %v1016
        %v1027 = vpack.c.b16 %v1019, %v1018
        %1036 = vmatprep.subr.bf16.mxu0 0
        %1037 = vmatpush1.bf16.msra.mxu0 %v1027
        %1038 = vmatprep.subr.bf16.mxu0 0
        %1039 = vmatpush1.bf16.msra.mxu0 %v1026
        %1040 = vmatprep.subr.bf16.mxu0 0
        %1041 = vmatpush1.bf16.msra.mxu0 %v1025
        %1042 = vmatprep.subr.bf16.mxu0 0
        %1043 = vmatpush1.bf16.msra.mxu0 %v1024
        %1044 = vmatprep.subr.bf16.mxu0 0
        %1045 = vmatpush1.bf16.msra.mxu0 %v1023
        %1046 = vmatprep.subr.bf16.mxu0 0
        %1047 = vmatpush1.bf16.msra.mxu0 %v1022
        %1048 = vmatprep.subr.bf16.mxu0 0
        %1049 = vmatpush1.bf16.msra.mxu0 %v1021
        %1050 = vmatprep.subr.bf16.mxu0 0
        %1051 = vmatpush1.bf16.msra.mxu0 %v1020
        %1052 = vmatprep.subr.bf16.mxu0 0
        %1053 = vmatpush2.bf16.msra.mxu0 0
        %1054 = vmatprep.subr.bf16.mxu0 0
        %1055 = vmatpush2.bf16.msra.mxu0 0
        %1056 = vmatprep.subr.bf16.mxu0 0
        %1057 = vmatpush2.bf16.msra.mxu0 0
        %1058 = vmatprep.subr.bf16.mxu0 0
        %1059 = vmatpush2.bf16.msra.mxu0 0
        %1060 = vmatprep.subr.bf16.mxu0 0
        %1061 = vmatpush2.bf16.msra.mxu0 0
        %1062 = vmatprep.subr.bf16.mxu0 0
        %1063 = vmatpush2.bf16.msra.mxu0 0
        %1064 = vmatprep.subr.bf16.mxu0 0
        %1065 = vmatpush2.bf16.msra.mxu0 0
        %1066 = vmatprep.subr.bf16.mxu0 0
        %1067 = vmatpush2.bf16.msra.mxu0 0
        %1068 = vmatprep.mubr.bf16.mxu0 0
        %1069 = vmatmul.mubr.bf16.gmra.mxu0 %v970
        %v1070 = vpop.f32.mrf.mxu0
        %v1071 = vadd.f32 0.0, %v1070
        %v1072 = vpop.f32.mrf.mxu0
        %v1073 = vpop.f32.mrf.mxu0
        %v1074 = vadd.f32 0.0, %v1073
        %v1075 = vpop.f32.mrf.mxu0
        %1076 = vmatprep.mubr.bf16.mxu0 0
        %1077 = vmatmul.mubr.bf16.gmra.mxu0 %v971
        %v1078 = vpop.f32.mrf.mxu0
        %v1079 = vadd.f32 0.0, %v1078
        %v1080 = vpop.f32.mrf.mxu0
        %v1081 = vpop.f32.mrf.mxu0
        %v1082 = vpop.f32.mrf.mxu0
        %1083 = vdwg.mxu0
        %v1100 = vunpack.c.l.b16 %v951
        %v1101 = vunpack.c.l.b16 %v952
        %v1102 = vunpack.c.l.b16 %v953
        %v1103 = vunpack.c.l.b16 %v954
        %v1104 = vunpack.c.l.b16 %v955
        %v1105 = vunpack.c.l.b16 %v956
        %v1106 = vunpack.c.l.b16 %v957
        %v1107 = vunpack.c.l.b16 %v958
        %v1108 = vunpack.c.l.b16 %v959
        %v1109 = vunpack.c.l.b16 %v960
        %v1110 = vunpack.c.l.b16 %v961
        %v1111 = vunpack.c.l.b16 %v962
        %v1112 = vunpack.c.l.b16 %v963
        %v1113 = vunpack.c.l.b16 %v964
        %v1114 = vunpack.c.l.b16 %v965
        %v1115 = vunpack.c.l.b16 %v966
        %v1116 = vpack.c.b16 %v1101, %v1100
        %v1117 = vpack.c.b16 %v1103, %v1102
        %v1118 = vpack.c.b16 %v1105, %v1104
        %v1119 = vpack.c.b16 %v1107, %v1106
        %v1120 = vpack.c.b16 %v1109, %v1108
        %v1121 = vpack.c.b16 %v1111, %v1110
        %v1122 = vpack.c.b16 %v1113, %v1112
        %v1123 = vpack.c.b16 %v1115, %v1114
        %1132 = vmatprep.subr.bf16.mxu0 0
        %1133 = vmatpush1.bf16.msra.mxu0 %v1123
        %1134 = vmatprep.subr.bf16.mxu0 0
        %1135 = vmatpush1.bf16.msra.mxu0 %v1122
        %1136 = vmatprep.subr.bf16.mxu0 0
        %1137 = vmatpush1.bf16.msra.mxu0 %v1121
        %1138 = vmatprep.subr.bf16.mxu0 0
        %1139 = vmatpush1.bf16.msra.mxu0 %v1120
        %1140 = vmatprep.subr.bf16.mxu0 0
        %1141 = vmatpush1.bf16.msra.mxu0 %v1119
        %1142 = vmatprep.subr.bf16.mxu0 0
        %1143 = vmatpush1.bf16.msra.mxu0 %v1118
        %1144 = vmatprep.subr.bf16.mxu0 0
        %1145 = vmatpush1.bf16.msra.mxu0 %v1117
        %1146 = vmatprep.subr.bf16.mxu0 0
        %1147 = vmatpush1.bf16.msra.mxu0 %v1116
        %1148 = vmatprep.subr.bf16.mxu0 0
        %1149 = vmatpush2.bf16.msra.mxu0 0
        %1150 = vmatprep.subr.bf16.mxu0 0
        %1151 = vmatpush2.bf16.msra.mxu0 0
        %1152 = vmatprep.subr.bf16.mxu0 0
        %1153 = vmatpush2.bf16.msra.mxu0 0
        %1154 = vmatprep.subr.bf16.mxu0 0
        %1155 = vmatpush2.bf16.msra.mxu0 0
        %1156 = vmatprep.subr.bf16.mxu0 0
        %1157 = vmatpush2.bf16.msra.mxu0 0
        %1158 = vmatprep.subr.bf16.mxu0 0
        %1159 = vmatpush2.bf16.msra.mxu0 0
        %1160 = vmatprep.subr.bf16.mxu0 0
        %1161 = vmatpush2.bf16.msra.mxu0 0
        %1162 = vmatprep.subr.bf16.mxu0 0
        %1163 = vmatpush2.bf16.msra.mxu0 0
        %1164 = vmatprep.mubr.bf16.mxu0 0
        %1165 = vmatmul.mubr.bf16.gmra.mxu0 %v949
        %v1166 = vpop.f32.mrf.mxu0
        %v1167 = vadd.f32 %v1071, %v1166
        %v1168 = vpop.f32.mrf.mxu0
        %v1169 = vpop.f32.mrf.mxu0
        %v1170 = vadd.f32 %v1074, %v1169
        %v1171 = vpop.f32.mrf.mxu0
        %1172 = vmatprep.mubr.bf16.mxu0 0
        %1173 = vmatmul.mubr.bf16.gmra.mxu0 %v950
        %v1174 = vpop.f32.mrf.mxu0
        %v1175 = vadd.f32 %v1079, %v1174
        %v1176 = vpop.f32.mrf.mxu0
        %v1177 = vpop.f32.mrf.mxu0
        %v1178 = vpop.f32.mrf.mxu0
        %1179 = vdwg.mxu0
        %v1180 = vld [vmem:[#allocation2 + $0x2] sm:$0xff]
        %v1181 = vld [vmem:[#allocation2 + $0xa] sm:$0xff]
        %v1182 = vld [vmem:[#allocation2 + $0x12] sm:$0x3f]
        %v1183 = vpack.c.bf16 %v1181, %v1180
        %v1184 = vpack.c.bf16 %v1182, %v1182
        %v1185 = vld [vmem:[%s3 + $0x80] sm:$0xf]
        %v1186 = vld [vmem:[%s3 + $0x84] sm:$0xf]
        %v1187 = vld [vmem:[%s3 + $0x88] sm:$0xf]
        %v1188 = vld [vmem:[%s3 + $0x8c] sm:$0xf]
        %v1189 = vld [vmem:[%s3 + $0x90] sm:$0xf]
        %v1190 = vld [vmem:[%s3 + $0x94] sm:$0xf]
        %v1191 = vld [vmem:[%s3 + $0x98] sm:$0xf]
        %v1192 = vld [vmem:[%s3 + $0x9c] sm:$0xf]
        %v1193 = vld [vmem:[%s3 + $0xa0] sm:$0xf]
        %v1194 = vld [vmem:[%s3 + $0xa4] sm:$0xf]
        %v1195 = vld [vmem:[%s3 + $0xa8] sm:$0xf]
        %v1196 = vld [vmem:[%s3 + $0xac] sm:$0xf]
        %v1197 = vld [vmem:[%s3 + $0xb0] sm:$0xf]
        %v1198 = vld [vmem:[%s3 + $0xb4] sm:$0xf]
        %v1199 = vld [vmem:[%s3 + $0xb8] sm:$0xf]
        %v1200 = vld [vmem:[%s3 + $0xbc] sm:$0xf]
        %v1217 = vunpack.c.l.b16 %v1185
        %v1218 = vunpack.c.l.b16 %v1186
        %v1219 = vunpack.c.l.b16 %v1187
        %v1220 = vunpack.c.l.b16 %v1188
        %v1221 = vunpack.c.l.b16 %v1189
        %v1222 = vunpack.c.l.b16 %v1190
        %v1223 = vunpack.c.l.b16 %v1191
        %v1224 = vunpack.c.l.b16 %v1192
        %v1225 = vunpack.c.l.b16 %v1193
        %v1226 = vunpack.c.l.b16 %v1194
        %v1227 = vunpack.c.l.b16 %v1195
        %v1228 = vunpack.c.l.b16 %v1196
        %v1229 = vunpack.c.l.b16 %v1197
        %v1230 = vunpack.c.l.b16 %v1198
        %v1231 = vunpack.c.l.b16 %v1199
        %v1232 = vunpack.c.l.b16 %v1200
        %v1233 = vpack.c.b16 %v1218, %v1217
        %v1234 = vpack.c.b16 %v1220, %v1219
        %v1235 = vpack.c.b16 %v1222, %v1221
        %v1236 = vpack.c.b16 %v1224, %v1223
        %v1237 = vpack.c.b16 %v1226, %v1225
        %v1238 = vpack.c.b16 %v1228, %v1227
        %v1239 = vpack.c.b16 %v1230, %v1229
        %v1240 = vpack.c.b16 %v1232, %v1231
        %1249 = vmatprep.subr.bf16.mxu0 0
        %1250 = vmatpush1.bf16.msra.mxu0 %v1240
        %1251 = vmatprep.subr.bf16.mxu0 0
        %1252 = vmatpush1.bf16.msra.mxu0 %v1239
        %1253 = vmatprep.subr.bf16.mxu0 0
        %1254 = vmatpush1.bf16.msra.mxu0 %v1238
        %1255 = vmatprep.subr.bf16.mxu0 0
        %1256 = vmatpush1.bf16.msra.mxu0 %v1237
        %1257 = vmatprep.subr.bf16.mxu0 0
        %1258 = vmatpush1.bf16.msra.mxu0 %v1236
        %1259 = vmatprep.subr.bf16.mxu0 0
        %1260 = vmatpush1.bf16.msra.mxu0 %v1235
        %1261 = vmatprep.subr.bf16.mxu0 0
        %1262 = vmatpush1.bf16.msra.mxu0 %v1234
        %1263 = vmatprep.subr.bf16.mxu0 0
        %1264 = vmatpush1.bf16.msra.mxu0 %v1233
        %1265 = vmatprep.subr.bf16.mxu0 0
        %1266 = vmatpush2.bf16.msra.mxu0 0
        %1267 = vmatprep.subr.bf16.mxu0 0
        %1268 = vmatpush2.bf16.msra.mxu0 0
        %1269 = vmatprep.subr.bf16.mxu0 0
        %1270 = vmatpush2.bf16.msra.mxu0 0
        %1271 = vmatprep.subr.bf16.mxu0 0
        %1272 = vmatpush2.bf16.msra.mxu0 0
        %1273 = vmatprep.subr.bf16.mxu0 0
        %1274 = vmatpush2.bf16.msra.mxu0 0
        %1275 = vmatprep.subr.bf16.mxu0 0
        %1276 = vmatpush2.bf16.msra.mxu0 0
        %1277 = vmatprep.subr.bf16.mxu0 0
        %1278 = vmatpush2.bf16.msra.mxu0 0
        %1279 = vmatprep.subr.bf16.mxu0 0
        %1280 = vmatpush2.bf16.msra.mxu0 0
        %1281 = vmatprep.mubr.bf16.mxu0 0
        %1282 = vmatmul.mubr.bf16.gmra.mxu0 %v1183
        %v1283 = vpop.f32.mrf.mxu0
        %v1284 = vadd.f32 0.0, %v1283
        %v1285 = vpop.f32.mrf.mxu0
        %v1286 = vpop.f32.mrf.mxu0
        %v1287 = vadd.f32 0.0, %v1286
        %v1288 = vpop.f32.mrf.mxu0
        %1289 = vmatprep.mubr.bf16.mxu0 0
        %1290 = vmatmul.mubr.bf16.gmra.mxu0 %v1184
        %v1291 = vpop.f32.mrf.mxu0
        %v1292 = vadd.f32 0.0, %v1291
        %v1293 = vpop.f32.mrf.mxu0
        %v1294 = vpop.f32.mrf.mxu0
        %v1295 = vpop.f32.mrf.mxu0
        %1296 = vdwg.mxu0
        %v1297 = vadd.f32 %v1167, %v1284
        %v1298 = vadd.f32 %v1170, %v1287
        %v1299 = vadd.f32 %v1175, %v1292
        %v1300 = vld [vmem:[#allocation2 + $0x6] sm:$0xff]
        %v1301 = vld [vmem:[#allocation2 + $0xe] sm:$0xff]
        %v1302 = vld [vmem:[#allocation2 + $0x16] sm:$0x3f]
        %v1303 = vpack.c.bf16 %v1301, %v1300
        %v1304 = vpack.c.bf16 %v1302, %v1302
        %v1305 = vld [vmem:[%s3 + $0xc0] sm:$0xf]
        %v1306 = vld [vmem:[%s3 + $0xc4] sm:$0xf]
        %v1307 = vld [vmem:[%s3 + $0xc8] sm:$0xf]
        %v1308 = vld [vmem:[%s3 + $0xcc] sm:$0xf]
        %v1309 = vld [vmem:[%s3 + $0xd0] sm:$0xf]
        %v1310 = vld [vmem:[%s3 + $0xd4] sm:$0xf]
        %v1311 = vld [vmem:[%s3 + $0xd8] sm:$0xf]
        %v1312 = vld [vmem:[%s3 + $0xdc] sm:$0xf]
        %v1313 = vld [vmem:[%s3 + $0xe0] sm:$0xf]
        %v1314 = vld [vmem:[%s3 + $0xe4] sm:$0xf]
        %v1315 = vld [vmem:[%s3 + $0xe8] sm:$0xf]
        %v1316 = vld [vmem:[%s3 + $0xec] sm:$0xf]
        %v1317 = vld [vmem:[%s3 + $0xf0] sm:$0xf]
        %v1318 = vld [vmem:[%s3 + $0xf4] sm:$0xf]
        %v1319 = vld [vmem:[%s3 + $0xf8] sm:$0xf]
        %v1320 = vld [vmem:[%s3 + $0xfc] sm:$0xf]
        %v1337 = vunpack.c.l.b16 %v1305
        %v1338 = vunpack.c.l.b16 %v1306
        %v1339 = vunpack.c.l.b16 %v1307
        %v1340 = vunpack.c.l.b16 %v1308
        %v1341 = vunpack.c.l.b16 %v1309
        %v1342 = vunpack.c.l.b16 %v1310
        %v1343 = vunpack.c.l.b16 %v1311
        %v1344 = vunpack.c.l.b16 %v1312
        %v1345 = vunpack.c.l.b16 %v1313
        %v1346 = vunpack.c.l.b16 %v1314
        %v1347 = vunpack.c.l.b16 %v1315
        %v1348 = vunpack.c.l.b16 %v1316
        %v1349 = vunpack.c.l.b16 %v1317
        %v1350 = vunpack.c.l.b16 %v1318
        %v1351 = vunpack.c.l.b16 %v1319
        %v1352 = vunpack.c.l.b16 %v1320
        %v1353 = vpack.c.b16 %v1338, %v1337
        %v1354 = vpack.c.b16 %v1340, %v1339
        %v1355 = vpack.c.b16 %v1342, %v1341
        %v1356 = vpack.c.b16 %v1344, %v1343
        %v1357 = vpack.c.b16 %v1346, %v1345
        %v1358 = vpack.c.b16 %v1348, %v1347
        %v1359 = vpack.c.b16 %v1350, %v1349
        %v1360 = vpack.c.b16 %v1352, %v1351
        %1369 = vmatprep.subr.bf16.mxu0 0
        %1370 = vmatpush1.bf16.msra.mxu0 %v1360
        %1371 = vmatprep.subr.bf16.mxu0 0
        %1372 = vmatpush1.bf16.msra.mxu0 %v1359
        %1373 = vmatprep.subr.bf16.mxu0 0
        %1374 = vmatpush1.bf16.msra.mxu0 %v1358
        %1375 = vmatprep.subr.bf16.mxu0 0
        %1376 = vmatpush1.bf16.msra.mxu0 %v1357
        %1377 = vmatprep.subr.bf16.mxu0 0
        %1378 = vmatpush1.bf16.msra.mxu0 %v1356
        %1379 = vmatprep.subr.bf16.mxu0 0
        %1380 = vmatpush1.bf16.msra.mxu0 %v1355
        %1381 = vmatprep.subr.bf16.mxu0 0
        %1382 = vmatpush1.bf16.msra.mxu0 %v1354
        %1383 = vmatprep.subr.bf16.mxu0 0
        %1384 = vmatpush1.bf16.msra.mxu0 %v1353
        %1385 = vmatprep.subr.bf16.mxu0 0
        %1386 = vmatpush2.bf16.msra.mxu0 0
        %1387 = vmatprep.subr.bf16.mxu0 0
        %1388 = vmatpush2.bf16.msra.mxu0 0
        %1389 = vmatprep.subr.bf16.mxu0 0
        %1390 = vmatpush2.bf16.msra.mxu0 0
        %1391 = vmatprep.subr.bf16.mxu0 0
        %1392 = vmatpush2.bf16.msra.mxu0 0
        %1393 = vmatprep.subr.bf16.mxu0 0
        %1394 = vmatpush2.bf16.msra.mxu0 0
        %1395 = vmatprep.subr.bf16.mxu0 0
        %1396 = vmatpush2.bf16.msra.mxu0 0
        %1397 = vmatprep.subr.bf16.mxu0 0
        %1398 = vmatpush2.bf16.msra.mxu0 0
        %1399 = vmatprep.subr.bf16.mxu0 0
        %1400 = vmatpush2.bf16.msra.mxu0 0
        %1401 = vmatprep.mubr.bf16.mxu0 0
        %1402 = vmatmul.mubr.bf16.gmra.mxu0 %v1303
        %v1403 = vpop.f32.mrf.mxu0
        %v1404 = vadd.f32 0.0, %v1403
        %v1405 = vpop.f32.mrf.mxu0
        %v1406 = vpop.f32.mrf.mxu0
        %v1407 = vadd.f32 0.0, %v1406
        %v1408 = vpop.f32.mrf.mxu0
        %1409 = vmatprep.mubr.bf16.mxu0 0
        %1410 = vmatmul.mubr.bf16.gmra.mxu0 %v1304
        %v1411 = vpop.f32.mrf.mxu0
        %v1412 = vadd.f32 0.0, %v1411
        %v1413 = vpop.f32.mrf.mxu0
        %v1414 = vpop.f32.mrf.mxu0
        %v1415 = vpop.f32.mrf.mxu0
        %1416 = vdwg.mxu0
        %v1417 = vadd.f32 %v1297, %v1404
        %v1418 = vadd.f32 %v1298, %v1407
        %v1419 = vadd.f32 %v1299, %v1412
        %v1420 = vld [vmem:[#allocation2 + $0x7] sm:$0xff]
        %v1421 = vld [vmem:[#allocation2 + $0xf] sm:$0xff]
        %v1422 = vld [vmem:[#allocation2 + $0x17] sm:$0x3f]
        %v1423 = vpack.c.bf16 %v1421, %v1420
        %v1424 = vpack.c.bf16 %v1422, %v1422
        %v1425 = vld [vmem:[%s3 + $0x100] sm:$0xf]
        %v1426 = vld [vmem:[%s3 + $0x104] sm:$0xf]
        %v1427 = vld [vmem:[%s3 + $0x108] sm:$0xf]
        %v1428 = vld [vmem:[%s3 + $0x10c] sm:$0xf]
        %v1429 = vld [vmem:[%s3 + $0x110] sm:$0xf]
        %v1430 = vld [vmem:[%s3 + $0x114] sm:$0xf]
        %v1431 = vld [vmem:[%s3 + $0x118] sm:$0xf]
        %v1432 = vld [vmem:[%s3 + $0x11c] sm:$0xf]
        %v1433 = vld [vmem:[%s3 + $0x120] sm:$0xf]
        %v1434 = vld [vmem:[%s3 + $0x124] sm:$0xf]
        %v1435 = vld [vmem:[%s3 + $0x128] sm:$0xf]
        %v1436 = vld [vmem:[%s3 + $0x12c] sm:$0xf]
        %v1437 = vld [vmem:[%s3 + $0x130] sm:$0xf]
        %v1438 = vld [vmem:[%s3 + $0x134] sm:$0xf]
        %v1439 = vld [vmem:[%s3 + $0x138] sm:$0xf]
        %v1440 = vld [vmem:[%s3 + $0x13c] sm:$0xf]
        %v1457 = vunpack.c.l.b16 %v1425
        %v1458 = vunpack.c.l.b16 %v1426
        %v1459 = vunpack.c.l.b16 %v1427
        %v1460 = vunpack.c.l.b16 %v1428
        %v1461 = vunpack.c.l.b16 %v1429
        %v1462 = vunpack.c.l.b16 %v1430
        %v1463 = vunpack.c.l.b16 %v1431
        %v1464 = vunpack.c.l.b16 %v1432
        %v1465 = vunpack.c.l.b16 %v1433
        %v1466 = vunpack.c.l.b16 %v1434
        %v1467 = vunpack.c.l.b16 %v1435
        %v1468 = vunpack.c.l.b16 %v1436
        %v1469 = vunpack.c.l.b16 %v1437
        %v1470 = vunpack.c.l.b16 %v1438
        %v1471 = vunpack.c.l.b16 %v1439
        %v1472 = vunpack.c.l.b16 %v1440
        %v1473 = vpack.c.b16 %v1458, %v1457
        %v1474 = vpack.c.b16 %v1460, %v1459
        %v1475 = vpack.c.b16 %v1462, %v1461
        %v1476 = vpack.c.b16 %v1464, %v1463
        %v1477 = vpack.c.b16 %v1466, %v1465
        %v1478 = vpack.c.b16 %v1468, %v1467
        %v1479 = vpack.c.b16 %v1470, %v1469
        %v1480 = vpack.c.b16 %v1472, %v1471
        %1489 = vmatprep.subr.bf16.mxu0 0
        %1490 = vmatpush1.bf16.msra.mxu0 %v1480
        %1491 = vmatprep.subr.bf16.mxu0 0
        %1492 = vmatpush1.bf16.msra.mxu0 %v1479
        %1493 = vmatprep.subr.bf16.mxu0 0
        %1494 = vmatpush1.bf16.msra.mxu0 %v1478
        %1495 = vmatprep.subr.bf16.mxu0 0
        %1496 = vmatpush1.bf16.msra.mxu0 %v1477
        %1497 = vmatprep.subr.bf16.mxu0 0
        %1498 = vmatpush1.bf16.msra.mxu0 %v1476
        %1499 = vmatprep.subr.bf16.mxu0 0
        %1500 = vmatpush1.bf16.msra.mxu0 %v1475
        %1501 = vmatprep.subr.bf16.mxu0 0
        %1502 = vmatpush1.bf16.msra.mxu0 %v1474
        %1503 = vmatprep.subr.bf16.mxu0 0
        %1504 = vmatpush1.bf16.msra.mxu0 %v1473
        %1505 = vmatprep.subr.bf16.mxu0 0
        %1506 = vmatpush2.bf16.msra.mxu0 0
        %1507 = vmatprep.subr.bf16.mxu0 0
        %1508 = vmatpush2.bf16.msra.mxu0 0
        %1509 = vmatprep.subr.bf16.mxu0 0
        %1510 = vmatpush2.bf16.msra.mxu0 0
        %1511 = vmatprep.subr.bf16.mxu0 0
        %1512 = vmatpush2.bf16.msra.mxu0 0
        %1513 = vmatprep.subr.bf16.mxu0 0
        %1514 = vmatpush2.bf16.msra.mxu0 0
        %1515 = vmatprep.subr.bf16.mxu0 0
        %1516 = vmatpush2.bf16.msra.mxu0 0
        %1517 = vmatprep.subr.bf16.mxu0 0
        %1518 = vmatpush2.bf16.msra.mxu0 0
        %1519 = vmatprep.subr.bf16.mxu0 0
        %1520 = vmatpush2.bf16.msra.mxu0 0
        %1521 = vmatprep.mubr.bf16.mxu0 0
        %1522 = vmatmul.mubr.bf16.gmra.mxu0 %v1423
        %v1523 = vpop.f32.mrf.mxu0
        %v1524 = vadd.f32 0.0, %v1523
        %v1525 = vpop.f32.mrf.mxu0
        %v1526 = vpop.f32.mrf.mxu0
        %v1527 = vadd.f32 0.0, %v1526
        %v1528 = vpop.f32.mrf.mxu0
        %1529 = vmatprep.mubr.bf16.mxu0 0
        %1530 = vmatmul.mubr.bf16.gmra.mxu0 %v1424
        %v1531 = vpop.f32.mrf.mxu0
        %v1532 = vadd.f32 0.0, %v1531
        %v1533 = vpop.f32.mrf.mxu0
        %v1534 = vpop.f32.mrf.mxu0
        %v1535 = vpop.f32.mrf.mxu0
        %1536 = vdwg.mxu0
        %v1537 = vadd.f32 %v1417, %v1524
        %v1538 = vadd.f32 %v1418, %v1527
        %v1539 = vadd.f32 %v1419, %v1532
        %v1540 = vld [vmem:[#allocation2 + $0x8] sm:$0xff]
        %v1541 = vld [vmem:[#allocation2 + $0x10] sm:$0xff]
        %v1542 = vld [vmem:[#allocation2 + $0x18] sm:$0x3f]
        %v1543 = vpack.c.bf16 %v1541, %v1540
        %v1544 = vpack.c.bf16 %v1542, %v1542
        %v1545 = vld [vmem:[%s3 + $0x140] sm:$0xf]
        %v1546 = vld [vmem:[%s3 + $0x144] sm:$0xf]
        %v1547 = vld [vmem:[%s3 + $0x148] sm:$0xf]
        %v1548 = vld [vmem:[%s3 + $0x14c] sm:$0xf]
        %v1549 = vld [vmem:[%s3 + $0x150] sm:$0xf]
        %v1550 = vld [vmem:[%s3 + $0x154] sm:$0xf]
        %v1551 = vld [vmem:[%s3 + $0x158] sm:$0xf]
        %v1552 = vld [vmem:[%s3 + $0x15c] sm:$0xf]
        %v1553 = vld [vmem:[%s3 + $0x160] sm:$0xf]
        %v1554 = vld [vmem:[%s3 + $0x164] sm:$0xf]
        %v1555 = vld [vmem:[%s3 + $0x168] sm:$0xf]
        %v1556 = vld [vmem:[%s3 + $0x16c] sm:$0xf]
        %v1557 = vld [vmem:[%s3 + $0x170] sm:$0xf]
        %v1558 = vld [vmem:[%s3 + $0x174] sm:$0xf]
        %v1559 = vld [vmem:[%s3 + $0x178] sm:$0xf]
        %v1560 = vld [vmem:[%s3 + $0x17c] sm:$0xf]
        %v1577 = vunpack.c.l.b16 %v1545
        %v1578 = vunpack.c.l.b16 %v1546
        %v1579 = vunpack.c.l.b16 %v1547
        %v1580 = vunpack.c.l.b16 %v1548
        %v1581 = vunpack.c.l.b16 %v1549
        %v1582 = vunpack.c.l.b16 %v1550
        %v1583 = vunpack.c.l.b16 %v1551
        %v1584 = vunpack.c.l.b16 %v1552
        %v1585 = vunpack.c.l.b16 %v1553
        %v1586 = vunpack.c.l.b16 %v1554
        %v1587 = vunpack.c.l.b16 %v1555
        %v1588 = vunpack.c.l.b16 %v1556
        %v1589 = vunpack.c.l.b16 %v1557
        %v1590 = vunpack.c.l.b16 %v1558
        %v1591 = vunpack.c.l.b16 %v1559
        %v1592 = vunpack.c.l.b16 %v1560
        %v1593 = vpack.c.b16 %v1578, %v1577
        %v1594 = vpack.c.b16 %v1580, %v1579
        %v1595 = vpack.c.b16 %v1582, %v1581
        %v1596 = vpack.c.b16 %v1584, %v1583
        %v1597 = vpack.c.b16 %v1586, %v1585
        %v1598 = vpack.c.b16 %v1588, %v1587
        %v1599 = vpack.c.b16 %v1590, %v1589
        %v1600 = vpack.c.b16 %v1592, %v1591
        %1609 = vmatprep.subr.bf16.mxu0 0
        %1610 = vmatpush1.bf16.msra.mxu0 %v1600
        %1611 = vmatprep.subr.bf16.mxu0 0
        %1612 = vmatpush1.bf16.msra.mxu0 %v1599
        %1613 = vmatprep.subr.bf16.mxu0 0
        %1614 = vmatpush1.bf16.msra.mxu0 %v1598
        %1615 = vmatprep.subr.bf16.mxu0 0
        %1616 = vmatpush1.bf16.msra.mxu0 %v1597
        %1617 = vmatprep.subr.bf16.mxu0 0
        %1618 = vmatpush1.bf16.msra.mxu0 %v1596
        %1619 = vmatprep.subr.bf16.mxu0 0
        %1620 = vmatpush1.bf16.msra.mxu0 %v1595
        %1621 = vmatprep.subr.bf16.mxu0 0
        %1622 = vmatpush1.bf16.msra.mxu0 %v1594
        %1623 = vmatprep.subr.bf16.mxu0 0
        %1624 = vmatpush1.bf16.msra.mxu0 %v1593
        %1625 = vmatprep.subr.bf16.mxu0 0
        %1626 = vmatpush2.bf16.msra.mxu0 0
        %1627 = vmatprep.subr.bf16.mxu0 0
        %1628 = vmatpush2.bf16.msra.mxu0 0
        %1629 = vmatprep.subr.bf16.mxu0 0
        %1630 = vmatpush2.bf16.msra.mxu0 0
        %1631 = vmatprep.subr.bf16.mxu0 0
        %1632 = vmatpush2.bf16.msra.mxu0 0
        %1633 = vmatprep.subr.bf16.mxu0 0
        %1634 = vmatpush2.bf16.msra.mxu0 0
        %1635 = vmatprep.subr.bf16.mxu0 0
        %1636 = vmatpush2.bf16.msra.mxu0 0
        %1637 = vmatprep.subr.bf16.mxu0 0
        %1638 = vmatpush2.bf16.msra.mxu0 0
        %1639 = vmatprep.subr.bf16.mxu0 0
        %1640 = vmatpush2.bf16.msra.mxu0 0
        %1641 = vmatprep.mubr.bf16.mxu0 0
        %1642 = vmatmul.mubr.bf16.gmra.mxu0 %v1543
        %v1643 = vpop.f32.mrf.mxu0
        %v1644 = vadd.f32 0.0, %v1643
        %v1645 = vpop.f32.mrf.mxu0
        %v1646 = vpop.f32.mrf.mxu0
        %v1647 = vadd.f32 0.0, %v1646
        %v1648 = vpop.f32.mrf.mxu0
        %1649 = vmatprep.mubr.bf16.mxu0 0
        %1650 = vmatmul.mubr.bf16.gmra.mxu0 %v1544
        %v1651 = vpop.f32.mrf.mxu0
        %v1652 = vadd.f32 0.0, %v1651
        %v1653 = vpop.f32.mrf.mxu0
        %v1654 = vpop.f32.mrf.mxu0
        %v1655 = vpop.f32.mrf.mxu0
        %1656 = vdwg.mxu0
        %v1657 = vadd.f32 %v1537, %v1644
        %v1658 = vadd.f32 %v1538, %v1647
        %v1659 = vadd.f32 %v1539, %v1652
        %v1660 = vld [vmem:[#allocation2 + $0xc] sm:$0xff]
        %v1661 = vld [vmem:[#allocation2 + $0x14] sm:$0xff]
        %v1662 = vld [vmem:[#allocation2 + $0x1c] sm:$0x3f]
        %v1663 = vpack.c.bf16 %v1661, %v1660
        %v1664 = vpack.c.bf16 %v1662, %v1662
        %v1665 = vld [vmem:[%s3 + $0x180] sm:$0xf]
        %v1666 = vld [vmem:[%s3 + $0x184] sm:$0xf]
        %v1667 = vld [vmem:[%s3 + $0x188] sm:$0xf]
        %v1668 = vld [vmem:[%s3 + $0x18c] sm:$0xf]
        %v1669 = vld [vmem:[%s3 + $0x190] sm:$0xf]
        %v1670 = vld [vmem:[%s3 + $0x194] sm:$0xf]
        %v1671 = vld [vmem:[%s3 + $0x198] sm:$0xf]
        %v1672 = vld [vmem:[%s3 + $0x19c] sm:$0xf]
        %v1673 = vld [vmem:[%s3 + $0x1a0] sm:$0xf]
        %v1674 = vld [vmem:[%s3 + $0x1a4] sm:$0xf]
        %v1675 = vld [vmem:[%s3 + $0x1a8] sm:$0xf]
        %v1676 = vld [vmem:[%s3 + $0x1ac] sm:$0xf]
        %v1677 = vld [vmem:[%s3 + $0x1b0] sm:$0xf]
        %v1678 = vld [vmem:[%s3 + $0x1b4] sm:$0xf]
        %v1679 = vld [vmem:[%s3 + $0x1b8] sm:$0xf]
        %v1680 = vld [vmem:[%s3 + $0x1bc] sm:$0xf]
        %v1697 = vunpack.c.l.b16 %v1665
        %v1698 = vunpack.c.l.b16 %v1666
        %v1699 = vunpack.c.l.b16 %v1667
        %v1700 = vunpack.c.l.b16 %v1668
        %v1701 = vunpack.c.l.b16 %v1669
        %v1702 = vunpack.c.l.b16 %v1670
        %v1703 = vunpack.c.l.b16 %v1671
        %v1704 = vunpack.c.l.b16 %v1672
        %v1705 = vunpack.c.l.b16 %v1673
        %v1706 = vunpack.c.l.b16 %v1674
        %v1707 = vunpack.c.l.b16 %v1675
        %v1708 = vunpack.c.l.b16 %v1676
        %v1709 = vunpack.c.l.b16 %v1677
        %v1710 = vunpack.c.l.b16 %v1678
        %v1711 = vunpack.c.l.b16 %v1679
        %v1712 = vunpack.c.l.b16 %v1680
        %v1713 = vpack.c.b16 %v1698, %v1697
        %v1714 = vpack.c.b16 %v1700, %v1699
        %v1715 = vpack.c.b16 %v1702, %v1701
        %v1716 = vpack.c.b16 %v1704, %v1703
        %v1717 = vpack.c.b16 %v1706, %v1705
        %v1718 = vpack.c.b16 %v1708, %v1707
        %v1719 = vpack.c.b16 %v1710, %v1709
        %v1720 = vpack.c.b16 %v1712, %v1711
        %1729 = vmatprep.subr.bf16.mxu0 0
        %1730 = vmatpush1.bf16.msra.mxu0 %v1720
        %1731 = vmatprep.subr.bf16.mxu0 0
        %1732 = vmatpush1.bf16.msra.mxu0 %v1719
        %1733 = vmatprep.subr.bf16.mxu0 0
        %1734 = vmatpush1.bf16.msra.mxu0 %v1718
        %1735 = vmatprep.subr.bf16.mxu0 0
        %1736 = vmatpush1.bf16.msra.mxu0 %v1717
        %1737 = vmatprep.subr.bf16.mxu0 0
        %1738 = vmatpush1.bf16.msra.mxu0 %v1716
        %1739 = vmatprep.subr.bf16.mxu0 0
        %1740 = vmatpush1.bf16.msra.mxu0 %v1715
        %1741 = vmatprep.subr.bf16.mxu0 0
        %1742 = vmatpush1.bf16.msra.mxu0 %v1714
        %1743 = vmatprep.subr.bf16.mxu0 0
        %1744 = vmatpush1.bf16.msra.mxu0 %v1713
        %1745 = vmatprep.subr.bf16.mxu0 0
        %1746 = vmatpush2.bf16.msra.mxu0 0
        %1747 = vmatprep.subr.bf16.mxu0 0
        %1748 = vmatpush2.bf16.msra.mxu0 0
        %1749 = vmatprep.subr.bf16.mxu0 0
        %1750 = vmatpush2.bf16.msra.mxu0 0
        %1751 = vmatprep.subr.bf16.mxu0 0
        %1752 = vmatpush2.bf16.msra.mxu0 0
        %1753 = vmatprep.subr.bf16.mxu0 0
        %1754 = vmatpush2.bf16.msra.mxu0 0
        %1755 = vmatprep.subr.bf16.mxu0 0
        %1756 = vmatpush2.bf16.msra.mxu0 0
        %1757 = vmatprep.subr.bf16.mxu0 0
        %1758 = vmatpush2.bf16.msra.mxu0 0
        %1759 = vmatprep.subr.bf16.mxu0 0
        %1760 = vmatpush2.bf16.msra.mxu0 0
        %1761 = vmatprep.mubr.bf16.mxu0 0
        %1762 = vmatmul.mubr.bf16.gmra.mxu0 %v1663
        %v1763 = vpop.f32.mrf.mxu0
        %v1764 = vadd.f32 0.0, %v1763
        %v1765 = vpop.f32.mrf.mxu0
        %v1766 = vpop.f32.mrf.mxu0
        %v1767 = vadd.f32 0.0, %v1766
        %v1768 = vpop.f32.mrf.mxu0
        %1769 = vmatprep.mubr.bf16.mxu0 0
        %1770 = vmatmul.mubr.bf16.gmra.mxu0 %v1664
        %v1771 = vpop.f32.mrf.mxu0
        %v1772 = vadd.f32 0.0, %v1771
        %v1773 = vpop.f32.mrf.mxu0
        %v1774 = vpop.f32.mrf.mxu0
        %v1775 = vpop.f32.mrf.mxu0
        %1776 = vdwg.mxu0
        %v1777 = vadd.f32 %v1657, %v1764
        %v1778 = vadd.f32 %v1658, %v1767
        %v1779 = vadd.f32 %v1659, %v1772
        %v1780 = vld [vmem:[#allocation2 + $0xd] sm:$0xff]
        %v1781 = vld [vmem:[#allocation2 + $0x15] sm:$0xff]
        %v1782 = vld [vmem:[#allocation2 + $0x1d] sm:$0x3f]
        %v1783 = vpack.c.bf16 %v1781, %v1780
        %v1784 = vpack.c.bf16 %v1782, %v1782
        %v1785 = vld [vmem:[%s3 + $0x1c0] sm:$0xf]
        %v1786 = vld [vmem:[%s3 + $0x1c4] sm:$0xf]
        %v1787 = vld [vmem:[%s3 + $0x1c8] sm:$0xf]
        %v1788 = vld [vmem:[%s3 + $0x1cc] sm:$0xf]
        %v1789 = vld [vmem:[%s3 + $0x1d0] sm:$0xf]
        %v1790 = vld [vmem:[%s3 + $0x1d4] sm:$0xf]
        %v1791 = vld [vmem:[%s3 + $0x1d8] sm:$0xf]
        %v1792 = vld [vmem:[%s3 + $0x1dc] sm:$0xf]
        %v1793 = vld [vmem:[%s3 + $0x1e0] sm:$0xf]
        %v1794 = vld [vmem:[%s3 + $0x1e4] sm:$0xf]
        %v1795 = vld [vmem:[%s3 + $0x1e8] sm:$0xf]
        %v1796 = vld [vmem:[%s3 + $0x1ec] sm:$0xf]
        %v1797 = vld [vmem:[%s3 + $0x1f0] sm:$0xf]
        %v1798 = vld [vmem:[%s3 + $0x1f4] sm:$0xf]
        %v1799 = vld [vmem:[%s3 + $0x1f8] sm:$0xf]
        %v1800 = vld [vmem:[%s3 + $0x1fc] sm:$0xf]
        %v1817 = vunpack.c.l.b16 %v1785
        %v1818 = vunpack.c.l.b16 %v1786
        %v1819 = vunpack.c.l.b16 %v1787
        %v1820 = vunpack.c.l.b16 %v1788
        %v1821 = vunpack.c.l.b16 %v1789
        %v1822 = vunpack.c.l.b16 %v1790
        %v1823 = vunpack.c.l.b16 %v1791
        %v1824 = vunpack.c.l.b16 %v1792
        %v1825 = vunpack.c.l.b16 %v1793
        %v1826 = vunpack.c.l.b16 %v1794
        %v1827 = vunpack.c.l.b16 %v1795
        %v1828 = vunpack.c.l.b16 %v1796
        %v1829 = vunpack.c.l.b16 %v1797
        %v1830 = vunpack.c.l.b16 %v1798
        %v1831 = vunpack.c.l.b16 %v1799
        %v1832 = vunpack.c.l.b16 %v1800
        %v1833 = vpack.c.b16 %v1818, %v1817
        %v1834 = vpack.c.b16 %v1820, %v1819
        %v1835 = vpack.c.b16 %v1822, %v1821
        %v1836 = vpack.c.b16 %v1824, %v1823
        %v1837 = vpack.c.b16 %v1826, %v1825
        %v1838 = vpack.c.b16 %v1828, %v1827
        %v1839 = vpack.c.b16 %v1830, %v1829
        %v1840 = vpack.c.b16 %v1832, %v1831
        %1849 = vmatprep.subr.bf16.mxu0 0
        %1850 = vmatpush1.bf16.msra.mxu0 %v1840
        %1851 = vmatprep.subr.bf16.mxu0 0
        %1852 = vmatpush1.bf16.msra.mxu0 %v1839
        %1853 = vmatprep.subr.bf16.mxu0 0
        %1854 = vmatpush1.bf16.msra.mxu0 %v1838
        %1855 = vmatprep.subr.bf16.mxu0 0
        %1856 = vmatpush1.bf16.msra.mxu0 %v1837
        %1857 = vmatprep.subr.bf16.mxu0 0
        %1858 = vmatpush1.bf16.msra.mxu0 %v1836
        %1859 = vmatprep.subr.bf16.mxu0 0
        %1860 = vmatpush1.bf16.msra.mxu0 %v1835
        %1861 = vmatprep.subr.bf16.mxu0 0
        %1862 = vmatpush1.bf16.msra.mxu0 %v1834
        %1863 = vmatprep.subr.bf16.mxu0 0
        %1864 = vmatpush1.bf16.msra.mxu0 %v1833
        %1865 = vmatprep.subr.bf16.mxu0 0
        %1866 = vmatpush2.bf16.msra.mxu0 0
        %1867 = vmatprep.subr.bf16.mxu0 0
        %1868 = vmatpush2.bf16.msra.mxu0 0
        %1869 = vmatprep.subr.bf16.mxu0 0
        %1870 = vmatpush2.bf16.msra.mxu0 0
        %1871 = vmatprep.subr.bf16.mxu0 0
        %1872 = vmatpush2.bf16.msra.mxu0 0
        %1873 = vmatprep.subr.bf16.mxu0 0
        %1874 = vmatpush2.bf16.msra.mxu0 0
        %1875 = vmatprep.subr.bf16.mxu0 0
        %1876 = vmatpush2.bf16.msra.mxu0 0
        %1877 = vmatprep.subr.bf16.mxu0 0
        %1878 = vmatpush2.bf16.msra.mxu0 0
        %1879 = vmatprep.subr.bf16.mxu0 0
        %1880 = vmatpush2.bf16.msra.mxu0 0
        %1881 = vmatprep.mubr.bf16.mxu0 0
        %1882 = vmatmul.mubr.bf16.gmra.mxu0 %v1783
        %v1883 = vpop.f32.mrf.mxu0
        %v1884 = vadd.f32 0.0, %v1883
        %v1885 = vpop.f32.mrf.mxu0
        %v1886 = vpop.f32.mrf.mxu0
        %v1887 = vadd.f32 0.0, %v1886
        %v1888 = vpop.f32.mrf.mxu0
        %1889 = vmatprep.mubr.bf16.mxu0 0
        %1890 = vmatmul.mubr.bf16.gmra.mxu0 %v1784
        %v1891 = vpop.f32.mrf.mxu0
        %v1892 = vadd.f32 0.0, %v1891
        %v1893 = vpop.f32.mrf.mxu0
        %v1894 = vpop.f32.mrf.mxu0
        %v1895 = vpop.f32.mrf.mxu0
        %1896 = vdwg.mxu0
        %v1897 = vadd.f32 %v1777, %v1884
        %v1898 = vadd.f32 %v1778, %v1887
        %v1899 = vadd.f32 %v1779, %v1892
        %v1900 = vld [vmem:[#allocation2 + $0xe] sm:$0xff]
        %v1901 = vld [vmem:[#allocation2 + $0x16] sm:$0xff]
        %v1902 = vld [vmem:[#allocation2 + $0x1e] sm:$0x3f]
        %v1903 = vpack.c.bf16 %v1901, %v1900
        %v1904 = vpack.c.bf16 %v1902, %v1902
        %v1905 = vld [vmem:[%s3 + $0x200] sm:$0xf]
        %v1906 = vld [vmem:[%s3 + $0x204] sm:$0xf]
        %v1907 = vld [vmem:[%s3 + $0x208] sm:$0xf]
        %v1908 = vld [vmem:[%s3 + $0x20c] sm:$0xf]
        %v1909 = vld [vmem:[%s3 + $0x210] sm:$0xf]
        %v1910 = vld [vmem:[%s3 + $0x214] sm:$0xf]
        %v1911 = vld [vmem:[%s3 + $0x218] sm:$0xf]
        %v1912 = vld [vmem:[%s3 + $0x21c] sm:$0xf]
        %v1913 = vld [vmem:[%s3 + $0x220] sm:$0xf]
        %v1914 = vld [vmem:[%s3 + $0x224] sm:$0xf]
        %v1915 = vld [vmem:[%s3 + $0x228] sm:$0xf]
        %v1916 = vld [vmem:[%s3 + $0x22c] sm:$0xf]
        %v1917 = vld [vmem:[%s3 + $0x230] sm:$0xf]
        %v1918 = vld [vmem:[%s3 + $0x234] sm:$0xf]
        %v1919 = vld [vmem:[%s3 + $0x238] sm:$0xf]
        %v1920 = vld [vmem:[%s3 + $0x23c] sm:$0xf]
        %v1937 = vunpack.c.l.b16 %v1905
        %v1938 = vunpack.c.l.b16 %v1906
        %v1939 = vunpack.c.l.b16 %v1907
        %v1940 = vunpack.c.l.b16 %v1908
        %v1941 = vunpack.c.l.b16 %v1909
        %v1942 = vunpack.c.l.b16 %v1910
        %v1943 = vunpack.c.l.b16 %v1911
        %v1944 = vunpack.c.l.b16 %v1912
        %v1945 = vunpack.c.l.b16 %v1913
        %v1946 = vunpack.c.l.b16 %v1914
        %v1947 = vunpack.c.l.b16 %v1915
        %v1948 = vunpack.c.l.b16 %v1916
        %v1949 = vunpack.c.l.b16 %v1917
        %v1950 = vunpack.c.l.b16 %v1918
        %v1951 = vunpack.c.l.b16 %v1919
        %v1952 = vunpack.c.l.b16 %v1920
        %v1953 = vpack.c.b16 %v1938, %v1937
        %v1954 = vpack.c.b16 %v1940, %v1939
        %v1955 = vpack.c.b16 %v1942, %v1941
        %v1956 = vpack.c.b16 %v1944, %v1943
        %v1957 = vpack.c.b16 %v1946, %v1945
        %v1958 = vpack.c.b16 %v1948, %v1947
        %v1959 = vpack.c.b16 %v1950, %v1949
        %v1960 = vpack.c.b16 %v1952, %v1951
        %1969 = vmatprep.subr.bf16.mxu0 0
        %1970 = vmatpush1.bf16.msra.mxu0 %v1960
        %1971 = vmatprep.subr.bf16.mxu0 0
        %1972 = vmatpush1.bf16.msra.mxu0 %v1959
        %1973 = vmatprep.subr.bf16.mxu0 0
        %1974 = vmatpush1.bf16.msra.mxu0 %v1958
        %1975 = vmatprep.subr.bf16.mxu0 0
        %1976 = vmatpush1.bf16.msra.mxu0 %v1957
        %1977 = vmatprep.subr.bf16.mxu0 0
        %1978 = vmatpush1.bf16.msra.mxu0 %v1956
        %1979 = vmatprep.subr.bf16.mxu0 0
        %1980 = vmatpush1.bf16.msra.mxu0 %v1955
        %1981 = vmatprep.subr.bf16.mxu0 0
        %1982 = vmatpush1.bf16.msra.mxu0 %v1954
        %1983 = vmatprep.subr.bf16.mxu0 0
        %1984 = vmatpush1.bf16.msra.mxu0 %v1953
        %1985 = vmatprep.subr.bf16.mxu0 0
        %1986 = vmatpush2.bf16.msra.mxu0 0
        %1987 = vmatprep.subr.bf16.mxu0 0
        %1988 = vmatpush2.bf16.msra.mxu0 0
        %1989 = vmatprep.subr.bf16.mxu0 0
        %1990 = vmatpush2.bf16.msra.mxu0 0
        %1991 = vmatprep.subr.bf16.mxu0 0
        %1992 = vmatpush2.bf16.msra.mxu0 0
        %1993 = vmatprep.subr.bf16.mxu0 0
        %1994 = vmatpush2.bf16.msra.mxu0 0
        %1995 = vmatprep.subr.bf16.mxu0 0
        %1996 = vmatpush2.bf16.msra.mxu0 0
        %1997 = vmatprep.subr.bf16.mxu0 0
        %1998 = vmatpush2.bf16.msra.mxu0 0
        %1999 = vmatprep.subr.bf16.mxu0 0
        %2000 = vmatpush2.bf16.msra.mxu0 0
        %2001 = vmatprep.mubr.bf16.mxu0 0
        %2002 = vmatmul.mubr.bf16.gmra.mxu0 %v1903
        %v2003 = vpop.f32.mrf.mxu0
        %v2004 = vadd.f32 0.0, %v2003
        %v2005 = vpop.f32.mrf.mxu0
        %v2006 = vpop.f32.mrf.mxu0
        %v2007 = vadd.f32 0.0, %v2006
        %v2008 = vpop.f32.mrf.mxu0
        %2009 = vmatprep.mubr.bf16.mxu0 0
        %2010 = vmatmul.mubr.bf16.gmra.mxu0 %v1904
        %v2011 = vpop.f32.mrf.mxu0
        %v2012 = vadd.f32 0.0, %v2011
        %v2013 = vpop.f32.mrf.mxu0
        %v2014 = vpop.f32.mrf.mxu0
        %v2015 = vpop.f32.mrf.mxu0
        %2016 = vdwg.mxu0
        %v2017 = vadd.f32 %v1897, %v2004
        %v2018 = vadd.f32 %v1898, %v2007
        %v2019 = vadd.f32 %v1899, %v2012
        %vm2022 = vcmask 1045504
        %v2023 = vrot.slane %v2017, 2
        %v2024 = vrot.slane %v2018, 2
        %v2025 = vsel %vm2022, %v2023, %v2024
        %v2027 = vrot.slane %v2018, 4
        %v2030 = vrot.slane %v2019, 6
        %v2032 = vsel %vm934, %v2017, %v2025
        %v2033 = vsel %vm934, %v2027, %v2030
        %v2034 = vld [vmem:[%s4] sm:$0x1]
        %v2036 = vlaneseq
        %v2037 = vshrl.u32 %v2036, 7
        %v2038 = vsub.s32 0, %v2037
        %v2039 = vrot.slane %v2034, %v2038
        %v2041 = vadd.f32 %v2032, %v2039
        %v2042 = vadd.f32 %v2033, %v2039
        %v2043 = vmax.f32 %v2041, 0.0
        %v2044 = vmax.f32 %v2042, 0.0
        %2045 = vst [vmem:[#allocation3] sm:$0xff] 0.0
        %2046 = vst [vmem:[#allocation3 + $0x8] sm:$0xff] 0.0
        %2047 = vst [vmem:[#allocation3 + $0x10] sm:$0xff] 0.0
        %2048 = vst [vmem:[#allocation3 + $0x18] sm:$0xff] 0.0
        %2049 = vst [vmem:[#allocation3 + $0x20] sm:$0xf] 0.0
        %2050 = vst [vmem:[#allocation3 + $0x7] sm:$0xf] %v2043
        %2051 = vst [vmem:[#allocation3 + $0x9] sm:$0xf0] %v2043
        %2052 = vst [vmem:[#allocation3 + $0x13] sm:$0xf] %v2044
        %2053 = vst [vmem:[#allocation3 + $0x15] sm:$0xf0] %v2044
        %v2054 = vld [vmem:[#allocation3] sm:$0xff]
        %v2055 = vld [vmem:[#allocation3 + $0x8] sm:$0xff]
        %v2056 = vld [vmem:[#allocation3 + $0x10] sm:$0x3f]
        %v2057 = vpack.c.bf16 %v2055, %v2054
        %v2058 = vpack.c.bf16 %v2056, %v2056
        %v2059 = vld [vmem:[%s5] sm:$0xf]
        %v2060 = vld [vmem:[%s5 + $0x4] sm:$0xf]
        %v2061 = vld [vmem:[%s5 + $0x8] sm:$0xf]
        %v2062 = vld [vmem:[%s5 + $0xc] sm:$0xf]
        %v2063 = vld [vmem:[%s5 + $0x10] sm:$0xf]
        %v2064 = vld [vmem:[%s5 + $0x14] sm:$0xf]
        %v2065 = vld [vmem:[%s5 + $0x18] sm:$0xf]
        %v2066 = vld [vmem:[%s5 + $0x1c] sm:$0xf]
        %v2067 = vld [vmem:[%s5 + $0x20] sm:$0xf]
        %v2068 = vld [vmem:[%s5 + $0x24] sm:$0xf]
        %v2069 = vld [vmem:[%s5 + $0x28] sm:$0xf]
        %v2070 = vld [vmem:[%s5 + $0x2c] sm:$0xf]
        %v2071 = vld [vmem:[%s5 + $0x30] sm:$0xf]
        %v2072 = vld [vmem:[%s5 + $0x34] sm:$0xf]
        %v2073 = vld [vmem:[%s5 + $0x38] sm:$0xf]
        %v2074 = vld [vmem:[%s5 + $0x3c] sm:$0xf]
        %v2075 = vld [vmem:[#allocation3 + $0x1] sm:$0xff]
        %v2076 = vld [vmem:[#allocation3 + $0x9] sm:$0xff]
        %v2077 = vld [vmem:[#allocation3 + $0x11] sm:$0x3f]
        %v2078 = vpack.c.bf16 %v2076, %v2075
        %v2079 = vpack.c.bf16 %v2077, %v2077
        %v2080 = vld [vmem:[%s5 + $0x40] sm:$0xf]
        %v2081 = vld [vmem:[%s5 + $0x44] sm:$0xf]
        %v2082 = vld [vmem:[%s5 + $0x48] sm:$0xf]
        %v2083 = vld [vmem:[%s5 + $0x4c] sm:$0xf]
        %v2084 = vld [vmem:[%s5 + $0x50] sm:$0xf]
        %v2085 = vld [vmem:[%s5 + $0x54] sm:$0xf]
        %v2086 = vld [vmem:[%s5 + $0x58] sm:$0xf]
        %v2087 = vld [vmem:[%s5 + $0x5c] sm:$0xf]
        %v2088 = vld [vmem:[%s5 + $0x60] sm:$0xf]
        %v2089 = vld [vmem:[%s5 + $0x64] sm:$0xf]
        %v2090 = vld [vmem:[%s5 + $0x68] sm:$0xf]
        %v2091 = vld [vmem:[%s5 + $0x6c] sm:$0xf]
        %v2092 = vld [vmem:[%s5 + $0x70] sm:$0xf]
        %v2093 = vld [vmem:[%s5 + $0x74] sm:$0xf]
        %v2094 = vld [vmem:[%s5 + $0x78] sm:$0xf]
        %v2095 = vld [vmem:[%s5 + $0x7c] sm:$0xf]
        %v2112 = vunpack.c.l.b16 %v2080
        %v2113 = vunpack.c.l.b16 %v2081
        %v2114 = vunpack.c.l.b16 %v2082
        %v2115 = vunpack.c.l.b16 %v2083
        %v2116 = vunpack.c.l.b16 %v2084
        %v2117 = vunpack.c.l.b16 %v2085
        %v2118 = vunpack.c.l.b16 %v2086
        %v2119 = vunpack.c.l.b16 %v2087
        %v2120 = vunpack.c.l.b16 %v2088
        %v2121 = vunpack.c.l.b16 %v2089
        %v2122 = vunpack.c.l.b16 %v2090
        %v2123 = vunpack.c.l.b16 %v2091
        %v2124 = vunpack.c.l.b16 %v2092
        %v2125 = vunpack.c.l.b16 %v2093
        %v2126 = vunpack.c.l.b16 %v2094
        %v2127 = vunpack.c.l.b16 %v2095
        %v2128 = vpack.c.b16 %v2113, %v2112
        %v2129 = vpack.c.b16 %v2115, %v2114
        %v2130 = vpack.c.b16 %v2117, %v2116
        %v2131 = vpack.c.b16 %v2119, %v2118
        %v2132 = vpack.c.b16 %v2121, %v2120
        %v2133 = vpack.c.b16 %v2123, %v2122
        %v2134 = vpack.c.b16 %v2125, %v2124
        %v2135 = vpack.c.b16 %v2127, %v2126
        %2144 = vmatprep.subr.bf16.mxu0 0
        %2145 = vmatpush1.bf16.msra.mxu0 %v2135
        %2146 = vmatprep.subr.bf16.mxu0 0
        %2147 = vmatpush1.bf16.msra.mxu0 %v2134
        %2148 = vmatprep.subr.bf16.mxu0 0
        %2149 = vmatpush1.bf16.msra.mxu0 %v2133
        %2150 = vmatprep.subr.bf16.mxu0 0
        %2151 = vmatpush1.bf16.msra.mxu0 %v2132
        %2152 = vmatprep.subr.bf16.mxu0 0
        %2153 = vmatpush1.bf16.msra.mxu0 %v2131
        %2154 = vmatprep.subr.bf16.mxu0 0
        %2155 = vmatpush1.bf16.msra.mxu0 %v2130
        %2156 = vmatprep.subr.bf16.mxu0 0
        %2157 = vmatpush1.bf16.msra.mxu0 %v2129
        %2158 = vmatprep.subr.bf16.mxu0 0
        %2159 = vmatpush1.bf16.msra.mxu0 %v2128
        %2160 = vmatprep.subr.bf16.mxu0 0
        %2161 = vmatpush2.bf16.msra.mxu0 0
        %2162 = vmatprep.subr.bf16.mxu0 0
        %2163 = vmatpush2.bf16.msra.mxu0 0
        %2164 = vmatprep.subr.bf16.mxu0 0
        %2165 = vmatpush2.bf16.msra.mxu0 0
        %2166 = vmatprep.subr.bf16.mxu0 0
        %2167 = vmatpush2.bf16.msra.mxu0 0
        %2168 = vmatprep.subr.bf16.mxu0 0
        %2169 = vmatpush2.bf16.msra.mxu0 0
        %2170 = vmatprep.subr.bf16.mxu0 0
        %2171 = vmatpush2.bf16.msra.mxu0 0
        %2172 = vmatprep.subr.bf16.mxu0 0
        %2173 = vmatpush2.bf16.msra.mxu0 0
        %2174 = vmatprep.subr.bf16.mxu0 0
        %2175 = vmatpush2.bf16.msra.mxu0 0
        %2176 = vmatprep.mubr.bf16.mxu0 0
        %2177 = vmatmul.mubr.bf16.gmra.mxu0 %v2078
        %v2178 = vpop.f32.mrf.mxu0
        %v2179 = vadd.f32 0.0, %v2178
        %v2180 = vpop.f32.mrf.mxu0
        %v2181 = vpop.f32.mrf.mxu0
        %v2182 = vadd.f32 0.0, %v2181
        %v2183 = vpop.f32.mrf.mxu0
        %2184 = vmatprep.mubr.bf16.mxu0 0
        %2185 = vmatmul.mubr.bf16.gmra.mxu0 %v2079
        %v2186 = vpop.f32.mrf.mxu0
        %v2187 = vadd.f32 0.0, %v2186
        %v2188 = vpop.f32.mrf.mxu0
        %v2189 = vpop.f32.mrf.mxu0
        %v2190 = vpop.f32.mrf.mxu0
        %2191 = vdwg.mxu0
        %v2208 = vunpack.c.l.b16 %v2059
        %v2209 = vunpack.c.l.b16 %v2060
        %v2210 = vunpack.c.l.b16 %v2061
        %v2211 = vunpack.c.l.b16 %v2062
        %v2212 = vunpack.c.l.b16 %v2063
        %v2213 = vunpack.c.l.b16 %v2064
        %v2214 = vunpack.c.l.b16 %v2065
        %v2215 = vunpack.c.l.b16 %v2066
        %v2216 = vunpack.c.l.b16 %v2067
        %v2217 = vunpack.c.l.b16 %v2068
        %v2218 = vunpack.c.l.b16 %v2069
        %v2219 = vunpack.c.l.b16 %v2070
        %v2220 = vunpack.c.l.b16 %v2071
        %v2221 = vunpack.c.l.b16 %v2072
        %v2222 = vunpack.c.l.b16 %v2073
        %v2223 = vunpack.c.l.b16 %v2074
        %v2224 = vpack.c.b16 %v2209, %v2208
        %v2225 = vpack.c.b16 %v2211, %v2210
        %v2226 = vpack.c.b16 %v2213, %v2212
        %v2227 = vpack.c.b16 %v2215, %v2214
        %v2228 = vpack.c.b16 %v2217, %v2216
        %v2229 = vpack.c.b16 %v2219, %v2218
        %v2230 = vpack.c.b16 %v2221, %v2220
        %v2231 = vpack.c.b16 %v2223, %v2222
        %2240 = vmatprep.subr.bf16.mxu0 0
        %2241 = vmatpush1.bf16.msra.mxu0 %v2231
        %2242 = vmatprep.subr.bf16.mxu0 0
        %2243 = vmatpush1.bf16.msra.mxu0 %v2230
        %2244 = vmatprep.subr.bf16.mxu0 0
        %2245 = vmatpush1.bf16.msra.mxu0 %v2229
        %2246 = vmatprep.subr.bf16.mxu0 0
        %2247 = vmatpush1.bf16.msra.mxu0 %v2228
        %2248 = vmatprep.subr.bf16.mxu0 0
        %2249 = vmatpush1.bf16.msra.mxu0 %v2227
        %2250 = vmatprep.subr.bf16.mxu0 0
        %2251 = vmatpush1.bf16.msra.mxu0 %v2226
        %2252 = vmatprep.subr.bf16.mxu0 0
        %2253 = vmatpush1.bf16.msra.mxu0 %v2225
        %2254 = vmatprep.subr.bf16.mxu0 0
        %2255 = vmatpush1.bf16.msra.mxu0 %v2224
        %2256 = vmatprep.subr.bf16.mxu0 0
        %2257 = vmatpush2.bf16.msra.mxu0 0
        %2258 = vmatprep.subr.bf16.mxu0 0
        %2259 = vmatpush2.bf16.msra.mxu0 0
        %2260 = vmatprep.subr.bf16.mxu0 0
        %2261 = vmatpush2.bf16.msra.mxu0 0
        %2262 = vmatprep.subr.bf16.mxu0 0
        %2263 = vmatpush2.bf16.msra.mxu0 0
        %2264 = vmatprep.subr.bf16.mxu0 0
        %2265 = vmatpush2.bf16.msra.mxu0 0
        %2266 = vmatprep.subr.bf16.mxu0 0
        %2267 = vmatpush2.bf16.msra.mxu0 0
        %2268 = vmatprep.subr.bf16.mxu0 0
        %2269 = vmatpush2.bf16.msra.mxu0 0
        %2270 = vmatprep.subr.bf16.mxu0 0
        %2271 = vmatpush2.bf16.msra.mxu0 0
        %2272 = vmatprep.mubr.bf16.mxu0 0
        %2273 = vmatmul.mubr.bf16.gmra.mxu0 %v2057
        %v2274 = vpop.f32.mrf.mxu0
        %v2275 = vadd.f32 %v2179, %v2274
        %v2276 = vpop.f32.mrf.mxu0
        %v2277 = vpop.f32.mrf.mxu0
        %v2278 = vadd.f32 %v2182, %v2277
        %v2279 = vpop.f32.mrf.mxu0
        %2280 = vmatprep.mubr.bf16.mxu0 0
        %2281 = vmatmul.mubr.bf16.gmra.mxu0 %v2058
        %v2282 = vpop.f32.mrf.mxu0
        %v2283 = vadd.f32 %v2187, %v2282
        %v2284 = vpop.f32.mrf.mxu0
        %v2285 = vpop.f32.mrf.mxu0
        %v2286 = vpop.f32.mrf.mxu0
        %2287 = vdwg.mxu0
        %v2288 = vld [vmem:[#allocation3 + $0x2] sm:$0xff]
        %v2289 = vld [vmem:[#allocation3 + $0xa] sm:$0xff]
        %v2290 = vld [vmem:[#allocation3 + $0x12] sm:$0x3f]
        %v2291 = vpack.c.bf16 %v2289, %v2288
        %v2292 = vpack.c.bf16 %v2290, %v2290
        %v2293 = vld [vmem:[%s5 + $0x80] sm:$0xf]
        %v2294 = vld [vmem:[%s5 + $0x84] sm:$0xf]
        %v2295 = vld [vmem:[%s5 + $0x88] sm:$0xf]
        %v2296 = vld [vmem:[%s5 + $0x8c] sm:$0xf]
        %v2297 = vld [vmem:[%s5 + $0x90] sm:$0xf]
        %v2298 = vld [vmem:[%s5 + $0x94] sm:$0xf]
        %v2299 = vld [vmem:[%s5 + $0x98] sm:$0xf]
        %v2300 = vld [vmem:[%s5 + $0x9c] sm:$0xf]
        %v2301 = vld [vmem:[%s5 + $0xa0] sm:$0xf]
        %v2302 = vld [vmem:[%s5 + $0xa4] sm:$0xf]
        %v2303 = vld [vmem:[%s5 + $0xa8] sm:$0xf]
        %v2304 = vld [vmem:[%s5 + $0xac] sm:$0xf]
        %v2305 = vld [vmem:[%s5 + $0xb0] sm:$0xf]
        %v2306 = vld [vmem:[%s5 + $0xb4] sm:$0xf]
        %v2307 = vld [vmem:[%s5 + $0xb8] sm:$0xf]
        %v2308 = vld [vmem:[%s5 + $0xbc] sm:$0xf]
        %v2325 = vunpack.c.l.b16 %v2293
        %v2326 = vunpack.c.l.b16 %v2294
        %v2327 = vunpack.c.l.b16 %v2295
        %v2328 = vunpack.c.l.b16 %v2296
        %v2329 = vunpack.c.l.b16 %v2297
        %v2330 = vunpack.c.l.b16 %v2298
        %v2331 = vunpack.c.l.b16 %v2299
        %v2332 = vunpack.c.l.b16 %v2300
        %v2333 = vunpack.c.l.b16 %v2301
        %v2334 = vunpack.c.l.b16 %v2302
        %v2335 = vunpack.c.l.b16 %v2303
        %v2336 = vunpack.c.l.b16 %v2304
        %v2337 = vunpack.c.l.b16 %v2305
        %v2338 = vunpack.c.l.b16 %v2306
        %v2339 = vunpack.c.l.b16 %v2307
        %v2340 = vunpack.c.l.b16 %v2308
        %v2341 = vpack.c.b16 %v2326, %v2325
        %v2342 = vpack.c.b16 %v2328, %v2327
        %v2343 = vpack.c.b16 %v2330, %v2329
        %v2344 = vpack.c.b16 %v2332, %v2331
        %v2345 = vpack.c.b16 %v2334, %v2333
        %v2346 = vpack.c.b16 %v2336, %v2335
        %v2347 = vpack.c.b16 %v2338, %v2337
        %v2348 = vpack.c.b16 %v2340, %v2339
        %2357 = vmatprep.subr.bf16.mxu0 0
        %2358 = vmatpush1.bf16.msra.mxu0 %v2348
        %2359 = vmatprep.subr.bf16.mxu0 0
        %2360 = vmatpush1.bf16.msra.mxu0 %v2347
        %2361 = vmatprep.subr.bf16.mxu0 0
        %2362 = vmatpush1.bf16.msra.mxu0 %v2346
        %2363 = vmatprep.subr.bf16.mxu0 0
        %2364 = vmatpush1.bf16.msra.mxu0 %v2345
        %2365 = vmatprep.subr.bf16.mxu0 0
        %2366 = vmatpush1.bf16.msra.mxu0 %v2344
        %2367 = vmatprep.subr.bf16.mxu0 0
        %2368 = vmatpush1.bf16.msra.mxu0 %v2343
        %2369 = vmatprep.subr.bf16.mxu0 0
        %2370 = vmatpush1.bf16.msra.mxu0 %v2342
        %2371 = vmatprep.subr.bf16.mxu0 0
        %2372 = vmatpush1.bf16.msra.mxu0 %v2341
        %2373 = vmatprep.subr.bf16.mxu0 0
        %2374 = vmatpush2.bf16.msra.mxu0 0
        %2375 = vmatprep.subr.bf16.mxu0 0
        %2376 = vmatpush2.bf16.msra.mxu0 0
        %2377 = vmatprep.subr.bf16.mxu0 0
        %2378 = vmatpush2.bf16.msra.mxu0 0
        %2379 = vmatprep.subr.bf16.mxu0 0
        %2380 = vmatpush2.bf16.msra.mxu0 0
        %2381 = vmatprep.subr.bf16.mxu0 0
        %2382 = vmatpush2.bf16.msra.mxu0 0
        %2383 = vmatprep.subr.bf16.mxu0 0
        %2384 = vmatpush2.bf16.msra.mxu0 0
        %2385 = vmatprep.subr.bf16.mxu0 0
        %2386 = vmatpush2.bf16.msra.mxu0 0
        %2387 = vmatprep.subr.bf16.mxu0 0
        %2388 = vmatpush2.bf16.msra.mxu0 0
        %2389 = vmatprep.mubr.bf16.mxu0 0
        %2390 = vmatmul.mubr.bf16.gmra.mxu0 %v2291
        %v2391 = vpop.f32.mrf.mxu0
        %v2392 = vadd.f32 0.0, %v2391
        %v2393 = vpop.f32.mrf.mxu0
        %v2394 = vpop.f32.mrf.mxu0
        %v2395 = vadd.f32 0.0, %v2394
        %v2396 = vpop.f32.mrf.mxu0
        %2397 = vmatprep.mubr.bf16.mxu0 0
        %2398 = vmatmul.mubr.bf16.gmra.mxu0 %v2292
        %v2399 = vpop.f32.mrf.mxu0
        %v2400 = vadd.f32 0.0, %v2399
        %v2401 = vpop.f32.mrf.mxu0
        %v2402 = vpop.f32.mrf.mxu0
        %v2403 = vpop.f32.mrf.mxu0
        %2404 = vdwg.mxu0
        %v2405 = vadd.f32 %v2275, %v2392
        %v2406 = vadd.f32 %v2278, %v2395
        %v2407 = vadd.f32 %v2283, %v2400
        %v2408 = vld [vmem:[#allocation3 + $0x6] sm:$0xff]
        %v2409 = vld [vmem:[#allocation3 + $0xe] sm:$0xff]
        %v2410 = vld [vmem:[#allocation3 + $0x16] sm:$0x3f]
        %v2411 = vpack.c.bf16 %v2409, %v2408
        %v2412 = vpack.c.bf16 %v2410, %v2410
        %v2413 = vld [vmem:[%s5 + $0xc0] sm:$0xf]
        %v2414 = vld [vmem:[%s5 + $0xc4] sm:$0xf]
        %v2415 = vld [vmem:[%s5 + $0xc8] sm:$0xf]
        %v2416 = vld [vmem:[%s5 + $0xcc] sm:$0xf]
        %v2417 = vld [vmem:[%s5 + $0xd0] sm:$0xf]
        %v2418 = vld [vmem:[%s5 + $0xd4] sm:$0xf]
        %v2419 = vld [vmem:[%s5 + $0xd8] sm:$0xf]
        %v2420 = vld [vmem:[%s5 + $0xdc] sm:$0xf]
        %v2421 = vld [vmem:[%s5 + $0xe0] sm:$0xf]
        %v2422 = vld [vmem:[%s5 + $0xe4] sm:$0xf]
        %v2423 = vld [vmem:[%s5 + $0xe8] sm:$0xf]
        %v2424 = vld [vmem:[%s5 + $0xec] sm:$0xf]
        %v2425 = vld [vmem:[%s5 + $0xf0] sm:$0xf]
        %v2426 = vld [vmem:[%s5 + $0xf4] sm:$0xf]
        %v2427 = vld [vmem:[%s5 + $0xf8] sm:$0xf]
        %v2428 = vld [vmem:[%s5 + $0xfc] sm:$0xf]
        %v2445 = vunpack.c.l.b16 %v2413
        %v2446 = vunpack.c.l.b16 %v2414
        %v2447 = vunpack.c.l.b16 %v2415
        %v2448 = vunpack.c.l.b16 %v2416
        %v2449 = vunpack.c.l.b16 %v2417
        %v2450 = vunpack.c.l.b16 %v2418
        %v2451 = vunpack.c.l.b16 %v2419
        %v2452 = vunpack.c.l.b16 %v2420
        %v2453 = vunpack.c.l.b16 %v2421
        %v2454 = vunpack.c.l.b16 %v2422
        %v2455 = vunpack.c.l.b16 %v2423
        %v2456 = vunpack.c.l.b16 %v2424
        %v2457 = vunpack.c.l.b16 %v2425
        %v2458 = vunpack.c.l.b16 %v2426
        %v2459 = vunpack.c.l.b16 %v2427
        %v2460 = vunpack.c.l.b16 %v2428
        %v2461 = vpack.c.b16 %v2446, %v2445
        %v2462 = vpack.c.b16 %v2448, %v2447
        %v2463 = vpack.c.b16 %v2450, %v2449
        %v2464 = vpack.c.b16 %v2452, %v2451
        %v2465 = vpack.c.b16 %v2454, %v2453
        %v2466 = vpack.c.b16 %v2456, %v2455
        %v2467 = vpack.c.b16 %v2458, %v2457
        %v2468 = vpack.c.b16 %v2460, %v2459
        %2477 = vmatprep.subr.bf16.mxu0 0
        %2478 = vmatpush1.bf16.msra.mxu0 %v2468
        %2479 = vmatprep.subr.bf16.mxu0 0
        %2480 = vmatpush1.bf16.msra.mxu0 %v2467
        %2481 = vmatprep.subr.bf16.mxu0 0
        %2482 = vmatpush1.bf16.msra.mxu0 %v2466
        %2483 = vmatprep.subr.bf16.mxu0 0
        %2484 = vmatpush1.bf16.msra.mxu0 %v2465
        %2485 = vmatprep.subr.bf16.mxu0 0
        %2486 = vmatpush1.bf16.msra.mxu0 %v2464
        %2487 = vmatprep.subr.bf16.mxu0 0
        %2488 = vmatpush1.bf16.msra.mxu0 %v2463
        %2489 = vmatprep.subr.bf16.mxu0 0
        %2490 = vmatpush1.bf16.msra.mxu0 %v2462
        %2491 = vmatprep.subr.bf16.mxu0 0
        %2492 = vmatpush1.bf16.msra.mxu0 %v2461
        %2493 = vmatprep.subr.bf16.mxu0 0
        %2494 = vmatpush2.bf16.msra.mxu0 0
        %2495 = vmatprep.subr.bf16.mxu0 0
        %2496 = vmatpush2.bf16.msra.mxu0 0
        %2497 = vmatprep.subr.bf16.mxu0 0
        %2498 = vmatpush2.bf16.msra.mxu0 0
        %2499 = vmatprep.subr.bf16.mxu0 0
        %2500 = vmatpush2.bf16.msra.mxu0 0
        %2501 = vmatprep.subr.bf16.mxu0 0
        %2502 = vmatpush2.bf16.msra.mxu0 0
        %2503 = vmatprep.subr.bf16.mxu0 0
        %2504 = vmatpush2.bf16.msra.mxu0 0
        %2505 = vmatprep.subr.bf16.mxu0 0
        %2506 = vmatpush2.bf16.msra.mxu0 0
        %2507 = vmatprep.subr.bf16.mxu0 0
        %2508 = vmatpush2.bf16.msra.mxu0 0
        %2509 = vmatprep.mubr.bf16.mxu0 0
        %2510 = vmatmul.mubr.bf16.gmra.mxu0 %v2411
        %v2511 = vpop.f32.mrf.mxu0
        %v2512 = vadd.f32 0.0, %v2511
        %v2513 = vpop.f32.mrf.mxu0
        %v2514 = vpop.f32.mrf.mxu0
        %v2515 = vadd.f32 0.0, %v2514
        %v2516 = vpop.f32.mrf.mxu0
        %2517 = vmatprep.mubr.bf16.mxu0 0
        %2518 = vmatmul.mubr.bf16.gmra.mxu0 %v2412
        %v2519 = vpop.f32.mrf.mxu0
        %v2520 = vadd.f32 0.0, %v2519
        %v2521 = vpop.f32.mrf.mxu0
        %v2522 = vpop.f32.mrf.mxu0
        %v2523 = vpop.f32.mrf.mxu0
        %2524 = vdwg.mxu0
        %v2525 = vadd.f32 %v2405, %v2512
        %v2526 = vadd.f32 %v2406, %v2515
        %v2527 = vadd.f32 %v2407, %v2520
        %v2528 = vld [vmem:[#allocation3 + $0x7] sm:$0xff]
        %v2529 = vld [vmem:[#allocation3 + $0xf] sm:$0xff]
        %v2530 = vld [vmem:[#allocation3 + $0x17] sm:$0x3f]
        %v2531 = vpack.c.bf16 %v2529, %v2528
        %v2532 = vpack.c.bf16 %v2530, %v2530
        %v2533 = vld [vmem:[%s5 + $0x100] sm:$0xf]
        %v2534 = vld [vmem:[%s5 + $0x104] sm:$0xf]
        %v2535 = vld [vmem:[%s5 + $0x108] sm:$0xf]
        %v2536 = vld [vmem:[%s5 + $0x10c] sm:$0xf]
        %v2537 = vld [vmem:[%s5 + $0x110] sm:$0xf]
        %v2538 = vld [vmem:[%s5 + $0x114] sm:$0xf]
        %v2539 = vld [vmem:[%s5 + $0x118] sm:$0xf]
        %v2540 = vld [vmem:[%s5 + $0x11c] sm:$0xf]
        %v2541 = vld [vmem:[%s5 + $0x120] sm:$0xf]
        %v2542 = vld [vmem:[%s5 + $0x124] sm:$0xf]
        %v2543 = vld [vmem:[%s5 + $0x128] sm:$0xf]
        %v2544 = vld [vmem:[%s5 + $0x12c] sm:$0xf]
        %v2545 = vld [vmem:[%s5 + $0x130] sm:$0xf]
        %v2546 = vld [vmem:[%s5 + $0x134] sm:$0xf]
        %v2547 = vld [vmem:[%s5 + $0x138] sm:$0xf]
        %v2548 = vld [vmem:[%s5 + $0x13c] sm:$0xf]
        %v2565 = vunpack.c.l.b16 %v2533
        %v2566 = vunpack.c.l.b16 %v2534
        %v2567 = vunpack.c.l.b16 %v2535
        %v2568 = vunpack.c.l.b16 %v2536
        %v2569 = vunpack.c.l.b16 %v2537
        %v2570 = vunpack.c.l.b16 %v2538
        %v2571 = vunpack.c.l.b16 %v2539
        %v2572 = vunpack.c.l.b16 %v2540
        %v2573 = vunpack.c.l.b16 %v2541
        %v2574 = vunpack.c.l.b16 %v2542
        %v2575 = vunpack.c.l.b16 %v2543
        %v2576 = vunpack.c.l.b16 %v2544
        %v2577 = vunpack.c.l.b16 %v2545
        %v2578 = vunpack.c.l.b16 %v2546
        %v2579 = vunpack.c.l.b16 %v2547
        %v2580 = vunpack.c.l.b16 %v2548
        %v2581 = vpack.c.b16 %v2566, %v2565
        %v2582 = vpack.c.b16 %v2568, %v2567
        %v2583 = vpack.c.b16 %v2570, %v2569
        %v2584 = vpack.c.b16 %v2572, %v2571
        %v2585 = vpack.c.b16 %v2574, %v2573
        %v2586 = vpack.c.b16 %v2576, %v2575
        %v2587 = vpack.c.b16 %v2578, %v2577
        %v2588 = vpack.c.b16 %v2580, %v2579
        %2597 = vmatprep.subr.bf16.mxu0 0
        %2598 = vmatpush1.bf16.msra.mxu0 %v2588
        %2599 = vmatprep.subr.bf16.mxu0 0
        %2600 = vmatpush1.bf16.msra.mxu0 %v2587
        %2601 = vmatprep.subr.bf16.mxu0 0
        %2602 = vmatpush1.bf16.msra.mxu0 %v2586
        %2603 = vmatprep.subr.bf16.mxu0 0
        %2604 = vmatpush1.bf16.msra.mxu0 %v2585
        %2605 = vmatprep.subr.bf16.mxu0 0
        %2606 = vmatpush1.bf16.msra.mxu0 %v2584
        %2607 = vmatprep.subr.bf16.mxu0 0
        %2608 = vmatpush1.bf16.msra.mxu0 %v2583
        %2609 = vmatprep.subr.bf16.mxu0 0
        %2610 = vmatpush1.bf16.msra.mxu0 %v2582
        %2611 = vmatprep.subr.bf16.mxu0 0
        %2612 = vmatpush1.bf16.msra.mxu0 %v2581
        %2613 = vmatprep.subr.bf16.mxu0 0
        %2614 = vmatpush2.bf16.msra.mxu0 0
        %2615 = vmatprep.subr.bf16.mxu0 0
        %2616 = vmatpush2.bf16.msra.mxu0 0
        %2617 = vmatprep.subr.bf16.mxu0 0
        %2618 = vmatpush2.bf16.msra.mxu0 0
        %2619 = vmatprep.subr.bf16.mxu0 0
        %2620 = vmatpush2.bf16.msra.mxu0 0
        %2621 = vmatprep.subr.bf16.mxu0 0
        %2622 = vmatpush2.bf16.msra.mxu0 0
        %2623 = vmatprep.subr.bf16.mxu0 0
        %2624 = vmatpush2.bf16.msra.mxu0 0
        %2625 = vmatprep.subr.bf16.mxu0 0
        %2626 = vmatpush2.bf16.msra.mxu0 0
        %2627 = vmatprep.subr.bf16.mxu0 0
        %2628 = vmatpush2.bf16.msra.mxu0 0
        %2629 = vmatprep.mubr.bf16.mxu0 0
        %2630 = vmatmul.mubr.bf16.gmra.mxu0 %v2531
        %v2631 = vpop.f32.mrf.mxu0
        %v2632 = vadd.f32 0.0, %v2631
        %v2633 = vpop.f32.mrf.mxu0
        %v2634 = vpop.f32.mrf.mxu0
        %v2635 = vadd.f32 0.0, %v2634
        %v2636 = vpop.f32.mrf.mxu0
        %2637 = vmatprep.mubr.bf16.mxu0 0
        %2638 = vmatmul.mubr.bf16.gmra.mxu0 %v2532
        %v2639 = vpop.f32.mrf.mxu0
        %v2640 = vadd.f32 0.0, %v2639
        %v2641 = vpop.f32.mrf.mxu0
        %v2642 = vpop.f32.mrf.mxu0
        %v2643 = vpop.f32.mrf.mxu0
        %2644 = vdwg.mxu0
        %v2645 = vadd.f32 %v2525, %v2632
        %v2646 = vadd.f32 %v2526, %v2635
        %v2647 = vadd.f32 %v2527, %v2640
        %v2648 = vld [vmem:[#allocation3 + $0x8] sm:$0xff]
        %v2649 = vld [vmem:[#allocation3 + $0x10] sm:$0xff]
        %v2650 = vld [vmem:[#allocation3 + $0x18] sm:$0x3f]
        %v2651 = vpack.c.bf16 %v2649, %v2648
        %v2652 = vpack.c.bf16 %v2650, %v2650
        %v2653 = vld [vmem:[%s5 + $0x140] sm:$0xf]
        %v2654 = vld [vmem:[%s5 + $0x144] sm:$0xf]
        %v2655 = vld [vmem:[%s5 + $0x148] sm:$0xf]
        %v2656 = vld [vmem:[%s5 + $0x14c] sm:$0xf]
        %v2657 = vld [vmem:[%s5 + $0x150] sm:$0xf]
        %v2658 = vld [vmem:[%s5 + $0x154] sm:$0xf]
        %v2659 = vld [vmem:[%s5 + $0x158] sm:$0xf]
        %v2660 = vld [vmem:[%s5 + $0x15c] sm:$0xf]
        %v2661 = vld [vmem:[%s5 + $0x160] sm:$0xf]
        %v2662 = vld [vmem:[%s5 + $0x164] sm:$0xf]
        %v2663 = vld [vmem:[%s5 + $0x168] sm:$0xf]
        %v2664 = vld [vmem:[%s5 + $0x16c] sm:$0xf]
        %v2665 = vld [vmem:[%s5 + $0x170] sm:$0xf]
        %v2666 = vld [vmem:[%s5 + $0x174] sm:$0xf]
        %v2667 = vld [vmem:[%s5 + $0x178] sm:$0xf]
        %v2668 = vld [vmem:[%s5 + $0x17c] sm:$0xf]
        %v2685 = vunpack.c.l.b16 %v2653
        %v2686 = vunpack.c.l.b16 %v2654
        %v2687 = vunpack.c.l.b16 %v2655
        %v2688 = vunpack.c.l.b16 %v2656
        %v2689 = vunpack.c.l.b16 %v2657
        %v2690 = vunpack.c.l.b16 %v2658
        %v2691 = vunpack.c.l.b16 %v2659
        %v2692 = vunpack.c.l.b16 %v2660
        %v2693 = vunpack.c.l.b16 %v2661
        %v2694 = vunpack.c.l.b16 %v2662
        %v2695 = vunpack.c.l.b16 %v2663
        %v2696 = vunpack.c.l.b16 %v2664
        %v2697 = vunpack.c.l.b16 %v2665
        %v2698 = vunpack.c.l.b16 %v2666
        %v2699 = vunpack.c.l.b16 %v2667
        %v2700 = vunpack.c.l.b16 %v2668
        %v2701 = vpack.c.b16 %v2686, %v2685
        %v2702 = vpack.c.b16 %v2688, %v2687
        %v2703 = vpack.c.b16 %v2690, %v2689
        %v2704 = vpack.c.b16 %v2692, %v2691
        %v2705 = vpack.c.b16 %v2694, %v2693
        %v2706 = vpack.c.b16 %v2696, %v2695
        %v2707 = vpack.c.b16 %v2698, %v2697
        %v2708 = vpack.c.b16 %v2700, %v2699
        %2717 = vmatprep.subr.bf16.mxu0 0
        %2718 = vmatpush1.bf16.msra.mxu0 %v2708
        %2719 = vmatprep.subr.bf16.mxu0 0
        %2720 = vmatpush1.bf16.msra.mxu0 %v2707
        %2721 = vmatprep.subr.bf16.mxu0 0
        %2722 = vmatpush1.bf16.msra.mxu0 %v2706
        %2723 = vmatprep.subr.bf16.mxu0 0
        %2724 = vmatpush1.bf16.msra.mxu0 %v2705
        %2725 = vmatprep.subr.bf16.mxu0 0
        %2726 = vmatpush1.bf16.msra.mxu0 %v2704
        %2727 = vmatprep.subr.bf16.mxu0 0
        %2728 = vmatpush1.bf16.msra.mxu0 %v2703
        %2729 = vmatprep.subr.bf16.mxu0 0
        %2730 = vmatpush1.bf16.msra.mxu0 %v2702
        %2731 = vmatprep.subr.bf16.mxu0 0
        %2732 = vmatpush1.bf16.msra.mxu0 %v2701
        %2733 = vmatprep.subr.bf16.mxu0 0
        %2734 = vmatpush2.bf16.msra.mxu0 0
        %2735 = vmatprep.subr.bf16.mxu0 0
        %2736 = vmatpush2.bf16.msra.mxu0 0
        %2737 = vmatprep.subr.bf16.mxu0 0
        %2738 = vmatpush2.bf16.msra.mxu0 0
        %2739 = vmatprep.subr.bf16.mxu0 0
        %2740 = vmatpush2.bf16.msra.mxu0 0
        %2741 = vmatprep.subr.bf16.mxu0 0
        %2742 = vmatpush2.bf16.msra.mxu0 0
        %2743 = vmatprep.subr.bf16.mxu0 0
        %2744 = vmatpush2.bf16.msra.mxu0 0
        %2745 = vmatprep.subr.bf16.mxu0 0
        %2746 = vmatpush2.bf16.msra.mxu0 0
        %2747 = vmatprep.subr.bf16.mxu0 0
        %2748 = vmatpush2.bf16.msra.mxu0 0
        %2749 = vmatprep.mubr.bf16.mxu0 0
        %2750 = vmatmul.mubr.bf16.gmra.mxu0 %v2651
        %v2751 = vpop.f32.mrf.mxu0
        %v2752 = vadd.f32 0.0, %v2751
        %v2753 = vpop.f32.mrf.mxu0
        %v2754 = vpop.f32.mrf.mxu0
        %v2755 = vadd.f32 0.0, %v2754
        %v2756 = vpop.f32.mrf.mxu0
        %2757 = vmatprep.mubr.bf16.mxu0 0
        %2758 = vmatmul.mubr.bf16.gmra.mxu0 %v2652
        %v2759 = vpop.f32.mrf.mxu0
        %v2760 = vadd.f32 0.0, %v2759
        %v2761 = vpop.f32.mrf.mxu0
        %v2762 = vpop.f32.mrf.mxu0
        %v2763 = vpop.f32.mrf.mxu0
        %2764 = vdwg.mxu0
        %v2765 = vadd.f32 %v2645, %v2752
        %v2766 = vadd.f32 %v2646, %v2755
        %v2767 = vadd.f32 %v2647, %v2760
        %v2768 = vld [vmem:[#allocation3 + $0xc] sm:$0xff]
        %v2769 = vld [vmem:[#allocation3 + $0x14] sm:$0xff]
        %v2770 = vld [vmem:[#allocation3 + $0x1c] sm:$0x3f]
        %v2771 = vpack.c.bf16 %v2769, %v2768
        %v2772 = vpack.c.bf16 %v2770, %v2770
        %v2773 = vld [vmem:[%s5 + $0x180] sm:$0xf]
        %v2774 = vld [vmem:[%s5 + $0x184] sm:$0xf]
        %v2775 = vld [vmem:[%s5 + $0x188] sm:$0xf]
        %v2776 = vld [vmem:[%s5 + $0x18c] sm:$0xf]
        %v2777 = vld [vmem:[%s5 + $0x190] sm:$0xf]
        %v2778 = vld [vmem:[%s5 + $0x194] sm:$0xf]
        %v2779 = vld [vmem:[%s5 + $0x198] sm:$0xf]
        %v2780 = vld [vmem:[%s5 + $0x19c] sm:$0xf]
        %v2781 = vld [vmem:[%s5 + $0x1a0] sm:$0xf]
        %v2782 = vld [vmem:[%s5 + $0x1a4] sm:$0xf]
        %v2783 = vld [vmem:[%s5 + $0x1a8] sm:$0xf]
        %v2784 = vld [vmem:[%s5 + $0x1ac] sm:$0xf]
        %v2785 = vld [vmem:[%s5 + $0x1b0] sm:$0xf]
        %v2786 = vld [vmem:[%s5 + $0x1b4] sm:$0xf]
        %v2787 = vld [vmem:[%s5 + $0x1b8] sm:$0xf]
        %v2788 = vld [vmem:[%s5 + $0x1bc] sm:$0xf]
        %v2805 = vunpack.c.l.b16 %v2773
        %v2806 = vunpack.c.l.b16 %v2774
        %v2807 = vunpack.c.l.b16 %v2775
        %v2808 = vunpack.c.l.b16 %v2776
        %v2809 = vunpack.c.l.b16 %v2777
        %v2810 = vunpack.c.l.b16 %v2778
        %v2811 = vunpack.c.l.b16 %v2779
        %v2812 = vunpack.c.l.b16 %v2780
        %v2813 = vunpack.c.l.b16 %v2781
        %v2814 = vunpack.c.l.b16 %v2782
        %v2815 = vunpack.c.l.b16 %v2783
        %v2816 = vunpack.c.l.b16 %v2784
        %v2817 = vunpack.c.l.b16 %v2785
        %v2818 = vunpack.c.l.b16 %v2786
        %v2819 = vunpack.c.l.b16 %v2787
        %v2820 = vunpack.c.l.b16 %v2788
        %v2821 = vpack.c.b16 %v2806, %v2805
        %v2822 = vpack.c.b16 %v2808, %v2807
        %v2823 = vpack.c.b16 %v2810, %v2809
        %v2824 = vpack.c.b16 %v2812, %v2811
        %v2825 = vpack.c.b16 %v2814, %v2813
        %v2826 = vpack.c.b16 %v2816, %v2815
        %v2827 = vpack.c.b16 %v2818, %v2817
        %v2828 = vpack.c.b16 %v2820, %v2819
        %2837 = vmatprep.subr.bf16.mxu0 0
        %2838 = vmatpush1.bf16.msra.mxu0 %v2828
        %2839 = vmatprep.subr.bf16.mxu0 0
        %2840 = vmatpush1.bf16.msra.mxu0 %v2827
        %2841 = vmatprep.subr.bf16.mxu0 0
        %2842 = vmatpush1.bf16.msra.mxu0 %v2826
        %2843 = vmatprep.subr.bf16.mxu0 0
        %2844 = vmatpush1.bf16.msra.mxu0 %v2825
        %2845 = vmatprep.subr.bf16.mxu0 0
        %2846 = vmatpush1.bf16.msra.mxu0 %v2824
        %2847 = vmatprep.subr.bf16.mxu0 0
        %2848 = vmatpush1.bf16.msra.mxu0 %v2823
        %2849 = vmatprep.subr.bf16.mxu0 0
        %2850 = vmatpush1.bf16.msra.mxu0 %v2822
        %2851 = vmatprep.subr.bf16.mxu0 0
        %2852 = vmatpush1.bf16.msra.mxu0 %v2821
        %2853 = vmatprep.subr.bf16.mxu0 0
        %2854 = vmatpush2.bf16.msra.mxu0 0
        %2855 = vmatprep.subr.bf16.mxu0 0
        %2856 = vmatpush2.bf16.msra.mxu0 0
        %2857 = vmatprep.subr.bf16.mxu0 0
        %2858 = vmatpush2.bf16.msra.mxu0 0
        %2859 = vmatprep.subr.bf16.mxu0 0
        %2860 = vmatpush2.bf16.msra.mxu0 0
        %2861 = vmatprep.subr.bf16.mxu0 0
        %2862 = vmatpush2.bf16.msra.mxu0 0
        %2863 = vmatprep.subr.bf16.mxu0 0
        %2864 = vmatpush2.bf16.msra.mxu0 0
        %2865 = vmatprep.subr.bf16.mxu0 0
        %2866 = vmatpush2.bf16.msra.mxu0 0
        %2867 = vmatprep.subr.bf16.mxu0 0
        %2868 = vmatpush2.bf16.msra.mxu0 0
        %2869 = vmatprep.mubr.bf16.mxu0 0
        %2870 = vmatmul.mubr.bf16.gmra.mxu0 %v2771
        %v2871 = vpop.f32.mrf.mxu0
        %v2872 = vadd.f32 0.0, %v2871
        %v2873 = vpop.f32.mrf.mxu0
        %v2874 = vpop.f32.mrf.mxu0
        %v2875 = vadd.f32 0.0, %v2874
        %v2876 = vpop.f32.mrf.mxu0
        %2877 = vmatprep.mubr.bf16.mxu0 0
        %2878 = vmatmul.mubr.bf16.gmra.mxu0 %v2772
        %v2879 = vpop.f32.mrf.mxu0
        %v2880 = vadd.f32 0.0, %v2879
        %v2881 = vpop.f32.mrf.mxu0
        %v2882 = vpop.f32.mrf.mxu0
        %v2883 = vpop.f32.mrf.mxu0
        %2884 = vdwg.mxu0
        %v2885 = vadd.f32 %v2765, %v2872
        %v2886 = vadd.f32 %v2766, %v2875
        %v2887 = vadd.f32 %v2767, %v2880
        %v2888 = vld [vmem:[#allocation3 + $0xd] sm:$0xff]
        %v2889 = vld [vmem:[#allocation3 + $0x15] sm:$0xff]
        %v2890 = vld [vmem:[#allocation3 + $0x1d] sm:$0x3f]
        %v2891 = vpack.c.bf16 %v2889, %v2888
        %v2892 = vpack.c.bf16 %v2890, %v2890
        %v2893 = vld [vmem:[%s5 + $0x1c0] sm:$0xf]
        %v2894 = vld [vmem:[%s5 + $0x1c4] sm:$0xf]
        %v2895 = vld [vmem:[%s5 + $0x1c8] sm:$0xf]
        %v2896 = vld [vmem:[%s5 + $0x1cc] sm:$0xf]
        %v2897 = vld [vmem:[%s5 + $0x1d0] sm:$0xf]
        %v2898 = vld [vmem:[%s5 + $0x1d4] sm:$0xf]
        %v2899 = vld [vmem:[%s5 + $0x1d8] sm:$0xf]
        %v2900 = vld [vmem:[%s5 + $0x1dc] sm:$0xf]
        %v2901 = vld [vmem:[%s5 + $0x1e0] sm:$0xf]
        %v2902 = vld [vmem:[%s5 + $0x1e4] sm:$0xf]
        %v2903 = vld [vmem:[%s5 + $0x1e8] sm:$0xf]
        %v2904 = vld [vmem:[%s5 + $0x1ec] sm:$0xf]
        %v2905 = vld [vmem:[%s5 + $0x1f0] sm:$0xf]
        %v2906 = vld [vmem:[%s5 + $0x1f4] sm:$0xf]
        %v2907 = vld [vmem:[%s5 + $0x1f8] sm:$0xf]
        %v2908 = vld [vmem:[%s5 + $0x1fc] sm:$0xf]
        %v2925 = vunpack.c.l.b16 %v2893
        %v2926 = vunpack.c.l.b16 %v2894
        %v2927 = vunpack.c.l.b16 %v2895
        %v2928 = vunpack.c.l.b16 %v2896
        %v2929 = vunpack.c.l.b16 %v2897
        %v2930 = vunpack.c.l.b16 %v2898
        %v2931 = vunpack.c.l.b16 %v2899
        %v2932 = vunpack.c.l.b16 %v2900
        %v2933 = vunpack.c.l.b16 %v2901
        %v2934 = vunpack.c.l.b16 %v2902
        %v2935 = vunpack.c.l.b16 %v2903
        %v2936 = vunpack.c.l.b16 %v2904
        %v2937 = vunpack.c.l.b16 %v2905
        %v2938 = vunpack.c.l.b16 %v2906
        %v2939 = vunpack.c.l.b16 %v2907
        %v2940 = vunpack.c.l.b16 %v2908
        %v2941 = vpack.c.b16 %v2926, %v2925
        %v2942 = vpack.c.b16 %v2928, %v2927
        %v2943 = vpack.c.b16 %v2930, %v2929
        %v2944 = vpack.c.b16 %v2932, %v2931
        %v2945 = vpack.c.b16 %v2934, %v2933
        %v2946 = vpack.c.b16 %v2936, %v2935
        %v2947 = vpack.c.b16 %v2938, %v2937
        %v2948 = vpack.c.b16 %v2940, %v2939
        %2957 = vmatprep.subr.bf16.mxu0 0
        %2958 = vmatpush1.bf16.msra.mxu0 %v2948
        %2959 = vmatprep.subr.bf16.mxu0 0
        %2960 = vmatpush1.bf16.msra.mxu0 %v2947
        %2961 = vmatprep.subr.bf16.mxu0 0
        %2962 = vmatpush1.bf16.msra.mxu0 %v2946
        %2963 = vmatprep.subr.bf16.mxu0 0
        %2964 = vmatpush1.bf16.msra.mxu0 %v2945
        %2965 = vmatprep.subr.bf16.mxu0 0
        %2966 = vmatpush1.bf16.msra.mxu0 %v2944
        %2967 = vmatprep.subr.bf16.mxu0 0
        %2968 = vmatpush1.bf16.msra.mxu0 %v2943
        %2969 = vmatprep.subr.bf16.mxu0 0
        %2970 = vmatpush1.bf16.msra.mxu0 %v2942
        %2971 = vmatprep.subr.bf16.mxu0 0
        %2972 = vmatpush1.bf16.msra.mxu0 %v2941
        %2973 = vmatprep.subr.bf16.mxu0 0
        %2974 = vmatpush2.bf16.msra.mxu0 0
        %2975 = vmatprep.subr.bf16.mxu0 0
        %2976 = vmatpush2.bf16.msra.mxu0 0
        %2977 = vmatprep.subr.bf16.mxu0 0
        %2978 = vmatpush2.bf16.msra.mxu0 0
        %2979 = vmatprep.subr.bf16.mxu0 0
        %2980 = vmatpush2.bf16.msra.mxu0 0
        %2981 = vmatprep.subr.bf16.mxu0 0
        %2982 = vmatpush2.bf16.msra.mxu0 0
        %2983 = vmatprep.subr.bf16.mxu0 0
        %2984 = vmatpush2.bf16.msra.mxu0 0
        %2985 = vmatprep.subr.bf16.mxu0 0
        %2986 = vmatpush2.bf16.msra.mxu0 0
        %2987 = vmatprep.subr.bf16.mxu0 0
        %2988 = vmatpush2.bf16.msra.mxu0 0
        %2989 = vmatprep.mubr.bf16.mxu0 0
        %2990 = vmatmul.mubr.bf16.gmra.mxu0 %v2891
        %v2991 = vpop.f32.mrf.mxu0
        %v2992 = vadd.f32 0.0, %v2991
        %v2993 = vpop.f32.mrf.mxu0
        %v2994 = vpop.f32.mrf.mxu0
        %v2995 = vadd.f32 0.0, %v2994
        %v2996 = vpop.f32.mrf.mxu0
        %2997 = vmatprep.mubr.bf16.mxu0 0
        %2998 = vmatmul.mubr.bf16.gmra.mxu0 %v2892
        %v2999 = vpop.f32.mrf.mxu0
        %v3000 = vadd.f32 0.0, %v2999
        %v3001 = vpop.f32.mrf.mxu0
        %v3002 = vpop.f32.mrf.mxu0
        %v3003 = vpop.f32.mrf.mxu0
        %3004 = vdwg.mxu0
        %v3005 = vadd.f32 %v2885, %v2992
        %v3006 = vadd.f32 %v2886, %v2995
        %v3007 = vadd.f32 %v2887, %v3000
        %v3008 = vld [vmem:[#allocation3 + $0xe] sm:$0xff]
        %v3009 = vld [vmem:[#allocation3 + $0x16] sm:$0xff]
        %v3010 = vld [vmem:[#allocation3 + $0x1e] sm:$0x3f]
        %v3011 = vpack.c.bf16 %v3009, %v3008
        %v3012 = vpack.c.bf16 %v3010, %v3010
        %v3013 = vld [vmem:[%s5 + $0x200] sm:$0xf]
        %v3014 = vld [vmem:[%s5 + $0x204] sm:$0xf]
        %v3015 = vld [vmem:[%s5 + $0x208] sm:$0xf]
        %v3016 = vld [vmem:[%s5 + $0x20c] sm:$0xf]
        %v3017 = vld [vmem:[%s5 + $0x210] sm:$0xf]
        %v3018 = vld [vmem:[%s5 + $0x214] sm:$0xf]
        %v3019 = vld [vmem:[%s5 + $0x218] sm:$0xf]
        %v3020 = vld [vmem:[%s5 + $0x21c] sm:$0xf]
        %v3021 = vld [vmem:[%s5 + $0x220] sm:$0xf]
        %v3022 = vld [vmem:[%s5 + $0x224] sm:$0xf]
        %v3023 = vld [vmem:[%s5 + $0x228] sm:$0xf]
        %v3024 = vld [vmem:[%s5 + $0x22c] sm:$0xf]
        %v3025 = vld [vmem:[%s5 + $0x230] sm:$0xf]
        %v3026 = vld [vmem:[%s5 + $0x234] sm:$0xf]
        %v3027 = vld [vmem:[%s5 + $0x238] sm:$0xf]
        %v3028 = vld [vmem:[%s5 + $0x23c] sm:$0xf]
        %v3045 = vunpack.c.l.b16 %v3013
        %v3046 = vunpack.c.l.b16 %v3014
        %v3047 = vunpack.c.l.b16 %v3015
        %v3048 = vunpack.c.l.b16 %v3016
        %v3049 = vunpack.c.l.b16 %v3017
        %v3050 = vunpack.c.l.b16 %v3018
        %v3051 = vunpack.c.l.b16 %v3019
        %v3052 = vunpack.c.l.b16 %v3020
        %v3053 = vunpack.c.l.b16 %v3021
        %v3054 = vunpack.c.l.b16 %v3022
        %v3055 = vunpack.c.l.b16 %v3023
        %v3056 = vunpack.c.l.b16 %v3024
        %v3057 = vunpack.c.l.b16 %v3025
        %v3058 = vunpack.c.l.b16 %v3026
        %v3059 = vunpack.c.l.b16 %v3027
        %v3060 = vunpack.c.l.b16 %v3028
        %v3061 = vpack.c.b16 %v3046, %v3045
        %v3062 = vpack.c.b16 %v3048, %v3047
        %v3063 = vpack.c.b16 %v3050, %v3049
        %v3064 = vpack.c.b16 %v3052, %v3051
        %v3065 = vpack.c.b16 %v3054, %v3053
        %v3066 = vpack.c.b16 %v3056, %v3055
        %v3067 = vpack.c.b16 %v3058, %v3057
        %v3068 = vpack.c.b16 %v3060, %v3059
        %3077 = vmatprep.subr.bf16.mxu0 0
        %3078 = vmatpush1.bf16.msra.mxu0 %v3068
        %3079 = vmatprep.subr.bf16.mxu0 0
        %3080 = vmatpush1.bf16.msra.mxu0 %v3067
        %3081 = vmatprep.subr.bf16.mxu0 0
        %3082 = vmatpush1.bf16.msra.mxu0 %v3066
        %3083 = vmatprep.subr.bf16.mxu0 0
        %3084 = vmatpush1.bf16.msra.mxu0 %v3065
        %3085 = vmatprep.subr.bf16.mxu0 0
        %3086 = vmatpush1.bf16.msra.mxu0 %v3064
        %3087 = vmatprep.subr.bf16.mxu0 0
        %3088 = vmatpush1.bf16.msra.mxu0 %v3063
        %3089 = vmatprep.subr.bf16.mxu0 0
        %3090 = vmatpush1.bf16.msra.mxu0 %v3062
        %3091 = vmatprep.subr.bf16.mxu0 0
        %3092 = vmatpush1.bf16.msra.mxu0 %v3061
        %3093 = vmatprep.subr.bf16.mxu0 0
        %3094 = vmatpush2.bf16.msra.mxu0 0
        %3095 = vmatprep.subr.bf16.mxu0 0
        %3096 = vmatpush2.bf16.msra.mxu0 0
        %3097 = vmatprep.subr.bf16.mxu0 0
        %3098 = vmatpush2.bf16.msra.mxu0 0
        %3099 = vmatprep.subr.bf16.mxu0 0
        %3100 = vmatpush2.bf16.msra.mxu0 0
        %3101 = vmatprep.subr.bf16.mxu0 0
        %3102 = vmatpush2.bf16.msra.mxu0 0
        %3103 = vmatprep.subr.bf16.mxu0 0
        %3104 = vmatpush2.bf16.msra.mxu0 0
        %3105 = vmatprep.subr.bf16.mxu0 0
        %3106 = vmatpush2.bf16.msra.mxu0 0
        %3107 = vmatprep.subr.bf16.mxu0 0
        %3108 = vmatpush2.bf16.msra.mxu0 0
        %3109 = vmatprep.mubr.bf16.mxu0 0
        %3110 = vmatmul.mubr.bf16.gmra.mxu0 %v3011
        %v3111 = vpop.f32.mrf.mxu0
        %v3112 = vadd.f32 0.0, %v3111
        %v3113 = vpop.f32.mrf.mxu0
        %v3114 = vpop.f32.mrf.mxu0
        %v3115 = vadd.f32 0.0, %v3114
        %v3116 = vpop.f32.mrf.mxu0
        %3117 = vmatprep.mubr.bf16.mxu0 0
        %3118 = vmatmul.mubr.bf16.gmra.mxu0 %v3012
        %v3119 = vpop.f32.mrf.mxu0
        %v3120 = vadd.f32 0.0, %v3119
        %v3121 = vpop.f32.mrf.mxu0
        %v3122 = vpop.f32.mrf.mxu0
        %v3123 = vpop.f32.mrf.mxu0
        %3124 = vdwg.mxu0
        %v3125 = vadd.f32 %v3005, %v3112
        %v3126 = vadd.f32 %v3006, %v3115
        %v3127 = vadd.f32 %v3007, %v3120
        %v3130 = vrot.slane %v3125, 2
        %v3131 = vrot.slane %v3126, 2
        %v3132 = vsel %vm2022, %v3130, %v3131
        %v3134 = vrot.slane %v3126, 4
        %v3137 = vrot.slane %v3127, 6
        %v3139 = vsel %vm934, %v3125, %v3132
        %v3140 = vsel %vm934, %v3134, %v3137
        %v3141 = vld [vmem:[%s6] sm:$0x1]
        %v3143 = vlaneseq
        %v3144 = vshrl.u32 %v3143, 7
        %v3145 = vsub.s32 0, %v3144
        %v3146 = vrot.slane %v3141, %v3145
        %v3148 = vadd.f32 %v3139, %v3146
        %v3149 = vadd.f32 %v3140, %v3146
        %v3150 = vadd.f32 %v3148, %v935
        %v3151 = vadd.f32 %v3149, %v936
        %v3152 = vmax.f32 %v3150, 0.0
        %v3153 = vmax.f32 %v3151, 0.0
        %3154 = vst [vmem:[#allocation2] sm:$0xff] 0.0
        %3155 = vst [vmem:[#allocation2 + $0x8] sm:$0xff] 0.0
        %3156 = vst [vmem:[#allocation2 + $0x10] sm:$0xff] 0.0
        %3157 = vst [vmem:[#allocation2 + $0x18] sm:$0xff] 0.0
        %3158 = vst [vmem:[#allocation2 + $0x20] sm:$0xf] 0.0
        %3159 = vst [vmem:[#allocation2 + $0x7] sm:$0xf] %v3152
        %3160 = vst [vmem:[#allocation2 + $0x9] sm:$0xf0] %v3152
        %3161 = vst [vmem:[#allocation2 + $0x13] sm:$0xf] %v3153
        %3162 = vst [vmem:[#allocation2 + $0x15] sm:$0xf0] %v3153
        %v3163 = vld [vmem:[#allocation2] sm:$0xff]
        %v3164 = vld [vmem:[#allocation2 + $0x8] sm:$0xff]
        %v3165 = vld [vmem:[#allocation2 + $0x10] sm:$0x3f]
        %v3166 = vpack.c.bf16 %v3164, %v3163
        %v3167 = vpack.c.bf16 %v3165, %v3165
        %v3168 = vld [vmem:[%s7] sm:$0xf]
        %v3169 = vld [vmem:[%s7 + $0x4] sm:$0xf]
        %v3170 = vld [vmem:[%s7 + $0x8] sm:$0xf]
        %v3171 = vld [vmem:[%s7 + $0xc] sm:$0xf]
        %v3172 = vld [vmem:[%s7 + $0x10] sm:$0xf]
        %v3173 = vld [vmem:[%s7 + $0x14] sm:$0xf]
        %v3174 = vld [vmem:[%s7 + $0x18] sm:$0xf]
        %v3175 = vld [vmem:[%s7 + $0x1c] sm:$0xf]
        %v3176 = vld [vmem:[%s7 + $0x20] sm:$0xf]
        %v3177 = vld [vmem:[%s7 + $0x24] sm:$0xf]
        %v3178 = vld [vmem:[%s7 + $0x28] sm:$0xf]
        %v3179 = vld [vmem:[%s7 + $0x2c] sm:$0xf]
        %v3180 = vld [vmem:[%s7 + $0x30] sm:$0xf]
        %v3181 = vld [vmem:[%s7 + $0x34] sm:$0xf]
        %v3182 = vld [vmem:[%s7 + $0x38] sm:$0xf]
        %v3183 = vld [vmem:[%s7 + $0x3c] sm:$0xf]
        %v3184 = vld [vmem:[#allocation2 + $0x1] sm:$0xff]
        %v3185 = vld [vmem:[#allocation2 + $0x9] sm:$0xff]
        %v3186 = vld [vmem:[#allocation2 + $0x11] sm:$0x3f]
        %v3187 = vpack.c.bf16 %v3185, %v3184
        %v3188 = vpack.c.bf16 %v3186, %v3186
        %v3189 = vld [vmem:[%s7 + $0x40] sm:$0xf]
        %v3190 = vld [vmem:[%s7 + $0x44] sm:$0xf]
        %v3191 = vld [vmem:[%s7 + $0x48] sm:$0xf]
        %v3192 = vld [vmem:[%s7 + $0x4c] sm:$0xf]
        %v3193 = vld [vmem:[%s7 + $0x50] sm:$0xf]
        %v3194 = vld [vmem:[%s7 + $0x54] sm:$0xf]
        %v3195 = vld [vmem:[%s7 + $0x58] sm:$0xf]
        %v3196 = vld [vmem:[%s7 + $0x5c] sm:$0xf]
        %v3197 = vld [vmem:[%s7 + $0x60] sm:$0xf]
        %v3198 = vld [vmem:[%s7 + $0x64] sm:$0xf]
        %v3199 = vld [vmem:[%s7 + $0x68] sm:$0xf]
        %v3200 = vld [vmem:[%s7 + $0x6c] sm:$0xf]
        %v3201 = vld [vmem:[%s7 + $0x70] sm:$0xf]
        %v3202 = vld [vmem:[%s7 + $0x74] sm:$0xf]
        %v3203 = vld [vmem:[%s7 + $0x78] sm:$0xf]
        %v3204 = vld [vmem:[%s7 + $0x7c] sm:$0xf]
        %v3221 = vunpack.c.l.b16 %v3189
        %v3222 = vunpack.c.l.b16 %v3190
        %v3223 = vunpack.c.l.b16 %v3191
        %v3224 = vunpack.c.l.b16 %v3192
        %v3225 = vunpack.c.l.b16 %v3193
        %v3226 = vunpack.c.l.b16 %v3194
        %v3227 = vunpack.c.l.b16 %v3195
        %v3228 = vunpack.c.l.b16 %v3196
        %v3229 = vunpack.c.l.b16 %v3197
        %v3230 = vunpack.c.l.b16 %v3198
        %v3231 = vunpack.c.l.b16 %v3199
        %v3232 = vunpack.c.l.b16 %v3200
        %v3233 = vunpack.c.l.b16 %v3201
        %v3234 = vunpack.c.l.b16 %v3202
        %v3235 = vunpack.c.l.b16 %v3203
        %v3236 = vunpack.c.l.b16 %v3204
        %v3237 = vpack.c.b16 %v3222, %v3221
        %v3238 = vpack.c.b16 %v3224, %v3223
        %v3239 = vpack.c.b16 %v3226, %v3225
        %v3240 = vpack.c.b16 %v3228, %v3227
        %v3241 = vpack.c.b16 %v3230, %v3229
        %v3242 = vpack.c.b16 %v3232, %v3231
        %v3243 = vpack.c.b16 %v3234, %v3233
        %v3244 = vpack.c.b16 %v3236, %v3235
        %3253 = vmatprep.subr.bf16.mxu0 0
        %3254 = vmatpush1.bf16.msra.mxu0 %v3244
        %3255 = vmatprep.subr.bf16.mxu0 0
        %3256 = vmatpush1.bf16.msra.mxu0 %v3243
        %3257 = vmatprep.subr.bf16.mxu0 0
        %3258 = vmatpush1.bf16.msra.mxu0 %v3242
        %3259 = vmatprep.subr.bf16.mxu0 0
        %3260 = vmatpush1.bf16.msra.mxu0 %v3241
        %3261 = vmatprep.subr.bf16.mxu0 0
        %3262 = vmatpush1.bf16.msra.mxu0 %v3240
        %3263 = vmatprep.subr.bf16.mxu0 0
        %3264 = vmatpush1.bf16.msra.mxu0 %v3239
        %3265 = vmatprep.subr.bf16.mxu0 0
        %3266 = vmatpush1.bf16.msra.mxu0 %v3238
        %3267 = vmatprep.subr.bf16.mxu0 0
        %3268 = vmatpush1.bf16.msra.mxu0 %v3237
        %3269 = vmatprep.subr.bf16.mxu0 0
        %3270 = vmatpush2.bf16.msra.mxu0 0
        %3271 = vmatprep.subr.bf16.mxu0 0
        %3272 = vmatpush2.bf16.msra.mxu0 0
        %3273 = vmatprep.subr.bf16.mxu0 0
        %3274 = vmatpush2.bf16.msra.mxu0 0
        %3275 = vmatprep.subr.bf16.mxu0 0
        %3276 = vmatpush2.bf16.msra.mxu0 0
        %3277 = vmatprep.subr.bf16.mxu0 0
        %3278 = vmatpush2.bf16.msra.mxu0 0
        %3279 = vmatprep.subr.bf16.mxu0 0
        %3280 = vmatpush2.bf16.msra.mxu0 0
        %3281 = vmatprep.subr.bf16.mxu0 0
        %3282 = vmatpush2.bf16.msra.mxu0 0
        %3283 = vmatprep.subr.bf16.mxu0 0
        %3284 = vmatpush2.bf16.msra.mxu0 0
        %3285 = vmatprep.mubr.bf16.mxu0 0
        %3286 = vmatmul.mubr.bf16.gmra.mxu0 %v3187
        %v3287 = vpop.f32.mrf.mxu0
        %v3288 = vadd.f32 0.0, %v3287
        %v3289 = vpop.f32.mrf.mxu0
        %v3290 = vpop.f32.mrf.mxu0
        %v3291 = vadd.f32 0.0, %v3290
        %v3292 = vpop.f32.mrf.mxu0
        %3293 = vmatprep.mubr.bf16.mxu0 0
        %3294 = vmatmul.mubr.bf16.gmra.mxu0 %v3188
        %v3295 = vpop.f32.mrf.mxu0
        %v3296 = vadd.f32 0.0, %v3295
        %v3297 = vpop.f32.mrf.mxu0
        %v3298 = vpop.f32.mrf.mxu0
        %v3299 = vpop.f32.mrf.mxu0
        %3300 = vdwg.mxu0
        %v3317 = vunpack.c.l.b16 %v3168
        %v3318 = vunpack.c.l.b16 %v3169
        %v3319 = vunpack.c.l.b16 %v3170
        %v3320 = vunpack.c.l.b16 %v3171
        %v3321 = vunpack.c.l.b16 %v3172
        %v3322 = vunpack.c.l.b16 %v3173
        %v3323 = vunpack.c.l.b16 %v3174
        %v3324 = vunpack.c.l.b16 %v3175
        %v3325 = vunpack.c.l.b16 %v3176
        %v3326 = vunpack.c.l.b16 %v3177
        %v3327 = vunpack.c.l.b16 %v3178
        %v3328 = vunpack.c.l.b16 %v3179
        %v3329 = vunpack.c.l.b16 %v3180
        %v3330 = vunpack.c.l.b16 %v3181
        %v3331 = vunpack.c.l.b16 %v3182
        %v3332 = vunpack.c.l.b16 %v3183
        %v3333 = vpack.c.b16 %v3318, %v3317
        %v3334 = vpack.c.b16 %v3320, %v3319
        %v3335 = vpack.c.b16 %v3322, %v3321
        %v3336 = vpack.c.b16 %v3324, %v3323
        %v3337 = vpack.c.b16 %v3326, %v3325
        %v3338 = vpack.c.b16 %v3328, %v3327
        %v3339 = vpack.c.b16 %v3330, %v3329
        %v3340 = vpack.c.b16 %v3332, %v3331
        %3349 = vmatprep.subr.bf16.mxu0 0
        %3350 = vmatpush1.bf16.msra.mxu0 %v3340
        %3351 = vmatprep.subr.bf16.mxu0 0
        %3352 = vmatpush1.bf16.msra.mxu0 %v3339
        %3353 = vmatprep.subr.bf16.mxu0 0
        %3354 = vmatpush1.bf16.msra.mxu0 %v3338
        %3355 = vmatprep.subr.bf16.mxu0 0
        %3356 = vmatpush1.bf16.msra.mxu0 %v3337
        %3357 = vmatprep.subr.bf16.mxu0 0
        %3358 = vmatpush1.bf16.msra.mxu0 %v3336
        %3359 = vmatprep.subr.bf16.mxu0 0
        %3360 = vmatpush1.bf16.msra.mxu0 %v3335
        %3361 = vmatprep.subr.bf16.mxu0 0
        %3362 = vmatpush1.bf16.msra.mxu0 %v3334
        %3363 = vmatprep.subr.bf16.mxu0 0
        %3364 = vmatpush1.bf16.msra.mxu0 %v3333
        %3365 = vmatprep.subr.bf16.mxu0 0
        %3366 = vmatpush2.bf16.msra.mxu0 0
        %3367 = vmatprep.subr.bf16.mxu0 0
        %3368 = vmatpush2.bf16.msra.mxu0 0
        %3369 = vmatprep.subr.bf16.mxu0 0
        %3370 = vmatpush2.bf16.msra.mxu0 0
        %3371 = vmatprep.subr.bf16.mxu0 0
        %3372 = vmatpush2.bf16.msra.mxu0 0
        %3373 = vmatprep.subr.bf16.mxu0 0
        %3374 = vmatpush2.bf16.msra.mxu0 0
        %3375 = vmatprep.subr.bf16.mxu0 0
        %3376 = vmatpush2.bf16.msra.mxu0 0
        %3377 = vmatprep.subr.bf16.mxu0 0
        %3378 = vmatpush2.bf16.msra.mxu0 0
        %3379 = vmatprep.subr.bf16.mxu0 0
        %3380 = vmatpush2.bf16.msra.mxu0 0
        %3381 = vmatprep.mubr.bf16.mxu0 0
        %3382 = vmatmul.mubr.bf16.gmra.mxu0 %v3166
        %v3383 = vpop.f32.mrf.mxu0
        %v3384 = vadd.f32 %v3288, %v3383
        %v3385 = vpop.f32.mrf.mxu0
        %v3386 = vpop.f32.mrf.mxu0
        %v3387 = vadd.f32 %v3291, %v3386
        %v3388 = vpop.f32.mrf.mxu0
        %3389 = vmatprep.mubr.bf16.mxu0 0
        %3390 = vmatmul.mubr.bf16.gmra.mxu0 %v3167
        %v3391 = vpop.f32.mrf.mxu0
        %v3392 = vadd.f32 %v3296, %v3391
        %v3393 = vpop.f32.mrf.mxu0
        %v3394 = vpop.f32.mrf.mxu0
        %v3395 = vpop.f32.mrf.mxu0
        %3396 = vdwg.mxu0
        %v3397 = vld [vmem:[#allocation2 + $0x2] sm:$0xff]
        %v3398 = vld [vmem:[#allocation2 + $0xa] sm:$0xff]
        %v3399 = vld [vmem:[#allocation2 + $0x12] sm:$0x3f]
        %v3400 = vpack.c.bf16 %v3398, %v3397
        %v3401 = vpack.c.bf16 %v3399, %v3399
        %v3402 = vld [vmem:[%s7 + $0x80] sm:$0xf]
        %v3403 = vld [vmem:[%s7 + $0x84] sm:$0xf]
        %v3404 = vld [vmem:[%s7 + $0x88] sm:$0xf]
        %v3405 = vld [vmem:[%s7 + $0x8c] sm:$0xf]
        %v3406 = vld [vmem:[%s7 + $0x90] sm:$0xf]
        %v3407 = vld [vmem:[%s7 + $0x94] sm:$0xf]
        %v3408 = vld [vmem:[%s7 + $0x98] sm:$0xf]
        %v3409 = vld [vmem:[%s7 + $0x9c] sm:$0xf]
        %v3410 = vld [vmem:[%s7 + $0xa0] sm:$0xf]
        %v3411 = vld [vmem:[%s7 + $0xa4] sm:$0xf]
        %v3412 = vld [vmem:[%s7 + $0xa8] sm:$0xf]
        %v3413 = vld [vmem:[%s7 + $0xac] sm:$0xf]
        %v3414 = vld [vmem:[%s7 + $0xb0] sm:$0xf]
        %v3415 = vld [vmem:[%s7 + $0xb4] sm:$0xf]
        %v3416 = vld [vmem:[%s7 + $0xb8] sm:$0xf]
        %v3417 = vld [vmem:[%s7 + $0xbc] sm:$0xf]
        %v3434 = vunpack.c.l.b16 %v3402
        %v3435 = vunpack.c.l.b16 %v3403
        %v3436 = vunpack.c.l.b16 %v3404
        %v3437 = vunpack.c.l.b16 %v3405
        %v3438 = vunpack.c.l.b16 %v3406
        %v3439 = vunpack.c.l.b16 %v3407
        %v3440 = vunpack.c.l.b16 %v3408
        %v3441 = vunpack.c.l.b16 %v3409
        %v3442 = vunpack.c.l.b16 %v3410
        %v3443 = vunpack.c.l.b16 %v3411
        %v3444 = vunpack.c.l.b16 %v3412
        %v3445 = vunpack.c.l.b16 %v3413
        %v3446 = vunpack.c.l.b16 %v3414
        %v3447 = vunpack.c.l.b16 %v3415
        %v3448 = vunpack.c.l.b16 %v3416
        %v3449 = vunpack.c.l.b16 %v3417
        %v3450 = vpack.c.b16 %v3435, %v3434
        %v3451 = vpack.c.b16 %v3437, %v3436
        %v3452 = vpack.c.b16 %v3439, %v3438
        %v3453 = vpack.c.b16 %v3441, %v3440
        %v3454 = vpack.c.b16 %v3443, %v3442
        %v3455 = vpack.c.b16 %v3445, %v3444
        %v3456 = vpack.c.b16 %v3447, %v3446
        %v3457 = vpack.c.b16 %v3449, %v3448
        %3466 = vmatprep.subr.bf16.mxu0 0
        %3467 = vmatpush1.bf16.msra.mxu0 %v3457
        %3468 = vmatprep.subr.bf16.mxu0 0
        %3469 = vmatpush1.bf16.msra.mxu0 %v3456
        %3470 = vmatprep.subr.bf16.mxu0 0
        %3471 = vmatpush1.bf16.msra.mxu0 %v3455
        %3472 = vmatprep.subr.bf16.mxu0 0
        %3473 = vmatpush1.bf16.msra.mxu0 %v3454
        %3474 = vmatprep.subr.bf16.mxu0 0
        %3475 = vmatpush1.bf16.msra.mxu0 %v3453
        %3476 = vmatprep.subr.bf16.mxu0 0
        %3477 = vmatpush1.bf16.msra.mxu0 %v3452
        %3478 = vmatprep.subr.bf16.mxu0 0
        %3479 = vmatpush1.bf16.msra.mxu0 %v3451
        %3480 = vmatprep.subr.bf16.mxu0 0
        %3481 = vmatpush1.bf16.msra.mxu0 %v3450
        %3482 = vmatprep.subr.bf16.mxu0 0
        %3483 = vmatpush2.bf16.msra.mxu0 0
        %3484 = vmatprep.subr.bf16.mxu0 0
        %3485 = vmatpush2.bf16.msra.mxu0 0
        %3486 = vmatprep.subr.bf16.mxu0 0
        %3487 = vmatpush2.bf16.msra.mxu0 0
        %3488 = vmatprep.subr.bf16.mxu0 0
        %3489 = vmatpush2.bf16.msra.mxu0 0
        %3490 = vmatprep.subr.bf16.mxu0 0
        %3491 = vmatpush2.bf16.msra.mxu0 0
        %3492 = vmatprep.subr.bf16.mxu0 0
        %3493 = vmatpush2.bf16.msra.mxu0 0
        %3494 = vmatprep.subr.bf16.mxu0 0
        %3495 = vmatpush2.bf16.msra.mxu0 0
        %3496 = vmatprep.subr.bf16.mxu0 0
        %3497 = vmatpush2.bf16.msra.mxu0 0
        %3498 = vmatprep.mubr.bf16.mxu0 0
        %3499 = vmatmul.mubr.bf16.gmra.mxu0 %v3400
        %v3500 = vpop.f32.mrf.mxu0
        %v3501 = vadd.f32 0.0, %v3500
        %v3502 = vpop.f32.mrf.mxu0
        %v3503 = vpop.f32.mrf.mxu0
        %v3504 = vadd.f32 0.0, %v3503
        %v3505 = vpop.f32.mrf.mxu0
        %3506 = vmatprep.mubr.bf16.mxu0 0
        %3507 = vmatmul.mubr.bf16.gmra.mxu0 %v3401
        %v3508 = vpop.f32.mrf.mxu0
        %v3509 = vadd.f32 0.0, %v3508
        %v3510 = vpop.f32.mrf.mxu0
        %v3511 = vpop.f32.mrf.mxu0
        %v3512 = vpop.f32.mrf.mxu0
        %3513 = vdwg.mxu0
        %v3514 = vadd.f32 %v3384, %v3501
        %v3515 = vadd.f32 %v3387, %v3504
        %v3516 = vadd.f32 %v3392, %v3509
        %v3517 = vld [vmem:[#allocation2 + $0x6] sm:$0xff]
        %v3518 = vld [vmem:[#allocation2 + $0xe] sm:$0xff]
        %v3519 = vld [vmem:[#allocation2 + $0x16] sm:$0x3f]
        %v3520 = vpack.c.bf16 %v3518, %v3517
        %v3521 = vpack.c.bf16 %v3519, %v3519
        %v3522 = vld [vmem:[%s7 + $0xc0] sm:$0xf]
        %v3523 = vld [vmem:[%s7 + $0xc4] sm:$0xf]
        %v3524 = vld [vmem:[%s7 + $0xc8] sm:$0xf]
        %v3525 = vld [vmem:[%s7 + $0xcc] sm:$0xf]
        %v3526 = vld [vmem:[%s7 + $0xd0] sm:$0xf]
        %v3527 = vld [vmem:[%s7 + $0xd4] sm:$0xf]
        %v3528 = vld [vmem:[%s7 + $0xd8] sm:$0xf]
        %v3529 = vld [vmem:[%s7 + $0xdc] sm:$0xf]
        %v3530 = vld [vmem:[%s7 + $0xe0] sm:$0xf]
        %v3531 = vld [vmem:[%s7 + $0xe4] sm:$0xf]
        %v3532 = vld [vmem:[%s7 + $0xe8] sm:$0xf]
        %v3533 = vld [vmem:[%s7 + $0xec] sm:$0xf]
        %v3534 = vld [vmem:[%s7 + $0xf0] sm:$0xf]
        %v3535 = vld [vmem:[%s7 + $0xf4] sm:$0xf]
        %v3536 = vld [vmem:[%s7 + $0xf8] sm:$0xf]
        %v3537 = vld [vmem:[%s7 + $0xfc] sm:$0xf]
        %v3554 = vunpack.c.l.b16 %v3522
        %v3555 = vunpack.c.l.b16 %v3523
        %v3556 = vunpack.c.l.b16 %v3524
        %v3557 = vunpack.c.l.b16 %v3525
        %v3558 = vunpack.c.l.b16 %v3526
        %v3559 = vunpack.c.l.b16 %v3527
        %v3560 = vunpack.c.l.b16 %v3528
        %v3561 = vunpack.c.l.b16 %v3529
        %v3562 = vunpack.c.l.b16 %v3530
        %v3563 = vunpack.c.l.b16 %v3531
        %v3564 = vunpack.c.l.b16 %v3532
        %v3565 = vunpack.c.l.b16 %v3533
        %v3566 = vunpack.c.l.b16 %v3534
        %v3567 = vunpack.c.l.b16 %v3535
        %v3568 = vunpack.c.l.b16 %v3536
        %v3569 = vunpack.c.l.b16 %v3537
        %v3570 = vpack.c.b16 %v3555, %v3554
        %v3571 = vpack.c.b16 %v3557, %v3556
        %v3572 = vpack.c.b16 %v3559, %v3558
        %v3573 = vpack.c.b16 %v3561, %v3560
        %v3574 = vpack.c.b16 %v3563, %v3562
        %v3575 = vpack.c.b16 %v3565, %v3564
        %v3576 = vpack.c.b16 %v3567, %v3566
        %v3577 = vpack.c.b16 %v3569, %v3568
        %3586 = vmatprep.subr.bf16.mxu0 0
        %3587 = vmatpush1.bf16.msra.mxu0 %v3577
        %3588 = vmatprep.subr.bf16.mxu0 0
        %3589 = vmatpush1.bf16.msra.mxu0 %v3576
        %3590 = vmatprep.subr.bf16.mxu0 0
        %3591 = vmatpush1.bf16.msra.mxu0 %v3575
        %3592 = vmatprep.subr.bf16.mxu0 0
        %3593 = vmatpush1.bf16.msra.mxu0 %v3574
        %3594 = vmatprep.subr.bf16.mxu0 0
        %3595 = vmatpush1.bf16.msra.mxu0 %v3573
        %3596 = vmatprep.subr.bf16.mxu0 0
        %3597 = vmatpush1.bf16.msra.mxu0 %v3572
        %3598 = vmatprep.subr.bf16.mxu0 0
        %3599 = vmatpush1.bf16.msra.mxu0 %v3571
        %3600 = vmatprep.subr.bf16.mxu0 0
        %3601 = vmatpush1.bf16.msra.mxu0 %v3570
        %3602 = vmatprep.subr.bf16.mxu0 0
        %3603 = vmatpush2.bf16.msra.mxu0 0
        %3604 = vmatprep.subr.bf16.mxu0 0
        %3605 = vmatpush2.bf16.msra.mxu0 0
        %3606 = vmatprep.subr.bf16.mxu0 0
        %3607 = vmatpush2.bf16.msra.mxu0 0
        %3608 = vmatprep.subr.bf16.mxu0 0
        %3609 = vmatpush2.bf16.msra.mxu0 0
        %3610 = vmatprep.subr.bf16.mxu0 0
        %3611 = vmatpush2.bf16.msra.mxu0 0
        %3612 = vmatprep.subr.bf16.mxu0 0
        %3613 = vmatpush2.bf16.msra.mxu0 0
        %3614 = vmatprep.subr.bf16.mxu0 0
        %3615 = vmatpush2.bf16.msra.mxu0 0
        %3616 = vmatprep.subr.bf16.mxu0 0
        %3617 = vmatpush2.bf16.msra.mxu0 0
        %3618 = vmatprep.mubr.bf16.mxu0 0
        %3619 = vmatmul.mubr.bf16.gmra.mxu0 %v3520
        %v3620 = vpop.f32.mrf.mxu0
        %v3621 = vadd.f32 0.0, %v3620
        %v3622 = vpop.f32.mrf.mxu0
        %v3623 = vpop.f32.mrf.mxu0
        %v3624 = vadd.f32 0.0, %v3623
        %v3625 = vpop.f32.mrf.mxu0
        %3626 = vmatprep.mubr.bf16.mxu0 0
        %3627 = vmatmul.mubr.bf16.gmra.mxu0 %v3521
        %v3628 = vpop.f32.mrf.mxu0
        %v3629 = vadd.f32 0.0, %v3628
        %v3630 = vpop.f32.mrf.mxu0
        %v3631 = vpop.f32.mrf.mxu0
        %v3632 = vpop.f32.mrf.mxu0
        %3633 = vdwg.mxu0
        %v3634 = vadd.f32 %v3514, %v3621
        %v3635 = vadd.f32 %v3515, %v3624
        %v3636 = vadd.f32 %v3516, %v3629
        %v3637 = vld [vmem:[#allocation2 + $0x7] sm:$0xff]
        %v3638 = vld [vmem:[#allocation2 + $0xf] sm:$0xff]
        %v3639 = vld [vmem:[#allocation2 + $0x17] sm:$0x3f]
        %v3640 = vpack.c.bf16 %v3638, %v3637
        %v3641 = vpack.c.bf16 %v3639, %v3639
        %v3642 = vld [vmem:[%s7 + $0x100] sm:$0xf]
        %v3643 = vld [vmem:[%s7 + $0x104] sm:$0xf]
        %v3644 = vld [vmem:[%s7 + $0x108] sm:$0xf]
        %v3645 = vld [vmem:[%s7 + $0x10c] sm:$0xf]
        %v3646 = vld [vmem:[%s7 + $0x110] sm:$0xf]
        %v3647 = vld [vmem:[%s7 + $0x114] sm:$0xf]
        %v3648 = vld [vmem:[%s7 + $0x118] sm:$0xf]
        %v3649 = vld [vmem:[%s7 + $0x11c] sm:$0xf]
        %v3650 = vld [vmem:[%s7 + $0x120] sm:$0xf]
        %v3651 = vld [vmem:[%s7 + $0x124] sm:$0xf]
        %v3652 = vld [vmem:[%s7 + $0x128] sm:$0xf]
        %v3653 = vld [vmem:[%s7 + $0x12c] sm:$0xf]
        %v3654 = vld [vmem:[%s7 + $0x130] sm:$0xf]
        %v3655 = vld [vmem:[%s7 + $0x134] sm:$0xf]
        %v3656 = vld [vmem:[%s7 + $0x138] sm:$0xf]
        %v3657 = vld [vmem:[%s7 + $0x13c] sm:$0xf]
        %v3674 = vunpack.c.l.b16 %v3642
        %v3675 = vunpack.c.l.b16 %v3643
        %v3676 = vunpack.c.l.b16 %v3644
        %v3677 = vunpack.c.l.b16 %v3645
        %v3678 = vunpack.c.l.b16 %v3646
        %v3679 = vunpack.c.l.b16 %v3647
        %v3680 = vunpack.c.l.b16 %v3648
        %v3681 = vunpack.c.l.b16 %v3649
        %v3682 = vunpack.c.l.b16 %v3650
        %v3683 = vunpack.c.l.b16 %v3651
        %v3684 = vunpack.c.l.b16 %v3652
        %v3685 = vunpack.c.l.b16 %v3653
        %v3686 = vunpack.c.l.b16 %v3654
        %v3687 = vunpack.c.l.b16 %v3655
        %v3688 = vunpack.c.l.b16 %v3656
        %v3689 = vunpack.c.l.b16 %v3657
        %v3690 = vpack.c.b16 %v3675, %v3674
        %v3691 = vpack.c.b16 %v3677, %v3676
        %v3692 = vpack.c.b16 %v3679, %v3678
        %v3693 = vpack.c.b16 %v3681, %v3680
        %v3694 = vpack.c.b16 %v3683, %v3682
        %v3695 = vpack.c.b16 %v3685, %v3684
        %v3696 = vpack.c.b16 %v3687, %v3686
        %v3697 = vpack.c.b16 %v3689, %v3688
        %3706 = vmatprep.subr.bf16.mxu0 0
        %3707 = vmatpush1.bf16.msra.mxu0 %v3697
        %3708 = vmatprep.subr.bf16.mxu0 0
        %3709 = vmatpush1.bf16.msra.mxu0 %v3696
        %3710 = vmatprep.subr.bf16.mxu0 0
        %3711 = vmatpush1.bf16.msra.mxu0 %v3695
        %3712 = vmatprep.subr.bf16.mxu0 0
        %3713 = vmatpush1.bf16.msra.mxu0 %v3694
        %3714 = vmatprep.subr.bf16.mxu0 0
        %3715 = vmatpush1.bf16.msra.mxu0 %v3693
        %3716 = vmatprep.subr.bf16.mxu0 0
        %3717 = vmatpush1.bf16.msra.mxu0 %v3692
        %3718 = vmatprep.subr.bf16.mxu0 0
        %3719 = vmatpush1.bf16.msra.mxu0 %v3691
        %3720 = vmatprep.subr.bf16.mxu0 0
        %3721 = vmatpush1.bf16.msra.mxu0 %v3690
        %3722 = vmatprep.subr.bf16.mxu0 0
        %3723 = vmatpush2.bf16.msra.mxu0 0
        %3724 = vmatprep.subr.bf16.mxu0 0
        %3725 = vmatpush2.bf16.msra.mxu0 0
        %3726 = vmatprep.subr.bf16.mxu0 0
        %3727 = vmatpush2.bf16.msra.mxu0 0
        %3728 = vmatprep.subr.bf16.mxu0 0
        %3729 = vmatpush2.bf16.msra.mxu0 0
        %3730 = vmatprep.subr.bf16.mxu0 0
        %3731 = vmatpush2.bf16.msra.mxu0 0
        %3732 = vmatprep.subr.bf16.mxu0 0
        %3733 = vmatpush2.bf16.msra.mxu0 0
        %3734 = vmatprep.subr.bf16.mxu0 0
        %3735 = vmatpush2.bf16.msra.mxu0 0
        %3736 = vmatprep.subr.bf16.mxu0 0
        %3737 = vmatpush2.bf16.msra.mxu0 0
        %3738 = vmatprep.mubr.bf16.mxu0 0
        %3739 = vmatmul.mubr.bf16.gmra.mxu0 %v3640
        %v3740 = vpop.f32.mrf.mxu0
        %v3741 = vadd.f32 0.0, %v3740
        %v3742 = vpop.f32.mrf.mxu0
        %v3743 = vpop.f32.mrf.mxu0
        %v3744 = vadd.f32 0.0, %v3743
        %v3745 = vpop.f32.mrf.mxu0
        %3746 = vmatprep.mubr.bf16.mxu0 0
        %3747 = vmatmul.mubr.bf16.gmra.mxu0 %v3641
        %v3748 = vpop.f32.mrf.mxu0
        %v3749 = vadd.f32 0.0, %v3748
        %v3750 = vpop.f32.mrf.mxu0
        %v3751 = vpop.f32.mrf.mxu0
        %v3752 = vpop.f32.mrf.mxu0
        %3753 = vdwg.mxu0
        %v3754 = vadd.f32 %v3634, %v3741
        %v3755 = vadd.f32 %v3635, %v3744
        %v3756 = vadd.f32 %v3636, %v3749
        %v3757 = vld [vmem:[#allocation2 + $0x8] sm:$0xff]
        %v3758 = vld [vmem:[#allocation2 + $0x10] sm:$0xff]
        %v3759 = vld [vmem:[#allocation2 + $0x18] sm:$0x3f]
        %v3760 = vpack.c.bf16 %v3758, %v3757
        %v3761 = vpack.c.bf16 %v3759, %v3759
        %v3762 = vld [vmem:[%s7 + $0x140] sm:$0xf]
        %v3763 = vld [vmem:[%s7 + $0x144] sm:$0xf]
        %v3764 = vld [vmem:[%s7 + $0x148] sm:$0xf]
        %v3765 = vld [vmem:[%s7 + $0x14c] sm:$0xf]
        %v3766 = vld [vmem:[%s7 + $0x150] sm:$0xf]
        %v3767 = vld [vmem:[%s7 + $0x154] sm:$0xf]
        %v3768 = vld [vmem:[%s7 + $0x158] sm:$0xf]
        %v3769 = vld [vmem:[%s7 + $0x15c] sm:$0xf]
        %v3770 = vld [vmem:[%s7 + $0x160] sm:$0xf]
        %v3771 = vld [vmem:[%s7 + $0x164] sm:$0xf]
        %v3772 = vld [vmem:[%s7 + $0x168] sm:$0xf]
        %v3773 = vld [vmem:[%s7 + $0x16c] sm:$0xf]
        %v3774 = vld [vmem:[%s7 + $0x170] sm:$0xf]
        %v3775 = vld [vmem:[%s7 + $0x174] sm:$0xf]
        %v3776 = vld [vmem:[%s7 + $0x178] sm:$0xf]
        %v3777 = vld [vmem:[%s7 + $0x17c] sm:$0xf]
        %v3794 = vunpack.c.l.b16 %v3762
        %v3795 = vunpack.c.l.b16 %v3763
        %v3796 = vunpack.c.l.b16 %v3764
        %v3797 = vunpack.c.l.b16 %v3765
        %v3798 = vunpack.c.l.b16 %v3766
        %v3799 = vunpack.c.l.b16 %v3767
        %v3800 = vunpack.c.l.b16 %v3768
        %v3801 = vunpack.c.l.b16 %v3769
        %v3802 = vunpack.c.l.b16 %v3770
        %v3803 = vunpack.c.l.b16 %v3771
        %v3804 = vunpack.c.l.b16 %v3772
        %v3805 = vunpack.c.l.b16 %v3773
        %v3806 = vunpack.c.l.b16 %v3774
        %v3807 = vunpack.c.l.b16 %v3775
        %v3808 = vunpack.c.l.b16 %v3776
        %v3809 = vunpack.c.l.b16 %v3777
        %v3810 = vpack.c.b16 %v3795, %v3794
        %v3811 = vpack.c.b16 %v3797, %v3796
        %v3812 = vpack.c.b16 %v3799, %v3798
        %v3813 = vpack.c.b16 %v3801, %v3800
        %v3814 = vpack.c.b16 %v3803, %v3802
        %v3815 = vpack.c.b16 %v3805, %v3804
        %v3816 = vpack.c.b16 %v3807, %v3806
        %v3817 = vpack.c.b16 %v3809, %v3808
        %3826 = vmatprep.subr.bf16.mxu0 0
        %3827 = vmatpush1.bf16.msra.mxu0 %v3817
        %3828 = vmatprep.subr.bf16.mxu0 0
        %3829 = vmatpush1.bf16.msra.mxu0 %v3816
        %3830 = vmatprep.subr.bf16.mxu0 0
        %3831 = vmatpush1.bf16.msra.mxu0 %v3815
        %3832 = vmatprep.subr.bf16.mxu0 0
        %3833 = vmatpush1.bf16.msra.mxu0 %v3814
        %3834 = vmatprep.subr.bf16.mxu0 0
        %3835 = vmatpush1.bf16.msra.mxu0 %v3813
        %3836 = vmatprep.subr.bf16.mxu0 0
        %3837 = vmatpush1.bf16.msra.mxu0 %v3812
        %3838 = vmatprep.subr.bf16.mxu0 0
        %3839 = vmatpush1.bf16.msra.mxu0 %v3811
        %3840 = vmatprep.subr.bf16.mxu0 0
        %3841 = vmatpush1.bf16.msra.mxu0 %v3810
        %3842 = vmatprep.subr.bf16.mxu0 0
        %3843 = vmatpush2.bf16.msra.mxu0 0
        %3844 = vmatprep.subr.bf16.mxu0 0
        %3845 = vmatpush2.bf16.msra.mxu0 0
        %3846 = vmatprep.subr.bf16.mxu0 0
        %3847 = vmatpush2.bf16.msra.mxu0 0
        %3848 = vmatprep.subr.bf16.mxu0 0
        %3849 = vmatpush2.bf16.msra.mxu0 0
        %3850 = vmatprep.subr.bf16.mxu0 0
        %3851 = vmatpush2.bf16.msra.mxu0 0
        %3852 = vmatprep.subr.bf16.mxu0 0
        %3853 = vmatpush2.bf16.msra.mxu0 0
        %3854 = vmatprep.subr.bf16.mxu0 0
        %3855 = vmatpush2.bf16.msra.mxu0 0
        %3856 = vmatprep.subr.bf16.mxu0 0
        %3857 = vmatpush2.bf16.msra.mxu0 0
        %3858 = vmatprep.mubr.bf16.mxu0 0
        %3859 = vmatmul.mubr.bf16.gmra.mxu0 %v3760
        %v3860 = vpop.f32.mrf.mxu0
        %v3861 = vadd.f32 0.0, %v3860
        %v3862 = vpop.f32.mrf.mxu0
        %v3863 = vpop.f32.mrf.mxu0
        %v3864 = vadd.f32 0.0, %v3863
        %v3865 = vpop.f32.mrf.mxu0
        %3866 = vmatprep.mubr.bf16.mxu0 0
        %3867 = vmatmul.mubr.bf16.gmra.mxu0 %v3761
        %v3868 = vpop.f32.mrf.mxu0
        %v3869 = vadd.f32 0.0, %v3868
        %v3870 = vpop.f32.mrf.mxu0
        %v3871 = vpop.f32.mrf.mxu0
        %v3872 = vpop.f32.mrf.mxu0
        %3873 = vdwg.mxu0
        %v3874 = vadd.f32 %v3754, %v3861
        %v3875 = vadd.f32 %v3755, %v3864
        %v3876 = vadd.f32 %v3756, %v3869
        %v3877 = vld [vmem:[#allocation2 + $0xc] sm:$0xff]
        %v3878 = vld [vmem:[#allocation2 + $0x14] sm:$0xff]
        %v3879 = vld [vmem:[#allocation2 + $0x1c] sm:$0x3f]
        %v3880 = vpack.c.bf16 %v3878, %v3877
        %v3881 = vpack.c.bf16 %v3879, %v3879
        %v3882 = vld [vmem:[%s7 + $0x180] sm:$0xf]
        %v3883 = vld [vmem:[%s7 + $0x184] sm:$0xf]
        %v3884 = vld [vmem:[%s7 + $0x188] sm:$0xf]
        %v3885 = vld [vmem:[%s7 + $0x18c] sm:$0xf]
        %v3886 = vld [vmem:[%s7 + $0x190] sm:$0xf]
        %v3887 = vld [vmem:[%s7 + $0x194] sm:$0xf]
        %v3888 = vld [vmem:[%s7 + $0x198] sm:$0xf]
        %v3889 = vld [vmem:[%s7 + $0x19c] sm:$0xf]
        %v3890 = vld [vmem:[%s7 + $0x1a0] sm:$0xf]
        %v3891 = vld [vmem:[%s7 + $0x1a4] sm:$0xf]
        %v3892 = vld [vmem:[%s7 + $0x1a8] sm:$0xf]
        %v3893 = vld [vmem:[%s7 + $0x1ac] sm:$0xf]
        %v3894 = vld [vmem:[%s7 + $0x1b0] sm:$0xf]
        %v3895 = vld [vmem:[%s7 + $0x1b4] sm:$0xf]
        %v3896 = vld [vmem:[%s7 + $0x1b8] sm:$0xf]
        %v3897 = vld [vmem:[%s7 + $0x1bc] sm:$0xf]
        %v3914 = vunpack.c.l.b16 %v3882
        %v3915 = vunpack.c.l.b16 %v3883
        %v3916 = vunpack.c.l.b16 %v3884
        %v3917 = vunpack.c.l.b16 %v3885
        %v3918 = vunpack.c.l.b16 %v3886
        %v3919 = vunpack.c.l.b16 %v3887
        %v3920 = vunpack.c.l.b16 %v3888
        %v3921 = vunpack.c.l.b16 %v3889
        %v3922 = vunpack.c.l.b16 %v3890
        %v3923 = vunpack.c.l.b16 %v3891
        %v3924 = vunpack.c.l.b16 %v3892
        %v3925 = vunpack.c.l.b16 %v3893
        %v3926 = vunpack.c.l.b16 %v3894
        %v3927 = vunpack.c.l.b16 %v3895
        %v3928 = vunpack.c.l.b16 %v3896
        %v3929 = vunpack.c.l.b16 %v3897
        %v3930 = vpack.c.b16 %v3915, %v3914
        %v3931 = vpack.c.b16 %v3917, %v3916
        %v3932 = vpack.c.b16 %v3919, %v3918
        %v3933 = vpack.c.b16 %v3921, %v3920
        %v3934 = vpack.c.b16 %v3923, %v3922
        %v3935 = vpack.c.b16 %v3925, %v3924
        %v3936 = vpack.c.b16 %v3927, %v3926
        %v3937 = vpack.c.b16 %v3929, %v3928
        %3946 = vmatprep.subr.bf16.mxu0 0
        %3947 = vmatpush1.bf16.msra.mxu0 %v3937
        %3948 = vmatprep.subr.bf16.mxu0 0
        %3949 = vmatpush1.bf16.msra.mxu0 %v3936
        %3950 = vmatprep.subr.bf16.mxu0 0
        %3951 = vmatpush1.bf16.msra.mxu0 %v3935
        %3952 = vmatprep.subr.bf16.mxu0 0
        %3953 = vmatpush1.bf16.msra.mxu0 %v3934
        %3954 = vmatprep.subr.bf16.mxu0 0
        %3955 = vmatpush1.bf16.msra.mxu0 %v3933
        %3956 = vmatprep.subr.bf16.mxu0 0
        %3957 = vmatpush1.bf16.msra.mxu0 %v3932
        %3958 = vmatprep.subr.bf16.mxu0 0
        %3959 = vmatpush1.bf16.msra.mxu0 %v3931
        %3960 = vmatprep.subr.bf16.mxu0 0
        %3961 = vmatpush1.bf16.msra.mxu0 %v3930
        %3962 = vmatprep.subr.bf16.mxu0 0
        %3963 = vmatpush2.bf16.msra.mxu0 0
        %3964 = vmatprep.subr.bf16.mxu0 0
        %3965 = vmatpush2.bf16.msra.mxu0 0
        %3966 = vmatprep.subr.bf16.mxu0 0
        %3967 = vmatpush2.bf16.msra.mxu0 0
        %3968 = vmatprep.subr.bf16.mxu0 0
        %3969 = vmatpush2.bf16.msra.mxu0 0
        %3970 = vmatprep.subr.bf16.mxu0 0
        %3971 = vmatpush2.bf16.msra.mxu0 0
        %3972 = vmatprep.subr.bf16.mxu0 0
        %3973 = vmatpush2.bf16.msra.mxu0 0
        %3974 = vmatprep.subr.bf16.mxu0 0
        %3975 = vmatpush2.bf16.msra.mxu0 0
        %3976 = vmatprep.subr.bf16.mxu0 0
        %3977 = vmatpush2.bf16.msra.mxu0 0
        %3978 = vmatprep.mubr.bf16.mxu0 0
        %3979 = vmatmul.mubr.bf16.gmra.mxu0 %v3880
        %v3980 = vpop.f32.mrf.mxu0
        %v3981 = vadd.f32 0.0, %v3980
        %v3982 = vpop.f32.mrf.mxu0
        %v3983 = vpop.f32.mrf.mxu0
        %v3984 = vadd.f32 0.0, %v3983
        %v3985 = vpop.f32.mrf.mxu0
        %3986 = vmatprep.mubr.bf16.mxu0 0
        %3987 = vmatmul.mubr.bf16.gmra.mxu0 %v3881
        %v3988 = vpop.f32.mrf.mxu0
        %v3989 = vadd.f32 0.0, %v3988
        %v3990 = vpop.f32.mrf.mxu0
        %v3991 = vpop.f32.mrf.mxu0
        %v3992 = vpop.f32.mrf.mxu0
        %3993 = vdwg.mxu0
        %v3994 = vadd.f32 %v3874, %v3981
        %v3995 = vadd.f32 %v3875, %v3984
        %v3996 = vadd.f32 %v3876, %v3989
        %v3997 = vld [vmem:[#allocation2 + $0xd] sm:$0xff]
        %v3998 = vld [vmem:[#allocation2 + $0x15] sm:$0xff]
        %v3999 = vld [vmem:[#allocation2 + $0x1d] sm:$0x3f]
        %v4000 = vpack.c.bf16 %v3998, %v3997
        %v4001 = vpack.c.bf16 %v3999, %v3999
        %v4002 = vld [vmem:[%s7 + $0x1c0] sm:$0xf]
        %v4003 = vld [vmem:[%s7 + $0x1c4] sm:$0xf]
        %v4004 = vld [vmem:[%s7 + $0x1c8] sm:$0xf]
        %v4005 = vld [vmem:[%s7 + $0x1cc] sm:$0xf]
        %v4006 = vld [vmem:[%s7 + $0x1d0] sm:$0xf]
        %v4007 = vld [vmem:[%s7 + $0x1d4] sm:$0xf]
        %v4008 = vld [vmem:[%s7 + $0x1d8] sm:$0xf]
        %v4009 = vld [vmem:[%s7 + $0x1dc] sm:$0xf]
        %v4010 = vld [vmem:[%s7 + $0x1e0] sm:$0xf]
        %v4011 = vld [vmem:[%s7 + $0x1e4] sm:$0xf]
        %v4012 = vld [vmem:[%s7 + $0x1e8] sm:$0xf]
        %v4013 = vld [vmem:[%s7 + $0x1ec] sm:$0xf]
        %v4014 = vld [vmem:[%s7 + $0x1f0] sm:$0xf]
        %v4015 = vld [vmem:[%s7 + $0x1f4] sm:$0xf]
        %v4016 = vld [vmem:[%s7 + $0x1f8] sm:$0xf]
        %v4017 = vld [vmem:[%s7 + $0x1fc] sm:$0xf]
        %v4034 = vunpack.c.l.b16 %v4002
        %v4035 = vunpack.c.l.b16 %v4003
        %v4036 = vunpack.c.l.b16 %v4004
        %v4037 = vunpack.c.l.b16 %v4005
        %v4038 = vunpack.c.l.b16 %v4006
        %v4039 = vunpack.c.l.b16 %v4007
        %v4040 = vunpack.c.l.b16 %v4008
        %v4041 = vunpack.c.l.b16 %v4009
        %v4042 = vunpack.c.l.b16 %v4010
        %v4043 = vunpack.c.l.b16 %v4011
        %v4044 = vunpack.c.l.b16 %v4012
        %v4045 = vunpack.c.l.b16 %v4013
        %v4046 = vunpack.c.l.b16 %v4014
        %v4047 = vunpack.c.l.b16 %v4015
        %v4048 = vunpack.c.l.b16 %v4016
        %v4049 = vunpack.c.l.b16 %v4017
        %v4050 = vpack.c.b16 %v4035, %v4034
        %v4051 = vpack.c.b16 %v4037, %v4036
        %v4052 = vpack.c.b16 %v4039, %v4038
        %v4053 = vpack.c.b16 %v4041, %v4040
        %v4054 = vpack.c.b16 %v4043, %v4042
        %v4055 = vpack.c.b16 %v4045, %v4044
        %v4056 = vpack.c.b16 %v4047, %v4046
        %v4057 = vpack.c.b16 %v4049, %v4048
        %4066 = vmatprep.subr.bf16.mxu0 0
        %4067 = vmatpush1.bf16.msra.mxu0 %v4057
        %4068 = vmatprep.subr.bf16.mxu0 0
        %4069 = vmatpush1.bf16.msra.mxu0 %v4056
        %4070 = vmatprep.subr.bf16.mxu0 0
        %4071 = vmatpush1.bf16.msra.mxu0 %v4055
        %4072 = vmatprep.subr.bf16.mxu0 0
        %4073 = vmatpush1.bf16.msra.mxu0 %v4054
        %4074 = vmatprep.subr.bf16.mxu0 0
        %4075 = vmatpush1.bf16.msra.mxu0 %v4053
        %4076 = vmatprep.subr.bf16.mxu0 0
        %4077 = vmatpush1.bf16.msra.mxu0 %v4052
        %4078 = vmatprep.subr.bf16.mxu0 0
        %4079 = vmatpush1.bf16.msra.mxu0 %v4051
        %4080 = vmatprep.subr.bf16.mxu0 0
        %4081 = vmatpush1.bf16.msra.mxu0 %v4050
        %4082 = vmatprep.subr.bf16.mxu0 0
        %4083 = vmatpush2.bf16.msra.mxu0 0
        %4084 = vmatprep.subr.bf16.mxu0 0
        %4085 = vmatpush2.bf16.msra.mxu0 0
        %4086 = vmatprep.subr.bf16.mxu0 0
        %4087 = vmatpush2.bf16.msra.mxu0 0
        %4088 = vmatprep.subr.bf16.mxu0 0
        %4089 = vmatpush2.bf16.msra.mxu0 0
        %4090 = vmatprep.subr.bf16.mxu0 0
        %4091 = vmatpush2.bf16.msra.mxu0 0
        %4092 = vmatprep.subr.bf16.mxu0 0
        %4093 = vmatpush2.bf16.msra.mxu0 0
        %4094 = vmatprep.subr.bf16.mxu0 0
        %4095 = vmatpush2.bf16.msra.mxu0 0
        %4096 = vmatprep.subr.bf16.mxu0 0
        %4097 = vmatpush2.bf16.msra.mxu0 0
        %4098 = vmatprep.mubr.bf16.mxu0 0
        %4099 = vmatmul.mubr.bf16.gmra.mxu0 %v4000
        %v4100 = vpop.f32.mrf.mxu0
        %v4101 = vadd.f32 0.0, %v4100
        %v4102 = vpop.f32.mrf.mxu0
        %v4103 = vpop.f32.mrf.mxu0
        %v4104 = vadd.f32 0.0, %v4103
        %v4105 = vpop.f32.mrf.mxu0
        %4106 = vmatprep.mubr.bf16.mxu0 0
        %4107 = vmatmul.mubr.bf16.gmra.mxu0 %v4001
        %v4108 = vpop.f32.mrf.mxu0
        %v4109 = vadd.f32 0.0, %v4108
        %v4110 = vpop.f32.mrf.mxu0
        %v4111 = vpop.f32.mrf.mxu0
        %v4112 = vpop.f32.mrf.mxu0
        %4113 = vdwg.mxu0
        %v4114 = vadd.f32 %v3994, %v4101
        %v4115 = vadd.f32 %v3995, %v4104
        %v4116 = vadd.f32 %v3996, %v4109
        %v4117 = vld [vmem:[#allocation2 + $0xe] sm:$0xff]
        %v4118 = vld [vmem:[#allocation2 + $0x16] sm:$0xff]
        %v4119 = vld [vmem:[#allocation2 + $0x1e] sm:$0x3f]
        %v4120 = vpack.c.bf16 %v4118, %v4117
        %v4121 = vpack.c.bf16 %v4119, %v4119
        %v4122 = vld [vmem:[%s7 + $0x200] sm:$0xf]
        %v4123 = vld [vmem:[%s7 + $0x204] sm:$0xf]
        %v4124 = vld [vmem:[%s7 + $0x208] sm:$0xf]
        %v4125 = vld [vmem:[%s7 + $0x20c] sm:$0xf]
        %v4126 = vld [vmem:[%s7 + $0x210] sm:$0xf]
        %v4127 = vld [vmem:[%s7 + $0x214] sm:$0xf]
        %v4128 = vld [vmem:[%s7 + $0x218] sm:$0xf]
        %v4129 = vld [vmem:[%s7 + $0x21c] sm:$0xf]
        %v4130 = vld [vmem:[%s7 + $0x220] sm:$0xf]
        %v4131 = vld [vmem:[%s7 + $0x224] sm:$0xf]
        %v4132 = vld [vmem:[%s7 + $0x228] sm:$0xf]
        %v4133 = vld [vmem:[%s7 + $0x22c] sm:$0xf]
        %v4134 = vld [vmem:[%s7 + $0x230] sm:$0xf]
        %v4135 = vld [vmem:[%s7 + $0x234] sm:$0xf]
        %v4136 = vld [vmem:[%s7 + $0x238] sm:$0xf]
        %v4137 = vld [vmem:[%s7 + $0x23c] sm:$0xf]
        %v4154 = vunpack.c.l.b16 %v4122
        %v4155 = vunpack.c.l.b16 %v4123
        %v4156 = vunpack.c.l.b16 %v4124
        %v4157 = vunpack.c.l.b16 %v4125
        %v4158 = vunpack.c.l.b16 %v4126
        %v4159 = vunpack.c.l.b16 %v4127
        %v4160 = vunpack.c.l.b16 %v4128
        %v4161 = vunpack.c.l.b16 %v4129
        %v4162 = vunpack.c.l.b16 %v4130
        %v4163 = vunpack.c.l.b16 %v4131
        %v4164 = vunpack.c.l.b16 %v4132
        %v4165 = vunpack.c.l.b16 %v4133
        %v4166 = vunpack.c.l.b16 %v4134
        %v4167 = vunpack.c.l.b16 %v4135
        %v4168 = vunpack.c.l.b16 %v4136
        %v4169 = vunpack.c.l.b16 %v4137
        %v4170 = vpack.c.b16 %v4155, %v4154
        %v4171 = vpack.c.b16 %v4157, %v4156
        %v4172 = vpack.c.b16 %v4159, %v4158
        %v4173 = vpack.c.b16 %v4161, %v4160
        %v4174 = vpack.c.b16 %v4163, %v4162
        %v4175 = vpack.c.b16 %v4165, %v4164
        %v4176 = vpack.c.b16 %v4167, %v4166
        %v4177 = vpack.c.b16 %v4169, %v4168
        %4186 = vmatprep.subr.bf16.mxu0 0
        %4187 = vmatpush1.bf16.msra.mxu0 %v4177
        %4188 = vmatprep.subr.bf16.mxu0 0
        %4189 = vmatpush1.bf16.msra.mxu0 %v4176
        %4190 = vmatprep.subr.bf16.mxu0 0
        %4191 = vmatpush1.bf16.msra.mxu0 %v4175
        %4192 = vmatprep.subr.bf16.mxu0 0
        %4193 = vmatpush1.bf16.msra.mxu0 %v4174
        %4194 = vmatprep.subr.bf16.mxu0 0
        %4195 = vmatpush1.bf16.msra.mxu0 %v4173
        %4196 = vmatprep.subr.bf16.mxu0 0
        %4197 = vmatpush1.bf16.msra.mxu0 %v4172
        %4198 = vmatprep.subr.bf16.mxu0 0
        %4199 = vmatpush1.bf16.msra.mxu0 %v4171
        %4200 = vmatprep.subr.bf16.mxu0 0
        %4201 = vmatpush1.bf16.msra.mxu0 %v4170
        %4202 = vmatprep.subr.bf16.mxu0 0
        %4203 = vmatpush2.bf16.msra.mxu0 0
        %4204 = vmatprep.subr.bf16.mxu0 0
        %4205 = vmatpush2.bf16.msra.mxu0 0
        %4206 = vmatprep.subr.bf16.mxu0 0
        %4207 = vmatpush2.bf16.msra.mxu0 0
        %4208 = vmatprep.subr.bf16.mxu0 0
        %4209 = vmatpush2.bf16.msra.mxu0 0
        %4210 = vmatprep.subr.bf16.mxu0 0
        %4211 = vmatpush2.bf16.msra.mxu0 0
        %4212 = vmatprep.subr.bf16.mxu0 0
        %4213 = vmatpush2.bf16.msra.mxu0 0
        %4214 = vmatprep.subr.bf16.mxu0 0
        %4215 = vmatpush2.bf16.msra.mxu0 0
        %4216 = vmatprep.subr.bf16.mxu0 0
        %4217 = vmatpush2.bf16.msra.mxu0 0
        %4218 = vmatprep.mubr.bf16.mxu0 0
        %4219 = vmatmul.mubr.bf16.gmra.mxu0 %v4120
        %v4220 = vpop.f32.mrf.mxu0
        %v4221 = vadd.f32 0.0, %v4220
        %v4222 = vpop.f32.mrf.mxu0
        %v4223 = vpop.f32.mrf.mxu0
        %v4224 = vadd.f32 0.0, %v4223
        %v4225 = vpop.f32.mrf.mxu0
        %4226 = vmatprep.mubr.bf16.mxu0 0
        %4227 = vmatmul.mubr.bf16.gmra.mxu0 %v4121
        %v4228 = vpop.f32.mrf.mxu0
        %v4229 = vadd.f32 0.0, %v4228
        %v4230 = vpop.f32.mrf.mxu0
        %v4231 = vpop.f32.mrf.mxu0
        %v4232 = vpop.f32.mrf.mxu0
        %4233 = vdwg.mxu0
        %v4234 = vadd.f32 %v4114, %v4221
        %v4235 = vadd.f32 %v4115, %v4224
        %v4236 = vadd.f32 %v4116, %v4229
        %v4239 = vrot.slane %v4234, 2
        %v4240 = vrot.slane %v4235, 2
        %v4241 = vsel %vm2022, %v4239, %v4240
        %v4243 = vrot.slane %v4235, 4
        %v4246 = vrot.slane %v4236, 6
        %v4248 = vsel %vm934, %v4234, %v4241
        %v4249 = vsel %vm934, %v4243, %v4246
        %v4250 = vld [vmem:[%s8] sm:$0x1]
        %v4252 = vlaneseq
        %v4253 = vshrl.u32 %v4252, 7
        %v4254 = vsub.s32 0, %v4253
        %v4255 = vrot.slane %v4250, %v4254
        %v4257 = vadd.f32 %v4248, %v4255
        %v4258 = vadd.f32 %v4249, %v4255
        %v4259 = vmax.f32 %v4257, 0.0
        %v4260 = vmax.f32 %v4258, 0.0
        %4261 = vst [vmem:[#allocation3] sm:$0xff] 0.0
        %4262 = vst [vmem:[#allocation3 + $0x8] sm:$0xff] 0.0
        %4263 = vst [vmem:[#allocation3 + $0x10] sm:$0xff] 0.0
        %4264 = vst [vmem:[#allocation3 + $0x18] sm:$0xff] 0.0
        %4265 = vst [vmem:[#allocation3 + $0x20] sm:$0xf] 0.0
        %4266 = vst [vmem:[#allocation3 + $0x7] sm:$0xf] %v4259
        %4267 = vst [vmem:[#allocation3 + $0x9] sm:$0xf0] %v4259
        %4268 = vst [vmem:[#allocation3 + $0x13] sm:$0xf] %v4260
        %4269 = vst [vmem:[#allocation3 + $0x15] sm:$0xf0] %v4260
        %v4270 = vld [vmem:[#allocation3] sm:$0xff]
        %v4271 = vld [vmem:[#allocation3 + $0x8] sm:$0xff]
        %v4272 = vld [vmem:[#allocation3 + $0x10] sm:$0x3f]
        %v4273 = vpack.c.bf16 %v4271, %v4270
        %v4274 = vpack.c.bf16 %v4272, %v4272
        %v4275 = vld [vmem:[%s9] sm:$0xf]
        %v4276 = vld [vmem:[%s9 + $0x4] sm:$0xf]
        %v4277 = vld [vmem:[%s9 + $0x8] sm:$0xf]
        %v4278 = vld [vmem:[%s9 + $0xc] sm:$0xf]
        %v4279 = vld [vmem:[%s9 + $0x10] sm:$0xf]
        %v4280 = vld [vmem:[%s9 + $0x14] sm:$0xf]
        %v4281 = vld [vmem:[%s9 + $0x18] sm:$0xf]
        %v4282 = vld [vmem:[%s9 + $0x1c] sm:$0xf]
        %v4283 = vld [vmem:[%s9 + $0x20] sm:$0xf]
        %v4284 = vld [vmem:[%s9 + $0x24] sm:$0xf]
        %v4285 = vld [vmem:[%s9 + $0x28] sm:$0xf]
        %v4286 = vld [vmem:[%s9 + $0x2c] sm:$0xf]
        %v4287 = vld [vmem:[%s9 + $0x30] sm:$0xf]
        %v4288 = vld [vmem:[%s9 + $0x34] sm:$0xf]
        %v4289 = vld [vmem:[%s9 + $0x38] sm:$0xf]
        %v4290 = vld [vmem:[%s9 + $0x3c] sm:$0xf]
        %v4291 = vld [vmem:[#allocation3 + $0x1] sm:$0xff]
        %v4292 = vld [vmem:[#allocation3 + $0x9] sm:$0xff]
        %v4293 = vld [vmem:[#allocation3 + $0x11] sm:$0x3f]
        %v4294 = vpack.c.bf16 %v4292, %v4291
        %v4295 = vpack.c.bf16 %v4293, %v4293
        %v4296 = vld [vmem:[%s9 + $0x40] sm:$0xf]
        %v4297 = vld [vmem:[%s9 + $0x44] sm:$0xf]
        %v4298 = vld [vmem:[%s9 + $0x48] sm:$0xf]
        %v4299 = vld [vmem:[%s9 + $0x4c] sm:$0xf]
        %v4300 = vld [vmem:[%s9 + $0x50] sm:$0xf]
        %v4301 = vld [vmem:[%s9 + $0x54] sm:$0xf]
        %v4302 = vld [vmem:[%s9 + $0x58] sm:$0xf]
        %v4303 = vld [vmem:[%s9 + $0x5c] sm:$0xf]
        %v4304 = vld [vmem:[%s9 + $0x60] sm:$0xf]
        %v4305 = vld [vmem:[%s9 + $0x64] sm:$0xf]
        %v4306 = vld [vmem:[%s9 + $0x68] sm:$0xf]
        %v4307 = vld [vmem:[%s9 + $0x6c] sm:$0xf]
        %v4308 = vld [vmem:[%s9 + $0x70] sm:$0xf]
        %v4309 = vld [vmem:[%s9 + $0x74] sm:$0xf]
        %v4310 = vld [vmem:[%s9 + $0x78] sm:$0xf]
        %v4311 = vld [vmem:[%s9 + $0x7c] sm:$0xf]
        %v4328 = vunpack.c.l.b16 %v4296
        %v4329 = vunpack.c.l.b16 %v4297
        %v4330 = vunpack.c.l.b16 %v4298
        %v4331 = vunpack.c.l.b16 %v4299
        %v4332 = vunpack.c.l.b16 %v4300
        %v4333 = vunpack.c.l.b16 %v4301
        %v4334 = vunpack.c.l.b16 %v4302
        %v4335 = vunpack.c.l.b16 %v4303
        %v4336 = vunpack.c.l.b16 %v4304
        %v4337 = vunpack.c.l.b16 %v4305
        %v4338 = vunpack.c.l.b16 %v4306
        %v4339 = vunpack.c.l.b16 %v4307
        %v4340 = vunpack.c.l.b16 %v4308
        %v4341 = vunpack.c.l.b16 %v4309
        %v4342 = vunpack.c.l.b16 %v4310
        %v4343 = vunpack.c.l.b16 %v4311
        %v4344 = vpack.c.b16 %v4329, %v4328
        %v4345 = vpack.c.b16 %v4331, %v4330
        %v4346 = vpack.c.b16 %v4333, %v4332
        %v4347 = vpack.c.b16 %v4335, %v4334
        %v4348 = vpack.c.b16 %v4337, %v4336
        %v4349 = vpack.c.b16 %v4339, %v4338
        %v4350 = vpack.c.b16 %v4341, %v4340
        %v4351 = vpack.c.b16 %v4343, %v4342
        %4360 = vmatprep.subr.bf16.mxu0 0
        %4361 = vmatpush1.bf16.msra.mxu0 %v4351
        %4362 = vmatprep.subr.bf16.mxu0 0
        %4363 = vmatpush1.bf16.msra.mxu0 %v4350
        %4364 = vmatprep.subr.bf16.mxu0 0
        %4365 = vmatpush1.bf16.msra.mxu0 %v4349
        %4366 = vmatprep.subr.bf16.mxu0 0
        %4367 = vmatpush1.bf16.msra.mxu0 %v4348
        %4368 = vmatprep.subr.bf16.mxu0 0
        %4369 = vmatpush1.bf16.msra.mxu0 %v4347
        %4370 = vmatprep.subr.bf16.mxu0 0
        %4371 = vmatpush1.bf16.msra.mxu0 %v4346
        %4372 = vmatprep.subr.bf16.mxu0 0
        %4373 = vmatpush1.bf16.msra.mxu0 %v4345
        %4374 = vmatprep.subr.bf16.mxu0 0
        %4375 = vmatpush1.bf16.msra.mxu0 %v4344
        %4376 = vmatprep.subr.bf16.mxu0 0
        %4377 = vmatpush2.bf16.msra.mxu0 0
        %4378 = vmatprep.subr.bf16.mxu0 0
        %4379 = vmatpush2.bf16.msra.mxu0 0
        %4380 = vmatprep.subr.bf16.mxu0 0
        %4381 = vmatpush2.bf16.msra.mxu0 0
        %4382 = vmatprep.subr.bf16.mxu0 0
        %4383 = vmatpush2.bf16.msra.mxu0 0
        %4384 = vmatprep.subr.bf16.mxu0 0
        %4385 = vmatpush2.bf16.msra.mxu0 0
        %4386 = vmatprep.subr.bf16.mxu0 0
        %4387 = vmatpush2.bf16.msra.mxu0 0
        %4388 = vmatprep.subr.bf16.mxu0 0
        %4389 = vmatpush2.bf16.msra.mxu0 0
        %4390 = vmatprep.subr.bf16.mxu0 0
        %4391 = vmatpush2.bf16.msra.mxu0 0
        %4392 = vmatprep.mubr.bf16.mxu0 0
        %4393 = vmatmul.mubr.bf16.gmra.mxu0 %v4294
        %v4394 = vpop.f32.mrf.mxu0
        %v4395 = vadd.f32 0.0, %v4394
        %v4396 = vpop.f32.mrf.mxu0
        %v4397 = vpop.f32.mrf.mxu0
        %v4398 = vadd.f32 0.0, %v4397
        %v4399 = vpop.f32.mrf.mxu0
        %4400 = vmatprep.mubr.bf16.mxu0 0
        %4401 = vmatmul.mubr.bf16.gmra.mxu0 %v4295
        %v4402 = vpop.f32.mrf.mxu0
        %v4403 = vadd.f32 0.0, %v4402
        %v4404 = vpop.f32.mrf.mxu0
        %v4405 = vpop.f32.mrf.mxu0
        %v4406 = vpop.f32.mrf.mxu0
        %4407 = vdwg.mxu0
        %v4424 = vunpack.c.l.b16 %v4275
        %v4425 = vunpack.c.l.b16 %v4276
        %v4426 = vunpack.c.l.b16 %v4277
        %v4427 = vunpack.c.l.b16 %v4278
        %v4428 = vunpack.c.l.b16 %v4279
        %v4429 = vunpack.c.l.b16 %v4280
        %v4430 = vunpack.c.l.b16 %v4281
        %v4431 = vunpack.c.l.b16 %v4282
        %v4432 = vunpack.c.l.b16 %v4283
        %v4433 = vunpack.c.l.b16 %v4284
        %v4434 = vunpack.c.l.b16 %v4285
        %v4435 = vunpack.c.l.b16 %v4286
        %v4436 = vunpack.c.l.b16 %v4287
        %v4437 = vunpack.c.l.b16 %v4288
        %v4438 = vunpack.c.l.b16 %v4289
        %v4439 = vunpack.c.l.b16 %v4290
        %v4440 = vpack.c.b16 %v4425, %v4424
        %v4441 = vpack.c.b16 %v4427, %v4426
        %v4442 = vpack.c.b16 %v4429, %v4428
        %v4443 = vpack.c.b16 %v4431, %v4430
        %v4444 = vpack.c.b16 %v4433, %v4432
        %v4445 = vpack.c.b16 %v4435, %v4434
        %v4446 = vpack.c.b16 %v4437, %v4436
        %v4447 = vpack.c.b16 %v4439, %v4438
        %4456 = vmatprep.subr.bf16.mxu0 0
        %4457 = vmatpush1.bf16.msra.mxu0 %v4447
        %4458 = vmatprep.subr.bf16.mxu0 0
        %4459 = vmatpush1.bf16.msra.mxu0 %v4446
        %4460 = vmatprep.subr.bf16.mxu0 0
        %4461 = vmatpush1.bf16.msra.mxu0 %v4445
        %4462 = vmatprep.subr.bf16.mxu0 0
        %4463 = vmatpush1.bf16.msra.mxu0 %v4444
        %4464 = vmatprep.subr.bf16.mxu0 0
        %4465 = vmatpush1.bf16.msra.mxu0 %v4443
        %4466 = vmatprep.subr.bf16.mxu0 0
        %4467 = vmatpush1.bf16.msra.mxu0 %v4442
        %4468 = vmatprep.subr.bf16.mxu0 0
        %4469 = vmatpush1.bf16.msra.mxu0 %v4441
        %4470 = vmatprep.subr.bf16.mxu0 0
        %4471 = vmatpush1.bf16.msra.mxu0 %v4440
        %4472 = vmatprep.subr.bf16.mxu0 0
        %4473 = vmatpush2.bf16.msra.mxu0 0
        %4474 = vmatprep.subr.bf16.mxu0 0
        %4475 = vmatpush2.bf16.msra.mxu0 0
        %4476 = vmatprep.subr.bf16.mxu0 0
        %4477 = vmatpush2.bf16.msra.mxu0 0
        %4478 = vmatprep.subr.bf16.mxu0 0
        %4479 = vmatpush2.bf16.msra.mxu0 0
        %4480 = vmatprep.subr.bf16.mxu0 0
        %4481 = vmatpush2.bf16.msra.mxu0 0
        %4482 = vmatprep.subr.bf16.mxu0 0
        %4483 = vmatpush2.bf16.msra.mxu0 0
        %4484 = vmatprep.subr.bf16.mxu0 0
        %4485 = vmatpush2.bf16.msra.mxu0 0
        %4486 = vmatprep.subr.bf16.mxu0 0
        %4487 = vmatpush2.bf16.msra.mxu0 0
        %4488 = vmatprep.mubr.bf16.mxu0 0
        %4489 = vmatmul.mubr.bf16.gmra.mxu0 %v4273
        %v4490 = vpop.f32.mrf.mxu0
        %v4491 = vadd.f32 %v4395, %v4490
        %v4492 = vpop.f32.mrf.mxu0
        %v4493 = vpop.f32.mrf.mxu0
        %v4494 = vadd.f32 %v4398, %v4493
        %v4495 = vpop.f32.mrf.mxu0
        %4496 = vmatprep.mubr.bf16.mxu0 0
        %4497 = vmatmul.mubr.bf16.gmra.mxu0 %v4274
        %v4498 = vpop.f32.mrf.mxu0
        %v4499 = vadd.f32 %v4403, %v4498
        %v4500 = vpop.f32.mrf.mxu0
        %v4501 = vpop.f32.mrf.mxu0
        %v4502 = vpop.f32.mrf.mxu0
        %4503 = vdwg.mxu0
        %v4504 = vld [vmem:[#allocation3 + $0x2] sm:$0xff]
        %v4505 = vld [vmem:[#allocation3 + $0xa] sm:$0xff]
        %v4506 = vld [vmem:[#allocation3 + $0x12] sm:$0x3f]
        %v4507 = vpack.c.bf16 %v4505, %v4504
        %v4508 = vpack.c.bf16 %v4506, %v4506
        %v4509 = vld [vmem:[%s9 + $0x80] sm:$0xf]
        %v4510 = vld [vmem:[%s9 + $0x84] sm:$0xf]
        %v4511 = vld [vmem:[%s9 + $0x88] sm:$0xf]
        %v4512 = vld [vmem:[%s9 + $0x8c] sm:$0xf]
        %v4513 = vld [vmem:[%s9 + $0x90] sm:$0xf]
        %v4514 = vld [vmem:[%s9 + $0x94] sm:$0xf]
        %v4515 = vld [vmem:[%s9 + $0x98] sm:$0xf]
        %v4516 = vld [vmem:[%s9 + $0x9c] sm:$0xf]
        %v4517 = vld [vmem:[%s9 + $0xa0] sm:$0xf]
        %v4518 = vld [vmem:[%s9 + $0xa4] sm:$0xf]
        %v4519 = vld [vmem:[%s9 + $0xa8] sm:$0xf]
        %v4520 = vld [vmem:[%s9 + $0xac] sm:$0xf]
        %v4521 = vld [vmem:[%s9 + $0xb0] sm:$0xf]
        %v4522 = vld [vmem:[%s9 + $0xb4] sm:$0xf]
        %v4523 = vld [vmem:[%s9 + $0xb8] sm:$0xf]
        %v4524 = vld [vmem:[%s9 + $0xbc] sm:$0xf]
        %v4541 = vunpack.c.l.b16 %v4509
        %v4542 = vunpack.c.l.b16 %v4510
        %v4543 = vunpack.c.l.b16 %v4511
        %v4544 = vunpack.c.l.b16 %v4512
        %v4545 = vunpack.c.l.b16 %v4513
        %v4546 = vunpack.c.l.b16 %v4514
        %v4547 = vunpack.c.l.b16 %v4515
        %v4548 = vunpack.c.l.b16 %v4516
        %v4549 = vunpack.c.l.b16 %v4517
        %v4550 = vunpack.c.l.b16 %v4518
        %v4551 = vunpack.c.l.b16 %v4519
        %v4552 = vunpack.c.l.b16 %v4520
        %v4553 = vunpack.c.l.b16 %v4521
        %v4554 = vunpack.c.l.b16 %v4522
        %v4555 = vunpack.c.l.b16 %v4523
        %v4556 = vunpack.c.l.b16 %v4524
        %v4557 = vpack.c.b16 %v4542, %v4541
        %v4558 = vpack.c.b16 %v4544, %v4543
        %v4559 = vpack.c.b16 %v4546, %v4545
        %v4560 = vpack.c.b16 %v4548, %v4547
        %v4561 = vpack.c.b16 %v4550, %v4549
        %v4562 = vpack.c.b16 %v4552, %v4551
        %v4563 = vpack.c.b16 %v4554, %v4553
        %v4564 = vpack.c.b16 %v4556, %v4555
        %4573 = vmatprep.subr.bf16.mxu0 0
        %4574 = vmatpush1.bf16.msra.mxu0 %v4564
        %4575 = vmatprep.subr.bf16.mxu0 0
        %4576 = vmatpush1.bf16.msra.mxu0 %v4563
        %4577 = vmatprep.subr.bf16.mxu0 0
        %4578 = vmatpush1.bf16.msra.mxu0 %v4562
        %4579 = vmatprep.subr.bf16.mxu0 0
        %4580 = vmatpush1.bf16.msra.mxu0 %v4561
        %4581 = vmatprep.subr.bf16.mxu0 0
        %4582 = vmatpush1.bf16.msra.mxu0 %v4560
        %4583 = vmatprep.subr.bf16.mxu0 0
        %4584 = vmatpush1.bf16.msra.mxu0 %v4559
        %4585 = vmatprep.subr.bf16.mxu0 0
        %4586 = vmatpush1.bf16.msra.mxu0 %v4558
        %4587 = vmatprep.subr.bf16.mxu0 0
        %4588 = vmatpush1.bf16.msra.mxu0 %v4557
        %4589 = vmatprep.subr.bf16.mxu0 0
        %4590 = vmatpush2.bf16.msra.mxu0 0
        %4591 = vmatprep.subr.bf16.mxu0 0
        %4592 = vmatpush2.bf16.msra.mxu0 0
        %4593 = vmatprep.subr.bf16.mxu0 0
        %4594 = vmatpush2.bf16.msra.mxu0 0
        %4595 = vmatprep.subr.bf16.mxu0 0
        %4596 = vmatpush2.bf16.msra.mxu0 0
        %4597 = vmatprep.subr.bf16.mxu0 0
        %4598 = vmatpush2.bf16.msra.mxu0 0
        %4599 = vmatprep.subr.bf16.mxu0 0
        %4600 = vmatpush2.bf16.msra.mxu0 0
        %4601 = vmatprep.subr.bf16.mxu0 0
        %4602 = vmatpush2.bf16.msra.mxu0 0
        %4603 = vmatprep.subr.bf16.mxu0 0
        %4604 = vmatpush2.bf16.msra.mxu0 0
        %4605 = vmatprep.mubr.bf16.mxu0 0
        %4606 = vmatmul.mubr.bf16.gmra.mxu0 %v4507
        %v4607 = vpop.f32.mrf.mxu0
        %v4608 = vadd.f32 0.0, %v4607
        %v4609 = vpop.f32.mrf.mxu0
        %v4610 = vpop.f32.mrf.mxu0
        %v4611 = vadd.f32 0.0, %v4610
        %v4612 = vpop.f32.mrf.mxu0
        %4613 = vmatprep.mubr.bf16.mxu0 0
        %4614 = vmatmul.mubr.bf16.gmra.mxu0 %v4508
        %v4615 = vpop.f32.mrf.mxu0
        %v4616 = vadd.f32 0.0, %v4615
        %v4617 = vpop.f32.mrf.mxu0
        %v4618 = vpop.f32.mrf.mxu0
        %v4619 = vpop.f32.mrf.mxu0
        %4620 = vdwg.mxu0
        %v4621 = vadd.f32 %v4491, %v4608
        %v4622 = vadd.f32 %v4494, %v4611
        %v4623 = vadd.f32 %v4499, %v4616
        %v4624 = vld [vmem:[#allocation3 + $0x6] sm:$0xff]
        %v4625 = vld [vmem:[#allocation3 + $0xe] sm:$0xff]
        %v4626 = vld [vmem:[#allocation3 + $0x16] sm:$0x3f]
        %v4627 = vpack.c.bf16 %v4625, %v4624
        %v4628 = vpack.c.bf16 %v4626, %v4626
        %v4629 = vld [vmem:[%s9 + $0xc0] sm:$0xf]
        %v4630 = vld [vmem:[%s9 + $0xc4] sm:$0xf]
        %v4631 = vld [vmem:[%s9 + $0xc8] sm:$0xf]
        %v4632 = vld [vmem:[%s9 + $0xcc] sm:$0xf]
        %v4633 = vld [vmem:[%s9 + $0xd0] sm:$0xf]
        %v4634 = vld [vmem:[%s9 + $0xd4] sm:$0xf]
        %v4635 = vld [vmem:[%s9 + $0xd8] sm:$0xf]
        %v4636 = vld [vmem:[%s9 + $0xdc] sm:$0xf]
        %v4637 = vld [vmem:[%s9 + $0xe0] sm:$0xf]
        %v4638 = vld [vmem:[%s9 + $0xe4] sm:$0xf]
        %v4639 = vld [vmem:[%s9 + $0xe8] sm:$0xf]
        %v4640 = vld [vmem:[%s9 + $0xec] sm:$0xf]
        %v4641 = vld [vmem:[%s9 + $0xf0] sm:$0xf]
        %v4642 = vld [vmem:[%s9 + $0xf4] sm:$0xf]
        %v4643 = vld [vmem:[%s9 + $0xf8] sm:$0xf]
        %v4644 = vld [vmem:[%s9 + $0xfc] sm:$0xf]
        %v4661 = vunpack.c.l.b16 %v4629
        %v4662 = vunpack.c.l.b16 %v4630
        %v4663 = vunpack.c.l.b16 %v4631
        %v4664 = vunpack.c.l.b16 %v4632
        %v4665 = vunpack.c.l.b16 %v4633
        %v4666 = vunpack.c.l.b16 %v4634
        %v4667 = vunpack.c.l.b16 %v4635
        %v4668 = vunpack.c.l.b16 %v4636
        %v4669 = vunpack.c.l.b16 %v4637
        %v4670 = vunpack.c.l.b16 %v4638
        %v4671 = vunpack.c.l.b16 %v4639
        %v4672 = vunpack.c.l.b16 %v4640
        %v4673 = vunpack.c.l.b16 %v4641
        %v4674 = vunpack.c.l.b16 %v4642
        %v4675 = vunpack.c.l.b16 %v4643
        %v4676 = vunpack.c.l.b16 %v4644
        %v4677 = vpack.c.b16 %v4662, %v4661
        %v4678 = vpack.c.b16 %v4664, %v4663
        %v4679 = vpack.c.b16 %v4666, %v4665
        %v4680 = vpack.c.b16 %v4668, %v4667
        %v4681 = vpack.c.b16 %v4670, %v4669
        %v4682 = vpack.c.b16 %v4672, %v4671
        %v4683 = vpack.c.b16 %v4674, %v4673
        %v4684 = vpack.c.b16 %v4676, %v4675
        %4693 = vmatprep.subr.bf16.mxu0 0
        %4694 = vmatpush1.bf16.msra.mxu0 %v4684
        %4695 = vmatprep.subr.bf16.mxu0 0
        %4696 = vmatpush1.bf16.msra.mxu0 %v4683
        %4697 = vmatprep.subr.bf16.mxu0 0
        %4698 = vmatpush1.bf16.msra.mxu0 %v4682
        %4699 = vmatprep.subr.bf16.mxu0 0
        %4700 = vmatpush1.bf16.msra.mxu0 %v4681
        %4701 = vmatprep.subr.bf16.mxu0 0
        %4702 = vmatpush1.bf16.msra.mxu0 %v4680
        %4703 = vmatprep.subr.bf16.mxu0 0
        %4704 = vmatpush1.bf16.msra.mxu0 %v4679
        %4705 = vmatprep.subr.bf16.mxu0 0
        %4706 = vmatpush1.bf16.msra.mxu0 %v4678
        %4707 = vmatprep.subr.bf16.mxu0 0
        %4708 = vmatpush1.bf16.msra.mxu0 %v4677
        %4709 = vmatprep.subr.bf16.mxu0 0
        %4710 = vmatpush2.bf16.msra.mxu0 0
        %4711 = vmatprep.subr.bf16.mxu0 0
        %4712 = vmatpush2.bf16.msra.mxu0 0
        %4713 = vmatprep.subr.bf16.mxu0 0
        %4714 = vmatpush2.bf16.msra.mxu0 0
        %4715 = vmatprep.subr.bf16.mxu0 0
        %4716 = vmatpush2.bf16.msra.mxu0 0
        %4717 = vmatprep.subr.bf16.mxu0 0
        %4718 = vmatpush2.bf16.msra.mxu0 0
        %4719 = vmatprep.subr.bf16.mxu0 0
        %4720 = vmatpush2.bf16.msra.mxu0 0
        %4721 = vmatprep.subr.bf16.mxu0 0
        %4722 = vmatpush2.bf16.msra.mxu0 0
        %4723 = vmatprep.subr.bf16.mxu0 0
        %4724 = vmatpush2.bf16.msra.mxu0 0
        %4725 = vmatprep.mubr.bf16.mxu0 0
        %4726 = vmatmul.mubr.bf16.gmra.mxu0 %v4627
        %v4727 = vpop.f32.mrf.mxu0
        %v4728 = vadd.f32 0.0, %v4727
        %v4729 = vpop.f32.mrf.mxu0
        %v4730 = vpop.f32.mrf.mxu0
        %v4731 = vadd.f32 0.0, %v4730
        %v4732 = vpop.f32.mrf.mxu0
        %4733 = vmatprep.mubr.bf16.mxu0 0
        %4734 = vmatmul.mubr.bf16.gmra.mxu0 %v4628
        %v4735 = vpop.f32.mrf.mxu0
        %v4736 = vadd.f32 0.0, %v4735
        %v4737 = vpop.f32.mrf.mxu0
        %v4738 = vpop.f32.mrf.mxu0
        %v4739 = vpop.f32.mrf.mxu0
        %4740 = vdwg.mxu0
        %v4741 = vadd.f32 %v4621, %v4728
        %v4742 = vadd.f32 %v4622, %v4731
        %v4743 = vadd.f32 %v4623, %v4736
        %v4744 = vld [vmem:[#allocation3 + $0x7] sm:$0xff]
        %v4745 = vld [vmem:[#allocation3 + $0xf] sm:$0xff]
        %v4746 = vld [vmem:[#allocation3 + $0x17] sm:$0x3f]
        %v4747 = vpack.c.bf16 %v4745, %v4744
        %v4748 = vpack.c.bf16 %v4746, %v4746
        %v4749 = vld [vmem:[%s9 + $0x100] sm:$0xf]
        %v4750 = vld [vmem:[%s9 + $0x104] sm:$0xf]
        %v4751 = vld [vmem:[%s9 + $0x108] sm:$0xf]
        %v4752 = vld [vmem:[%s9 + $0x10c] sm:$0xf]
        %v4753 = vld [vmem:[%s9 + $0x110] sm:$0xf]
        %v4754 = vld [vmem:[%s9 + $0x114] sm:$0xf]
        %v4755 = vld [vmem:[%s9 + $0x118] sm:$0xf]
        %v4756 = vld [vmem:[%s9 + $0x11c] sm:$0xf]
        %v4757 = vld [vmem:[%s9 + $0x120] sm:$0xf]
        %v4758 = vld [vmem:[%s9 + $0x124] sm:$0xf]
        %v4759 = vld [vmem:[%s9 + $0x128] sm:$0xf]
        %v4760 = vld [vmem:[%s9 + $0x12c] sm:$0xf]
        %v4761 = vld [vmem:[%s9 + $0x130] sm:$0xf]
        %v4762 = vld [vmem:[%s9 + $0x134] sm:$0xf]
        %v4763 = vld [vmem:[%s9 + $0x138] sm:$0xf]
        %v4764 = vld [vmem:[%s9 + $0x13c] sm:$0xf]
        %v4781 = vunpack.c.l.b16 %v4749
        %v4782 = vunpack.c.l.b16 %v4750
        %v4783 = vunpack.c.l.b16 %v4751
        %v4784 = vunpack.c.l.b16 %v4752
        %v4785 = vunpack.c.l.b16 %v4753
        %v4786 = vunpack.c.l.b16 %v4754
        %v4787 = vunpack.c.l.b16 %v4755
        %v4788 = vunpack.c.l.b16 %v4756
        %v4789 = vunpack.c.l.b16 %v4757
        %v4790 = vunpack.c.l.b16 %v4758
        %v4791 = vunpack.c.l.b16 %v4759
        %v4792 = vunpack.c.l.b16 %v4760
        %v4793 = vunpack.c.l.b16 %v4761
        %v4794 = vunpack.c.l.b16 %v4762
        %v4795 = vunpack.c.l.b16 %v4763
        %v4796 = vunpack.c.l.b16 %v4764
        %v4797 = vpack.c.b16 %v4782, %v4781
        %v4798 = vpack.c.b16 %v4784, %v4783
        %v4799 = vpack.c.b16 %v4786, %v4785
        %v4800 = vpack.c.b16 %v4788, %v4787
        %v4801 = vpack.c.b16 %v4790, %v4789
        %v4802 = vpack.c.b16 %v4792, %v4791
        %v4803 = vpack.c.b16 %v4794, %v4793
        %v4804 = vpack.c.b16 %v4796, %v4795
        %4813 = vmatprep.subr.bf16.mxu0 0
        %4814 = vmatpush1.bf16.msra.mxu0 %v4804
        %4815 = vmatprep.subr.bf16.mxu0 0
        %4816 = vmatpush1.bf16.msra.mxu0 %v4803
        %4817 = vmatprep.subr.bf16.mxu0 0
        %4818 = vmatpush1.bf16.msra.mxu0 %v4802
        %4819 = vmatprep.subr.bf16.mxu0 0
        %4820 = vmatpush1.bf16.msra.mxu0 %v4801
        %4821 = vmatprep.subr.bf16.mxu0 0
        %4822 = vmatpush1.bf16.msra.mxu0 %v4800
        %4823 = vmatprep.subr.bf16.mxu0 0
        %4824 = vmatpush1.bf16.msra.mxu0 %v4799
        %4825 = vmatprep.subr.bf16.mxu0 0
        %4826 = vmatpush1.bf16.msra.mxu0 %v4798
        %4827 = vmatprep.subr.bf16.mxu0 0
        %4828 = vmatpush1.bf16.msra.mxu0 %v4797
        %4829 = vmatprep.subr.bf16.mxu0 0
        %4830 = vmatpush2.bf16.msra.mxu0 0
        %4831 = vmatprep.subr.bf16.mxu0 0
        %4832 = vmatpush2.bf16.msra.mxu0 0
        %4833 = vmatprep.subr.bf16.mxu0 0
        %4834 = vmatpush2.bf16.msra.mxu0 0
        %4835 = vmatprep.subr.bf16.mxu0 0
        %4836 = vmatpush2.bf16.msra.mxu0 0
        %4837 = vmatprep.subr.bf16.mxu0 0
        %4838 = vmatpush2.bf16.msra.mxu0 0
        %4839 = vmatprep.subr.bf16.mxu0 0
        %4840 = vmatpush2.bf16.msra.mxu0 0
        %4841 = vmatprep.subr.bf16.mxu0 0
        %4842 = vmatpush2.bf16.msra.mxu0 0
        %4843 = vmatprep.subr.bf16.mxu0 0
        %4844 = vmatpush2.bf16.msra.mxu0 0
        %4845 = vmatprep.mubr.bf16.mxu0 0
        %4846 = vmatmul.mubr.bf16.gmra.mxu0 %v4747
        %v4847 = vpop.f32.mrf.mxu0
        %v4848 = vadd.f32 0.0, %v4847
        %v4849 = vpop.f32.mrf.mxu0
        %v4850 = vpop.f32.mrf.mxu0
        %v4851 = vadd.f32 0.0, %v4850
        %v4852 = vpop.f32.mrf.mxu0
        %4853 = vmatprep.mubr.bf16.mxu0 0
        %4854 = vmatmul.mubr.bf16.gmra.mxu0 %v4748
        %v4855 = vpop.f32.mrf.mxu0
        %v4856 = vadd.f32 0.0, %v4855
        %v4857 = vpop.f32.mrf.mxu0
        %v4858 = vpop.f32.mrf.mxu0
        %v4859 = vpop.f32.mrf.mxu0
        %4860 = vdwg.mxu0
        %v4861 = vadd.f32 %v4741, %v4848
        %v4862 = vadd.f32 %v4742, %v4851
        %v4863 = vadd.f32 %v4743, %v4856
        %v4864 = vld [vmem:[#allocation3 + $0x8] sm:$0xff]
        %v4865 = vld [vmem:[#allocation3 + $0x10] sm:$0xff]
        %v4866 = vld [vmem:[#allocation3 + $0x18] sm:$0x3f]
        %v4867 = vpack.c.bf16 %v4865, %v4864
        %v4868 = vpack.c.bf16 %v4866, %v4866
        %v4869 = vld [vmem:[%s9 + $0x140] sm:$0xf]
        %v4870 = vld [vmem:[%s9 + $0x144] sm:$0xf]
        %v4871 = vld [vmem:[%s9 + $0x148] sm:$0xf]
        %v4872 = vld [vmem:[%s9 + $0x14c] sm:$0xf]
        %v4873 = vld [vmem:[%s9 + $0x150] sm:$0xf]
        %v4874 = vld [vmem:[%s9 + $0x154] sm:$0xf]
        %v4875 = vld [vmem:[%s9 + $0x158] sm:$0xf]
        %v4876 = vld [vmem:[%s9 + $0x15c] sm:$0xf]
        %v4877 = vld [vmem:[%s9 + $0x160] sm:$0xf]
        %v4878 = vld [vmem:[%s9 + $0x164] sm:$0xf]
        %v4879 = vld [vmem:[%s9 + $0x168] sm:$0xf]
        %v4880 = vld [vmem:[%s9 + $0x16c] sm:$0xf]
        %v4881 = vld [vmem:[%s9 + $0x170] sm:$0xf]
        %v4882 = vld [vmem:[%s9 + $0x174] sm:$0xf]
        %v4883 = vld [vmem:[%s9 + $0x178] sm:$0xf]
        %v4884 = vld [vmem:[%s9 + $0x17c] sm:$0xf]
        %v4901 = vunpack.c.l.b16 %v4869
        %v4902 = vunpack.c.l.b16 %v4870
        %v4903 = vunpack.c.l.b16 %v4871
        %v4904 = vunpack.c.l.b16 %v4872
        %v4905 = vunpack.c.l.b16 %v4873
        %v4906 = vunpack.c.l.b16 %v4874
        %v4907 = vunpack.c.l.b16 %v4875
        %v4908 = vunpack.c.l.b16 %v4876
        %v4909 = vunpack.c.l.b16 %v4877
        %v4910 = vunpack.c.l.b16 %v4878
        %v4911 = vunpack.c.l.b16 %v4879
        %v4912 = vunpack.c.l.b16 %v4880
        %v4913 = vunpack.c.l.b16 %v4881
        %v4914 = vunpack.c.l.b16 %v4882
        %v4915 = vunpack.c.l.b16 %v4883
        %v4916 = vunpack.c.l.b16 %v4884
        %v4917 = vpack.c.b16 %v4902, %v4901
        %v4918 = vpack.c.b16 %v4904, %v4903
        %v4919 = vpack.c.b16 %v4906, %v4905
        %v4920 = vpack.c.b16 %v4908, %v4907
        %v4921 = vpack.c.b16 %v4910, %v4909
        %v4922 = vpack.c.b16 %v4912, %v4911
        %v4923 = vpack.c.b16 %v4914, %v4913
        %v4924 = vpack.c.b16 %v4916, %v4915
        %4933 = vmatprep.subr.bf16.mxu0 0
        %4934 = vmatpush1.bf16.msra.mxu0 %v4924
        %4935 = vmatprep.subr.bf16.mxu0 0
        %4936 = vmatpush1.bf16.msra.mxu0 %v4923
        %4937 = vmatprep.subr.bf16.mxu0 0
        %4938 = vmatpush1.bf16.msra.mxu0 %v4922
        %4939 = vmatprep.subr.bf16.mxu0 0
        %4940 = vmatpush1.bf16.msra.mxu0 %v4921
        %4941 = vmatprep.subr.bf16.mxu0 0
        %4942 = vmatpush1.bf16.msra.mxu0 %v4920
        %4943 = vmatprep.subr.bf16.mxu0 0
        %4944 = vmatpush1.bf16.msra.mxu0 %v4919
        %4945 = vmatprep.subr.bf16.mxu0 0
        %4946 = vmatpush1.bf16.msra.mxu0 %v4918
        %4947 = vmatprep.subr.bf16.mxu0 0
        %4948 = vmatpush1.bf16.msra.mxu0 %v4917
        %4949 = vmatprep.subr.bf16.mxu0 0
        %4950 = vmatpush2.bf16.msra.mxu0 0
        %4951 = vmatprep.subr.bf16.mxu0 0
        %4952 = vmatpush2.bf16.msra.mxu0 0
        %4953 = vmatprep.subr.bf16.mxu0 0
        %4954 = vmatpush2.bf16.msra.mxu0 0
        %4955 = vmatprep.subr.bf16.mxu0 0
        %4956 = vmatpush2.bf16.msra.mxu0 0
        %4957 = vmatprep.subr.bf16.mxu0 0
        %4958 = vmatpush2.bf16.msra.mxu0 0
        %4959 = vmatprep.subr.bf16.mxu0 0
        %4960 = vmatpush2.bf16.msra.mxu0 0
        %4961 = vmatprep.subr.bf16.mxu0 0
        %4962 = vmatpush2.bf16.msra.mxu0 0
        %4963 = vmatprep.subr.bf16.mxu0 0
        %4964 = vmatpush2.bf16.msra.mxu0 0
        %4965 = vmatprep.mubr.bf16.mxu0 0
        %4966 = vmatmul.mubr.bf16.gmra.mxu0 %v4867
        %v4967 = vpop.f32.mrf.mxu0
        %v4968 = vadd.f32 0.0, %v4967
        %v4969 = vpop.f32.mrf.mxu0
        %v4970 = vpop.f32.mrf.mxu0
        %v4971 = vadd.f32 0.0, %v4970
        %v4972 = vpop.f32.mrf.mxu0
        %4973 = vmatprep.mubr.bf16.mxu0 0
        %4974 = vmatmul.mubr.bf16.gmra.mxu0 %v4868
        %v4975 = vpop.f32.mrf.mxu0
        %v4976 = vadd.f32 0.0, %v4975
        %v4977 = vpop.f32.mrf.mxu0
        %v4978 = vpop.f32.mrf.mxu0
        %v4979 = vpop.f32.mrf.mxu0
        %4980 = vdwg.mxu0
        %v4981 = vadd.f32 %v4861, %v4968
        %v4982 = vadd.f32 %v4862, %v4971
        %v4983 = vadd.f32 %v4863, %v4976
        %v4984 = vld [vmem:[#allocation3 + $0xc] sm:$0xff]
        %v4985 = vld [vmem:[#allocation3 + $0x14] sm:$0xff]
        %v4986 = vld [vmem:[#allocation3 + $0x1c] sm:$0x3f]
        %v4987 = vpack.c.bf16 %v4985, %v4984
        %v4988 = vpack.c.bf16 %v4986, %v4986
        %v4989 = vld [vmem:[%s9 + $0x180] sm:$0xf]
        %v4990 = vld [vmem:[%s9 + $0x184] sm:$0xf]
        %v4991 = vld [vmem:[%s9 + $0x188] sm:$0xf]
        %v4992 = vld [vmem:[%s9 + $0x18c] sm:$0xf]
        %v4993 = vld [vmem:[%s9 + $0x190] sm:$0xf]
        %v4994 = vld [vmem:[%s9 + $0x194] sm:$0xf]
        %v4995 = vld [vmem:[%s9 + $0x198] sm:$0xf]
        %v4996 = vld [vmem:[%s9 + $0x19c] sm:$0xf]
        %v4997 = vld [vmem:[%s9 + $0x1a0] sm:$0xf]
        %v4998 = vld [vmem:[%s9 + $0x1a4] sm:$0xf]
        %v4999 = vld [vmem:[%s9 + $0x1a8] sm:$0xf]
        %v5000 = vld [vmem:[%s9 + $0x1ac] sm:$0xf]
        %v5001 = vld [vmem:[%s9 + $0x1b0] sm:$0xf]
        %v5002 = vld [vmem:[%s9 + $0x1b4] sm:$0xf]
        %v5003 = vld [vmem:[%s9 + $0x1b8] sm:$0xf]
        %v5004 = vld [vmem:[%s9 + $0x1bc] sm:$0xf]
        %v5021 = vunpack.c.l.b16 %v4989
        %v5022 = vunpack.c.l.b16 %v4990
        %v5023 = vunpack.c.l.b16 %v4991
        %v5024 = vunpack.c.l.b16 %v4992
        %v5025 = vunpack.c.l.b16 %v4993
        %v5026 = vunpack.c.l.b16 %v4994
        %v5027 = vunpack.c.l.b16 %v4995
        %v5028 = vunpack.c.l.b16 %v4996
        %v5029 = vunpack.c.l.b16 %v4997
        %v5030 = vunpack.c.l.b16 %v4998
        %v5031 = vunpack.c.l.b16 %v4999
        %v5032 = vunpack.c.l.b16 %v5000
        %v5033 = vunpack.c.l.b16 %v5001
        %v5034 = vunpack.c.l.b16 %v5002
        %v5035 = vunpack.c.l.b16 %v5003
        %v5036 = vunpack.c.l.b16 %v5004
        %v5037 = vpack.c.b16 %v5022, %v5021
        %v5038 = vpack.c.b16 %v5024, %v5023
        %v5039 = vpack.c.b16 %v5026, %v5025
        %v5040 = vpack.c.b16 %v5028, %v5027
        %v5041 = vpack.c.b16 %v5030, %v5029
        %v5042 = vpack.c.b16 %v5032, %v5031
        %v5043 = vpack.c.b16 %v5034, %v5033
        %v5044 = vpack.c.b16 %v5036, %v5035
        %5053 = vmatprep.subr.bf16.mxu0 0
        %5054 = vmatpush1.bf16.msra.mxu0 %v5044
        %5055 = vmatprep.subr.bf16.mxu0 0
        %5056 = vmatpush1.bf16.msra.mxu0 %v5043
        %5057 = vmatprep.subr.bf16.mxu0 0
        %5058 = vmatpush1.bf16.msra.mxu0 %v5042
        %5059 = vmatprep.subr.bf16.mxu0 0
        %5060 = vmatpush1.bf16.msra.mxu0 %v5041
        %5061 = vmatprep.subr.bf16.mxu0 0
        %5062 = vmatpush1.bf16.msra.mxu0 %v5040
        %5063 = vmatprep.subr.bf16.mxu0 0
        %5064 = vmatpush1.bf16.msra.mxu0 %v5039
        %5065 = vmatprep.subr.bf16.mxu0 0
        %5066 = vmatpush1.bf16.msra.mxu0 %v5038
        %5067 = vmatprep.subr.bf16.mxu0 0
        %5068 = vmatpush1.bf16.msra.mxu0 %v5037
        %5069 = vmatprep.subr.bf16.mxu0 0
        %5070 = vmatpush2.bf16.msra.mxu0 0
        %5071 = vmatprep.subr.bf16.mxu0 0
        %5072 = vmatpush2.bf16.msra.mxu0 0
        %5073 = vmatprep.subr.bf16.mxu0 0
        %5074 = vmatpush2.bf16.msra.mxu0 0
        %5075 = vmatprep.subr.bf16.mxu0 0
        %5076 = vmatpush2.bf16.msra.mxu0 0
        %5077 = vmatprep.subr.bf16.mxu0 0
        %5078 = vmatpush2.bf16.msra.mxu0 0
        %5079 = vmatprep.subr.bf16.mxu0 0
        %5080 = vmatpush2.bf16.msra.mxu0 0
        %5081 = vmatprep.subr.bf16.mxu0 0
        %5082 = vmatpush2.bf16.msra.mxu0 0
        %5083 = vmatprep.subr.bf16.mxu0 0
        %5084 = vmatpush2.bf16.msra.mxu0 0
        %5085 = vmatprep.mubr.bf16.mxu0 0
        %5086 = vmatmul.mubr.bf16.gmra.mxu0 %v4987
        %v5087 = vpop.f32.mrf.mxu0
        %v5088 = vadd.f32 0.0, %v5087
        %v5089 = vpop.f32.mrf.mxu0
        %v5090 = vpop.f32.mrf.mxu0
        %v5091 = vadd.f32 0.0, %v5090
        %v5092 = vpop.f32.mrf.mxu0
        %5093 = vmatprep.mubr.bf16.mxu0 0
        %5094 = vmatmul.mubr.bf16.gmra.mxu0 %v4988
        %v5095 = vpop.f32.mrf.mxu0
        %v5096 = vadd.f32 0.0, %v5095
        %v5097 = vpop.f32.mrf.mxu0
        %v5098 = vpop.f32.mrf.mxu0
        %v5099 = vpop.f32.mrf.mxu0
        %5100 = vdwg.mxu0
        %v5101 = vadd.f32 %v4981, %v5088
        %v5102 = vadd.f32 %v4982, %v5091
        %v5103 = vadd.f32 %v4983, %v5096
        %v5104 = vld [vmem:[#allocation3 + $0xd] sm:$0xff]
        %v5105 = vld [vmem:[#allocation3 + $0x15] sm:$0xff]
        %v5106 = vld [vmem:[#allocation3 + $0x1d] sm:$0x3f]
        %v5107 = vpack.c.bf16 %v5105, %v5104
        %v5108 = vpack.c.bf16 %v5106, %v5106
        %v5109 = vld [vmem:[%s9 + $0x1c0] sm:$0xf]
        %v5110 = vld [vmem:[%s9 + $0x1c4] sm:$0xf]
        %v5111 = vld [vmem:[%s9 + $0x1c8] sm:$0xf]
        %v5112 = vld [vmem:[%s9 + $0x1cc] sm:$0xf]
        %v5113 = vld [vmem:[%s9 + $0x1d0] sm:$0xf]
        %v5114 = vld [vmem:[%s9 + $0x1d4] sm:$0xf]
        %v5115 = vld [vmem:[%s9 + $0x1d8] sm:$0xf]
        %v5116 = vld [vmem:[%s9 + $0x1dc] sm:$0xf]
        %v5117 = vld [vmem:[%s9 + $0x1e0] sm:$0xf]
        %v5118 = vld [vmem:[%s9 + $0x1e4] sm:$0xf]
        %v5119 = vld [vmem:[%s9 + $0x1e8] sm:$0xf]
        %v5120 = vld [vmem:[%s9 + $0x1ec] sm:$0xf]
        %v5121 = vld [vmem:[%s9 + $0x1f0] sm:$0xf]
        %v5122 = vld [vmem:[%s9 + $0x1f4] sm:$0xf]
        %v5123 = vld [vmem:[%s9 + $0x1f8] sm:$0xf]
        %v5124 = vld [vmem:[%s9 + $0x1fc] sm:$0xf]
        %v5141 = vunpack.c.l.b16 %v5109
        %v5142 = vunpack.c.l.b16 %v5110
        %v5143 = vunpack.c.l.b16 %v5111
        %v5144 = vunpack.c.l.b16 %v5112
        %v5145 = vunpack.c.l.b16 %v5113
        %v5146 = vunpack.c.l.b16 %v5114
        %v5147 = vunpack.c.l.b16 %v5115
        %v5148 = vunpack.c.l.b16 %v5116
        %v5149 = vunpack.c.l.b16 %v5117
        %v5150 = vunpack.c.l.b16 %v5118
        %v5151 = vunpack.c.l.b16 %v5119
        %v5152 = vunpack.c.l.b16 %v5120
        %v5153 = vunpack.c.l.b16 %v5121
        %v5154 = vunpack.c.l.b16 %v5122
        %v5155 = vunpack.c.l.b16 %v5123
        %v5156 = vunpack.c.l.b16 %v5124
        %v5157 = vpack.c.b16 %v5142, %v5141
        %v5158 = vpack.c.b16 %v5144, %v5143
        %v5159 = vpack.c.b16 %v5146, %v5145
        %v5160 = vpack.c.b16 %v5148, %v5147
        %v5161 = vpack.c.b16 %v5150, %v5149
        %v5162 = vpack.c.b16 %v5152, %v5151
        %v5163 = vpack.c.b16 %v5154, %v5153
        %v5164 = vpack.c.b16 %v5156, %v5155
        %5173 = vmatprep.subr.bf16.mxu0 0
        %5174 = vmatpush1.bf16.msra.mxu0 %v5164
        %5175 = vmatprep.subr.bf16.mxu0 0
        %5176 = vmatpush1.bf16.msra.mxu0 %v5163
        %5177 = vmatprep.subr.bf16.mxu0 0
        %5178 = vmatpush1.bf16.msra.mxu0 %v5162
        %5179 = vmatprep.subr.bf16.mxu0 0
        %5180 = vmatpush1.bf16.msra.mxu0 %v5161
        %5181 = vmatprep.subr.bf16.mxu0 0
        %5182 = vmatpush1.bf16.msra.mxu0 %v5160
        %5183 = vmatprep.subr.bf16.mxu0 0
        %5184 = vmatpush1.bf16.msra.mxu0 %v5159
        %5185 = vmatprep.subr.bf16.mxu0 0
        %5186 = vmatpush1.bf16.msra.mxu0 %v5158
        %5187 = vmatprep.subr.bf16.mxu0 0
        %5188 = vmatpush1.bf16.msra.mxu0 %v5157
        %5189 = vmatprep.subr.bf16.mxu0 0
        %5190 = vmatpush2.bf16.msra.mxu0 0
        %5191 = vmatprep.subr.bf16.mxu0 0
        %5192 = vmatpush2.bf16.msra.mxu0 0
        %5193 = vmatprep.subr.bf16.mxu0 0
        %5194 = vmatpush2.bf16.msra.mxu0 0
        %5195 = vmatprep.subr.bf16.mxu0 0
        %5196 = vmatpush2.bf16.msra.mxu0 0
        %5197 = vmatprep.subr.bf16.mxu0 0
        %5198 = vmatpush2.bf16.msra.mxu0 0
        %5199 = vmatprep.subr.bf16.mxu0 0
        %5200 = vmatpush2.bf16.msra.mxu0 0
        %5201 = vmatprep.subr.bf16.mxu0 0
        %5202 = vmatpush2.bf16.msra.mxu0 0
        %5203 = vmatprep.subr.bf16.mxu0 0
        %5204 = vmatpush2.bf16.msra.mxu0 0
        %5205 = vmatprep.mubr.bf16.mxu0 0
        %5206 = vmatmul.mubr.bf16.gmra.mxu0 %v5107
        %v5207 = vpop.f32.mrf.mxu0
        %v5208 = vadd.f32 0.0, %v5207
        %v5209 = vpop.f32.mrf.mxu0
        %v5210 = vpop.f32.mrf.mxu0
        %v5211 = vadd.f32 0.0, %v5210
        %v5212 = vpop.f32.mrf.mxu0
        %5213 = vmatprep.mubr.bf16.mxu0 0
        %5214 = vmatmul.mubr.bf16.gmra.mxu0 %v5108
        %v5215 = vpop.f32.mrf.mxu0
        %v5216 = vadd.f32 0.0, %v5215
        %v5217 = vpop.f32.mrf.mxu0
        %v5218 = vpop.f32.mrf.mxu0
        %v5219 = vpop.f32.mrf.mxu0
        %5220 = vdwg.mxu0
        %v5221 = vadd.f32 %v5101, %v5208
        %v5222 = vadd.f32 %v5102, %v5211
        %v5223 = vadd.f32 %v5103, %v5216
        %v5224 = vld [vmem:[#allocation3 + $0xe] sm:$0xff]
        %v5225 = vld [vmem:[#allocation3 + $0x16] sm:$0xff]
        %v5226 = vld [vmem:[#allocation3 + $0x1e] sm:$0x3f]
        %v5227 = vpack.c.bf16 %v5225, %v5224
        %v5228 = vpack.c.bf16 %v5226, %v5226
        %v5229 = vld [vmem:[%s9 + $0x200] sm:$0xf]
        %v5230 = vld [vmem:[%s9 + $0x204] sm:$0xf]
        %v5231 = vld [vmem:[%s9 + $0x208] sm:$0xf]
        %v5232 = vld [vmem:[%s9 + $0x20c] sm:$0xf]
        %v5233 = vld [vmem:[%s9 + $0x210] sm:$0xf]
        %v5234 = vld [vmem:[%s9 + $0x214] sm:$0xf]
        %v5235 = vld [vmem:[%s9 + $0x218] sm:$0xf]
        %v5236 = vld [vmem:[%s9 + $0x21c] sm:$0xf]
        %v5237 = vld [vmem:[%s9 + $0x220] sm:$0xf]
        %v5238 = vld [vmem:[%s9 + $0x224] sm:$0xf]
        %v5239 = vld [vmem:[%s9 + $0x228] sm:$0xf]
        %v5240 = vld [vmem:[%s9 + $0x22c] sm:$0xf]
        %v5241 = vld [vmem:[%s9 + $0x230] sm:$0xf]
        %v5242 = vld [vmem:[%s9 + $0x234] sm:$0xf]
        %v5243 = vld [vmem:[%s9 + $0x238] sm:$0xf]
        %v5244 = vld [vmem:[%s9 + $0x23c] sm:$0xf]
        %v5261 = vunpack.c.l.b16 %v5229
        %v5262 = vunpack.c.l.b16 %v5230
        %v5263 = vunpack.c.l.b16 %v5231
        %v5264 = vunpack.c.l.b16 %v5232
        %v5265 = vunpack.c.l.b16 %v5233
        %v5266 = vunpack.c.l.b16 %v5234
        %v5267 = vunpack.c.l.b16 %v5235
        %v5268 = vunpack.c.l.b16 %v5236
        %v5269 = vunpack.c.l.b16 %v5237
        %v5270 = vunpack.c.l.b16 %v5238
        %v5271 = vunpack.c.l.b16 %v5239
        %v5272 = vunpack.c.l.b16 %v5240
        %v5273 = vunpack.c.l.b16 %v5241
        %v5274 = vunpack.c.l.b16 %v5242
        %v5275 = vunpack.c.l.b16 %v5243
        %v5276 = vunpack.c.l.b16 %v5244
        %v5277 = vpack.c.b16 %v5262, %v5261
        %v5278 = vpack.c.b16 %v5264, %v5263
        %v5279 = vpack.c.b16 %v5266, %v5265
        %v5280 = vpack.c.b16 %v5268, %v5267
        %v5281 = vpack.c.b16 %v5270, %v5269
        %v5282 = vpack.c.b16 %v5272, %v5271
        %v5283 = vpack.c.b16 %v5274, %v5273
        %v5284 = vpack.c.b16 %v5276, %v5275
        %5293 = vmatprep.subr.bf16.mxu0 0
        %5294 = vmatpush1.bf16.msra.mxu0 %v5284
        %5295 = vmatprep.subr.bf16.mxu0 0
        %5296 = vmatpush1.bf16.msra.mxu0 %v5283
        %5297 = vmatprep.subr.bf16.mxu0 0
        %5298 = vmatpush1.bf16.msra.mxu0 %v5282
        %5299 = vmatprep.subr.bf16.mxu0 0
        %5300 = vmatpush1.bf16.msra.mxu0 %v5281
        %5301 = vmatprep.subr.bf16.mxu0 0
        %5302 = vmatpush1.bf16.msra.mxu0 %v5280
        %5303 = vmatprep.subr.bf16.mxu0 0
        %5304 = vmatpush1.bf16.msra.mxu0 %v5279
        %5305 = vmatprep.subr.bf16.mxu0 0
        %5306 = vmatpush1.bf16.msra.mxu0 %v5278
        %5307 = vmatprep.subr.bf16.mxu0 0
        %5308 = vmatpush1.bf16.msra.mxu0 %v5277
        %5309 = vmatprep.subr.bf16.mxu0 0
        %5310 = vmatpush2.bf16.msra.mxu0 0
        %5311 = vmatprep.subr.bf16.mxu0 0
        %5312 = vmatpush2.bf16.msra.mxu0 0
        %5313 = vmatprep.subr.bf16.mxu0 0
        %5314 = vmatpush2.bf16.msra.mxu0 0
        %5315 = vmatprep.subr.bf16.mxu0 0
        %5316 = vmatpush2.bf16.msra.mxu0 0
        %5317 = vmatprep.subr.bf16.mxu0 0
        %5318 = vmatpush2.bf16.msra.mxu0 0
        %5319 = vmatprep.subr.bf16.mxu0 0
        %5320 = vmatpush2.bf16.msra.mxu0 0
        %5321 = vmatprep.subr.bf16.mxu0 0
        %5322 = vmatpush2.bf16.msra.mxu0 0
        %5323 = vmatprep.subr.bf16.mxu0 0
        %5324 = vmatpush2.bf16.msra.mxu0 0
        %5325 = vmatprep.mubr.bf16.mxu0 0
        %5326 = vmatmul.mubr.bf16.gmra.mxu0 %v5227
        %v5327 = vpop.f32.mrf.mxu0
        %v5328 = vadd.f32 0.0, %v5327
        %v5329 = vpop.f32.mrf.mxu0
        %v5330 = vpop.f32.mrf.mxu0
        %v5331 = vadd.f32 0.0, %v5330
        %v5332 = vpop.f32.mrf.mxu0
        %5333 = vmatprep.mubr.bf16.mxu0 0
        %5334 = vmatmul.mubr.bf16.gmra.mxu0 %v5228
        %v5335 = vpop.f32.mrf.mxu0
        %v5336 = vadd.f32 0.0, %v5335
        %v5337 = vpop.f32.mrf.mxu0
        %v5338 = vpop.f32.mrf.mxu0
        %v5339 = vpop.f32.mrf.mxu0
        %5340 = vdwg.mxu0
        %v5341 = vadd.f32 %v5221, %v5328
        %v5342 = vadd.f32 %v5222, %v5331
        %v5343 = vadd.f32 %v5223, %v5336
        %v5346 = vrot.slane %v5341, 2
        %v5347 = vrot.slane %v5342, 2
        %v5348 = vsel %vm2022, %v5346, %v5347
        %v5350 = vrot.slane %v5342, 4
        %v5353 = vrot.slane %v5343, 6
        %v5355 = vsel %vm934, %v5341, %v5348
        %v5356 = vsel %vm934, %v5350, %v5353
        %v5357 = vld [vmem:[%s10] sm:$0x1]
        %v5359 = vlaneseq
        %v5360 = vshrl.u32 %v5359, 7
        %v5361 = vsub.s32 0, %v5360
        %v5362 = vrot.slane %v5357, %v5361
        %v5364 = vadd.f32 %v5355, %v5362
        %v5365 = vadd.f32 %v5356, %v5362
        %v5366 = vadd.f32 %v5364, %v3152
        %v5367 = vadd.f32 %v5365, %v3153
        %v5368 = vmax.f32 %v5366, 0.0
        %v5369 = vmax.f32 %v5367, 0.0
        %5370 = vst [vmem:[#allocation2] sm:$0xff] 0.0
        %5371 = vst [vmem:[#allocation2 + $0x8] sm:$0xff] 0.0
        %5372 = vst [vmem:[#allocation2 + $0x10] sm:$0xff] 0.0
        %5373 = vst [vmem:[#allocation2 + $0x18] sm:$0xff] 0.0
        %5374 = vst [vmem:[#allocation2 + $0x20] sm:$0xf] 0.0
        %5375 = vst [vmem:[#allocation2 + $0x7] sm:$0xf] %v5368
        %5376 = vst [vmem:[#allocation2 + $0x9] sm:$0xf0] %v5368
        %5377 = vst [vmem:[#allocation2 + $0x13] sm:$0xf] %v5369
        %5378 = vst [vmem:[#allocation2 + $0x15] sm:$0xf0] %v5369
        %v5379 = vld [vmem:[#allocation2] sm:$0xff]
        %v5380 = vld [vmem:[#allocation2 + $0x8] sm:$0xff]
        %v5381 = vld [vmem:[#allocation2 + $0x10] sm:$0x3f]
        %v5382 = vpack.c.bf16 %v5380, %v5379
        %v5383 = vpack.c.bf16 %v5381, %v5381
        %v5384 = vld [vmem:[%s11] sm:$0xff]
        %v5385 = vld [vmem:[%s11 + $0x8] sm:$0xff]
        %v5386 = vld [vmem:[%s11 + $0x10] sm:$0xff]
        %v5387 = vld [vmem:[%s11 + $0x18] sm:$0xff]
        %v5388 = vld [vmem:[%s11 + $0x20] sm:$0xff]
        %v5389 = vld [vmem:[%s11 + $0x28] sm:$0xff]
        %v5390 = vld [vmem:[%s11 + $0x30] sm:$0xff]
        %v5391 = vld [vmem:[%s11 + $0x38] sm:$0xff]
        %v5392 = vld [vmem:[%s11 + $0x40] sm:$0xff]
        %v5393 = vld [vmem:[%s11 + $0x48] sm:$0xff]
        %v5394 = vld [vmem:[%s11 + $0x50] sm:$0xff]
        %v5395 = vld [vmem:[%s11 + $0x58] sm:$0xff]
        %v5396 = vld [vmem:[%s11 + $0x60] sm:$0xff]
        %v5397 = vld [vmem:[%s11 + $0x68] sm:$0xff]
        %v5398 = vld [vmem:[%s11 + $0x70] sm:$0xff]
        %v5399 = vld [vmem:[%s11 + $0x78] sm:$0xff]
        %v5400 = vld [vmem:[#allocation2 + $0x1] sm:$0xff]
        %v5401 = vld [vmem:[#allocation2 + $0x9] sm:$0xff]
        %v5402 = vld [vmem:[#allocation2 + $0x11] sm:$0x3f]
        %v5403 = vpack.c.bf16 %v5401, %v5400
        %v5404 = vpack.c.bf16 %v5402, %v5402
        %v5405 = vld [vmem:[%s11 + $0x80] sm:$0xff]
        %v5406 = vld [vmem:[%s11 + $0x88] sm:$0xff]
        %v5407 = vld [vmem:[%s11 + $0x90] sm:$0xff]
        %v5408 = vld [vmem:[%s11 + $0x98] sm:$0xff]
        %v5409 = vld [vmem:[%s11 + $0xa0] sm:$0xff]
        %v5410 = vld [vmem:[%s11 + $0xa8] sm:$0xff]
        %v5411 = vld [vmem:[%s11 + $0xb0] sm:$0xff]
        %v5412 = vld [vmem:[%s11 + $0xb8] sm:$0xff]
        %v5413 = vld [vmem:[%s11 + $0xc0] sm:$0xff]
        %v5414 = vld [vmem:[%s11 + $0xc8] sm:$0xff]
        %v5415 = vld [vmem:[%s11 + $0xd0] sm:$0xff]
        %v5416 = vld [vmem:[%s11 + $0xd8] sm:$0xff]
        %v5417 = vld [vmem:[%s11 + $0xe0] sm:$0xff]
        %v5418 = vld [vmem:[%s11 + $0xe8] sm:$0xff]
        %v5419 = vld [vmem:[%s11 + $0xf0] sm:$0xff]
        %v5420 = vld [vmem:[%s11 + $0xf8] sm:$0xff]
        %v5437 = vunpack.c.l.b16 %v5405
        %v5438 = vunpack.c.h.b16 %v5405
        %v5439 = vunpack.c.l.b16 %v5406
        %v5440 = vunpack.c.h.b16 %v5406
        %v5441 = vunpack.c.l.b16 %v5407
        %v5442 = vunpack.c.h.b16 %v5407
        %v5443 = vunpack.c.l.b16 %v5408
        %v5444 = vunpack.c.h.b16 %v5408
        %v5445 = vunpack.c.l.b16 %v5409
        %v5446 = vunpack.c.h.b16 %v5409
        %v5447 = vunpack.c.l.b16 %v5410
        %v5448 = vunpack.c.h.b16 %v5410
        %v5449 = vunpack.c.l.b16 %v5411
        %v5450 = vunpack.c.h.b16 %v5411
        %v5451 = vunpack.c.l.b16 %v5412
        %v5452 = vunpack.c.h.b16 %v5412
        %v5453 = vunpack.c.l.b16 %v5413
        %v5454 = vunpack.c.h.b16 %v5413
        %v5455 = vunpack.c.l.b16 %v5414
        %v5456 = vunpack.c.h.b16 %v5414
        %v5457 = vunpack.c.l.b16 %v5415
        %v5458 = vunpack.c.h.b16 %v5415
        %v5459 = vunpack.c.l.b16 %v5416
        %v5460 = vunpack.c.h.b16 %v5416
        %v5461 = vunpack.c.l.b16 %v5417
        %v5462 = vunpack.c.h.b16 %v5417
        %v5463 = vunpack.c.l.b16 %v5418
        %v5464 = vunpack.c.h.b16 %v5418
        %v5465 = vunpack.c.l.b16 %v5419
        %v5466 = vunpack.c.h.b16 %v5419
        %v5467 = vunpack.c.l.b16 %v5420
        %v5468 = vunpack.c.h.b16 %v5420
        %v5469 = vpack.c.b16 %v5439, %v5437
        %v5470 = vpack.c.b16 %v5440, %v5438
        %v5471 = vpack.c.b16 %v5443, %v5441
        %v5472 = vpack.c.b16 %v5444, %v5442
        %v5473 = vpack.c.b16 %v5447, %v5445
        %v5474 = vpack.c.b16 %v5448, %v5446
        %v5475 = vpack.c.b16 %v5451, %v5449
        %v5476 = vpack.c.b16 %v5452, %v5450
        %v5477 = vpack.c.b16 %v5455, %v5453
        %v5478 = vpack.c.b16 %v5456, %v5454
        %v5479 = vpack.c.b16 %v5459, %v5457
        %v5480 = vpack.c.b16 %v5460, %v5458
        %v5481 = vpack.c.b16 %v5463, %v5461
        %v5482 = vpack.c.b16 %v5464, %v5462
        %v5483 = vpack.c.b16 %v5467, %v5465
        %v5484 = vpack.c.b16 %v5468, %v5466
        %5501 = vmatprep.subr.bf16.mxu0 %v5484
        %5502 = vmatpush1.bf16.msra.mxu0 %v5483
        %5503 = vmatprep.subr.bf16.mxu0 %v5482
        %5504 = vmatpush1.bf16.msra.mxu0 %v5481
        %5505 = vmatprep.subr.bf16.mxu0 %v5480
        %5506 = vmatpush1.bf16.msra.mxu0 %v5479
        %5507 = vmatprep.subr.bf16.mxu0 %v5478
        %5508 = vmatpush1.bf16.msra.mxu0 %v5477
        %5509 = vmatprep.subr.bf16.mxu0 %v5476
        %5510 = vmatpush1.bf16.msra.mxu0 %v5475
        %5511 = vmatprep.subr.bf16.mxu0 %v5474
        %5512 = vmatpush1.bf16.msra.mxu0 %v5473
        %5513 = vmatprep.subr.bf16.mxu0 %v5472
        %5514 = vmatpush1.bf16.msra.mxu0 %v5471
        %5515 = vmatprep.subr.bf16.mxu0 %v5470
        %5516 = vmatpush1.bf16.msra.mxu0 %v5469
        %5517 = vmatprep.subr.bf16.mxu0 0
        %5518 = vmatpush2.bf16.msra.mxu0 0
        %5519 = vmatprep.subr.bf16.mxu0 0
        %5520 = vmatpush2.bf16.msra.mxu0 0
        %5521 = vmatprep.subr.bf16.mxu0 0
        %5522 = vmatpush2.bf16.msra.mxu0 0
        %5523 = vmatprep.subr.bf16.mxu0 0
        %5524 = vmatpush2.bf16.msra.mxu0 0
        %5525 = vmatprep.subr.bf16.mxu0 0
        %5526 = vmatpush2.bf16.msra.mxu0 0
        %5527 = vmatprep.subr.bf16.mxu0 0
        %5528 = vmatpush2.bf16.msra.mxu0 0
        %5529 = vmatprep.subr.bf16.mxu0 0
        %5530 = vmatpush2.bf16.msra.mxu0 0
        %5531 = vmatprep.subr.bf16.mxu0 0
        %5532 = vmatpush2.bf16.msra.mxu0 0
        %5533 = vmatprep.mubr.bf16.mxu0 0
        %5534 = vmatmul.mubr.bf16.gmra.mxu0 %v5403
        %v5535 = vpop.f32.mrf.mxu0
        %v5536 = vadd.f32 0.0, %v5535
        %v5537 = vpop.f32.mrf.mxu0
        %v5538 = vadd.f32 0.0, %v5537
        %v5539 = vpop.f32.mrf.mxu0
        %v5540 = vadd.f32 0.0, %v5539
        %v5541 = vpop.f32.mrf.mxu0
        %v5542 = vadd.f32 0.0, %v5541
        %5543 = vmatprep.mubr.bf16.mxu0 0
        %5544 = vmatmul.mubr.bf16.gmra.mxu0 %v5404
        %v5545 = vpop.f32.mrf.mxu0
        %v5546 = vpop.f32.mrf.mxu0
        %v5547 = vpop.f32.mrf.mxu0
        %v5548 = vpop.f32.mrf.mxu0
        %5549 = vdwg.mxu0
        %v5566 = vunpack.c.l.b16 %v5384
        %v5567 = vunpack.c.h.b16 %v5384
        %v5568 = vunpack.c.l.b16 %v5385
        %v5569 = vunpack.c.h.b16 %v5385
        %v5570 = vunpack.c.l.b16 %v5386
        %v5571 = vunpack.c.h.b16 %v5386
        %v5572 = vunpack.c.l.b16 %v5387
        %v5573 = vunpack.c.h.b16 %v5387
        %v5574 = vunpack.c.l.b16 %v5388
        %v5575 = vunpack.c.h.b16 %v5388
        %v5576 = vunpack.c.l.b16 %v5389
        %v5577 = vunpack.c.h.b16 %v5389
        %v5578 = vunpack.c.l.b16 %v5390
        %v5579 = vunpack.c.h.b16 %v5390
        %v5580 = vunpack.c.l.b16 %v5391
        %v5581 = vunpack.c.h.b16 %v5391
        %v5582 = vunpack.c.l.b16 %v5392
        %v5583 = vunpack.c.h.b16 %v5392
        %v5584 = vunpack.c.l.b16 %v5393
        %v5585 = vunpack.c.h.b16 %v5393
        %v5586 = vunpack.c.l.b16 %v5394
        %v5587 = vunpack.c.h.b16 %v5394
        %v5588 = vunpack.c.l.b16 %v5395
        %v5589 = vunpack.c.h.b16 %v5395
        %v5590 = vunpack.c.l.b16 %v5396
        %v5591 = vunpack.c.h.b16 %v5396
        %v5592 = vunpack.c.l.b16 %v5397
        %v5593 = vunpack.c.h.b16 %v5397
        %v5594 = vunpack.c.l.b16 %v5398
        %v5595 = vunpack.c.h.b16 %v5398
        %v5596 = vunpack.c.l.b16 %v5399
        %v5597 = vunpack.c.h.b16 %v5399
        %v5598 = vpack.c.b16 %v5568, %v5566
        %v5599 = vpack.c.b16 %v5569, %v5567
        %v5600 = vpack.c.b16 %v5572, %v5570
        %v5601 = vpack.c.b16 %v5573, %v5571
        %v5602 = vpack.c.b16 %v5576, %v5574
        %v5603 = vpack.c.b16 %v5577, %v5575
        %v5604 = vpack.c.b16 %v5580, %v5578
        %v5605 = vpack.c.b16 %v5581, %v5579
        %v5606 = vpack.c.b16 %v5584, %v5582
        %v5607 = vpack.c.b16 %v5585, %v5583
        %v5608 = vpack.c.b16 %v5588, %v5586
        %v5609 = vpack.c.b16 %v5589, %v5587
        %v5610 = vpack.c.b16 %v5592, %v5590
        %v5611 = vpack.c.b16 %v5593, %v5591
        %v5612 = vpack.c.b16 %v5596, %v5594
        %v5613 = vpack.c.b16 %v5597, %v5595
        %5630 = vmatprep.subr.bf16.mxu0 %v5613
        %5631 = vmatpush1.bf16.msra.mxu0 %v5612
        %5632 = vmatprep.subr.bf16.mxu0 %v5611
        %5633 = vmatpush1.bf16.msra.mxu0 %v5610
        %5634 = vmatprep.subr.bf16.mxu0 %v5609
        %5635 = vmatpush1.bf16.msra.mxu0 %v5608
        %5636 = vmatprep.subr.bf16.mxu0 %v5607
        %5637 = vmatpush1.bf16.msra.mxu0 %v5606
        %5638 = vmatprep.subr.bf16.mxu0 %v5605
        %5639 = vmatpush1.bf16.msra.mxu0 %v5604
        %5640 = vmatprep.subr.bf16.mxu0 %v5603
        %5641 = vmatpush1.bf16.msra.mxu0 %v5602
        %5642 = vmatprep.subr.bf16.mxu0 %v5601
        %5643 = vmatpush1.bf16.msra.mxu0 %v5600
        %5644 = vmatprep.subr.bf16.mxu0 %v5599
        %5645 = vmatpush1.bf16.msra.mxu0 %v5598
        %5646 = vmatprep.subr.bf16.mxu0 0
        %5647 = vmatpush2.bf16.msra.mxu0 0
        %5648 = vmatprep.subr.bf16.mxu0 0
        %5649 = vmatpush2.bf16.msra.mxu0 0
        %5650 = vmatprep.subr.bf16.mxu0 0
        %5651 = vmatpush2.bf16.msra.mxu0 0
        %5652 = vmatprep.subr.bf16.mxu0 0
        %5653 = vmatpush2.bf16.msra.mxu0 0
        %5654 = vmatprep.subr.bf16.mxu0 0
        %5655 = vmatpush2.bf16.msra.mxu0 0
        %5656 = vmatprep.subr.bf16.mxu0 0
        %5657 = vmatpush2.bf16.msra.mxu0 0
        %5658 = vmatprep.subr.bf16.mxu0 0
        %5659 = vmatpush2.bf16.msra.mxu0 0
        %5660 = vmatprep.subr.bf16.mxu0 0
        %5661 = vmatpush2.bf16.msra.mxu0 0
        %5662 = vmatprep.mubr.bf16.mxu0 0
        %5663 = vmatmul.mubr.bf16.gmra.mxu0 %v5382
        %v5664 = vpop.f32.mrf.mxu0
        %v5665 = vadd.f32 %v5536, %v5664
        %v5666 = vpop.f32.mrf.mxu0
        %v5667 = vadd.f32 %v5538, %v5666
        %v5668 = vpop.f32.mrf.mxu0
        %v5669 = vadd.f32 %v5540, %v5668
        %v5670 = vpop.f32.mrf.mxu0
        %v5671 = vadd.f32 %v5542, %v5670
        %5672 = vmatprep.mubr.bf16.mxu0 0
        %5673 = vmatmul.mubr.bf16.gmra.mxu0 %v5383
        %v5674 = vpop.f32.mrf.mxu0
        %v5675 = vpop.f32.mrf.mxu0
        %v5676 = vpop.f32.mrf.mxu0
        %v5677 = vpop.f32.mrf.mxu0
        %5678 = vdwg.mxu0
        %v5679 = vld [vmem:[#allocation2 + $0x2] sm:$0xff]
        %v5680 = vld [vmem:[#allocation2 + $0xa] sm:$0xff]
        %v5681 = vld [vmem:[#allocation2 + $0x12] sm:$0x3f]
        %v5682 = vpack.c.bf16 %v5680, %v5679
        %v5683 = vpack.c.bf16 %v5681, %v5681
        %v5684 = vld [vmem:[%s11 + $0x100] sm:$0xff]
        %v5685 = vld [vmem:[%s11 + $0x108] sm:$0xff]
        %v5686 = vld [vmem:[%s11 + $0x110] sm:$0xff]
        %v5687 = vld [vmem:[%s11 + $0x118] sm:$0xff]
        %v5688 = vld [vmem:[%s11 + $0x120] sm:$0xff]
        %v5689 = vld [vmem:[%s11 + $0x128] sm:$0xff]
        %v5690 = vld [vmem:[%s11 + $0x130] sm:$0xff]
        %v5691 = vld [vmem:[%s11 + $0x138] sm:$0xff]
        %v5692 = vld [vmem:[%s11 + $0x140] sm:$0xff]
        %v5693 = vld [vmem:[%s11 + $0x148] sm:$0xff]
        %v5694 = vld [vmem:[%s11 + $0x150] sm:$0xff]
        %v5695 = vld [vmem:[%s11 + $0x158] sm:$0xff]
        %v5696 = vld [vmem:[%s11 + $0x160] sm:$0xff]
        %v5697 = vld [vmem:[%s11 + $0x168] sm:$0xff]
        %v5698 = vld [vmem:[%s11 + $0x170] sm:$0xff]
        %v5699 = vld [vmem:[%s11 + $0x178] sm:$0xff]
        %v5716 = vunpack.c.l.b16 %v5684
        %v5717 = vunpack.c.h.b16 %v5684
        %v5718 = vunpack.c.l.b16 %v5685
        %v5719 = vunpack.c.h.b16 %v5685
        %v5720 = vunpack.c.l.b16 %v5686
        %v5721 = vunpack.c.h.b16 %v5686
        %v5722 = vunpack.c.l.b16 %v5687
        %v5723 = vunpack.c.h.b16 %v5687
        %v5724 = vunpack.c.l.b16 %v5688
        %v5725 = vunpack.c.h.b16 %v5688
        %v5726 = vunpack.c.l.b16 %v5689
        %v5727 = vunpack.c.h.b16 %v5689
        %v5728 = vunpack.c.l.b16 %v5690
        %v5729 = vunpack.c.h.b16 %v5690
        %v5730 = vunpack.c.l.b16 %v5691
        %v5731 = vunpack.c.h.b16 %v5691
        %v5732 = vunpack.c.l.b16 %v5692
        %v5733 = vunpack.c.h.b16 %v5692
        %v5734 = vunpack.c.l.b16 %v5693
        %v5735 = vunpack.c.h.b16 %v5693
        %v5736 = vunpack.c.l.b16 %v5694
        %v5737 = vunpack.c.h.b16 %v5694
        %v5738 = vunpack.c.l.b16 %v5695
        %v5739 = vunpack.c.h.b16 %v5695
        %v5740 = vunpack.c.l.b16 %v5696
        %v5741 = vunpack.c.h.b16 %v5696
        %v5742 = vunpack.c.l.b16 %v5697
        %v5743 = vunpack.c.h.b16 %v5697
        %v5744 = vunpack.c.l.b16 %v5698
        %v5745 = vunpack.c.h.b16 %v5698
        %v5746 = vunpack.c.l.b16 %v5699
        %v5747 = vunpack.c.h.b16 %v5699
        %v5748 = vpack.c.b16 %v5718, %v5716
        %v5749 = vpack.c.b16 %v5719, %v5717
        %v5750 = vpack.c.b16 %v5722, %v5720
        %v5751 = vpack.c.b16 %v5723, %v5721
        %v5752 = vpack.c.b16 %v5726, %v5724
        %v5753 = vpack.c.b16 %v5727, %v5725
        %v5754 = vpack.c.b16 %v5730, %v5728
        %v5755 = vpack.c.b16 %v5731, %v5729
        %v5756 = vpack.c.b16 %v5734, %v5732
        %v5757 = vpack.c.b16 %v5735, %v5733
        %v5758 = vpack.c.b16 %v5738, %v5736
        %v5759 = vpack.c.b16 %v5739, %v5737
        %v5760 = vpack.c.b16 %v5742, %v5740
        %v5761 = vpack.c.b16 %v5743, %v5741
        %v5762 = vpack.c.b16 %v5746, %v5744
        %v5763 = vpack.c.b16 %v5747, %v5745
        %5780 = vmatprep.subr.bf16.mxu0 %v5763
        %5781 = vmatpush1.bf16.msra.mxu0 %v5762
        %5782 = vmatprep.subr.bf16.mxu0 %v5761
        %5783 = vmatpush1.bf16.msra.mxu0 %v5760
        %5784 = vmatprep.subr.bf16.mxu0 %v5759
        %5785 = vmatpush1.bf16.msra.mxu0 %v5758
        %5786 = vmatprep.subr.bf16.mxu0 %v5757
        %5787 = vmatpush1.bf16.msra.mxu0 %v5756
        %5788 = vmatprep.subr.bf16.mxu0 %v5755
        %5789 = vmatpush1.bf16.msra.mxu0 %v5754
        %5790 = vmatprep.subr.bf16.mxu0 %v5753
        %5791 = vmatpush1.bf16.msra.mxu0 %v5752
        %5792 = vmatprep.subr.bf16.mxu0 %v5751
        %5793 = vmatpush1.bf16.msra.mxu0 %v5750
        %5794 = vmatprep.subr.bf16.mxu0 %v5749
        %5795 = vmatpush1.bf16.msra.mxu0 %v5748
        %5796 = vmatprep.subr.bf16.mxu0 0
        %5797 = vmatpush2.bf16.msra.mxu0 0
        %5798 = vmatprep.subr.bf16.mxu0 0
        %5799 = vmatpush2.bf16.msra.mxu0 0
        %5800 = vmatprep.subr.bf16.mxu0 0
        %5801 = vmatpush2.bf16.msra.mxu0 0
        %5802 = vmatprep.subr.bf16.mxu0 0
        %5803 = vmatpush2.bf16.msra.mxu0 0
        %5804 = vmatprep.subr.bf16.mxu0 0
        %5805 = vmatpush2.bf16.msra.mxu0 0
        %5806 = vmatprep.subr.bf16.mxu0 0
        %5807 = vmatpush2.bf16.msra.mxu0 0
        %5808 = vmatprep.subr.bf16.mxu0 0
        %5809 = vmatpush2.bf16.msra.mxu0 0
        %5810 = vmatprep.subr.bf16.mxu0 0
        %5811 = vmatpush2.bf16.msra.mxu0 0
        %5812 = vmatprep.mubr.bf16.mxu0 0
        %5813 = vmatmul.mubr.bf16.gmra.mxu0 %v5682
        %v5814 = vpop.f32.mrf.mxu0
        %v5815 = vadd.f32 0.0, %v5814
        %v5816 = vpop.f32.mrf.mxu0
        %v5817 = vadd.f32 0.0, %v5816
        %v5818 = vpop.f32.mrf.mxu0
        %v5819 = vadd.f32 0.0, %v5818
        %v5820 = vpop.f32.mrf.mxu0
        %v5821 = vadd.f32 0.0, %v5820
        %5822 = vmatprep.mubr.bf16.mxu0 0
        %5823 = vmatmul.mubr.bf16.gmra.mxu0 %v5683
        %v5824 = vpop.f32.mrf.mxu0
        %v5825 = vpop.f32.mrf.mxu0
        %v5826 = vpop.f32.mrf.mxu0
        %v5827 = vpop.f32.mrf.mxu0
        %5828 = vdwg.mxu0
        %v5829 = vadd.f32 %v5665, %v5815
        %v5830 = vadd.f32 %v5667, %v5817
        %v5831 = vadd.f32 %v5669, %v5819
        %v5832 = vadd.f32 %v5671, %v5821
        %v5833 = vld [vmem:[#allocation2 + $0x6] sm:$0xff]
        %v5834 = vld [vmem:[#allocation2 + $0xe] sm:$0xff]
        %v5835 = vld [vmem:[#allocation2 + $0x16] sm:$0x3f]
        %v5836 = vpack.c.bf16 %v5834, %v5833
        %v5837 = vpack.c.bf16 %v5835, %v5835
        %v5838 = vld [vmem:[%s11 + $0x180] sm:$0xff]
        %v5839 = vld [vmem:[%s11 + $0x188] sm:$0xff]
        %v5840 = vld [vmem:[%s11 + $0x190] sm:$0xff]
        %v5841 = vld [vmem:[%s11 + $0x198] sm:$0xff]
        %v5842 = vld [vmem:[%s11 + $0x1a0] sm:$0xff]
        %v5843 = vld [vmem:[%s11 + $0x1a8] sm:$0xff]
        %v5844 = vld [vmem:[%s11 + $0x1b0] sm:$0xff]
        %v5845 = vld [vmem:[%s11 + $0x1b8] sm:$0xff]
        %v5846 = vld [vmem:[%s11 + $0x1c0] sm:$0xff]
        %v5847 = vld [vmem:[%s11 + $0x1c8] sm:$0xff]
        %v5848 = vld [vmem:[%s11 + $0x1d0] sm:$0xff]
        %v5849 = vld [vmem:[%s11 + $0x1d8] sm:$0xff]
        %v5850 = vld [vmem:[%s11 + $0x1e0] sm:$0xff]
        %v5851 = vld [vmem:[%s11 + $0x1e8] sm:$0xff]
        %v5852 = vld [vmem:[%s11 + $0x1f0] sm:$0xff]
        %v5853 = vld [vmem:[%s11 + $0x1f8] sm:$0xff]
        %v5870 = vunpack.c.l.b16 %v5838
        %v5871 = vunpack.c.h.b16 %v5838
        %v5872 = vunpack.c.l.b16 %v5839
        %v5873 = vunpack.c.h.b16 %v5839
        %v5874 = vunpack.c.l.b16 %v5840
        %v5875 = vunpack.c.h.b16 %v5840
        %v5876 = vunpack.c.l.b16 %v5841
        %v5877 = vunpack.c.h.b16 %v5841
        %v5878 = vunpack.c.l.b16 %v5842
        %v5879 = vunpack.c.h.b16 %v5842
        %v5880 = vunpack.c.l.b16 %v5843
        %v5881 = vunpack.c.h.b16 %v5843
        %v5882 = vunpack.c.l.b16 %v5844
        %v5883 = vunpack.c.h.b16 %v5844
        %v5884 = vunpack.c.l.b16 %v5845
        %v5885 = vunpack.c.h.b16 %v5845
        %v5886 = vunpack.c.l.b16 %v5846
        %v5887 = vunpack.c.h.b16 %v5846
        %v5888 = vunpack.c.l.b16 %v5847
        %v5889 = vunpack.c.h.b16 %v5847
        %v5890 = vunpack.c.l.b16 %v5848
        %v5891 = vunpack.c.h.b16 %v5848
        %v5892 = vunpack.c.l.b16 %v5849
        %v5893 = vunpack.c.h.b16 %v5849
        %v5894 = vunpack.c.l.b16 %v5850
        %v5895 = vunpack.c.h.b16 %v5850
        %v5896 = vunpack.c.l.b16 %v5851
        %v5897 = vunpack.c.h.b16 %v5851
        %v5898 = vunpack.c.l.b16 %v5852
        %v5899 = vunpack.c.h.b16 %v5852
        %v5900 = vunpack.c.l.b16 %v5853
        %v5901 = vunpack.c.h.b16 %v5853
        %v5902 = vpack.c.b16 %v5872, %v5870
        %v5903 = vpack.c.b16 %v5873, %v5871
        %v5904 = vpack.c.b16 %v5876, %v5874
        %v5905 = vpack.c.b16 %v5877, %v5875
        %v5906 = vpack.c.b16 %v5880, %v5878
        %v5907 = vpack.c.b16 %v5881, %v5879
        %v5908 = vpack.c.b16 %v5884, %v5882
        %v5909 = vpack.c.b16 %v5885, %v5883
        %v5910 = vpack.c.b16 %v5888, %v5886
        %v5911 = vpack.c.b16 %v5889, %v5887
        %v5912 = vpack.c.b16 %v5892, %v5890
        %v5913 = vpack.c.b16 %v5893, %v5891
        %v5914 = vpack.c.b16 %v5896, %v5894
        %v5915 = vpack.c.b16 %v5897, %v5895
        %v5916 = vpack.c.b16 %v5900, %v5898
        %v5917 = vpack.c.b16 %v5901, %v5899
        %5934 = vmatprep.subr.bf16.mxu0 %v5917
        %5935 = vmatpush1.bf16.msra.mxu0 %v5916
        %5936 = vmatprep.subr.bf16.mxu0 %v5915
        %5937 = vmatpush1.bf16.msra.mxu0 %v5914
        %5938 = vmatprep.subr.bf16.mxu0 %v5913
        %5939 = vmatpush1.bf16.msra.mxu0 %v5912
        %5940 = vmatprep.subr.bf16.mxu0 %v5911
        %5941 = vmatpush1.bf16.msra.mxu0 %v5910
        %5942 = vmatprep.subr.bf16.mxu0 %v5909
        %5943 = vmatpush1.bf16.msra.mxu0 %v5908
        %5944 = vmatprep.subr.bf16.mxu0 %v5907
        %5945 = vmatpush1.bf16.msra.mxu0 %v5906
        %5946 = vmatprep.subr.bf16.mxu0 %v5905
        %5947 = vmatpush1.bf16.msra.mxu0 %v5904
        %5948 = vmatprep.subr.bf16.mxu0 %v5903
        %5949 = vmatpush1.bf16.msra.mxu0 %v5902
        %5950 = vmatprep.subr.bf16.mxu0 0
        %5951 = vmatpush2.bf16.msra.mxu0 0
        %5952 = vmatprep.subr.bf16.mxu0 0
        %5953 = vmatpush2.bf16.msra.mxu0 0
        %5954 = vmatprep.subr.bf16.mxu0 0
        %5955 = vmatpush2.bf16.msra.mxu0 0
        %5956 = vmatprep.subr.bf16.mxu0 0
        %5957 = vmatpush2.bf16.msra.mxu0 0
        %5958 = vmatprep.subr.bf16.mxu0 0
        %5959 = vmatpush2.bf16.msra.mxu0 0
        %5960 = vmatprep.subr.bf16.mxu0 0
        %5961 = vmatpush2.bf16.msra.mxu0 0
        %5962 = vmatprep.subr.bf16.mxu0 0
        %5963 = vmatpush2.bf16.msra.mxu0 0
        %5964 = vmatprep.subr.bf16.mxu0 0
        %5965 = vmatpush2.bf16.msra.mxu0 0
        %5966 = vmatprep.mubr.bf16.mxu0 0
        %5967 = vmatmul.mubr.bf16.gmra.mxu0 %v5836
        %v5968 = vpop.f32.mrf.mxu0
        %v5969 = vadd.f32 0.0, %v5968
        %v5970 = vpop.f32.mrf.mxu0
        %v5971 = vadd.f32 0.0, %v5970
        %v5972 = vpop.f32.mrf.mxu0
        %v5973 = vadd.f32 0.0, %v5972
        %v5974 = vpop.f32.mrf.mxu0
        %v5975 = vadd.f32 0.0, %v5974
        %5976 = vmatprep.mubr.bf16.mxu0 0
        %5977 = vmatmul.mubr.bf16.gmra.mxu0 %v5837
        %v5978 = vpop.f32.mrf.mxu0
        %v5979 = vpop.f32.mrf.mxu0
        %v5980 = vpop.f32.mrf.mxu0
        %v5981 = vpop.f32.mrf.mxu0
        %5982 = vdwg.mxu0
        %v5983 = vadd.f32 %v5829, %v5969
        %v5984 = vadd.f32 %v5830, %v5971
        %v5985 = vadd.f32 %v5831, %v5973
        %v5986 = vadd.f32 %v5832, %v5975
        %v5987 = vld [vmem:[#allocation2 + $0x7] sm:$0xff]
        %v5988 = vld [vmem:[#allocation2 + $0xf] sm:$0xff]
        %v5989 = vld [vmem:[#allocation2 + $0x17] sm:$0x3f]
        %v5990 = vpack.c.bf16 %v5988, %v5987
        %v5991 = vpack.c.bf16 %v5989, %v5989
        %v5992 = vld [vmem:[%s11 + $0x200] sm:$0xff]
        %v5993 = vld [vmem:[%s11 + $0x208] sm:$0xff]
        %v5994 = vld [vmem:[%s11 + $0x210] sm:$0xff]
        %v5995 = vld [vmem:[%s11 + $0x218] sm:$0xff]
        %v5996 = vld [vmem:[%s11 + $0x220] sm:$0xff]
        %v5997 = vld [vmem:[%s11 + $0x228] sm:$0xff]
        %v5998 = vld [vmem:[%s11 + $0x230] sm:$0xff]
        %v5999 = vld [vmem:[%s11 + $0x238] sm:$0xff]
        %v6000 = vld [vmem:[%s11 + $0x240] sm:$0xff]
        %v6001 = vld [vmem:[%s11 + $0x248] sm:$0xff]
        %v6002 = vld [vmem:[%s11 + $0x250] sm:$0xff]
        %v6003 = vld [vmem:[%s11 + $0x258] sm:$0xff]
        %v6004 = vld [vmem:[%s11 + $0x260] sm:$0xff]
        %v6005 = vld [vmem:[%s11 + $0x268] sm:$0xff]
        %v6006 = vld [vmem:[%s11 + $0x270] sm:$0xff]
        %v6007 = vld [vmem:[%s11 + $0x278] sm:$0xff]
        %v6024 = vunpack.c.l.b16 %v5992
        %v6025 = vunpack.c.h.b16 %v5992
        %v6026 = vunpack.c.l.b16 %v5993
        %v6027 = vunpack.c.h.b16 %v5993
        %v6028 = vunpack.c.l.b16 %v5994
        %v6029 = vunpack.c.h.b16 %v5994
        %v6030 = vunpack.c.l.b16 %v5995
        %v6031 = vunpack.c.h.b16 %v5995
        %v6032 = vunpack.c.l.b16 %v5996
        %v6033 = vunpack.c.h.b16 %v5996
        %v6034 = vunpack.c.l.b16 %v5997
        %v6035 = vunpack.c.h.b16 %v5997
        %v6036 = vunpack.c.l.b16 %v5998
        %v6037 = vunpack.c.h.b16 %v5998
        %v6038 = vunpack.c.l.b16 %v5999
        %v6039 = vunpack.c.h.b16 %v5999
        %v6040 = vunpack.c.l.b16 %v6000
        %v6041 = vunpack.c.h.b16 %v6000
        %v6042 = vunpack.c.l.b16 %v6001
        %v6043 = vunpack.c.h.b16 %v6001
        %v6044 = vunpack.c.l.b16 %v6002
        %v6045 = vunpack.c.h.b16 %v6002
        %v6046 = vunpack.c.l.b16 %v6003
        %v6047 = vunpack.c.h.b16 %v6003
        %v6048 = vunpack.c.l.b16 %v6004
        %v6049 = vunpack.c.h.b16 %v6004
        %v6050 = vunpack.c.l.b16 %v6005
        %v6051 = vunpack.c.h.b16 %v6005
        %v6052 = vunpack.c.l.b16 %v6006
        %v6053 = vunpack.c.h.b16 %v6006
        %v6054 = vunpack.c.l.b16 %v6007
        %v6055 = vunpack.c.h.b16 %v6007
        %v6056 = vpack.c.b16 %v6026, %v6024
        %v6057 = vpack.c.b16 %v6027, %v6025
        %v6058 = vpack.c.b16 %v6030, %v6028
        %v6059 = vpack.c.b16 %v6031, %v6029
        %v6060 = vpack.c.b16 %v6034, %v6032
        %v6061 = vpack.c.b16 %v6035, %v6033
        %v6062 = vpack.c.b16 %v6038, %v6036
        %v6063 = vpack.c.b16 %v6039, %v6037
        %v6064 = vpack.c.b16 %v6042, %v6040
        %v6065 = vpack.c.b16 %v6043, %v6041
        %v6066 = vpack.c.b16 %v6046, %v6044
        %v6067 = vpack.c.b16 %v6047, %v6045
        %v6068 = vpack.c.b16 %v6050, %v6048
        %v6069 = vpack.c.b16 %v6051, %v6049
        %v6070 = vpack.c.b16 %v6054, %v6052
        %v6071 = vpack.c.b16 %v6055, %v6053
        %6088 = vmatprep.subr.bf16.mxu0 %v6071
        %6089 = vmatpush1.bf16.msra.mxu0 %v6070
        %6090 = vmatprep.subr.bf16.mxu0 %v6069
        %6091 = vmatpush1.bf16.msra.mxu0 %v6068
        %6092 = vmatprep.subr.bf16.mxu0 %v6067
        %6093 = vmatpush1.bf16.msra.mxu0 %v6066
        %6094 = vmatprep.subr.bf16.mxu0 %v6065
        %6095 = vmatpush1.bf16.msra.mxu0 %v6064
        %6096 = vmatprep.subr.bf16.mxu0 %v6063
        %6097 = vmatpush1.bf16.msra.mxu0 %v6062
        %6098 = vmatprep.subr.bf16.mxu0 %v6061
        %6099 = vmatpush1.bf16.msra.mxu0 %v6060
        %6100 = vmatprep.subr.bf16.mxu0 %v6059
        %6101 = vmatpush1.bf16.msra.mxu0 %v6058
        %6102 = vmatprep.subr.bf16.mxu0 %v6057
        %6103 = vmatpush1.bf16.msra.mxu0 %v6056
        %6104 = vmatprep.subr.bf16.mxu0 0
        %6105 = vmatpush2.bf16.msra.mxu0 0
        %6106 = vmatprep.subr.bf16.mxu0 0
        %6107 = vmatpush2.bf16.msra.mxu0 0
        %6108 = vmatprep.subr.bf16.mxu0 0
        %6109 = vmatpush2.bf16.msra.mxu0 0
        %6110 = vmatprep.subr.bf16.mxu0 0
        %6111 = vmatpush2.bf16.msra.mxu0 0
        %6112 = vmatprep.subr.bf16.mxu0 0
        %6113 = vmatpush2.bf16.msra.mxu0 0
        %6114 = vmatprep.subr.bf16.mxu0 0
        %6115 = vmatpush2.bf16.msra.mxu0 0
        %6116 = vmatprep.subr.bf16.mxu0 0
        %6117 = vmatpush2.bf16.msra.mxu0 0
        %6118 = vmatprep.subr.bf16.mxu0 0
        %6119 = vmatpush2.bf16.msra.mxu0 0
        %6120 = vmatprep.mubr.bf16.mxu0 0
        %6121 = vmatmul.mubr.bf16.gmra.mxu0 %v5990
        %v6122 = vpop.f32.mrf.mxu0
        %v6123 = vadd.f32 0.0, %v6122
        %v6124 = vpop.f32.mrf.mxu0
        %v6125 = vadd.f32 0.0, %v6124
        %v6126 = vpop.f32.mrf.mxu0
        %v6127 = vadd.f32 0.0, %v6126
        %v6128 = vpop.f32.mrf.mxu0
        %v6129 = vadd.f32 0.0, %v6128
        %6130 = vmatprep.mubr.bf16.mxu0 0
        %6131 = vmatmul.mubr.bf16.gmra.mxu0 %v5991
        %v6132 = vpop.f32.mrf.mxu0
        %v6133 = vpop.f32.mrf.mxu0
        %v6134 = vpop.f32.mrf.mxu0
        %v6135 = vpop.f32.mrf.mxu0
        %6136 = vdwg.mxu0
        %v6137 = vadd.f32 %v5983, %v6123
        %v6138 = vadd.f32 %v5984, %v6125
        %v6139 = vadd.f32 %v5985, %v6127
        %v6140 = vadd.f32 %v5986, %v6129
        %v6141 = vld [vmem:[#allocation2 + $0x8] sm:$0xff]
        %v6142 = vld [vmem:[#allocation2 + $0x10] sm:$0xff]
        %v6143 = vld [vmem:[#allocation2 + $0x18] sm:$0x3f]
        %v6144 = vpack.c.bf16 %v6142, %v6141
        %v6145 = vpack.c.bf16 %v6143, %v6143
        %v6146 = vld [vmem:[%s11 + $0x280] sm:$0xff]
        %v6147 = vld [vmem:[%s11 + $0x288] sm:$0xff]
        %v6148 = vld [vmem:[%s11 + $0x290] sm:$0xff]
        %v6149 = vld [vmem:[%s11 + $0x298] sm:$0xff]
        %v6150 = vld [vmem:[%s11 + $0x2a0] sm:$0xff]
        %v6151 = vld [vmem:[%s11 + $0x2a8] sm:$0xff]
        %v6152 = vld [vmem:[%s11 + $0x2b0] sm:$0xff]
        %v6153 = vld [vmem:[%s11 + $0x2b8] sm:$0xff]
        %v6154 = vld [vmem:[%s11 + $0x2c0] sm:$0xff]
        %v6155 = vld [vmem:[%s11 + $0x2c8] sm:$0xff]
        %v6156 = vld [vmem:[%s11 + $0x2d0] sm:$0xff]
        %v6157 = vld [vmem:[%s11 + $0x2d8] sm:$0xff]
        %v6158 = vld [vmem:[%s11 + $0x2e0] sm:$0xff]
        %v6159 = vld [vmem:[%s11 + $0x2e8] sm:$0xff]
        %v6160 = vld [vmem:[%s11 + $0x2f0] sm:$0xff]
        %v6161 = vld [vmem:[%s11 + $0x2f8] sm:$0xff]
        %v6178 = vunpack.c.l.b16 %v6146
        %v6179 = vunpack.c.h.b16 %v6146
        %v6180 = vunpack.c.l.b16 %v6147
        %v6181 = vunpack.c.h.b16 %v6147
        %v6182 = vunpack.c.l.b16 %v6148
        %v6183 = vunpack.c.h.b16 %v6148
        %v6184 = vunpack.c.l.b16 %v6149
        %v6185 = vunpack.c.h.b16 %v6149
        %v6186 = vunpack.c.l.b16 %v6150
        %v6187 = vunpack.c.h.b16 %v6150
        %v6188 = vunpack.c.l.b16 %v6151
        %v6189 = vunpack.c.h.b16 %v6151
        %v6190 = vunpack.c.l.b16 %v6152
        %v6191 = vunpack.c.h.b16 %v6152
        %v6192 = vunpack.c.l.b16 %v6153
        %v6193 = vunpack.c.h.b16 %v6153
        %v6194 = vunpack.c.l.b16 %v6154
        %v6195 = vunpack.c.h.b16 %v6154
        %v6196 = vunpack.c.l.b16 %v6155
        %v6197 = vunpack.c.h.b16 %v6155
        %v6198 = vunpack.c.l.b16 %v6156
        %v6199 = vunpack.c.h.b16 %v6156
        %v6200 = vunpack.c.l.b16 %v6157
        %v6201 = vunpack.c.h.b16 %v6157
        %v6202 = vunpack.c.l.b16 %v6158
        %v6203 = vunpack.c.h.b16 %v6158
        %v6204 = vunpack.c.l.b16 %v6159
        %v6205 = vunpack.c.h.b16 %v6159
        %v6206 = vunpack.c.l.b16 %v6160
        %v6207 = vunpack.c.h.b16 %v6160
        %v6208 = vunpack.c.l.b16 %v6161
        %v6209 = vunpack.c.h.b16 %v6161
        %v6210 = vpack.c.b16 %v6180, %v6178
        %v6211 = vpack.c.b16 %v6181, %v6179
        %v6212 = vpack.c.b16 %v6184, %v6182
        %v6213 = vpack.c.b16 %v6185, %v6183
        %v6214 = vpack.c.b16 %v6188, %v6186
        %v6215 = vpack.c.b16 %v6189, %v6187
        %v6216 = vpack.c.b16 %v6192, %v6190
        %v6217 = vpack.c.b16 %v6193, %v6191
        %v6218 = vpack.c.b16 %v6196, %v6194
        %v6219 = vpack.c.b16 %v6197, %v6195
        %v6220 = vpack.c.b16 %v6200, %v6198
        %v6221 = vpack.c.b16 %v6201, %v6199
        %v6222 = vpack.c.b16 %v6204, %v6202
        %v6223 = vpack.c.b16 %v6205, %v6203
        %v6224 = vpack.c.b16 %v6208, %v6206
        %v6225 = vpack.c.b16 %v6209, %v6207
        %6242 = vmatprep.subr.bf16.mxu0 %v6225
        %6243 = vmatpush1.bf16.msra.mxu0 %v6224
        %6244 = vmatprep.subr.bf16.mxu0 %v6223
        %6245 = vmatpush1.bf16.msra.mxu0 %v6222
        %6246 = vmatprep.subr.bf16.mxu0 %v6221
        %6247 = vmatpush1.bf16.msra.mxu0 %v6220
        %6248 = vmatprep.subr.bf16.mxu0 %v6219
        %6249 = vmatpush1.bf16.msra.mxu0 %v6218
        %6250 = vmatprep.subr.bf16.mxu0 %v6217
        %6251 = vmatpush1.bf16.msra.mxu0 %v6216
        %6252 = vmatprep.subr.bf16.mxu0 %v6215
        %6253 = vmatpush1.bf16.msra.mxu0 %v6214
        %6254 = vmatprep.subr.bf16.mxu0 %v6213
        %6255 = vmatpush1.bf16.msra.mxu0 %v6212
        %6256 = vmatprep.subr.bf16.mxu0 %v6211
        %6257 = vmatpush1.bf16.msra.mxu0 %v6210
        %6258 = vmatprep.subr.bf16.mxu0 0
        %6259 = vmatpush2.bf16.msra.mxu0 0
        %6260 = vmatprep.subr.bf16.mxu0 0
        %6261 = vmatpush2.bf16.msra.mxu0 0
        %6262 = vmatprep.subr.bf16.mxu0 0
        %6263 = vmatpush2.bf16.msra.mxu0 0
        %6264 = vmatprep.subr.bf16.mxu0 0
        %6265 = vmatpush2.bf16.msra.mxu0 0
        %6266 = vmatprep.subr.bf16.mxu0 0
        %6267 = vmatpush2.bf16.msra.mxu0 0
        %6268 = vmatprep.subr.bf16.mxu0 0
        %6269 = vmatpush2.bf16.msra.mxu0 0
        %6270 = vmatprep.subr.bf16.mxu0 0
        %6271 = vmatpush2.bf16.msra.mxu0 0
        %6272 = vmatprep.subr.bf16.mxu0 0
        %6273 = vmatpush2.bf16.msra.mxu0 0
        %6274 = vmatprep.mubr.bf16.mxu0 0
        %6275 = vmatmul.mubr.bf16.gmra.mxu0 %v6144
        %v6276 = vpop.f32.mrf.mxu0
        %v6277 = vadd.f32 0.0, %v6276
        %v6278 = vpop.f32.mrf.mxu0
        %v6279 = vadd.f32 0.0, %v6278
        %v6280 = vpop.f32.mrf.mxu0
        %v6281 = vadd.f32 0.0, %v6280
        %v6282 = vpop.f32.mrf.mxu0
        %v6283 = vadd.f32 0.0, %v6282
        %6284 = vmatprep.mubr.bf16.mxu0 0
        %6285 = vmatmul.mubr.bf16.gmra.mxu0 %v6145
        %v6286 = vpop.f32.mrf.mxu0
        %v6287 = vpop.f32.mrf.mxu0
        %v6288 = vpop.f32.mrf.mxu0
        %v6289 = vpop.f32.mrf.mxu0
        %6290 = vdwg.mxu0
        %v6291 = vadd.f32 %v6137, %v6277
        %v6292 = vadd.f32 %v6138, %v6279
        %v6293 = vadd.f32 %v6139, %v6281
        %v6294 = vadd.f32 %v6140, %v6283
        %v6295 = vld [vmem:[#allocation2 + $0xc] sm:$0xff]
        %v6296 = vld [vmem:[#allocation2 + $0x14] sm:$0xff]
        %v6297 = vld [vmem:[#allocation2 + $0x1c] sm:$0x3f]
        %v6298 = vpack.c.bf16 %v6296, %v6295
        %v6299 = vpack.c.bf16 %v6297, %v6297
        %v6300 = vld [vmem:[%s11 + $0x300] sm:$0xff]
        %v6301 = vld [vmem:[%s11 + $0x308] sm:$0xff]
        %v6302 = vld [vmem:[%s11 + $0x310] sm:$0xff]
        %v6303 = vld [vmem:[%s11 + $0x318] sm:$0xff]
        %v6304 = vld [vmem:[%s11 + $0x320] sm:$0xff]
        %v6305 = vld [vmem:[%s11 + $0x328] sm:$0xff]
        %v6306 = vld [vmem:[%s11 + $0x330] sm:$0xff]
        %v6307 = vld [vmem:[%s11 + $0x338] sm:$0xff]
        %v6308 = vld [vmem:[%s11 + $0x340] sm:$0xff]
        %v6309 = vld [vmem:[%s11 + $0x348] sm:$0xff]
        %v6310 = vld [vmem:[%s11 + $0x350] sm:$0xff]
        %v6311 = vld [vmem:[%s11 + $0x358] sm:$0xff]
        %v6312 = vld [vmem:[%s11 + $0x360] sm:$0xff]
        %v6313 = vld [vmem:[%s11 + $0x368] sm:$0xff]
        %v6314 = vld [vmem:[%s11 + $0x370] sm:$0xff]
        %v6315 = vld [vmem:[%s11 + $0x378] sm:$0xff]
        %v6332 = vunpack.c.l.b16 %v6300
        %v6333 = vunpack.c.h.b16 %v6300
        %v6334 = vunpack.c.l.b16 %v6301
        %v6335 = vunpack.c.h.b16 %v6301
        %v6336 = vunpack.c.l.b16 %v6302
        %v6337 = vunpack.c.h.b16 %v6302
        %v6338 = vunpack.c.l.b16 %v6303
        %v6339 = vunpack.c.h.b16 %v6303
        %v6340 = vunpack.c.l.b16 %v6304
        %v6341 = vunpack.c.h.b16 %v6304
        %v6342 = vunpack.c.l.b16 %v6305
        %v6343 = vunpack.c.h.b16 %v6305
        %v6344 = vunpack.c.l.b16 %v6306
        %v6345 = vunpack.c.h.b16 %v6306
        %v6346 = vunpack.c.l.b16 %v6307
        %v6347 = vunpack.c.h.b16 %v6307
        %v6348 = vunpack.c.l.b16 %v6308
        %v6349 = vunpack.c.h.b16 %v6308
        %v6350 = vunpack.c.l.b16 %v6309
        %v6351 = vunpack.c.h.b16 %v6309
        %v6352 = vunpack.c.l.b16 %v6310
        %v6353 = vunpack.c.h.b16 %v6310
        %v6354 = vunpack.c.l.b16 %v6311
        %v6355 = vunpack.c.h.b16 %v6311
        %v6356 = vunpack.c.l.b16 %v6312
        %v6357 = vunpack.c.h.b16 %v6312
        %v6358 = vunpack.c.l.b16 %v6313
        %v6359 = vunpack.c.h.b16 %v6313
        %v6360 = vunpack.c.l.b16 %v6314
        %v6361 = vunpack.c.h.b16 %v6314
        %v6362 = vunpack.c.l.b16 %v6315
        %v6363 = vunpack.c.h.b16 %v6315
        %v6364 = vpack.c.b16 %v6334, %v6332
        %v6365 = vpack.c.b16 %v6335, %v6333
        %v6366 = vpack.c.b16 %v6338, %v6336
        %v6367 = vpack.c.b16 %v6339, %v6337
        %v6368 = vpack.c.b16 %v6342, %v6340
        %v6369 = vpack.c.b16 %v6343, %v6341
        %v6370 = vpack.c.b16 %v6346, %v6344
        %v6371 = vpack.c.b16 %v6347, %v6345
        %v6372 = vpack.c.b16 %v6350, %v6348
        %v6373 = vpack.c.b16 %v6351, %v6349
        %v6374 = vpack.c.b16 %v6354, %v6352
        %v6375 = vpack.c.b16 %v6355, %v6353
        %v6376 = vpack.c.b16 %v6358, %v6356
        %v6377 = vpack.c.b16 %v6359, %v6357
        %v6378 = vpack.c.b16 %v6362, %v6360
        %v6379 = vpack.c.b16 %v6363, %v6361
        %6396 = vmatprep.subr.bf16.mxu0 %v6379
        %6397 = vmatpush1.bf16.msra.mxu0 %v6378
        %6398 = vmatprep.subr.bf16.mxu0 %v6377
        %6399 = vmatpush1.bf16.msra.mxu0 %v6376
        %6400 = vmatprep.subr.bf16.mxu0 %v6375
        %6401 = vmatpush1.bf16.msra.mxu0 %v6374
        %6402 = vmatprep.subr.bf16.mxu0 %v6373
        %6403 = vmatpush1.bf16.msra.mxu0 %v6372
        %6404 = vmatprep.subr.bf16.mxu0 %v6371
        %6405 = vmatpush1.bf16.msra.mxu0 %v6370
        %6406 = vmatprep.subr.bf16.mxu0 %v6369
        %6407 = vmatpush1.bf16.msra.mxu0 %v6368
        %6408 = vmatprep.subr.bf16.mxu0 %v6367
        %6409 = vmatpush1.bf16.msra.mxu0 %v6366
        %6410 = vmatprep.subr.bf16.mxu0 %v6365
        %6411 = vmatpush1.bf16.msra.mxu0 %v6364
        %6412 = vmatprep.subr.bf16.mxu0 0
        %6413 = vmatpush2.bf16.msra.mxu0 0
        %6414 = vmatprep.subr.bf16.mxu0 0
        %6415 = vmatpush2.bf16.msra.mxu0 0
        %6416 = vmatprep.subr.bf16.mxu0 0
        %6417 = vmatpush2.bf16.msra.mxu0 0
        %6418 = vmatprep.subr.bf16.mxu0 0
        %6419 = vmatpush2.bf16.msra.mxu0 0
        %6420 = vmatprep.subr.bf16.mxu0 0
        %6421 = vmatpush2.bf16.msra.mxu0 0
        %6422 = vmatprep.subr.bf16.mxu0 0
        %6423 = vmatpush2.bf16.msra.mxu0 0
        %6424 = vmatprep.subr.bf16.mxu0 0
        %6425 = vmatpush2.bf16.msra.mxu0 0
        %6426 = vmatprep.subr.bf16.mxu0 0
        %6427 = vmatpush2.bf16.msra.mxu0 0
        %6428 = vmatprep.mubr.bf16.mxu0 0
        %6429 = vmatmul.mubr.bf16.gmra.mxu0 %v6298
        %v6430 = vpop.f32.mrf.mxu0
        %v6431 = vadd.f32 0.0, %v6430
        %v6432 = vpop.f32.mrf.mxu0
        %v6433 = vadd.f32 0.0, %v6432
        %v6434 = vpop.f32.mrf.mxu0
        %v6435 = vadd.f32 0.0, %v6434
        %v6436 = vpop.f32.mrf.mxu0
        %v6437 = vadd.f32 0.0, %v6436
        %6438 = vmatprep.mubr.bf16.mxu0 0
        %6439 = vmatmul.mubr.bf16.gmra.mxu0 %v6299
        %v6440 = vpop.f32.mrf.mxu0
        %v6441 = vpop.f32.mrf.mxu0
        %v6442 = vpop.f32.mrf.mxu0
        %v6443 = vpop.f32.mrf.mxu0
        %6444 = vdwg.mxu0
        %v6445 = vadd.f32 %v6291, %v6431
        %v6446 = vadd.f32 %v6292, %v6433
        %v6447 = vadd.f32 %v6293, %v6435
        %v6448 = vadd.f32 %v6294, %v6437
        %v6449 = vld [vmem:[#allocation2 + $0xd] sm:$0xff]
        %v6450 = vld [vmem:[#allocation2 + $0x15] sm:$0xff]
        %v6451 = vld [vmem:[#allocation2 + $0x1d] sm:$0x3f]
        %v6452 = vpack.c.bf16 %v6450, %v6449
        %v6453 = vpack.c.bf16 %v6451, %v6451
        %v6454 = vld [vmem:[%s11 + $0x380] sm:$0xff]
        %v6455 = vld [vmem:[%s11 + $0x388] sm:$0xff]
        %v6456 = vld [vmem:[%s11 + $0x390] sm:$0xff]
        %v6457 = vld [vmem:[%s11 + $0x398] sm:$0xff]
        %v6458 = vld [vmem:[%s11 + $0x3a0] sm:$0xff]
        %v6459 = vld [vmem:[%s11 + $0x3a8] sm:$0xff]
        %v6460 = vld [vmem:[%s11 + $0x3b0] sm:$0xff]
        %v6461 = vld [vmem:[%s11 + $0x3b8] sm:$0xff]
        %v6462 = vld [vmem:[%s11 + $0x3c0] sm:$0xff]
        %v6463 = vld [vmem:[%s11 + $0x3c8] sm:$0xff]
        %v6464 = vld [vmem:[%s11 + $0x3d0] sm:$0xff]
        %v6465 = vld [vmem:[%s11 + $0x3d8] sm:$0xff]
        %v6466 = vld [vmem:[%s11 + $0x3e0] sm:$0xff]
        %v6467 = vld [vmem:[%s11 + $0x3e8] sm:$0xff]
        %v6468 = vld [vmem:[%s11 + $0x3f0] sm:$0xff]
        %v6469 = vld [vmem:[%s11 + $0x3f8] sm:$0xff]
        %v6486 = vunpack.c.l.b16 %v6454
        %v6487 = vunpack.c.h.b16 %v6454
        %v6488 = vunpack.c.l.b16 %v6455
        %v6489 = vunpack.c.h.b16 %v6455
        %v6490 = vunpack.c.l.b16 %v6456
        %v6491 = vunpack.c.h.b16 %v6456
        %v6492 = vunpack.c.l.b16 %v6457
        %v6493 = vunpack.c.h.b16 %v6457
        %v6494 = vunpack.c.l.b16 %v6458
        %v6495 = vunpack.c.h.b16 %v6458
        %v6496 = vunpack.c.l.b16 %v6459
        %v6497 = vunpack.c.h.b16 %v6459
        %v6498 = vunpack.c.l.b16 %v6460
        %v6499 = vunpack.c.h.b16 %v6460
        %v6500 = vunpack.c.l.b16 %v6461
        %v6501 = vunpack.c.h.b16 %v6461
        %v6502 = vunpack.c.l.b16 %v6462
        %v6503 = vunpack.c.h.b16 %v6462
        %v6504 = vunpack.c.l.b16 %v6463
        %v6505 = vunpack.c.h.b16 %v6463
        %v6506 = vunpack.c.l.b16 %v6464
        %v6507 = vunpack.c.h.b16 %v6464
        %v6508 = vunpack.c.l.b16 %v6465
        %v6509 = vunpack.c.h.b16 %v6465
        %v6510 = vunpack.c.l.b16 %v6466
        %v6511 = vunpack.c.h.b16 %v6466
        %v6512 = vunpack.c.l.b16 %v6467
        %v6513 = vunpack.c.h.b16 %v6467
        %v6514 = vunpack.c.l.b16 %v6468
        %v6515 = vunpack.c.h.b16 %v6468
        %v6516 = vunpack.c.l.b16 %v6469
        %v6517 = vunpack.c.h.b16 %v6469
        %v6518 = vpack.c.b16 %v6488, %v6486
        %v6519 = vpack.c.b16 %v6489, %v6487
        %v6520 = vpack.c.b16 %v6492, %v6490
        %v6521 = vpack.c.b16 %v6493, %v6491
        %v6522 = vpack.c.b16 %v6496, %v6494
        %v6523 = vpack.c.b16 %v6497, %v6495
        %v6524 = vpack.c.b16 %v6500, %v6498
        %v6525 = vpack.c.b16 %v6501, %v6499
        %v6526 = vpack.c.b16 %v6504, %v6502
        %v6527 = vpack.c.b16 %v6505, %v6503
        %v6528 = vpack.c.b16 %v6508, %v6506
        %v6529 = vpack.c.b16 %v6509, %v6507
        %v6530 = vpack.c.b16 %v6512, %v6510
        %v6531 = vpack.c.b16 %v6513, %v6511
        %v6532 = vpack.c.b16 %v6516, %v6514
        %v6533 = vpack.c.b16 %v6517, %v6515
        %6550 = vmatprep.subr.bf16.mxu0 %v6533
        %6551 = vmatpush1.bf16.msra.mxu0 %v6532
        %6552 = vmatprep.subr.bf16.mxu0 %v6531
        %6553 = vmatpush1.bf16.msra.mxu0 %v6530
        %6554 = vmatprep.subr.bf16.mxu0 %v6529
        %6555 = vmatpush1.bf16.msra.mxu0 %v6528
        %6556 = vmatprep.subr.bf16.mxu0 %v6527
        %6557 = vmatpush1.bf16.msra.mxu0 %v6526
        %6558 = vmatprep.subr.bf16.mxu0 %v6525
        %6559 = vmatpush1.bf16.msra.mxu0 %v6524
        %6560 = vmatprep.subr.bf16.mxu0 %v6523
        %6561 = vmatpush1.bf16.msra.mxu0 %v6522
        %6562 = vmatprep.subr.bf16.mxu0 %v6521
        %6563 = vmatpush1.bf16.msra.mxu0 %v6520
        %6564 = vmatprep.subr.bf16.mxu0 %v6519
        %6565 = vmatpush1.bf16.msra.mxu0 %v6518
        %6566 = vmatprep.subr.bf16.mxu0 0
        %6567 = vmatpush2.bf16.msra.mxu0 0
        %6568 = vmatprep.subr.bf16.mxu0 0
        %6569 = vmatpush2.bf16.msra.mxu0 0
        %6570 = vmatprep.subr.bf16.mxu0 0
        %6571 = vmatpush2.bf16.msra.mxu0 0
        %6572 = vmatprep.subr.bf16.mxu0 0
        %6573 = vmatpush2.bf16.msra.mxu0 0
        %6574 = vmatprep.subr.bf16.mxu0 0
        %6575 = vmatpush2.bf16.msra.mxu0 0
        %6576 = vmatprep.subr.bf16.mxu0 0
        %6577 = vmatpush2.bf16.msra.mxu0 0
        %6578 = vmatprep.subr.bf16.mxu0 0
        %6579 = vmatpush2.bf16.msra.mxu0 0
        %6580 = vmatprep.subr.bf16.mxu0 0
        %6581 = vmatpush2.bf16.msra.mxu0 0
        %6582 = vmatprep.mubr.bf16.mxu0 0
        %6583 = vmatmul.mubr.bf16.gmra.mxu0 %v6452
        %v6584 = vpop.f32.mrf.mxu0
        %v6585 = vadd.f32 0.0, %v6584
        %v6586 = vpop.f32.mrf.mxu0
        %v6587 = vadd.f32 0.0, %v6586
        %v6588 = vpop.f32.mrf.mxu0
        %v6589 = vadd.f32 0.0, %v6588
        %v6590 = vpop.f32.mrf.mxu0
        %v6591 = vadd.f32 0.0, %v6590
        %6592 = vmatprep.mubr.bf16.mxu0 0
        %6593 = vmatmul.mubr.bf16.gmra.mxu0 %v6453
        %v6594 = vpop.f32.mrf.mxu0
        %v6595 = vpop.f32.mrf.mxu0
        %v6596 = vpop.f32.mrf.mxu0
        %v6597 = vpop.f32.mrf.mxu0
        %6598 = vdwg.mxu0
        %v6599 = vadd.f32 %v6445, %v6585
        %v6600 = vadd.f32 %v6446, %v6587
        %v6601 = vadd.f32 %v6447, %v6589
        %v6602 = vadd.f32 %v6448, %v6591
        %v6603 = vld [vmem:[#allocation2 + $0xe] sm:$0xff]
        %v6604 = vld [vmem:[#allocation2 + $0x16] sm:$0xff]
        %v6605 = vld [vmem:[#allocation2 + $0x1e] sm:$0x3f]
        %v6606 = vpack.c.bf16 %v6604, %v6603
        %v6607 = vpack.c.bf16 %v6605, %v6605
        %v6608 = vld [vmem:[%s11 + $0x400] sm:$0xff]
        %v6609 = vld [vmem:[%s11 + $0x408] sm:$0xff]
        %v6610 = vld [vmem:[%s11 + $0x410] sm:$0xff]
        %v6611 = vld [vmem:[%s11 + $0x418] sm:$0xff]
        %v6612 = vld [vmem:[%s11 + $0x420] sm:$0xff]
        %v6613 = vld [vmem:[%s11 + $0x428] sm:$0xff]
        %v6614 = vld [vmem:[%s11 + $0x430] sm:$0xff]
        %v6615 = vld [vmem:[%s11 + $0x438] sm:$0xff]
        %v6616 = vld [vmem:[%s11 + $0x440] sm:$0xff]
        %v6617 = vld [vmem:[%s11 + $0x448] sm:$0xff]
        %v6618 = vld [vmem:[%s11 + $0x450] sm:$0xff]
        %v6619 = vld [vmem:[%s11 + $0x458] sm:$0xff]
        %v6620 = vld [vmem:[%s11 + $0x460] sm:$0xff]
        %v6621 = vld [vmem:[%s11 + $0x468] sm:$0xff]
        %v6622 = vld [vmem:[%s11 + $0x470] sm:$0xff]
        %v6623 = vld [vmem:[%s11 + $0x478] sm:$0xff]
        %v6640 = vunpack.c.l.b16 %v6608
        %v6641 = vunpack.c.h.b16 %v6608
        %v6642 = vunpack.c.l.b16 %v6609
        %v6643 = vunpack.c.h.b16 %v6609
        %v6644 = vunpack.c.l.b16 %v6610
        %v6645 = vunpack.c.h.b16 %v6610
        %v6646 = vunpack.c.l.b16 %v6611
        %v6647 = vunpack.c.h.b16 %v6611
        %v6648 = vunpack.c.l.b16 %v6612
        %v6649 = vunpack.c.h.b16 %v6612
        %v6650 = vunpack.c.l.b16 %v6613
        %v6651 = vunpack.c.h.b16 %v6613
        %v6652 = vunpack.c.l.b16 %v6614
        %v6653 = vunpack.c.h.b16 %v6614
        %v6654 = vunpack.c.l.b16 %v6615
        %v6655 = vunpack.c.h.b16 %v6615
        %v6656 = vunpack.c.l.b16 %v6616
        %v6657 = vunpack.c.h.b16 %v6616
        %v6658 = vunpack.c.l.b16 %v6617
        %v6659 = vunpack.c.h.b16 %v6617
        %v6660 = vunpack.c.l.b16 %v6618
        %v6661 = vunpack.c.h.b16 %v6618
        %v6662 = vunpack.c.l.b16 %v6619
        %v6663 = vunpack.c.h.b16 %v6619
        %v6664 = vunpack.c.l.b16 %v6620
        %v6665 = vunpack.c.h.b16 %v6620
        %v6666 = vunpack.c.l.b16 %v6621
        %v6667 = vunpack.c.h.b16 %v6621
        %v6668 = vunpack.c.l.b16 %v6622
        %v6669 = vunpack.c.h.b16 %v6622
        %v6670 = vunpack.c.l.b16 %v6623
        %v6671 = vunpack.c.h.b16 %v6623
        %v6672 = vpack.c.b16 %v6642, %v6640
        %v6673 = vpack.c.b16 %v6643, %v6641
        %v6674 = vpack.c.b16 %v6646, %v6644
        %v6675 = vpack.c.b16 %v6647, %v6645
        %v6676 = vpack.c.b16 %v6650, %v6648
        %v6677 = vpack.c.b16 %v6651, %v6649
        %v6678 = vpack.c.b16 %v6654, %v6652
        %v6679 = vpack.c.b16 %v6655, %v6653
        %v6680 = vpack.c.b16 %v6658, %v6656
        %v6681 = vpack.c.b16 %v6659, %v6657
        %v6682 = vpack.c.b16 %v6662, %v6660
        %v6683 = vpack.c.b16 %v6663, %v6661
        %v6684 = vpack.c.b16 %v6666, %v6664
        %v6685 = vpack.c.b16 %v6667, %v6665
        %v6686 = vpack.c.b16 %v6670, %v6668
        %v6687 = vpack.c.b16 %v6671, %v6669
        %6704 = vmatprep.subr.bf16.mxu0 %v6687
        %6705 = vmatpush1.bf16.msra.mxu0 %v6686
        %6706 = vmatprep.subr.bf16.mxu0 %v6685
        %6707 = vmatpush1.bf16.msra.mxu0 %v6684
        %6708 = vmatprep.subr.bf16.mxu0 %v6683
        %6709 = vmatpush1.bf16.msra.mxu0 %v6682
        %6710 = vmatprep.subr.bf16.mxu0 %v6681
        %6711 = vmatpush1.bf16.msra.mxu0 %v6680
        %6712 = vmatprep.subr.bf16.mxu0 %v6679
        %6713 = vmatpush1.bf16.msra.mxu0 %v6678
        %6714 = vmatprep.subr.bf16.mxu0 %v6677
        %6715 = vmatpush1.bf16.msra.mxu0 %v6676
        %6716 = vmatprep.subr.bf16.mxu0 %v6675
        %6717 = vmatpush1.bf16.msra.mxu0 %v6674
        %6718 = vmatprep.subr.bf16.mxu0 %v6673
        %6719 = vmatpush1.bf16.msra.mxu0 %v6672
        %6720 = vmatprep.subr.bf16.mxu0 0
        %6721 = vmatpush2.bf16.msra.mxu0 0
        %6722 = vmatprep.subr.bf16.mxu0 0
        %6723 = vmatpush2.bf16.msra.mxu0 0
        %6724 = vmatprep.subr.bf16.mxu0 0
        %6725 = vmatpush2.bf16.msra.mxu0 0
        %6726 = vmatprep.subr.bf16.mxu0 0
        %6727 = vmatpush2.bf16.msra.mxu0 0
        %6728 = vmatprep.subr.bf16.mxu0 0
        %6729 = vmatpush2.bf16.msra.mxu0 0
        %6730 = vmatprep.subr.bf16.mxu0 0
        %6731 = vmatpush2.bf16.msra.mxu0 0
        %6732 = vmatprep.subr.bf16.mxu0 0
        %6733 = vmatpush2.bf16.msra.mxu0 0
        %6734 = vmatprep.subr.bf16.mxu0 0
        %6735 = vmatpush2.bf16.msra.mxu0 0
        %6736 = vmatprep.mubr.bf16.mxu0 0
        %6737 = vmatmul.mubr.bf16.gmra.mxu0 %v6606
        %v6738 = vpop.f32.mrf.mxu0
        %v6739 = vadd.f32 0.0, %v6738
        %v6740 = vpop.f32.mrf.mxu0
        %v6741 = vadd.f32 0.0, %v6740
        %v6742 = vpop.f32.mrf.mxu0
        %v6743 = vadd.f32 0.0, %v6742
        %v6744 = vpop.f32.mrf.mxu0
        %v6745 = vadd.f32 0.0, %v6744
        %6746 = vmatprep.mubr.bf16.mxu0 0
        %6747 = vmatmul.mubr.bf16.gmra.mxu0 %v6607
        %v6748 = vpop.f32.mrf.mxu0
        %v6749 = vpop.f32.mrf.mxu0
        %v6750 = vpop.f32.mrf.mxu0
        %v6751 = vpop.f32.mrf.mxu0
        %6752 = vdwg.mxu0
        %v6753 = vadd.f32 %v6599, %v6739
        %v6754 = vadd.f32 %v6600, %v6741
        %v6755 = vadd.f32 %v6601, %v6743
        %v6756 = vadd.f32 %v6602, %v6745
        %v6759 = vrot.slane %v6753, 1
        %v6760 = vrot.slane %v6754, 1
        %v6765 = vrot.slane %v6755, 2
        %v6766 = vrot.slane %v6756, 2
        %v6769 = vrot.slane %v6755, 3
        %v6770 = vrot.slane %v6756, 3
        %v6773 = vsel %vm877, %v6753, %v6759
        %v6774 = vsel %vm877, %v6754, %v6760
        %v6775 = vsel %vm879, %v6773, %v6765
        %v6776 = vsel %vm879, %v6774, %v6766
        %v6777 = vsel %vm881, %v6775, %v6769
        %v6778 = vsel %vm881, %v6776, %v6770
        %v6779 = vld [vmem:[%s12] sm:$0x3]
        %v6781 = vlaneseq
        %v6782 = vshrl.u32 %v6781, 7
        %v6783 = vsub.s32 0, %v6782
        %v6784 = vrot.slane %v6779, %v6783
        %v6785 = vlaneseq
        %v6786 = vshrl.u32 %v6785, 7
        %v6787 = vsub.s32 1, %v6786
        %v6788 = vrot.slane %v6779, %v6787
        %v6791 = vadd.f32 %v6777, %v6784
        %v6792 = vadd.f32 %v6778, %v6788
        %v6793 = vmax.f32 %v6791, 0.0
        %6794 = vst [vmem:[#allocation3] sm:$0xff] 0.0
        %6795 = vst [vmem:[#allocation3 + $0x8] sm:$0xff] 0.0
        %6796 = vst [vmem:[#allocation3 + $0x10] sm:$0xff] 0.0
        %6797 = vst [vmem:[#allocation3 + $0x18] sm:$0xff] 0.0
        %6798 = vst [vmem:[#allocation3 + $0x20] sm:$0xf] 0.0
        %6799 = vst [vmem:[#allocation3 + $0x5] sm:$0x3] %v6793
        %6800 = vst [vmem:[#allocation3 + $0x7] sm:$0xc] %v6793
        %v6801 = vld [vmem:[#allocation3] sm:$0x3f]
        %v6802 = vpack.c.bf16 %v6801, %v6801
        %v6803 = vld [vmem:[%s13] sm:$0xf]
        %v6804 = vld [vmem:[%s13 + $0x4] sm:$0xf]
        %v6805 = vld [vmem:[%s13 + $0x8] sm:$0xf]
        %v6806 = vld [vmem:[%s13 + $0xc] sm:$0xf]
        %v6807 = vld [vmem:[%s13 + $0x10] sm:$0xf]
        %v6808 = vld [vmem:[%s13 + $0x14] sm:$0xf]
        %v6809 = vld [vmem:[%s13 + $0x18] sm:$0xf]
        %v6810 = vld [vmem:[%s13 + $0x1c] sm:$0xf]
        %v6811 = vld [vmem:[%s13 + $0x20] sm:$0xf]
        %v6812 = vld [vmem:[%s13 + $0x24] sm:$0xf]
        %v6813 = vld [vmem:[%s13 + $0x28] sm:$0xf]
        %v6814 = vld [vmem:[%s13 + $0x2c] sm:$0xf]
        %v6815 = vld [vmem:[%s13 + $0x30] sm:$0xf]
        %v6816 = vld [vmem:[%s13 + $0x34] sm:$0xf]
        %v6817 = vld [vmem:[%s13 + $0x38] sm:$0xf]
        %v6818 = vld [vmem:[%s13 + $0x3c] sm:$0xf]
        %v6819 = vld [vmem:[#allocation3 + $0x1] sm:$0x3f]
        %v6820 = vpack.c.bf16 %v6819, %v6819
        %v6821 = vld [vmem:[%s13 + $0x40] sm:$0xf]
        %v6822 = vld [vmem:[%s13 + $0x44] sm:$0xf]
        %v6823 = vld [vmem:[%s13 + $0x48] sm:$0xf]
        %v6824 = vld [vmem:[%s13 + $0x4c] sm:$0xf]
        %v6825 = vld [vmem:[%s13 + $0x50] sm:$0xf]
        %v6826 = vld [vmem:[%s13 + $0x54] sm:$0xf]
        %v6827 = vld [vmem:[%s13 + $0x58] sm:$0xf]
        %v6828 = vld [vmem:[%s13 + $0x5c] sm:$0xf]
        %v6829 = vld [vmem:[%s13 + $0x60] sm:$0xf]
        %v6830 = vld [vmem:[%s13 + $0x64] sm:$0xf]
        %v6831 = vld [vmem:[%s13 + $0x68] sm:$0xf]
        %v6832 = vld [vmem:[%s13 + $0x6c] sm:$0xf]
        %v6833 = vld [vmem:[%s13 + $0x70] sm:$0xf]
        %v6834 = vld [vmem:[%s13 + $0x74] sm:$0xf]
        %v6835 = vld [vmem:[%s13 + $0x78] sm:$0xf]
        %v6836 = vld [vmem:[%s13 + $0x7c] sm:$0xf]
        %v6853 = vunpack.c.l.b16 %v6821
        %v6854 = vunpack.c.l.b16 %v6822
        %v6855 = vunpack.c.l.b16 %v6823
        %v6856 = vunpack.c.l.b16 %v6824
        %v6857 = vunpack.c.l.b16 %v6825
        %v6858 = vunpack.c.l.b16 %v6826
        %v6859 = vunpack.c.l.b16 %v6827
        %v6860 = vunpack.c.l.b16 %v6828
        %v6861 = vunpack.c.l.b16 %v6829
        %v6862 = vunpack.c.l.b16 %v6830
        %v6863 = vunpack.c.l.b16 %v6831
        %v6864 = vunpack.c.l.b16 %v6832
        %v6865 = vunpack.c.l.b16 %v6833
        %v6866 = vunpack.c.l.b16 %v6834
        %v6867 = vunpack.c.l.b16 %v6835
        %v6868 = vunpack.c.l.b16 %v6836
        %v6869 = vpack.c.b16 %v6854, %v6853
        %v6870 = vpack.c.b16 %v6856, %v6855
        %v6871 = vpack.c.b16 %v6858, %v6857
        %v6872 = vpack.c.b16 %v6860, %v6859
        %v6873 = vpack.c.b16 %v6862, %v6861
        %v6874 = vpack.c.b16 %v6864, %v6863
        %v6875 = vpack.c.b16 %v6866, %v6865
        %v6876 = vpack.c.b16 %v6868, %v6867
        %6885 = vmatprep.subr.bf16.mxu0 0
        %6886 = vmatpush1.bf16.msra.mxu0 %v6876
        %6887 = vmatprep.subr.bf16.mxu0 0
        %6888 = vmatpush1.bf16.msra.mxu0 %v6875
        %6889 = vmatprep.subr.bf16.mxu0 0
        %6890 = vmatpush1.bf16.msra.mxu0 %v6874
        %6891 = vmatprep.subr.bf16.mxu0 0
        %6892 = vmatpush1.bf16.msra.mxu0 %v6873
        %6893 = vmatprep.subr.bf16.mxu0 0
        %6894 = vmatpush1.bf16.msra.mxu0 %v6872
        %6895 = vmatprep.subr.bf16.mxu0 0
        %6896 = vmatpush1.bf16.msra.mxu0 %v6871
        %6897 = vmatprep.subr.bf16.mxu0 0
        %6898 = vmatpush1.bf16.msra.mxu0 %v6870
        %6899 = vmatprep.subr.bf16.mxu0 0
        %6900 = vmatpush1.bf16.msra.mxu0 %v6869
        %6901 = vmatprep.subr.bf16.mxu0 0
        %6902 = vmatpush2.bf16.msra.mxu0 0
        %6903 = vmatprep.subr.bf16.mxu0 0
        %6904 = vmatpush2.bf16.msra.mxu0 0
        %6905 = vmatprep.subr.bf16.mxu0 0
        %6906 = vmatpush2.bf16.msra.mxu0 0
        %6907 = vmatprep.subr.bf16.mxu0 0
        %6908 = vmatpush2.bf16.msra.mxu0 0
        %6909 = vmatprep.subr.bf16.mxu0 0
        %6910 = vmatpush2.bf16.msra.mxu0 0
        %6911 = vmatprep.subr.bf16.mxu0 0
        %6912 = vmatpush2.bf16.msra.mxu0 0
        %6913 = vmatprep.subr.bf16.mxu0 0
        %6914 = vmatpush2.bf16.msra.mxu0 0
        %6915 = vmatprep.subr.bf16.mxu0 0
        %6916 = vmatpush2.bf16.msra.mxu0 0
        %6917 = vmatprep.mubr.bf16.mxu0 0
        %6918 = vmatmul.mubr.bf16.gmra.mxu0 %v6820
        %v6919 = vpop.f32.mrf.mxu0
        %v6920 = vadd.f32 0.0, %v6919
        %v6921 = vpop.f32.mrf.mxu0
        %v6922 = vpop.f32.mrf.mxu0
        %v6923 = vpop.f32.mrf.mxu0
        %6924 = vdwg.mxu0
        %v6941 = vunpack.c.l.b16 %v6803
        %v6942 = vunpack.c.l.b16 %v6804
        %v6943 = vunpack.c.l.b16 %v6805
        %v6944 = vunpack.c.l.b16 %v6806
        %v6945 = vunpack.c.l.b16 %v6807
        %v6946 = vunpack.c.l.b16 %v6808
        %v6947 = vunpack.c.l.b16 %v6809
        %v6948 = vunpack.c.l.b16 %v6810
        %v6949 = vunpack.c.l.b16 %v6811
        %v6950 = vunpack.c.l.b16 %v6812
        %v6951 = vunpack.c.l.b16 %v6813
        %v6952 = vunpack.c.l.b16 %v6814
        %v6953 = vunpack.c.l.b16 %v6815
        %v6954 = vunpack.c.l.b16 %v6816
        %v6955 = vunpack.c.l.b16 %v6817
        %v6956 = vunpack.c.l.b16 %v6818
        %v6957 = vpack.c.b16 %v6942, %v6941
        %v6958 = vpack.c.b16 %v6944, %v6943
        %v6959 = vpack.c.b16 %v6946, %v6945
        %v6960 = vpack.c.b16 %v6948, %v6947
        %v6961 = vpack.c.b16 %v6950, %v6949
        %v6962 = vpack.c.b16 %v6952, %v6951
        %v6963 = vpack.c.b16 %v6954, %v6953
        %v6964 = vpack.c.b16 %v6956, %v6955
        %6973 = vmatprep.subr.bf16.mxu0 0
        %6974 = vmatpush1.bf16.msra.mxu0 %v6964
        %6975 = vmatprep.subr.bf16.mxu0 0
        %6976 = vmatpush1.bf16.msra.mxu0 %v6963
        %6977 = vmatprep.subr.bf16.mxu0 0
        %6978 = vmatpush1.bf16.msra.mxu0 %v6962
        %6979 = vmatprep.subr.bf16.mxu0 0
        %6980 = vmatpush1.bf16.msra.mxu0 %v6961
        %6981 = vmatprep.subr.bf16.mxu0 0
        %6982 = vmatpush1.bf16.msra.mxu0 %v6960
        %6983 = vmatprep.subr.bf16.mxu0 0
        %6984 = vmatpush1.bf16.msra.mxu0 %v6959
        %6985 = vmatprep.subr.bf16.mxu0 0
        %6986 = vmatpush1.bf16.msra.mxu0 %v6958
        %6987 = vmatprep.subr.bf16.mxu0 0
        %6988 = vmatpush1.bf16.msra.mxu0 %v6957
        %6989 = vmatprep.subr.bf16.mxu0 0
        %6990 = vmatpush2.bf16.msra.mxu0 0
        %6991 = vmatprep.subr.bf16.mxu0 0
        %6992 = vmatpush2.bf16.msra.mxu0 0
        %6993 = vmatprep.subr.bf16.mxu0 0
        %6994 = vmatpush2.bf16.msra.mxu0 0
        %6995 = vmatprep.subr.bf16.mxu0 0
        %6996 = vmatpush2.bf16.msra.mxu0 0
        %6997 = vmatprep.subr.bf16.mxu0 0
        %6998 = vmatpush2.bf16.msra.mxu0 0
        %6999 = vmatprep.subr.bf16.mxu0 0
        %7000 = vmatpush2.bf16.msra.mxu0 0
        %7001 = vmatprep.subr.bf16.mxu0 0
        %7002 = vmatpush2.bf16.msra.mxu0 0
        %7003 = vmatprep.subr.bf16.mxu0 0
        %7004 = vmatpush2.bf16.msra.mxu0 0
        %7005 = vmatprep.mubr.bf16.mxu0 0
        %7006 = vmatmul.mubr.bf16.gmra.mxu0 %v6802
        %v7007 = vpop.f32.mrf.mxu0
        %v7008 = vadd.f32 %v6920, %v7007
        %v7009 = vpop.f32.mrf.mxu0
        %v7010 = vpop.f32.mrf.mxu0
        %v7011 = vpop.f32.mrf.mxu0
        %7012 = vdwg.mxu0
        %v7013 = vld [vmem:[#allocation3 + $0x2] sm:$0x3f]
        %v7014 = vpack.c.bf16 %v7013, %v7013
        %v7015 = vld [vmem:[%s13 + $0x80] sm:$0xf]
        %v7016 = vld [vmem:[%s13 + $0x84] sm:$0xf]
        %v7017 = vld [vmem:[%s13 + $0x88] sm:$0xf]
        %v7018 = vld [vmem:[%s13 + $0x8c] sm:$0xf]
        %v7019 = vld [vmem:[%s13 + $0x90] sm:$0xf]
        %v7020 = vld [vmem:[%s13 + $0x94] sm:$0xf]
        %v7021 = vld [vmem:[%s13 + $0x98] sm:$0xf]
        %v7022 = vld [vmem:[%s13 + $0x9c] sm:$0xf]
        %v7023 = vld [vmem:[%s13 + $0xa0] sm:$0xf]
        %v7024 = vld [vmem:[%s13 + $0xa4] sm:$0xf]
        %v7025 = vld [vmem:[%s13 + $0xa8] sm:$0xf]
        %v7026 = vld [vmem:[%s13 + $0xac] sm:$0xf]
        %v7027 = vld [vmem:[%s13 + $0xb0] sm:$0xf]
        %v7028 = vld [vmem:[%s13 + $0xb4] sm:$0xf]
        %v7029 = vld [vmem:[%s13 + $0xb8] sm:$0xf]
        %v7030 = vld [vmem:[%s13 + $0xbc] sm:$0xf]
        %v7047 = vunpack.c.l.b16 %v7015
        %v7048 = vunpack.c.l.b16 %v7016
        %v7049 = vunpack.c.l.b16 %v7017
        %v7050 = vunpack.c.l.b16 %v7018
        %v7051 = vunpack.c.l.b16 %v7019
        %v7052 = vunpack.c.l.b16 %v7020
        %v7053 = vunpack.c.l.b16 %v7021
        %v7054 = vunpack.c.l.b16 %v7022
        %v7055 = vunpack.c.l.b16 %v7023
        %v7056 = vunpack.c.l.b16 %v7024
        %v7057 = vunpack.c.l.b16 %v7025
        %v7058 = vunpack.c.l.b16 %v7026
        %v7059 = vunpack.c.l.b16 %v7027
        %v7060 = vunpack.c.l.b16 %v7028
        %v7061 = vunpack.c.l.b16 %v7029
        %v7062 = vunpack.c.l.b16 %v7030
        %v7063 = vpack.c.b16 %v7048, %v7047
        %v7064 = vpack.c.b16 %v7050, %v7049
        %v7065 = vpack.c.b16 %v7052, %v7051
        %v7066 = vpack.c.b16 %v7054, %v7053
        %v7067 = vpack.c.b16 %v7056, %v7055
        %v7068 = vpack.c.b16 %v7058, %v7057
        %v7069 = vpack.c.b16 %v7060, %v7059
        %v7070 = vpack.c.b16 %v7062, %v7061
        %7079 = vmatprep.subr.bf16.mxu0 0
        %7080 = vmatpush1.bf16.msra.mxu0 %v7070
        %7081 = vmatprep.subr.bf16.mxu0 0
        %7082 = vmatpush1.bf16.msra.mxu0 %v7069
        %7083 = vmatprep.subr.bf16.mxu0 0
        %7084 = vmatpush1.bf16.msra.mxu0 %v7068
        %7085 = vmatprep.subr.bf16.mxu0 0
        %7086 = vmatpush1.bf16.msra.mxu0 %v7067
        %7087 = vmatprep.subr.bf16.mxu0 0
        %7088 = vmatpush1.bf16.msra.mxu0 %v7066
        %7089 = vmatprep.subr.bf16.mxu0 0
        %7090 = vmatpush1.bf16.msra.mxu0 %v7065
        %7091 = vmatprep.subr.bf16.mxu0 0
        %7092 = vmatpush1.bf16.msra.mxu0 %v7064
        %7093 = vmatprep.subr.bf16.mxu0 0
        %7094 = vmatpush1.bf16.msra.mxu0 %v7063
        %7095 = vmatprep.subr.bf16.mxu0 0
        %7096 = vmatpush2.bf16.msra.mxu0 0
        %7097 = vmatprep.subr.bf16.mxu0 0
        %7098 = vmatpush2.bf16.msra.mxu0 0
        %7099 = vmatprep.subr.bf16.mxu0 0
        %7100 = vmatpush2.bf16.msra.mxu0 0
        %7101 = vmatprep.subr.bf16.mxu0 0
        %7102 = vmatpush2.bf16.msra.mxu0 0
        %7103 = vmatprep.subr.bf16.mxu0 0
        %7104 = vmatpush2.bf16.msra.mxu0 0
        %7105 = vmatprep.subr.bf16.mxu0 0
        %7106 = vmatpush2.bf16.msra.mxu0 0
        %7107 = vmatprep.subr.bf16.mxu0 0
        %7108 = vmatpush2.bf16.msra.mxu0 0
        %7109 = vmatprep.subr.bf16.mxu0 0
        %7110 = vmatpush2.bf16.msra.mxu0 0
        %7111 = vmatprep.mubr.bf16.mxu0 0
        %7112 = vmatmul.mubr.bf16.gmra.mxu0 %v7014
        %v7113 = vpop.f32.mrf.mxu0
        %v7114 = vadd.f32 0.0, %v7113
        %v7115 = vpop.f32.mrf.mxu0
        %v7116 = vpop.f32.mrf.mxu0
        %v7117 = vpop.f32.mrf.mxu0
        %7118 = vdwg.mxu0
        %v7119 = vadd.f32 %v7008, %v7114
        %v7120 = vld [vmem:[#allocation3 + $0x4] sm:$0x3f]
        %v7121 = vpack.c.bf16 %v7120, %v7120
        %v7122 = vld [vmem:[%s13 + $0xc0] sm:$0xf]
        %v7123 = vld [vmem:[%s13 + $0xc4] sm:$0xf]
        %v7124 = vld [vmem:[%s13 + $0xc8] sm:$0xf]
        %v7125 = vld [vmem:[%s13 + $0xcc] sm:$0xf]
        %v7126 = vld [vmem:[%s13 + $0xd0] sm:$0xf]
        %v7127 = vld [vmem:[%s13 + $0xd4] sm:$0xf]
        %v7128 = vld [vmem:[%s13 + $0xd8] sm:$0xf]
        %v7129 = vld [vmem:[%s13 + $0xdc] sm:$0xf]
        %v7130 = vld [vmem:[%s13 + $0xe0] sm:$0xf]
        %v7131 = vld [vmem:[%s13 + $0xe4] sm:$0xf]
        %v7132 = vld [vmem:[%s13 + $0xe8] sm:$0xf]
        %v7133 = vld [vmem:[%s13 + $0xec] sm:$0xf]
        %v7134 = vld [vmem:[%s13 + $0xf0] sm:$0xf]
        %v7135 = vld [vmem:[%s13 + $0xf4] sm:$0xf]
        %v7136 = vld [vmem:[%s13 + $0xf8] sm:$0xf]
        %v7137 = vld [vmem:[%s13 + $0xfc] sm:$0xf]
        %v7154 = vunpack.c.l.b16 %v7122
        %v7155 = vunpack.c.l.b16 %v7123
        %v7156 = vunpack.c.l.b16 %v7124
        %v7157 = vunpack.c.l.b16 %v7125
        %v7158 = vunpack.c.l.b16 %v7126
        %v7159 = vunpack.c.l.b16 %v7127
        %v7160 = vunpack.c.l.b16 %v7128
        %v7161 = vunpack.c.l.b16 %v7129
        %v7162 = vunpack.c.l.b16 %v7130
        %v7163 = vunpack.c.l.b16 %v7131
        %v7164 = vunpack.c.l.b16 %v7132
        %v7165 = vunpack.c.l.b16 %v7133
        %v7166 = vunpack.c.l.b16 %v7134
        %v7167 = vunpack.c.l.b16 %v7135
        %v7168 = vunpack.c.l.b16 %v7136
        %v7169 = vunpack.c.l.b16 %v7137
        %v7170 = vpack.c.b16 %v7155, %v7154
        %v7171 = vpack.c.b16 %v7157, %v7156
        %v7172 = vpack.c.b16 %v7159, %v7158
        %v7173 = vpack.c.b16 %v7161, %v7160
        %v7174 = vpack.c.b16 %v7163, %v7162
        %v7175 = vpack.c.b16 %v7165, %v7164
        %v7176 = vpack.c.b16 %v7167, %v7166
        %v7177 = vpack.c.b16 %v7169, %v7168
        %7186 = vmatprep.subr.bf16.mxu0 0
        %7187 = vmatpush1.bf16.msra.mxu0 %v7177
        %7188 = vmatprep.subr.bf16.mxu0 0
        %7189 = vmatpush1.bf16.msra.mxu0 %v7176
        %7190 = vmatprep.subr.bf16.mxu0 0
        %7191 = vmatpush1.bf16.msra.mxu0 %v7175
        %7192 = vmatprep.subr.bf16.mxu0 0
        %7193 = vmatpush1.bf16.msra.mxu0 %v7174
        %7194 = vmatprep.subr.bf16.mxu0 0
        %7195 = vmatpush1.bf16.msra.mxu0 %v7173
        %7196 = vmatprep.subr.bf16.mxu0 0
        %7197 = vmatpush1.bf16.msra.mxu0 %v7172
        %7198 = vmatprep.subr.bf16.mxu0 0
        %7199 = vmatpush1.bf16.msra.mxu0 %v7171
        %7200 = vmatprep.subr.bf16.mxu0 0
        %7201 = vmatpush1.bf16.msra.mxu0 %v7170
        %7202 = vmatprep.subr.bf16.mxu0 0
        %7203 = vmatpush2.bf16.msra.mxu0 0
        %7204 = vmatprep.subr.bf16.mxu0 0
        %7205 = vmatpush2.bf16.msra.mxu0 0
        %7206 = vmatprep.subr.bf16.mxu0 0
        %7207 = vmatpush2.bf16.msra.mxu0 0
        %7208 = vmatprep.subr.bf16.mxu0 0
        %7209 = vmatpush2.bf16.msra.mxu0 0
        %7210 = vmatprep.subr.bf16.mxu0 0
        %7211 = vmatpush2.bf16.msra.mxu0 0
        %7212 = vmatprep.subr.bf16.mxu0 0
        %7213 = vmatpush2.bf16.msra.mxu0 0
        %7214 = vmatprep.subr.bf16.mxu0 0
        %7215 = vmatpush2.bf16.msra.mxu0 0
        %7216 = vmatprep.subr.bf16.mxu0 0
        %7217 = vmatpush2.bf16.msra.mxu0 0
        %7218 = vmatprep.mubr.bf16.mxu0 0
        %7219 = vmatmul.mubr.bf16.gmra.mxu0 %v7121
        %v7220 = vpop.f32.mrf.mxu0
        %v7221 = vadd.f32 0.0, %v7220
        %v7222 = vpop.f32.mrf.mxu0
        %v7223 = vpop.f32.mrf.mxu0
        %v7224 = vpop.f32.mrf.mxu0
        %7225 = vdwg.mxu0
        %v7226 = vadd.f32 %v7119, %v7221
        %v7227 = vld [vmem:[#allocation3 + $0x5] sm:$0x3f]
        %v7228 = vpack.c.bf16 %v7227, %v7227
        %v7229 = vld [vmem:[%s13 + $0x100] sm:$0xf]
        %v7230 = vld [vmem:[%s13 + $0x104] sm:$0xf]
        %v7231 = vld [vmem:[%s13 + $0x108] sm:$0xf]
        %v7232 = vld [vmem:[%s13 + $0x10c] sm:$0xf]
        %v7233 = vld [vmem:[%s13 + $0x110] sm:$0xf]
        %v7234 = vld [vmem:[%s13 + $0x114] sm:$0xf]
        %v7235 = vld [vmem:[%s13 + $0x118] sm:$0xf]
        %v7236 = vld [vmem:[%s13 + $0x11c] sm:$0xf]
        %v7237 = vld [vmem:[%s13 + $0x120] sm:$0xf]
        %v7238 = vld [vmem:[%s13 + $0x124] sm:$0xf]
        %v7239 = vld [vmem:[%s13 + $0x128] sm:$0xf]
        %v7240 = vld [vmem:[%s13 + $0x12c] sm:$0xf]
        %v7241 = vld [vmem:[%s13 + $0x130] sm:$0xf]
        %v7242 = vld [vmem:[%s13 + $0x134] sm:$0xf]
        %v7243 = vld [vmem:[%s13 + $0x138] sm:$0xf]
        %v7244 = vld [vmem:[%s13 + $0x13c] sm:$0xf]
        %v7261 = vunpack.c.l.b16 %v7229
        %v7262 = vunpack.c.l.b16 %v7230
        %v7263 = vunpack.c.l.b16 %v7231
        %v7264 = vunpack.c.l.b16 %v7232
        %v7265 = vunpack.c.l.b16 %v7233
        %v7266 = vunpack.c.l.b16 %v7234
        %v7267 = vunpack.c.l.b16 %v7235
        %v7268 = vunpack.c.l.b16 %v7236
        %v7269 = vunpack.c.l.b16 %v7237
        %v7270 = vunpack.c.l.b16 %v7238
        %v7271 = vunpack.c.l.b16 %v7239
        %v7272 = vunpack.c.l.b16 %v7240
        %v7273 = vunpack.c.l.b16 %v7241
        %v7274 = vunpack.c.l.b16 %v7242
        %v7275 = vunpack.c.l.b16 %v7243
        %v7276 = vunpack.c.l.b16 %v7244
        %v7277 = vpack.c.b16 %v7262, %v7261
        %v7278 = vpack.c.b16 %v7264, %v7263
        %v7279 = vpack.c.b16 %v7266, %v7265
        %v7280 = vpack.c.b16 %v7268, %v7267
        %v7281 = vpack.c.b16 %v7270, %v7269
        %v7282 = vpack.c.b16 %v7272, %v7271
        %v7283 = vpack.c.b16 %v7274, %v7273
        %v7284 = vpack.c.b16 %v7276, %v7275
        %7293 = vmatprep.subr.bf16.mxu0 0
        %7294 = vmatpush1.bf16.msra.mxu0 %v7284
        %7295 = vmatprep.subr.bf16.mxu0 0
        %7296 = vmatpush1.bf16.msra.mxu0 %v7283
        %7297 = vmatprep.subr.bf16.mxu0 0
        %7298 = vmatpush1.bf16.msra.mxu0 %v7282
        %7299 = vmatprep.subr.bf16.mxu0 0
        %7300 = vmatpush1.bf16.msra.mxu0 %v7281
        %7301 = vmatprep.subr.bf16.mxu0 0
        %7302 = vmatpush1.bf16.msra.mxu0 %v7280
        %7303 = vmatprep.subr.bf16.mxu0 0
        %7304 = vmatpush1.bf16.msra.mxu0 %v7279
        %7305 = vmatprep.subr.bf16.mxu0 0
        %7306 = vmatpush1.bf16.msra.mxu0 %v7278
        %7307 = vmatprep.subr.bf16.mxu0 0
        %7308 = vmatpush1.bf16.msra.mxu0 %v7277
        %7309 = vmatprep.subr.bf16.mxu0 0
        %7310 = vmatpush2.bf16.msra.mxu0 0
        %7311 = vmatprep.subr.bf16.mxu0 0
        %7312 = vmatpush2.bf16.msra.mxu0 0
        %7313 = vmatprep.subr.bf16.mxu0 0
        %7314 = vmatpush2.bf16.msra.mxu0 0
        %7315 = vmatprep.subr.bf16.mxu0 0
        %7316 = vmatpush2.bf16.msra.mxu0 0
        %7317 = vmatprep.subr.bf16.mxu0 0
        %7318 = vmatpush2.bf16.msra.mxu0 0
        %7319 = vmatprep.subr.bf16.mxu0 0
        %7320 = vmatpush2.bf16.msra.mxu0 0
        %7321 = vmatprep.subr.bf16.mxu0 0
        %7322 = vmatpush2.bf16.msra.mxu0 0
        %7323 = vmatprep.subr.bf16.mxu0 0
        %7324 = vmatpush2.bf16.msra.mxu0 0
        %7325 = vmatprep.mubr.bf16.mxu0 0
        %7326 = vmatmul.mubr.bf16.gmra.mxu0 %v7228
        %v7327 = vpop.f32.mrf.mxu0
        %v7328 = vadd.f32 0.0, %v7327
        %v7329 = vpop.f32.mrf.mxu0
        %v7330 = vpop.f32.mrf.mxu0
        %v7331 = vpop.f32.mrf.mxu0
        %7332 = vdwg.mxu0
        %v7333 = vadd.f32 %v7226, %v7328
        %v7334 = vld [vmem:[#allocation3 + $0x6] sm:$0x3f]
        %v7335 = vpack.c.bf16 %v7334, %v7334
        %v7336 = vld [vmem:[%s13 + $0x140] sm:$0xf]
        %v7337 = vld [vmem:[%s13 + $0x144] sm:$0xf]
        %v7338 = vld [vmem:[%s13 + $0x148] sm:$0xf]
        %v7339 = vld [vmem:[%s13 + $0x14c] sm:$0xf]
        %v7340 = vld [vmem:[%s13 + $0x150] sm:$0xf]
        %v7341 = vld [vmem:[%s13 + $0x154] sm:$0xf]
        %v7342 = vld [vmem:[%s13 + $0x158] sm:$0xf]
        %v7343 = vld [vmem:[%s13 + $0x15c] sm:$0xf]
        %v7344 = vld [vmem:[%s13 + $0x160] sm:$0xf]
        %v7345 = vld [vmem:[%s13 + $0x164] sm:$0xf]
        %v7346 = vld [vmem:[%s13 + $0x168] sm:$0xf]
        %v7347 = vld [vmem:[%s13 + $0x16c] sm:$0xf]
        %v7348 = vld [vmem:[%s13 + $0x170] sm:$0xf]
        %v7349 = vld [vmem:[%s13 + $0x174] sm:$0xf]
        %v7350 = vld [vmem:[%s13 + $0x178] sm:$0xf]
        %v7351 = vld [vmem:[%s13 + $0x17c] sm:$0xf]
        %v7368 = vunpack.c.l.b16 %v7336
        %v7369 = vunpack.c.l.b16 %v7337
        %v7370 = vunpack.c.l.b16 %v7338
        %v7371 = vunpack.c.l.b16 %v7339
        %v7372 = vunpack.c.l.b16 %v7340
        %v7373 = vunpack.c.l.b16 %v7341
        %v7374 = vunpack.c.l.b16 %v7342
        %v7375 = vunpack.c.l.b16 %v7343
        %v7376 = vunpack.c.l.b16 %v7344
        %v7377 = vunpack.c.l.b16 %v7345
        %v7378 = vunpack.c.l.b16 %v7346
        %v7379 = vunpack.c.l.b16 %v7347
        %v7380 = vunpack.c.l.b16 %v7348
        %v7381 = vunpack.c.l.b16 %v7349
        %v7382 = vunpack.c.l.b16 %v7350
        %v7383 = vunpack.c.l.b16 %v7351
        %v7384 = vpack.c.b16 %v7369, %v7368
        %v7385 = vpack.c.b16 %v7371, %v7370
        %v7386 = vpack.c.b16 %v7373, %v7372
        %v7387 = vpack.c.b16 %v7375, %v7374
        %v7388 = vpack.c.b16 %v7377, %v7376
        %v7389 = vpack.c.b16 %v7379, %v7378
        %v7390 = vpack.c.b16 %v7381, %v7380
        %v7391 = vpack.c.b16 %v7383, %v7382
        %7400 = vmatprep.subr.bf16.mxu0 0
        %7401 = vmatpush1.bf16.msra.mxu0 %v7391
        %7402 = vmatprep.subr.bf16.mxu0 0
        %7403 = vmatpush1.bf16.msra.mxu0 %v7390
        %7404 = vmatprep.subr.bf16.mxu0 0
        %7405 = vmatpush1.bf16.msra.mxu0 %v7389
        %7406 = vmatprep.subr.bf16.mxu0 0
        %7407 = vmatpush1.bf16.msra.mxu0 %v7388
        %7408 = vmatprep.subr.bf16.mxu0 0
        %7409 = vmatpush1.bf16.msra.mxu0 %v7387
        %7410 = vmatprep.subr.bf16.mxu0 0
        %7411 = vmatpush1.bf16.msra.mxu0 %v7386
        %7412 = vmatprep.subr.bf16.mxu0 0
        %7413 = vmatpush1.bf16.msra.mxu0 %v7385
        %7414 = vmatprep.subr.bf16.mxu0 0
        %7415 = vmatpush1.bf16.msra.mxu0 %v7384
        %7416 = vmatprep.subr.bf16.mxu0 0
        %7417 = vmatpush2.bf16.msra.mxu0 0
        %7418 = vmatprep.subr.bf16.mxu0 0
        %7419 = vmatpush2.bf16.msra.mxu0 0
        %7420 = vmatprep.subr.bf16.mxu0 0
        %7421 = vmatpush2.bf16.msra.mxu0 0
        %7422 = vmatprep.subr.bf16.mxu0 0
        %7423 = vmatpush2.bf16.msra.mxu0 0
        %7424 = vmatprep.subr.bf16.mxu0 0
        %7425 = vmatpush2.bf16.msra.mxu0 0
        %7426 = vmatprep.subr.bf16.mxu0 0
        %7427 = vmatpush2.bf16.msra.mxu0 0
        %7428 = vmatprep.subr.bf16.mxu0 0
        %7429 = vmatpush2.bf16.msra.mxu0 0
        %7430 = vmatprep.subr.bf16.mxu0 0
        %7431 = vmatpush2.bf16.msra.mxu0 0
        %7432 = vmatprep.mubr.bf16.mxu0 0
        %7433 = vmatmul.mubr.bf16.gmra.mxu0 %v7335
        %v7434 = vpop.f32.mrf.mxu0
        %v7435 = vadd.f32 0.0, %v7434
        %v7436 = vpop.f32.mrf.mxu0
        %v7437 = vpop.f32.mrf.mxu0
        %v7438 = vpop.f32.mrf.mxu0
        %7439 = vdwg.mxu0
        %v7440 = vadd.f32 %v7333, %v7435
        %v7441 = vld [vmem:[#allocation3 + $0x8] sm:$0x3f]
        %v7442 = vpack.c.bf16 %v7441, %v7441
        %v7443 = vld [vmem:[%s13 + $0x180] sm:$0xf]
        %v7444 = vld [vmem:[%s13 + $0x184] sm:$0xf]
        %v7445 = vld [vmem:[%s13 + $0x188] sm:$0xf]
        %v7446 = vld [vmem:[%s13 + $0x18c] sm:$0xf]
        %v7447 = vld [vmem:[%s13 + $0x190] sm:$0xf]
        %v7448 = vld [vmem:[%s13 + $0x194] sm:$0xf]
        %v7449 = vld [vmem:[%s13 + $0x198] sm:$0xf]
        %v7450 = vld [vmem:[%s13 + $0x19c] sm:$0xf]
        %v7451 = vld [vmem:[%s13 + $0x1a0] sm:$0xf]
        %v7452 = vld [vmem:[%s13 + $0x1a4] sm:$0xf]
        %v7453 = vld [vmem:[%s13 + $0x1a8] sm:$0xf]
        %v7454 = vld [vmem:[%s13 + $0x1ac] sm:$0xf]
        %v7455 = vld [vmem:[%s13 + $0x1b0] sm:$0xf]
        %v7456 = vld [vmem:[%s13 + $0x1b4] sm:$0xf]
        %v7457 = vld [vmem:[%s13 + $0x1b8] sm:$0xf]
        %v7458 = vld [vmem:[%s13 + $0x1bc] sm:$0xf]
        %v7475 = vunpack.c.l.b16 %v7443
        %v7476 = vunpack.c.l.b16 %v7444
        %v7477 = vunpack.c.l.b16 %v7445
        %v7478 = vunpack.c.l.b16 %v7446
        %v7479 = vunpack.c.l.b16 %v7447
        %v7480 = vunpack.c.l.b16 %v7448
        %v7481 = vunpack.c.l.b16 %v7449
        %v7482 = vunpack.c.l.b16 %v7450
        %v7483 = vunpack.c.l.b16 %v7451
        %v7484 = vunpack.c.l.b16 %v7452
        %v7485 = vunpack.c.l.b16 %v7453
        %v7486 = vunpack.c.l.b16 %v7454
        %v7487 = vunpack.c.l.b16 %v7455
        %v7488 = vunpack.c.l.b16 %v7456
        %v7489 = vunpack.c.l.b16 %v7457
        %v7490 = vunpack.c.l.b16 %v7458
        %v7491 = vpack.c.b16 %v7476, %v7475
        %v7492 = vpack.c.b16 %v7478, %v7477
        %v7493 = vpack.c.b16 %v7480, %v7479
        %v7494 = vpack.c.b16 %v7482, %v7481
        %v7495 = vpack.c.b16 %v7484, %v7483
        %v7496 = vpack.c.b16 %v7486, %v7485
        %v7497 = vpack.c.b16 %v7488, %v7487
        %v7498 = vpack.c.b16 %v7490, %v7489
        %7507 = vmatprep.subr.bf16.mxu0 0
        %7508 = vmatpush1.bf16.msra.mxu0 %v7498
        %7509 = vmatprep.subr.bf16.mxu0 0
        %7510 = vmatpush1.bf16.msra.mxu0 %v7497
        %7511 = vmatprep.subr.bf16.mxu0 0
        %7512 = vmatpush1.bf16.msra.mxu0 %v7496
        %7513 = vmatprep.subr.bf16.mxu0 0
        %7514 = vmatpush1.bf16.msra.mxu0 %v7495
        %7515 = vmatprep.subr.bf16.mxu0 0
        %7516 = vmatpush1.bf16.msra.mxu0 %v7494
        %7517 = vmatprep.subr.bf16.mxu0 0
        %7518 = vmatpush1.bf16.msra.mxu0 %v7493
        %7519 = vmatprep.subr.bf16.mxu0 0
        %7520 = vmatpush1.bf16.msra.mxu0 %v7492
        %7521 = vmatprep.subr.bf16.mxu0 0
        %7522 = vmatpush1.bf16.msra.mxu0 %v7491
        %7523 = vmatprep.subr.bf16.mxu0 0
        %7524 = vmatpush2.bf16.msra.mxu0 0
        %7525 = vmatprep.subr.bf16.mxu0 0
        %7526 = vmatpush2.bf16.msra.mxu0 0
        %7527 = vmatprep.subr.bf16.mxu0 0
        %7528 = vmatpush2.bf16.msra.mxu0 0
        %7529 = vmatprep.subr.bf16.mxu0 0
        %7530 = vmatpush2.bf16.msra.mxu0 0
        %7531 = vmatprep.subr.bf16.mxu0 0
        %7532 = vmatpush2.bf16.msra.mxu0 0
        %7533 = vmatprep.subr.bf16.mxu0 0
        %7534 = vmatpush2.bf16.msra.mxu0 0
        %7535 = vmatprep.subr.bf16.mxu0 0
        %7536 = vmatpush2.bf16.msra.mxu0 0
        %7537 = vmatprep.subr.bf16.mxu0 0
        %7538 = vmatpush2.bf16.msra.mxu0 0
        %7539 = vmatprep.mubr.bf16.mxu0 0
        %7540 = vmatmul.mubr.bf16.gmra.mxu0 %v7442
        %v7541 = vpop.f32.mrf.mxu0
        %v7542 = vadd.f32 0.0, %v7541
        %v7543 = vpop.f32.mrf.mxu0
        %v7544 = vpop.f32.mrf.mxu0
        %v7545 = vpop.f32.mrf.mxu0
        %7546 = vdwg.mxu0
        %v7547 = vadd.f32 %v7440, %v7542
        %v7548 = vld [vmem:[#allocation3 + $0x9] sm:$0x3f]
        %v7549 = vpack.c.bf16 %v7548, %v7548
        %v7550 = vld [vmem:[%s13 + $0x1c0] sm:$0xf]
        %v7551 = vld [vmem:[%s13 + $0x1c4] sm:$0xf]
        %v7552 = vld [vmem:[%s13 + $0x1c8] sm:$0xf]
        %v7553 = vld [vmem:[%s13 + $0x1cc] sm:$0xf]
        %v7554 = vld [vmem:[%s13 + $0x1d0] sm:$0xf]
        %v7555 = vld [vmem:[%s13 + $0x1d4] sm:$0xf]
        %v7556 = vld [vmem:[%s13 + $0x1d8] sm:$0xf]
        %v7557 = vld [vmem:[%s13 + $0x1dc] sm:$0xf]
        %v7558 = vld [vmem:[%s13 + $0x1e0] sm:$0xf]
        %v7559 = vld [vmem:[%s13 + $0x1e4] sm:$0xf]
        %v7560 = vld [vmem:[%s13 + $0x1e8] sm:$0xf]
        %v7561 = vld [vmem:[%s13 + $0x1ec] sm:$0xf]
        %v7562 = vld [vmem:[%s13 + $0x1f0] sm:$0xf]
        %v7563 = vld [vmem:[%s13 + $0x1f4] sm:$0xf]
        %v7564 = vld [vmem:[%s13 + $0x1f8] sm:$0xf]
        %v7565 = vld [vmem:[%s13 + $0x1fc] sm:$0xf]
        %v7582 = vunpack.c.l.b16 %v7550
        %v7583 = vunpack.c.l.b16 %v7551
        %v7584 = vunpack.c.l.b16 %v7552
        %v7585 = vunpack.c.l.b16 %v7553
        %v7586 = vunpack.c.l.b16 %v7554
        %v7587 = vunpack.c.l.b16 %v7555
        %v7588 = vunpack.c.l.b16 %v7556
        %v7589 = vunpack.c.l.b16 %v7557
        %v7590 = vunpack.c.l.b16 %v7558
        %v7591 = vunpack.c.l.b16 %v7559
        %v7592 = vunpack.c.l.b16 %v7560
        %v7593 = vunpack.c.l.b16 %v7561
        %v7594 = vunpack.c.l.b16 %v7562
        %v7595 = vunpack.c.l.b16 %v7563
        %v7596 = vunpack.c.l.b16 %v7564
        %v7597 = vunpack.c.l.b16 %v7565
        %v7598 = vpack.c.b16 %v7583, %v7582
        %v7599 = vpack.c.b16 %v7585, %v7584
        %v7600 = vpack.c.b16 %v7587, %v7586
        %v7601 = vpack.c.b16 %v7589, %v7588
        %v7602 = vpack.c.b16 %v7591, %v7590
        %v7603 = vpack.c.b16 %v7593, %v7592
        %v7604 = vpack.c.b16 %v7595, %v7594
        %v7605 = vpack.c.b16 %v7597, %v7596
        %7614 = vmatprep.subr.bf16.mxu0 0
        %7615 = vmatpush1.bf16.msra.mxu0 %v7605
        %7616 = vmatprep.subr.bf16.mxu0 0
        %7617 = vmatpush1.bf16.msra.mxu0 %v7604
        %7618 = vmatprep.subr.bf16.mxu0 0
        %7619 = vmatpush1.bf16.msra.mxu0 %v7603
        %7620 = vmatprep.subr.bf16.mxu0 0
        %7621 = vmatpush1.bf16.msra.mxu0 %v7602
        %7622 = vmatprep.subr.bf16.mxu0 0
        %7623 = vmatpush1.bf16.msra.mxu0 %v7601
        %7624 = vmatprep.subr.bf16.mxu0 0
        %7625 = vmatpush1.bf16.msra.mxu0 %v7600
        %7626 = vmatprep.subr.bf16.mxu0 0
        %7627 = vmatpush1.bf16.msra.mxu0 %v7599
        %7628 = vmatprep.subr.bf16.mxu0 0
        %7629 = vmatpush1.bf16.msra.mxu0 %v7598
        %7630 = vmatprep.subr.bf16.mxu0 0
        %7631 = vmatpush2.bf16.msra.mxu0 0
        %7632 = vmatprep.subr.bf16.mxu0 0
        %7633 = vmatpush2.bf16.msra.mxu0 0
        %7634 = vmatprep.subr.bf16.mxu0 0
        %7635 = vmatpush2.bf16.msra.mxu0 0
        %7636 = vmatprep.subr.bf16.mxu0 0
        %7637 = vmatpush2.bf16.msra.mxu0 0
        %7638 = vmatprep.subr.bf16.mxu0 0
        %7639 = vmatpush2.bf16.msra.mxu0 0
        %7640 = vmatprep.subr.bf16.mxu0 0
        %7641 = vmatpush2.bf16.msra.mxu0 0
        %7642 = vmatprep.subr.bf16.mxu0 0
        %7643 = vmatpush2.bf16.msra.mxu0 0
        %7644 = vmatprep.subr.bf16.mxu0 0
        %7645 = vmatpush2.bf16.msra.mxu0 0
        %7646 = vmatprep.mubr.bf16.mxu0 0
        %7647 = vmatmul.mubr.bf16.gmra.mxu0 %v7549
        %v7648 = vpop.f32.mrf.mxu0
        %v7649 = vadd.f32 0.0, %v7648
        %v7650 = vpop.f32.mrf.mxu0
        %v7651 = vpop.f32.mrf.mxu0
        %v7652 = vpop.f32.mrf.mxu0
        %7653 = vdwg.mxu0
        %v7654 = vadd.f32 %v7547, %v7649
        %v7655 = vld [vmem:[#allocation3 + $0xa] sm:$0x3f]
        %v7656 = vpack.c.bf16 %v7655, %v7655
        %v7657 = vld [vmem:[%s13 + $0x200] sm:$0xf]
        %v7658 = vld [vmem:[%s13 + $0x204] sm:$0xf]
        %v7659 = vld [vmem:[%s13 + $0x208] sm:$0xf]
        %v7660 = vld [vmem:[%s13 + $0x20c] sm:$0xf]
        %v7661 = vld [vmem:[%s13 + $0x210] sm:$0xf]
        %v7662 = vld [vmem:[%s13 + $0x214] sm:$0xf]
        %v7663 = vld [vmem:[%s13 + $0x218] sm:$0xf]
        %v7664 = vld [vmem:[%s13 + $0x21c] sm:$0xf]
        %v7665 = vld [vmem:[%s13 + $0x220] sm:$0xf]
        %v7666 = vld [vmem:[%s13 + $0x224] sm:$0xf]
        %v7667 = vld [vmem:[%s13 + $0x228] sm:$0xf]
        %v7668 = vld [vmem:[%s13 + $0x22c] sm:$0xf]
        %v7669 = vld [vmem:[%s13 + $0x230] sm:$0xf]
        %v7670 = vld [vmem:[%s13 + $0x234] sm:$0xf]
        %v7671 = vld [vmem:[%s13 + $0x238] sm:$0xf]
        %v7672 = vld [vmem:[%s13 + $0x23c] sm:$0xf]
        %v7689 = vunpack.c.l.b16 %v7657
        %v7690 = vunpack.c.l.b16 %v7658
        %v7691 = vunpack.c.l.b16 %v7659
        %v7692 = vunpack.c.l.b16 %v7660
        %v7693 = vunpack.c.l.b16 %v7661
        %v7694 = vunpack.c.l.b16 %v7662
        %v7695 = vunpack.c.l.b16 %v7663
        %v7696 = vunpack.c.l.b16 %v7664
        %v7697 = vunpack.c.l.b16 %v7665
        %v7698 = vunpack.c.l.b16 %v7666
        %v7699 = vunpack.c.l.b16 %v7667
        %v7700 = vunpack.c.l.b16 %v7668
        %v7701 = vunpack.c.l.b16 %v7669
        %v7702 = vunpack.c.l.b16 %v7670
        %v7703 = vunpack.c.l.b16 %v7671
        %v7704 = vunpack.c.l.b16 %v7672
        %v7705 = vpack.c.b16 %v7690, %v7689
        %v7706 = vpack.c.b16 %v7692, %v7691
        %v7707 = vpack.c.b16 %v7694, %v7693
        %v7708 = vpack.c.b16 %v7696, %v7695
        %v7709 = vpack.c.b16 %v7698, %v7697
        %v7710 = vpack.c.b16 %v7700, %v7699
        %v7711 = vpack.c.b16 %v7702, %v7701
        %v7712 = vpack.c.b16 %v7704, %v7703
        %7721 = vmatprep.subr.bf16.mxu0 0
        %7722 = vmatpush1.bf16.msra.mxu0 %v7712
        %7723 = vmatprep.subr.bf16.mxu0 0
        %7724 = vmatpush1.bf16.msra.mxu0 %v7711
        %7725 = vmatprep.subr.bf16.mxu0 0
        %7726 = vmatpush1.bf16.msra.mxu0 %v7710
        %7727 = vmatprep.subr.bf16.mxu0 0
        %7728 = vmatpush1.bf16.msra.mxu0 %v7709
        %7729 = vmatprep.subr.bf16.mxu0 0
        %7730 = vmatpush1.bf16.msra.mxu0 %v7708
        %7731 = vmatprep.subr.bf16.mxu0 0
        %7732 = vmatpush1.bf16.msra.mxu0 %v7707
        %7733 = vmatprep.subr.bf16.mxu0 0
        %7734 = vmatpush1.bf16.msra.mxu0 %v7706
        %7735 = vmatprep.subr.bf16.mxu0 0
        %7736 = vmatpush1.bf16.msra.mxu0 %v7705
        %7737 = vmatprep.subr.bf16.mxu0 0
        %7738 = vmatpush2.bf16.msra.mxu0 0
        %7739 = vmatprep.subr.bf16.mxu0 0
        %7740 = vmatpush2.bf16.msra.mxu0 0
        %7741 = vmatprep.subr.bf16.mxu0 0
        %7742 = vmatpush2.bf16.msra.mxu0 0
        %7743 = vmatprep.subr.bf16.mxu0 0
        %7744 = vmatpush2.bf16.msra.mxu0 0
        %7745 = vmatprep.subr.bf16.mxu0 0
        %7746 = vmatpush2.bf16.msra.mxu0 0
        %7747 = vmatprep.subr.bf16.mxu0 0
        %7748 = vmatpush2.bf16.msra.mxu0 0
        %7749 = vmatprep.subr.bf16.mxu0 0
        %7750 = vmatpush2.bf16.msra.mxu0 0
        %7751 = vmatprep.subr.bf16.mxu0 0
        %7752 = vmatpush2.bf16.msra.mxu0 0
        %7753 = vmatprep.mubr.bf16.mxu0 0
        %7754 = vmatmul.mubr.bf16.gmra.mxu0 %v7656
        %v7755 = vpop.f32.mrf.mxu0
        %v7756 = vadd.f32 0.0, %v7755
        %v7757 = vpop.f32.mrf.mxu0
        %v7758 = vpop.f32.mrf.mxu0
        %v7759 = vpop.f32.mrf.mxu0
        %7760 = vdwg.mxu0
        %v7761 = vadd.f32 %v7654, %v7756
        %v7763 = vrot.slane %v7761, 2
        %v7765 = vsel %vm879, %v7761, %v7763
        %v7766 = vld [vmem:[%s14] sm:$0x1]
        %v7768 = vlaneseq
        %v7769 = vshrl.u32 %v7768, 7
        %v7770 = vsub.s32 0, %v7769
        %v7771 = vrot.slane %v7766, %v7770
        %v7773 = vadd.f32 %v7765, %v7771
        %v7774 = vadd.f32 %v7773, %v6792
        %v7775 = vmax.f32 %v7774, 0.0
        %7776 = vst [vmem:[#allocation2] sm:$0xff] 0.0
        %7777 = vst [vmem:[#allocation2 + $0x8] sm:$0xff] 0.0
        %7778 = vst [vmem:[#allocation2 + $0x10] sm:$0xff] 0.0
        %7779 = vst [vmem:[#allocation2 + $0x18] sm:$0xff] 0.0
        %7780 = vst [vmem:[#allocation2 + $0x20] sm:$0xf] 0.0
        %7781 = vst [vmem:[#allocation2 + $0x5] sm:$0x3] %v7775
        %7782 = vst [vmem:[#allocation2 + $0x7] sm:$0xc] %v7775
        %v7783 = vld [vmem:[#allocation2] sm:$0x3f]
        %v7784 = vpack.c.bf16 %v7783, %v7783
        %v7785 = vld [vmem:[%s15] sm:$0xf]
        %v7786 = vld [vmem:[%s15 + $0x4] sm:$0xf]
        %v7787 = vld [vmem:[%s15 + $0x8] sm:$0xf]
        %v7788 = vld [vmem:[%s15 + $0xc] sm:$0xf]
        %v7789 = vld [vmem:[%s15 + $0x10] sm:$0xf]
        %v7790 = vld [vmem:[%s15 + $0x14] sm:$0xf]
        %v7791 = vld [vmem:[%s15 + $0x18] sm:$0xf]
        %v7792 = vld [vmem:[%s15 + $0x1c] sm:$0xf]
        %v7793 = vld [vmem:[%s15 + $0x20] sm:$0xf]
        %v7794 = vld [vmem:[%s15 + $0x24] sm:$0xf]
        %v7795 = vld [vmem:[%s15 + $0x28] sm:$0xf]
        %v7796 = vld [vmem:[%s15 + $0x2c] sm:$0xf]
        %v7797 = vld [vmem:[%s15 + $0x30] sm:$0xf]
        %v7798 = vld [vmem:[%s15 + $0x34] sm:$0xf]
        %v7799 = vld [vmem:[%s15 + $0x38] sm:$0xf]
        %v7800 = vld [vmem:[%s15 + $0x3c] sm:$0xf]
        %v7801 = vld [vmem:[#allocation2 + $0x1] sm:$0x3f]
        %v7802 = vpack.c.bf16 %v7801, %v7801
        %v7803 = vld [vmem:[%s15 + $0x40] sm:$0xf]
        %v7804 = vld [vmem:[%s15 + $0x44] sm:$0xf]
        %v7805 = vld [vmem:[%s15 + $0x48] sm:$0xf]
        %v7806 = vld [vmem:[%s15 + $0x4c] sm:$0xf]
        %v7807 = vld [vmem:[%s15 + $0x50] sm:$0xf]
        %v7808 = vld [vmem:[%s15 + $0x54] sm:$0xf]
        %v7809 = vld [vmem:[%s15 + $0x58] sm:$0xf]
        %v7810 = vld [vmem:[%s15 + $0x5c] sm:$0xf]
        %v7811 = vld [vmem:[%s15 + $0x60] sm:$0xf]
        %v7812 = vld [vmem:[%s15 + $0x64] sm:$0xf]
        %v7813 = vld [vmem:[%s15 + $0x68] sm:$0xf]
        %v7814 = vld [vmem:[%s15 + $0x6c] sm:$0xf]
        %v7815 = vld [vmem:[%s15 + $0x70] sm:$0xf]
        %v7816 = vld [vmem:[%s15 + $0x74] sm:$0xf]
        %v7817 = vld [vmem:[%s15 + $0x78] sm:$0xf]
        %v7818 = vld [vmem:[%s15 + $0x7c] sm:$0xf]
        %v7835 = vunpack.c.l.b16 %v7803
        %v7836 = vunpack.c.l.b16 %v7804
        %v7837 = vunpack.c.l.b16 %v7805
        %v7838 = vunpack.c.l.b16 %v7806
        %v7839 = vunpack.c.l.b16 %v7807
        %v7840 = vunpack.c.l.b16 %v7808
        %v7841 = vunpack.c.l.b16 %v7809
        %v7842 = vunpack.c.l.b16 %v7810
        %v7843 = vunpack.c.l.b16 %v7811
        %v7844 = vunpack.c.l.b16 %v7812
        %v7845 = vunpack.c.l.b16 %v7813
        %v7846 = vunpack.c.l.b16 %v7814
        %v7847 = vunpack.c.l.b16 %v7815
        %v7848 = vunpack.c.l.b16 %v7816
        %v7849 = vunpack.c.l.b16 %v7817
        %v7850 = vunpack.c.l.b16 %v7818
        %v7851 = vpack.c.b16 %v7836, %v7835
        %v7852 = vpack.c.b16 %v7838, %v7837
        %v7853 = vpack.c.b16 %v7840, %v7839
        %v7854 = vpack.c.b16 %v7842, %v7841
        %v7855 = vpack.c.b16 %v7844, %v7843
        %v7856 = vpack.c.b16 %v7846, %v7845
        %v7857 = vpack.c.b16 %v7848, %v7847
        %v7858 = vpack.c.b16 %v7850, %v7849
        %7867 = vmatprep.subr.bf16.mxu0 0
        %7868 = vmatpush1.bf16.msra.mxu0 %v7858
        %7869 = vmatprep.subr.bf16.mxu0 0
        %7870 = vmatpush1.bf16.msra.mxu0 %v7857
        %7871 = vmatprep.subr.bf16.mxu0 0
        %7872 = vmatpush1.bf16.msra.mxu0 %v7856
        %7873 = vmatprep.subr.bf16.mxu0 0
        %7874 = vmatpush1.bf16.msra.mxu0 %v7855
        %7875 = vmatprep.subr.bf16.mxu0 0
        %7876 = vmatpush1.bf16.msra.mxu0 %v7854
        %7877 = vmatprep.subr.bf16.mxu0 0
        %7878 = vmatpush1.bf16.msra.mxu0 %v7853
        %7879 = vmatprep.subr.bf16.mxu0 0
        %7880 = vmatpush1.bf16.msra.mxu0 %v7852
        %7881 = vmatprep.subr.bf16.mxu0 0
        %7882 = vmatpush1.bf16.msra.mxu0 %v7851
        %7883 = vmatprep.subr.bf16.mxu0 0
        %7884 = vmatpush2.bf16.msra.mxu0 0
        %7885 = vmatprep.subr.bf16.mxu0 0
        %7886 = vmatpush2.bf16.msra.mxu0 0
        %7887 = vmatprep.subr.bf16.mxu0 0
        %7888 = vmatpush2.bf16.msra.mxu0 0
        %7889 = vmatprep.subr.bf16.mxu0 0
        %7890 = vmatpush2.bf16.msra.mxu0 0
        %7891 = vmatprep.subr.bf16.mxu0 0
        %7892 = vmatpush2.bf16.msra.mxu0 0
        %7893 = vmatprep.subr.bf16.mxu0 0
        %7894 = vmatpush2.bf16.msra.mxu0 0
        %7895 = vmatprep.subr.bf16.mxu0 0
        %7896 = vmatpush2.bf16.msra.mxu0 0
        %7897 = vmatprep.subr.bf16.mxu0 0
        %7898 = vmatpush2.bf16.msra.mxu0 0
        %7899 = vmatprep.mubr.bf16.mxu0 0
        %7900 = vmatmul.mubr.bf16.gmra.mxu0 %v7802
        %v7901 = vpop.f32.mrf.mxu0
        %v7902 = vadd.f32 0.0, %v7901
        %v7903 = vpop.f32.mrf.mxu0
        %v7904 = vpop.f32.mrf.mxu0
        %v7905 = vpop.f32.mrf.mxu0
        %7906 = vdwg.mxu0
        %v7923 = vunpack.c.l.b16 %v7785
        %v7924 = vunpack.c.l.b16 %v7786
        %v7925 = vunpack.c.l.b16 %v7787
        %v7926 = vunpack.c.l.b16 %v7788
        %v7927 = vunpack.c.l.b16 %v7789
        %v7928 = vunpack.c.l.b16 %v7790
        %v7929 = vunpack.c.l.b16 %v7791
        %v7930 = vunpack.c.l.b16 %v7792
        %v7931 = vunpack.c.l.b16 %v7793
        %v7932 = vunpack.c.l.b16 %v7794
        %v7933 = vunpack.c.l.b16 %v7795
        %v7934 = vunpack.c.l.b16 %v7796
        %v7935 = vunpack.c.l.b16 %v7797
        %v7936 = vunpack.c.l.b16 %v7798
        %v7937 = vunpack.c.l.b16 %v7799
        %v7938 = vunpack.c.l.b16 %v7800
        %v7939 = vpack.c.b16 %v7924, %v7923
        %v7940 = vpack.c.b16 %v7926, %v7925
        %v7941 = vpack.c.b16 %v7928, %v7927
        %v7942 = vpack.c.b16 %v7930, %v7929
        %v7943 = vpack.c.b16 %v7932, %v7931
        %v7944 = vpack.c.b16 %v7934, %v7933
        %v7945 = vpack.c.b16 %v7936, %v7935
        %v7946 = vpack.c.b16 %v7938, %v7937
        %7955 = vmatprep.subr.bf16.mxu0 0
        %7956 = vmatpush1.bf16.msra.mxu0 %v7946
        %7957 = vmatprep.subr.bf16.mxu0 0
        %7958 = vmatpush1.bf16.msra.mxu0 %v7945
        %7959 = vmatprep.subr.bf16.mxu0 0
        %7960 = vmatpush1.bf16.msra.mxu0 %v7944
        %7961 = vmatprep.subr.bf16.mxu0 0
        %7962 = vmatpush1.bf16.msra.mxu0 %v7943
        %7963 = vmatprep.subr.bf16.mxu0 0
        %7964 = vmatpush1.bf16.msra.mxu0 %v7942
        %7965 = vmatprep.subr.bf16.mxu0 0
        %7966 = vmatpush1.bf16.msra.mxu0 %v7941
        %7967 = vmatprep.subr.bf16.mxu0 0
        %7968 = vmatpush1.bf16.msra.mxu0 %v7940
        %7969 = vmatprep.subr.bf16.mxu0 0
        %7970 = vmatpush1.bf16.msra.mxu0 %v7939
        %7971 = vmatprep.subr.bf16.mxu0 0
        %7972 = vmatpush2.bf16.msra.mxu0 0
        %7973 = vmatprep.subr.bf16.mxu0 0
        %7974 = vmatpush2.bf16.msra.mxu0 0
        %7975 = vmatprep.subr.bf16.mxu0 0
        %7976 = vmatpush2.bf16.msra.mxu0 0
        %7977 = vmatprep.subr.bf16.mxu0 0
        %7978 = vmatpush2.bf16.msra.mxu0 0
        %7979 = vmatprep.subr.bf16.mxu0 0
        %7980 = vmatpush2.bf16.msra.mxu0 0
        %7981 = vmatprep.subr.bf16.mxu0 0
        %7982 = vmatpush2.bf16.msra.mxu0 0
        %7983 = vmatprep.subr.bf16.mxu0 0
        %7984 = vmatpush2.bf16.msra.mxu0 0
        %7985 = vmatprep.subr.bf16.mxu0 0
        %7986 = vmatpush2.bf16.msra.mxu0 0
        %7987 = vmatprep.mubr.bf16.mxu0 0
        %7988 = vmatmul.mubr.bf16.gmra.mxu0 %v7784
        %v7989 = vpop.f32.mrf.mxu0
        %v7990 = vadd.f32 %v7902, %v7989
        %v7991 = vpop.f32.mrf.mxu0
        %v7992 = vpop.f32.mrf.mxu0
        %v7993 = vpop.f32.mrf.mxu0
        %7994 = vdwg.mxu0
        %v7995 = vld [vmem:[#allocation2 + $0x2] sm:$0x3f]
        %v7996 = vpack.c.bf16 %v7995, %v7995
        %v7997 = vld [vmem:[%s15 + $0x80] sm:$0xf]
        %v7998 = vld [vmem:[%s15 + $0x84] sm:$0xf]
        %v7999 = vld [vmem:[%s15 + $0x88] sm:$0xf]
        %v8000 = vld [vmem:[%s15 + $0x8c] sm:$0xf]
        %v8001 = vld [vmem:[%s15 + $0x90] sm:$0xf]
        %v8002 = vld [vmem:[%s15 + $0x94] sm:$0xf]
        %v8003 = vld [vmem:[%s15 + $0x98] sm:$0xf]
        %v8004 = vld [vmem:[%s15 + $0x9c] sm:$0xf]
        %v8005 = vld [vmem:[%s15 + $0xa0] sm:$0xf]
        %v8006 = vld [vmem:[%s15 + $0xa4] sm:$0xf]
        %v8007 = vld [vmem:[%s15 + $0xa8] sm:$0xf]
        %v8008 = vld [vmem:[%s15 + $0xac] sm:$0xf]
        %v8009 = vld [vmem:[%s15 + $0xb0] sm:$0xf]
        %v8010 = vld [vmem:[%s15 + $0xb4] sm:$0xf]
        %v8011 = vld [vmem:[%s15 + $0xb8] sm:$0xf]
        %v8012 = vld [vmem:[%s15 + $0xbc] sm:$0xf]
        %v8029 = vunpack.c.l.b16 %v7997
        %v8030 = vunpack.c.l.b16 %v7998
        %v8031 = vunpack.c.l.b16 %v7999
        %v8032 = vunpack.c.l.b16 %v8000
        %v8033 = vunpack.c.l.b16 %v8001
        %v8034 = vunpack.c.l.b16 %v8002
        %v8035 = vunpack.c.l.b16 %v8003
        %v8036 = vunpack.c.l.b16 %v8004
        %v8037 = vunpack.c.l.b16 %v8005
        %v8038 = vunpack.c.l.b16 %v8006
        %v8039 = vunpack.c.l.b16 %v8007
        %v8040 = vunpack.c.l.b16 %v8008
        %v8041 = vunpack.c.l.b16 %v8009
        %v8042 = vunpack.c.l.b16 %v8010
        %v8043 = vunpack.c.l.b16 %v8011
        %v8044 = vunpack.c.l.b16 %v8012
        %v8045 = vpack.c.b16 %v8030, %v8029
        %v8046 = vpack.c.b16 %v8032, %v8031
        %v8047 = vpack.c.b16 %v8034, %v8033
        %v8048 = vpack.c.b16 %v8036, %v8035
        %v8049 = vpack.c.b16 %v8038, %v8037
        %v8050 = vpack.c.b16 %v8040, %v8039
        %v8051 = vpack.c.b16 %v8042, %v8041
        %v8052 = vpack.c.b16 %v8044, %v8043
        %8061 = vmatprep.subr.bf16.mxu0 0
        %8062 = vmatpush1.bf16.msra.mxu0 %v8052
        %8063 = vmatprep.subr.bf16.mxu0 0
        %8064 = vmatpush1.bf16.msra.mxu0 %v8051
        %8065 = vmatprep.subr.bf16.mxu0 0
        %8066 = vmatpush1.bf16.msra.mxu0 %v8050
        %8067 = vmatprep.subr.bf16.mxu0 0
        %8068 = vmatpush1.bf16.msra.mxu0 %v8049
        %8069 = vmatprep.subr.bf16.mxu0 0
        %8070 = vmatpush1.bf16.msra.mxu0 %v8048
        %8071 = vmatprep.subr.bf16.mxu0 0
        %8072 = vmatpush1.bf16.msra.mxu0 %v8047
        %8073 = vmatprep.subr.bf16.mxu0 0
        %8074 = vmatpush1.bf16.msra.mxu0 %v8046
        %8075 = vmatprep.subr.bf16.mxu0 0
        %8076 = vmatpush1.bf16.msra.mxu0 %v8045
        %8077 = vmatprep.subr.bf16.mxu0 0
        %8078 = vmatpush2.bf16.msra.mxu0 0
        %8079 = vmatprep.subr.bf16.mxu0 0
        %8080 = vmatpush2.bf16.msra.mxu0 0
        %8081 = vmatprep.subr.bf16.mxu0 0
        %8082 = vmatpush2.bf16.msra.mxu0 0
        %8083 = vmatprep.subr.bf16.mxu0 0
        %8084 = vmatpush2.bf16.msra.mxu0 0
        %8085 = vmatprep.subr.bf16.mxu0 0
        %8086 = vmatpush2.bf16.msra.mxu0 0
        %8087 = vmatprep.subr.bf16.mxu0 0
        %8088 = vmatpush2.bf16.msra.mxu0 0
        %8089 = vmatprep.subr.bf16.mxu0 0
        %8090 = vmatpush2.bf16.msra.mxu0 0
        %8091 = vmatprep.subr.bf16.mxu0 0
        %8092 = vmatpush2.bf16.msra.mxu0 0
        %8093 = vmatprep.mubr.bf16.mxu0 0
        %8094 = vmatmul.mubr.bf16.gmra.mxu0 %v7996
        %v8095 = vpop.f32.mrf.mxu0
        %v8096 = vadd.f32 0.0, %v8095
        %v8097 = vpop.f32.mrf.mxu0
        %v8098 = vpop.f32.mrf.mxu0
        %v8099 = vpop.f32.mrf.mxu0
        %8100 = vdwg.mxu0
        %v8101 = vadd.f32 %v7990, %v8096
        %v8102 = vld [vmem:[#allocation2 + $0x4] sm:$0x3f]
        %v8103 = vpack.c.bf16 %v8102, %v8102
        %v8104 = vld [vmem:[%s15 + $0xc0] sm:$0xf]
        %v8105 = vld [vmem:[%s15 + $0xc4] sm:$0xf]
        %v8106 = vld [vmem:[%s15 + $0xc8] sm:$0xf]
        %v8107 = vld [vmem:[%s15 + $0xcc] sm:$0xf]
        %v8108 = vld [vmem:[%s15 + $0xd0] sm:$0xf]
        %v8109 = vld [vmem:[%s15 + $0xd4] sm:$0xf]
        %v8110 = vld [vmem:[%s15 + $0xd8] sm:$0xf]
        %v8111 = vld [vmem:[%s15 + $0xdc] sm:$0xf]
        %v8112 = vld [vmem:[%s15 + $0xe0] sm:$0xf]
        %v8113 = vld [vmem:[%s15 + $0xe4] sm:$0xf]
        %v8114 = vld [vmem:[%s15 + $0xe8] sm:$0xf]
        %v8115 = vld [vmem:[%s15 + $0xec] sm:$0xf]
        %v8116 = vld [vmem:[%s15 + $0xf0] sm:$0xf]
        %v8117 = vld [vmem:[%s15 + $0xf4] sm:$0xf]
        %v8118 = vld [vmem:[%s15 + $0xf8] sm:$0xf]
        %v8119 = vld [vmem:[%s15 + $0xfc] sm:$0xf]
        %v8136 = vunpack.c.l.b16 %v8104
        %v8137 = vunpack.c.l.b16 %v8105
        %v8138 = vunpack.c.l.b16 %v8106
        %v8139 = vunpack.c.l.b16 %v8107
        %v8140 = vunpack.c.l.b16 %v8108
        %v8141 = vunpack.c.l.b16 %v8109
        %v8142 = vunpack.c.l.b16 %v8110
        %v8143 = vunpack.c.l.b16 %v8111
        %v8144 = vunpack.c.l.b16 %v8112
        %v8145 = vunpack.c.l.b16 %v8113
        %v8146 = vunpack.c.l.b16 %v8114
        %v8147 = vunpack.c.l.b16 %v8115
        %v8148 = vunpack.c.l.b16 %v8116
        %v8149 = vunpack.c.l.b16 %v8117
        %v8150 = vunpack.c.l.b16 %v8118
        %v8151 = vunpack.c.l.b16 %v8119
        %v8152 = vpack.c.b16 %v8137, %v8136
        %v8153 = vpack.c.b16 %v8139, %v8138
        %v8154 = vpack.c.b16 %v8141, %v8140
        %v8155 = vpack.c.b16 %v8143, %v8142
        %v8156 = vpack.c.b16 %v8145, %v8144
        %v8157 = vpack.c.b16 %v8147, %v8146
        %v8158 = vpack.c.b16 %v8149, %v8148
        %v8159 = vpack.c.b16 %v8151, %v8150
        %8168 = vmatprep.subr.bf16.mxu0 0
        %8169 = vmatpush1.bf16.msra.mxu0 %v8159
        %8170 = vmatprep.subr.bf16.mxu0 0
        %8171 = vmatpush1.bf16.msra.mxu0 %v8158
        %8172 = vmatprep.subr.bf16.mxu0 0
        %8173 = vmatpush1.bf16.msra.mxu0 %v8157
        %8174 = vmatprep.subr.bf16.mxu0 0
        %8175 = vmatpush1.bf16.msra.mxu0 %v8156
        %8176 = vmatprep.subr.bf16.mxu0 0
        %8177 = vmatpush1.bf16.msra.mxu0 %v8155
        %8178 = vmatprep.subr.bf16.mxu0 0
        %8179 = vmatpush1.bf16.msra.mxu0 %v8154
        %8180 = vmatprep.subr.bf16.mxu0 0
        %8181 = vmatpush1.bf16.msra.mxu0 %v8153
        %8182 = vmatprep.subr.bf16.mxu0 0
        %8183 = vmatpush1.bf16.msra.mxu0 %v8152
        %8184 = vmatprep.subr.bf16.mxu0 0
        %8185 = vmatpush2.bf16.msra.mxu0 0
        %8186 = vmatprep.subr.bf16.mxu0 0
        %8187 = vmatpush2.bf16.msra.mxu0 0
        %8188 = vmatprep.subr.bf16.mxu0 0
        %8189 = vmatpush2.bf16.msra.mxu0 0
        %8190 = vmatprep.subr.bf16.mxu0 0
        %8191 = vmatpush2.bf16.msra.mxu0 0
        %8192 = vmatprep.subr.bf16.mxu0 0
        %8193 = vmatpush2.bf16.msra.mxu0 0
        %8194 = vmatprep.subr.bf16.mxu0 0
        %8195 = vmatpush2.bf16.msra.mxu0 0
        %8196 = vmatprep.subr.bf16.mxu0 0
        %8197 = vmatpush2.bf16.msra.mxu0 0
        %8198 = vmatprep.subr.bf16.mxu0 0
        %8199 = vmatpush2.bf16.msra.mxu0 0
        %8200 = vmatprep.mubr.bf16.mxu0 0
        %8201 = vmatmul.mubr.bf16.gmra.mxu0 %v8103
        %v8202 = vpop.f32.mrf.mxu0
        %v8203 = vadd.f32 0.0, %v8202
        %v8204 = vpop.f32.mrf.mxu0
        %v8205 = vpop.f32.mrf.mxu0
        %v8206 = vpop.f32.mrf.mxu0
        %8207 = vdwg.mxu0
        %v8208 = vadd.f32 %v8101, %v8203
        %v8209 = vld [vmem:[#allocation2 + $0x5] sm:$0x3f]
        %v8210 = vpack.c.bf16 %v8209, %v8209
        %v8211 = vld [vmem:[%s15 + $0x100] sm:$0xf]
        %v8212 = vld [vmem:[%s15 + $0x104] sm:$0xf]
        %v8213 = vld [vmem:[%s15 + $0x108] sm:$0xf]
        %v8214 = vld [vmem:[%s15 + $0x10c] sm:$0xf]
        %v8215 = vld [vmem:[%s15 + $0x110] sm:$0xf]
        %v8216 = vld [vmem:[%s15 + $0x114] sm:$0xf]
        %v8217 = vld [vmem:[%s15 + $0x118] sm:$0xf]
        %v8218 = vld [vmem:[%s15 + $0x11c] sm:$0xf]
        %v8219 = vld [vmem:[%s15 + $0x120] sm:$0xf]
        %v8220 = vld [vmem:[%s15 + $0x124] sm:$0xf]
        %v8221 = vld [vmem:[%s15 + $0x128] sm:$0xf]
        %v8222 = vld [vmem:[%s15 + $0x12c] sm:$0xf]
        %v8223 = vld [vmem:[%s15 + $0x130] sm:$0xf]
        %v8224 = vld [vmem:[%s15 + $0x134] sm:$0xf]
        %v8225 = vld [vmem:[%s15 + $0x138] sm:$0xf]
        %v8226 = vld [vmem:[%s15 + $0x13c] sm:$0xf]
        %v8243 = vunpack.c.l.b16 %v8211
        %v8244 = vunpack.c.l.b16 %v8212
        %v8245 = vunpack.c.l.b16 %v8213
        %v8246 = vunpack.c.l.b16 %v8214
        %v8247 = vunpack.c.l.b16 %v8215
        %v8248 = vunpack.c.l.b16 %v8216
        %v8249 = vunpack.c.l.b16 %v8217
        %v8250 = vunpack.c.l.b16 %v8218
        %v8251 = vunpack.c.l.b16 %v8219
        %v8252 = vunpack.c.l.b16 %v8220
        %v8253 = vunpack.c.l.b16 %v8221
        %v8254 = vunpack.c.l.b16 %v8222
        %v8255 = vunpack.c.l.b16 %v8223
        %v8256 = vunpack.c.l.b16 %v8224
        %v8257 = vunpack.c.l.b16 %v8225
        %v8258 = vunpack.c.l.b16 %v8226
        %v8259 = vpack.c.b16 %v8244, %v8243
        %v8260 = vpack.c.b16 %v8246, %v8245
        %v8261 = vpack.c.b16 %v8248, %v8247
        %v8262 = vpack.c.b16 %v8250, %v8249
        %v8263 = vpack.c.b16 %v8252, %v8251
        %v8264 = vpack.c.b16 %v8254, %v8253
        %v8265 = vpack.c.b16 %v8256, %v8255
        %v8266 = vpack.c.b16 %v8258, %v8257
        %8275 = vmatprep.subr.bf16.mxu0 0
        %8276 = vmatpush1.bf16.msra.mxu0 %v8266
        %8277 = vmatprep.subr.bf16.mxu0 0
        %8278 = vmatpush1.bf16.msra.mxu0 %v8265
        %8279 = vmatprep.subr.bf16.mxu0 0
        %8280 = vmatpush1.bf16.msra.mxu0 %v8264
        %8281 = vmatprep.subr.bf16.mxu0 0
        %8282 = vmatpush1.bf16.msra.mxu0 %v8263
        %8283 = vmatprep.subr.bf16.mxu0 0
        %8284 = vmatpush1.bf16.msra.mxu0 %v8262
        %8285 = vmatprep.subr.bf16.mxu0 0
        %8286 = vmatpush1.bf16.msra.mxu0 %v8261
        %8287 = vmatprep.subr.bf16.mxu0 0
        %8288 = vmatpush1.bf16.msra.mxu0 %v8260
        %8289 = vmatprep.subr.bf16.mxu0 0
        %8290 = vmatpush1.bf16.msra.mxu0 %v8259
        %8291 = vmatprep.subr.bf16.mxu0 0
        %8292 = vmatpush2.bf16.msra.mxu0 0
        %8293 = vmatprep.subr.bf16.mxu0 0
        %8294 = vmatpush2.bf16.msra.mxu0 0
        %8295 = vmatprep.subr.bf16.mxu0 0
        %8296 = vmatpush2.bf16.msra.mxu0 0
        %8297 = vmatprep.subr.bf16.mxu0 0
        %8298 = vmatpush2.bf16.msra.mxu0 0
        %8299 = vmatprep.subr.bf16.mxu0 0
        %8300 = vmatpush2.bf16.msra.mxu0 0
        %8301 = vmatprep.subr.bf16.mxu0 0
        %8302 = vmatpush2.bf16.msra.mxu0 0
        %8303 = vmatprep.subr.bf16.mxu0 0
        %8304 = vmatpush2.bf16.msra.mxu0 0
        %8305 = vmatprep.subr.bf16.mxu0 0
        %8306 = vmatpush2.bf16.msra.mxu0 0
        %8307 = vmatprep.mubr.bf16.mxu0 0
        %8308 = vmatmul.mubr.bf16.gmra.mxu0 %v8210
        %v8309 = vpop.f32.mrf.mxu0
        %v8310 = vadd.f32 0.0, %v8309
        %v8311 = vpop.f32.mrf.mxu0
        %v8312 = vpop.f32.mrf.mxu0
        %v8313 = vpop.f32.mrf.mxu0
        %8314 = vdwg.mxu0
        %v8315 = vadd.f32 %v8208, %v8310
        %v8316 = vld [vmem:[#allocation2 + $0x6] sm:$0x3f]
        %v8317 = vpack.c.bf16 %v8316, %v8316
        %v8318 = vld [vmem:[%s15 + $0x140] sm:$0xf]
        %v8319 = vld [vmem:[%s15 + $0x144] sm:$0xf]
        %v8320 = vld [vmem:[%s15 + $0x148] sm:$0xf]
        %v8321 = vld [vmem:[%s15 + $0x14c] sm:$0xf]
        %v8322 = vld [vmem:[%s15 + $0x150] sm:$0xf]
        %v8323 = vld [vmem:[%s15 + $0x154] sm:$0xf]
        %v8324 = vld [vmem:[%s15 + $0x158] sm:$0xf]
        %v8325 = vld [vmem:[%s15 + $0x15c] sm:$0xf]
        %v8326 = vld [vmem:[%s15 + $0x160] sm:$0xf]
        %v8327 = vld [vmem:[%s15 + $0x164] sm:$0xf]
        %v8328 = vld [vmem:[%s15 + $0x168] sm:$0xf]
        %v8329 = vld [vmem:[%s15 + $0x16c] sm:$0xf]
        %v8330 = vld [vmem:[%s15 + $0x170] sm:$0xf]
        %v8331 = vld [vmem:[%s15 + $0x174] sm:$0xf]
        %v8332 = vld [vmem:[%s15 + $0x178] sm:$0xf]
        %v8333 = vld [vmem:[%s15 + $0x17c] sm:$0xf]
        %v8350 = vunpack.c.l.b16 %v8318
        %v8351 = vunpack.c.l.b16 %v8319
        %v8352 = vunpack.c.l.b16 %v8320
        %v8353 = vunpack.c.l.b16 %v8321
        %v8354 = vunpack.c.l.b16 %v8322
        %v8355 = vunpack.c.l.b16 %v8323
        %v8356 = vunpack.c.l.b16 %v8324
        %v8357 = vunpack.c.l.b16 %v8325
        %v8358 = vunpack.c.l.b16 %v8326
        %v8359 = vunpack.c.l.b16 %v8327
        %v8360 = vunpack.c.l.b16 %v8328
        %v8361 = vunpack.c.l.b16 %v8329
        %v8362 = vunpack.c.l.b16 %v8330
        %v8363 = vunpack.c.l.b16 %v8331
        %v8364 = vunpack.c.l.b16 %v8332
        %v8365 = vunpack.c.l.b16 %v8333
        %v8366 = vpack.c.b16 %v8351, %v8350
        %v8367 = vpack.c.b16 %v8353, %v8352
        %v8368 = vpack.c.b16 %v8355, %v8354
        %v8369 = vpack.c.b16 %v8357, %v8356
        %v8370 = vpack.c.b16 %v8359, %v8358
        %v8371 = vpack.c.b16 %v8361, %v8360
        %v8372 = vpack.c.b16 %v8363, %v8362
        %v8373 = vpack.c.b16 %v8365, %v8364
        %8382 = vmatprep.subr.bf16.mxu0 0
        %8383 = vmatpush1.bf16.msra.mxu0 %v8373
        %8384 = vmatprep.subr.bf16.mxu0 0
        %8385 = vmatpush1.bf16.msra.mxu0 %v8372
        %8386 = vmatprep.subr.bf16.mxu0 0
        %8387 = vmatpush1.bf16.msra.mxu0 %v8371
        %8388 = vmatprep.subr.bf16.mxu0 0
        %8389 = vmatpush1.bf16.msra.mxu0 %v8370
        %8390 = vmatprep.subr.bf16.mxu0 0
        %8391 = vmatpush1.bf16.msra.mxu0 %v8369
        %8392 = vmatprep.subr.bf16.mxu0 0
        %8393 = vmatpush1.bf16.msra.mxu0 %v8368
        %8394 = vmatprep.subr.bf16.mxu0 0
        %8395 = vmatpush1.bf16.msra.mxu0 %v8367
        %8396 = vmatprep.subr.bf16.mxu0 0
        %8397 = vmatpush1.bf16.msra.mxu0 %v8366
        %8398 = vmatprep.subr.bf16.mxu0 0
        %8399 = vmatpush2.bf16.msra.mxu0 0
        %8400 = vmatprep.subr.bf16.mxu0 0
        %8401 = vmatpush2.bf16.msra.mxu0 0
        %8402 = vmatprep.subr.bf16.mxu0 0
        %8403 = vmatpush2.bf16.msra.mxu0 0
        %8404 = vmatprep.subr.bf16.mxu0 0
        %8405 = vmatpush2.bf16.msra.mxu0 0
        %8406 = vmatprep.subr.bf16.mxu0 0
        %8407 = vmatpush2.bf16.msra.mxu0 0
        %8408 = vmatprep.subr.bf16.mxu0 0
        %8409 = vmatpush2.bf16.msra.mxu0 0
        %8410 = vmatprep.subr.bf16.mxu0 0
        %8411 = vmatpush2.bf16.msra.mxu0 0
        %8412 = vmatprep.subr.bf16.mxu0 0
        %8413 = vmatpush2.bf16.msra.mxu0 0
        %8414 = vmatprep.mubr.bf16.mxu0 0
        %8415 = vmatmul.mubr.bf16.gmra.mxu0 %v8317
        %v8416 = vpop.f32.mrf.mxu0
        %v8417 = vadd.f32 0.0, %v8416
        %v8418 = vpop.f32.mrf.mxu0
        %v8419 = vpop.f32.mrf.mxu0
        %v8420 = vpop.f32.mrf.mxu0
        %8421 = vdwg.mxu0
        %v8422 = vadd.f32 %v8315, %v8417
        %v8423 = vld [vmem:[#allocation2 + $0x8] sm:$0x3f]
        %v8424 = vpack.c.bf16 %v8423, %v8423
        %v8425 = vld [vmem:[%s15 + $0x180] sm:$0xf]
        %v8426 = vld [vmem:[%s15 + $0x184] sm:$0xf]
        %v8427 = vld [vmem:[%s15 + $0x188] sm:$0xf]
        %v8428 = vld [vmem:[%s15 + $0x18c] sm:$0xf]
        %v8429 = vld [vmem:[%s15 + $0x190] sm:$0xf]
        %v8430 = vld [vmem:[%s15 + $0x194] sm:$0xf]
        %v8431 = vld [vmem:[%s15 + $0x198] sm:$0xf]
        %v8432 = vld [vmem:[%s15 + $0x19c] sm:$0xf]
        %v8433 = vld [vmem:[%s15 + $0x1a0] sm:$0xf]
        %v8434 = vld [vmem:[%s15 + $0x1a4] sm:$0xf]
        %v8435 = vld [vmem:[%s15 + $0x1a8] sm:$0xf]
        %v8436 = vld [vmem:[%s15 + $0x1ac] sm:$0xf]
        %v8437 = vld [vmem:[%s15 + $0x1b0] sm:$0xf]
        %v8438 = vld [vmem:[%s15 + $0x1b4] sm:$0xf]
        %v8439 = vld [vmem:[%s15 + $0x1b8] sm:$0xf]
        %v8440 = vld [vmem:[%s15 + $0x1bc] sm:$0xf]
        %v8457 = vunpack.c.l.b16 %v8425
        %v8458 = vunpack.c.l.b16 %v8426
        %v8459 = vunpack.c.l.b16 %v8427
        %v8460 = vunpack.c.l.b16 %v8428
        %v8461 = vunpack.c.l.b16 %v8429
        %v8462 = vunpack.c.l.b16 %v8430
        %v8463 = vunpack.c.l.b16 %v8431
        %v8464 = vunpack.c.l.b16 %v8432
        %v8465 = vunpack.c.l.b16 %v8433
        %v8466 = vunpack.c.l.b16 %v8434
        %v8467 = vunpack.c.l.b16 %v8435
        %v8468 = vunpack.c.l.b16 %v8436
        %v8469 = vunpack.c.l.b16 %v8437
        %v8470 = vunpack.c.l.b16 %v8438
        %v8471 = vunpack.c.l.b16 %v8439
        %v8472 = vunpack.c.l.b16 %v8440
        %v8473 = vpack.c.b16 %v8458, %v8457
        %v8474 = vpack.c.b16 %v8460, %v8459
        %v8475 = vpack.c.b16 %v8462, %v8461
        %v8476 = vpack.c.b16 %v8464, %v8463
        %v8477 = vpack.c.b16 %v8466, %v8465
        %v8478 = vpack.c.b16 %v8468, %v8467
        %v8479 = vpack.c.b16 %v8470, %v8469
        %v8480 = vpack.c.b16 %v8472, %v8471
        %8489 = vmatprep.subr.bf16.mxu0 0
        %8490 = vmatpush1.bf16.msra.mxu0 %v8480
        %8491 = vmatprep.subr.bf16.mxu0 0
        %8492 = vmatpush1.bf16.msra.mxu0 %v8479
        %8493 = vmatprep.subr.bf16.mxu0 0
        %8494 = vmatpush1.bf16.msra.mxu0 %v8478
        %8495 = vmatprep.subr.bf16.mxu0 0
        %8496 = vmatpush1.bf16.msra.mxu0 %v8477
        %8497 = vmatprep.subr.bf16.mxu0 0
        %8498 = vmatpush1.bf16.msra.mxu0 %v8476
        %8499 = vmatprep.subr.bf16.mxu0 0
        %8500 = vmatpush1.bf16.msra.mxu0 %v8475
        %8501 = vmatprep.subr.bf16.mxu0 0
        %8502 = vmatpush1.bf16.msra.mxu0 %v8474
        %8503 = vmatprep.subr.bf16.mxu0 0
        %8504 = vmatpush1.bf16.msra.mxu0 %v8473
        %8505 = vmatprep.subr.bf16.mxu0 0
        %8506 = vmatpush2.bf16.msra.mxu0 0
        %8507 = vmatprep.subr.bf16.mxu0 0
        %8508 = vmatpush2.bf16.msra.mxu0 0
        %8509 = vmatprep.subr.bf16.mxu0 0
        %8510 = vmatpush2.bf16.msra.mxu0 0
        %8511 = vmatprep.subr.bf16.mxu0 0
        %8512 = vmatpush2.bf16.msra.mxu0 0
        %8513 = vmatprep.subr.bf16.mxu0 0
        %8514 = vmatpush2.bf16.msra.mxu0 0
        %8515 = vmatprep.subr.bf16.mxu0 0
        %8516 = vmatpush2.bf16.msra.mxu0 0
        %8517 = vmatprep.subr.bf16.mxu0 0
        %8518 = vmatpush2.bf16.msra.mxu0 0
        %8519 = vmatprep.subr.bf16.mxu0 0
        %8520 = vmatpush2.bf16.msra.mxu0 0
        %8521 = vmatprep.mubr.bf16.mxu0 0
        %8522 = vmatmul.mubr.bf16.gmra.mxu0 %v8424
        %v8523 = vpop.f32.mrf.mxu0
        %v8524 = vadd.f32 0.0, %v8523
        %v8525 = vpop.f32.mrf.mxu0
        %v8526 = vpop.f32.mrf.mxu0
        %v8527 = vpop.f32.mrf.mxu0
        %8528 = vdwg.mxu0
        %v8529 = vadd.f32 %v8422, %v8524
        %v8530 = vld [vmem:[#allocation2 + $0x9] sm:$0x3f]
        %v8531 = vpack.c.bf16 %v8530, %v8530
        %v8532 = vld [vmem:[%s15 + $0x1c0] sm:$0xf]
        %v8533 = vld [vmem:[%s15 + $0x1c4] sm:$0xf]
        %v8534 = vld [vmem:[%s15 + $0x1c8] sm:$0xf]
        %v8535 = vld [vmem:[%s15 + $0x1cc] sm:$0xf]
        %v8536 = vld [vmem:[%s15 + $0x1d0] sm:$0xf]
        %v8537 = vld [vmem:[%s15 + $0x1d4] sm:$0xf]
        %v8538 = vld [vmem:[%s15 + $0x1d8] sm:$0xf]
        %v8539 = vld [vmem:[%s15 + $0x1dc] sm:$0xf]
        %v8540 = vld [vmem:[%s15 + $0x1e0] sm:$0xf]
        %v8541 = vld [vmem:[%s15 + $0x1e4] sm:$0xf]
        %v8542 = vld [vmem:[%s15 + $0x1e8] sm:$0xf]
        %v8543 = vld [vmem:[%s15 + $0x1ec] sm:$0xf]
        %v8544 = vld [vmem:[%s15 + $0x1f0] sm:$0xf]
        %v8545 = vld [vmem:[%s15 + $0x1f4] sm:$0xf]
        %v8546 = vld [vmem:[%s15 + $0x1f8] sm:$0xf]
        %v8547 = vld [vmem:[%s15 + $0x1fc] sm:$0xf]
        %v8564 = vunpack.c.l.b16 %v8532
        %v8565 = vunpack.c.l.b16 %v8533
        %v8566 = vunpack.c.l.b16 %v8534
        %v8567 = vunpack.c.l.b16 %v8535
        %v8568 = vunpack.c.l.b16 %v8536
        %v8569 = vunpack.c.l.b16 %v8537
        %v8570 = vunpack.c.l.b16 %v8538
        %v8571 = vunpack.c.l.b16 %v8539
        %v8572 = vunpack.c.l.b16 %v8540
        %v8573 = vunpack.c.l.b16 %v8541
        %v8574 = vunpack.c.l.b16 %v8542
        %v8575 = vunpack.c.l.b16 %v8543
        %v8576 = vunpack.c.l.b16 %v8544
        %v8577 = vunpack.c.l.b16 %v8545
        %v8578 = vunpack.c.l.b16 %v8546
        %v8579 = vunpack.c.l.b16 %v8547
        %v8580 = vpack.c.b16 %v8565, %v8564
        %v8581 = vpack.c.b16 %v8567, %v8566
        %v8582 = vpack.c.b16 %v8569, %v8568
        %v8583 = vpack.c.b16 %v8571, %v8570
        %v8584 = vpack.c.b16 %v8573, %v8572
        %v8585 = vpack.c.b16 %v8575, %v8574
        %v8586 = vpack.c.b16 %v8577, %v8576
        %v8587 = vpack.c.b16 %v8579, %v8578
        %8596 = vmatprep.subr.bf16.mxu0 0
        %8597 = vmatpush1.bf16.msra.mxu0 %v8587
        %8598 = vmatprep.subr.bf16.mxu0 0
        %8599 = vmatpush1.bf16.msra.mxu0 %v8586
        %8600 = vmatprep.subr.bf16.mxu0 0
        %8601 = vmatpush1.bf16.msra.mxu0 %v8585
        %8602 = vmatprep.subr.bf16.mxu0 0
        %8603 = vmatpush1.bf16.msra.mxu0 %v8584
        %8604 = vmatprep.subr.bf16.mxu0 0
        %8605 = vmatpush1.bf16.msra.mxu0 %v8583
        %8606 = vmatprep.subr.bf16.mxu0 0
        %8607 = vmatpush1.bf16.msra.mxu0 %v8582
        %8608 = vmatprep.subr.bf16.mxu0 0
        %8609 = vmatpush1.bf16.msra.mxu0 %v8581
        %8610 = vmatprep.subr.bf16.mxu0 0
        %8611 = vmatpush1.bf16.msra.mxu0 %v8580
        %8612 = vmatprep.subr.bf16.mxu0 0
        %8613 = vmatpush2.bf16.msra.mxu0 0
        %8614 = vmatprep.subr.bf16.mxu0 0
        %8615 = vmatpush2.bf16.msra.mxu0 0
        %8616 = vmatprep.subr.bf16.mxu0 0
        %8617 = vmatpush2.bf16.msra.mxu0 0
        %8618 = vmatprep.subr.bf16.mxu0 0
        %8619 = vmatpush2.bf16.msra.mxu0 0
        %8620 = vmatprep.subr.bf16.mxu0 0
        %8621 = vmatpush2.bf16.msra.mxu0 0
        %8622 = vmatprep.subr.bf16.mxu0 0
        %8623 = vmatpush2.bf16.msra.mxu0 0
        %8624 = vmatprep.subr.bf16.mxu0 0
        %8625 = vmatpush2.bf16.msra.mxu0 0
        %8626 = vmatprep.subr.bf16.mxu0 0
        %8627 = vmatpush2.bf16.msra.mxu0 0
        %8628 = vmatprep.mubr.bf16.mxu0 0
        %8629 = vmatmul.mubr.bf16.gmra.mxu0 %v8531
        %v8630 = vpop.f32.mrf.mxu0
        %v8631 = vadd.f32 0.0, %v8630
        %v8632 = vpop.f32.mrf.mxu0
        %v8633 = vpop.f32.mrf.mxu0
        %v8634 = vpop.f32.mrf.mxu0
        %8635 = vdwg.mxu0
        %v8636 = vadd.f32 %v8529, %v8631
        %v8637 = vld [vmem:[#allocation2 + $0xa] sm:$0x3f]
        %v8638 = vpack.c.bf16 %v8637, %v8637
        %v8639 = vld [vmem:[%s15 + $0x200] sm:$0xf]
        %v8640 = vld [vmem:[%s15 + $0x204] sm:$0xf]
        %v8641 = vld [vmem:[%s15 + $0x208] sm:$0xf]
        %v8642 = vld [vmem:[%s15 + $0x20c] sm:$0xf]
        %v8643 = vld [vmem:[%s15 + $0x210] sm:$0xf]
        %v8644 = vld [vmem:[%s15 + $0x214] sm:$0xf]
        %v8645 = vld [vmem:[%s15 + $0x218] sm:$0xf]
        %v8646 = vld [vmem:[%s15 + $0x21c] sm:$0xf]
        %v8647 = vld [vmem:[%s15 + $0x220] sm:$0xf]
        %v8648 = vld [vmem:[%s15 + $0x224] sm:$0xf]
        %v8649 = vld [vmem:[%s15 + $0x228] sm:$0xf]
        %v8650 = vld [vmem:[%s15 + $0x22c] sm:$0xf]
        %v8651 = vld [vmem:[%s15 + $0x230] sm:$0xf]
        %v8652 = vld [vmem:[%s15 + $0x234] sm:$0xf]
        %v8653 = vld [vmem:[%s15 + $0x238] sm:$0xf]
        %v8654 = vld [vmem:[%s15 + $0x23c] sm:$0xf]
        %v8671 = vunpack.c.l.b16 %v8639
        %v8672 = vunpack.c.l.b16 %v8640
        %v8673 = vunpack.c.l.b16 %v8641
        %v8674 = vunpack.c.l.b16 %v8642
        %v8675 = vunpack.c.l.b16 %v8643
        %v8676 = vunpack.c.l.b16 %v8644
        %v8677 = vunpack.c.l.b16 %v8645
        %v8678 = vunpack.c.l.b16 %v8646
        %v8679 = vunpack.c.l.b16 %v8647
        %v8680 = vunpack.c.l.b16 %v8648
        %v8681 = vunpack.c.l.b16 %v8649
        %v8682 = vunpack.c.l.b16 %v8650
        %v8683 = vunpack.c.l.b16 %v8651
        %v8684 = vunpack.c.l.b16 %v8652
        %v8685 = vunpack.c.l.b16 %v8653
        %v8686 = vunpack.c.l.b16 %v8654
        %v8687 = vpack.c.b16 %v8672, %v8671
        %v8688 = vpack.c.b16 %v8674, %v8673
        %v8689 = vpack.c.b16 %v8676, %v8675
        %v8690 = vpack.c.b16 %v8678, %v8677
        %v8691 = vpack.c.b16 %v8680, %v8679
        %v8692 = vpack.c.b16 %v8682, %v8681
        %v8693 = vpack.c.b16 %v8684, %v8683
        %v8694 = vpack.c.b16 %v8686, %v8685
        %8703 = vmatprep.subr.bf16.mxu0 0
        %8704 = vmatpush1.bf16.msra.mxu0 %v8694
        %8705 = vmatprep.subr.bf16.mxu0 0
        %8706 = vmatpush1.bf16.msra.mxu0 %v8693
        %8707 = vmatprep.subr.bf16.mxu0 0
        %8708 = vmatpush1.bf16.msra.mxu0 %v8692
        %8709 = vmatprep.subr.bf16.mxu0 0
        %8710 = vmatpush1.bf16.msra.mxu0 %v8691
        %8711 = vmatprep.subr.bf16.mxu0 0
        %8712 = vmatpush1.bf16.msra.mxu0 %v8690
        %8713 = vmatprep.subr.bf16.mxu0 0
        %8714 = vmatpush1.bf16.msra.mxu0 %v8689
        %8715 = vmatprep.subr.bf16.mxu0 0
        %8716 = vmatpush1.bf16.msra.mxu0 %v8688
        %8717 = vmatprep.subr.bf16.mxu0 0
        %8718 = vmatpush1.bf16.msra.mxu0 %v8687
        %8719 = vmatprep.subr.bf16.mxu0 0
        %8720 = vmatpush2.bf16.msra.mxu0 0
        %8721 = vmatprep.subr.bf16.mxu0 0
        %8722 = vmatpush2.bf16.msra.mxu0 0
        %8723 = vmatprep.subr.bf16.mxu0 0
        %8724 = vmatpush2.bf16.msra.mxu0 0
        %8725 = vmatprep.subr.bf16.mxu0 0
        %8726 = vmatpush2.bf16.msra.mxu0 0
        %8727 = vmatprep.subr.bf16.mxu0 0
        %8728 = vmatpush2.bf16.msra.mxu0 0
        %8729 = vmatprep.subr.bf16.mxu0 0
        %8730 = vmatpush2.bf16.msra.mxu0 0
        %8731 = vmatprep.subr.bf16.mxu0 0
        %8732 = vmatpush2.bf16.msra.mxu0 0
        %8733 = vmatprep.subr.bf16.mxu0 0
        %8734 = vmatpush2.bf16.msra.mxu0 0
        %8735 = vmatprep.mubr.bf16.mxu0 0
        %8736 = vmatmul.mubr.bf16.gmra.mxu0 %v8638
        %v8737 = vpop.f32.mrf.mxu0
        %v8738 = vadd.f32 0.0, %v8737
        %v8739 = vpop.f32.mrf.mxu0
        %v8740 = vpop.f32.mrf.mxu0
        %v8741 = vpop.f32.mrf.mxu0
        %8742 = vdwg.mxu0
        %v8743 = vadd.f32 %v8636, %v8738
        %v8745 = vrot.slane %v8743, 2
        %v8747 = vsel %vm879, %v8743, %v8745
        %v8748 = vld [vmem:[%s16] sm:$0x1]
        %v8750 = vlaneseq
        %v8751 = vshrl.u32 %v8750, 7
        %v8752 = vsub.s32 0, %v8751
        %v8753 = vrot.slane %v8748, %v8752
        %v8755 = vadd.f32 %v8747, %v8753
        %v8756 = vmax.f32 %v8755, 0.0
        %8757 = vst [vmem:[#allocation3] sm:$0xff] 0.0
        %8758 = vst [vmem:[#allocation3 + $0x8] sm:$0xff] 0.0
        %8759 = vst [vmem:[#allocation3 + $0x10] sm:$0xff] 0.0
        %8760 = vst [vmem:[#allocation3 + $0x18] sm:$0xff] 0.0
        %8761 = vst [vmem:[#allocation3 + $0x20] sm:$0xf] 0.0
        %8762 = vst [vmem:[#allocation3 + $0x5] sm:$0x3] %v8756
        %8763 = vst [vmem:[#allocation3 + $0x7] sm:$0xc] %v8756
        %v8764 = vld [vmem:[#allocation3] sm:$0x3f]
        %v8765 = vpack.c.bf16 %v8764, %v8764
        %v8766 = vld [vmem:[%s17] sm:$0xf]
        %v8767 = vld [vmem:[%s17 + $0x4] sm:$0xf]
        %v8768 = vld [vmem:[%s17 + $0x8] sm:$0xf]
        %v8769 = vld [vmem:[%s17 + $0xc] sm:$0xf]
        %v8770 = vld [vmem:[%s17 + $0x10] sm:$0xf]
        %v8771 = vld [vmem:[%s17 + $0x14] sm:$0xf]
        %v8772 = vld [vmem:[%s17 + $0x18] sm:$0xf]
        %v8773 = vld [vmem:[%s17 + $0x1c] sm:$0xf]
        %v8774 = vld [vmem:[%s17 + $0x20] sm:$0xf]
        %v8775 = vld [vmem:[%s17 + $0x24] sm:$0xf]
        %v8776 = vld [vmem:[%s17 + $0x28] sm:$0xf]
        %v8777 = vld [vmem:[%s17 + $0x2c] sm:$0xf]
        %v8778 = vld [vmem:[%s17 + $0x30] sm:$0xf]
        %v8779 = vld [vmem:[%s17 + $0x34] sm:$0xf]
        %v8780 = vld [vmem:[%s17 + $0x38] sm:$0xf]
        %v8781 = vld [vmem:[%s17 + $0x3c] sm:$0xf]
        %v8782 = vld [vmem:[#allocation3 + $0x1] sm:$0x3f]
        %v8783 = vpack.c.bf16 %v8782, %v8782
        %v8784 = vld [vmem:[%s17 + $0x40] sm:$0xf]
        %v8785 = vld [vmem:[%s17 + $0x44] sm:$0xf]
        %v8786 = vld [vmem:[%s17 + $0x48] sm:$0xf]
        %v8787 = vld [vmem:[%s17 + $0x4c] sm:$0xf]
        %v8788 = vld [vmem:[%s17 + $0x50] sm:$0xf]
        %v8789 = vld [vmem:[%s17 + $0x54] sm:$0xf]
        %v8790 = vld [vmem:[%s17 + $0x58] sm:$0xf]
        %v8791 = vld [vmem:[%s17 + $0x5c] sm:$0xf]
        %v8792 = vld [vmem:[%s17 + $0x60] sm:$0xf]
        %v8793 = vld [vmem:[%s17 + $0x64] sm:$0xf]
        %v8794 = vld [vmem:[%s17 + $0x68] sm:$0xf]
        %v8795 = vld [vmem:[%s17 + $0x6c] sm:$0xf]
        %v8796 = vld [vmem:[%s17 + $0x70] sm:$0xf]
        %v8797 = vld [vmem:[%s17 + $0x74] sm:$0xf]
        %v8798 = vld [vmem:[%s17 + $0x78] sm:$0xf]
        %v8799 = vld [vmem:[%s17 + $0x7c] sm:$0xf]
        %v8816 = vunpack.c.l.b16 %v8784
        %v8817 = vunpack.c.l.b16 %v8785
        %v8818 = vunpack.c.l.b16 %v8786
        %v8819 = vunpack.c.l.b16 %v8787
        %v8820 = vunpack.c.l.b16 %v8788
        %v8821 = vunpack.c.l.b16 %v8789
        %v8822 = vunpack.c.l.b16 %v8790
        %v8823 = vunpack.c.l.b16 %v8791
        %v8824 = vunpack.c.l.b16 %v8792
        %v8825 = vunpack.c.l.b16 %v8793
        %v8826 = vunpack.c.l.b16 %v8794
        %v8827 = vunpack.c.l.b16 %v8795
        %v8828 = vunpack.c.l.b16 %v8796
        %v8829 = vunpack.c.l.b16 %v8797
        %v8830 = vunpack.c.l.b16 %v8798
        %v8831 = vunpack.c.l.b16 %v8799
        %v8832 = vpack.c.b16 %v8817, %v8816
        %v8833 = vpack.c.b16 %v8819, %v8818
        %v8834 = vpack.c.b16 %v8821, %v8820
        %v8835 = vpack.c.b16 %v8823, %v8822
        %v8836 = vpack.c.b16 %v8825, %v8824
        %v8837 = vpack.c.b16 %v8827, %v8826
        %v8838 = vpack.c.b16 %v8829, %v8828
        %v8839 = vpack.c.b16 %v8831, %v8830
        %8848 = vmatprep.subr.bf16.mxu0 0
        %8849 = vmatpush1.bf16.msra.mxu0 %v8839
        %8850 = vmatprep.subr.bf16.mxu0 0
        %8851 = vmatpush1.bf16.msra.mxu0 %v8838
        %8852 = vmatprep.subr.bf16.mxu0 0
        %8853 = vmatpush1.bf16.msra.mxu0 %v8837
        %8854 = vmatprep.subr.bf16.mxu0 0
        %8855 = vmatpush1.bf16.msra.mxu0 %v8836
        %8856 = vmatprep.subr.bf16.mxu0 0
        %8857 = vmatpush1.bf16.msra.mxu0 %v8835
        %8858 = vmatprep.subr.bf16.mxu0 0
        %8859 = vmatpush1.bf16.msra.mxu0 %v8834
        %8860 = vmatprep.subr.bf16.mxu0 0
        %8861 = vmatpush1.bf16.msra.mxu0 %v8833
        %8862 = vmatprep.subr.bf16.mxu0 0
        %8863 = vmatpush1.bf16.msra.mxu0 %v8832
        %8864 = vmatprep.subr.bf16.mxu0 0
        %8865 = vmatpush2.bf16.msra.mxu0 0
        %8866 = vmatprep.subr.bf16.mxu0 0
        %8867 = vmatpush2.bf16.msra.mxu0 0
        %8868 = vmatprep.subr.bf16.mxu0 0
        %8869 = vmatpush2.bf16.msra.mxu0 0
        %8870 = vmatprep.subr.bf16.mxu0 0
        %8871 = vmatpush2.bf16.msra.mxu0 0
        %8872 = vmatprep.subr.bf16.mxu0 0
        %8873 = vmatpush2.bf16.msra.mxu0 0
        %8874 = vmatprep.subr.bf16.mxu0 0
        %8875 = vmatpush2.bf16.msra.mxu0 0
        %8876 = vmatprep.subr.bf16.mxu0 0
        %8877 = vmatpush2.bf16.msra.mxu0 0
        %8878 = vmatprep.subr.bf16.mxu0 0
        %8879 = vmatpush2.bf16.msra.mxu0 0
        %8880 = vmatprep.mubr.bf16.mxu0 0
        %8881 = vmatmul.mubr.bf16.gmra.mxu0 %v8783
        %v8882 = vpop.f32.mrf.mxu0
        %v8883 = vadd.f32 0.0, %v8882
        %v8884 = vpop.f32.mrf.mxu0
        %v8885 = vpop.f32.mrf.mxu0
        %v8886 = vpop.f32.mrf.mxu0
        %8887 = vdwg.mxu0
        %v8904 = vunpack.c.l.b16 %v8766
        %v8905 = vunpack.c.l.b16 %v8767
        %v8906 = vunpack.c.l.b16 %v8768
        %v8907 = vunpack.c.l.b16 %v8769
        %v8908 = vunpack.c.l.b16 %v8770
        %v8909 = vunpack.c.l.b16 %v8771
        %v8910 = vunpack.c.l.b16 %v8772
        %v8911 = vunpack.c.l.b16 %v8773
        %v8912 = vunpack.c.l.b16 %v8774
        %v8913 = vunpack.c.l.b16 %v8775
        %v8914 = vunpack.c.l.b16 %v8776
        %v8915 = vunpack.c.l.b16 %v8777
        %v8916 = vunpack.c.l.b16 %v8778
        %v8917 = vunpack.c.l.b16 %v8779
        %v8918 = vunpack.c.l.b16 %v8780
        %v8919 = vunpack.c.l.b16 %v8781
        %v8920 = vpack.c.b16 %v8905, %v8904
        %v8921 = vpack.c.b16 %v8907, %v8906
        %v8922 = vpack.c.b16 %v8909, %v8908
        %v8923 = vpack.c.b16 %v8911, %v8910
        %v8924 = vpack.c.b16 %v8913, %v8912
        %v8925 = vpack.c.b16 %v8915, %v8914
        %v8926 = vpack.c.b16 %v8917, %v8916
        %v8927 = vpack.c.b16 %v8919, %v8918
        %8936 = vmatprep.subr.bf16.mxu0 0
        %8937 = vmatpush1.bf16.msra.mxu0 %v8927
        %8938 = vmatprep.subr.bf16.mxu0 0
        %8939 = vmatpush1.bf16.msra.mxu0 %v8926
        %8940 = vmatprep.subr.bf16.mxu0 0
        %8941 = vmatpush1.bf16.msra.mxu0 %v8925
        %8942 = vmatprep.subr.bf16.mxu0 0
        %8943 = vmatpush1.bf16.msra.mxu0 %v8924
        %8944 = vmatprep.subr.bf16.mxu0 0
        %8945 = vmatpush1.bf16.msra.mxu0 %v8923
        %8946 = vmatprep.subr.bf16.mxu0 0
        %8947 = vmatpush1.bf16.msra.mxu0 %v8922
        %8948 = vmatprep.subr.bf16.mxu0 0
        %8949 = vmatpush1.bf16.msra.mxu0 %v8921
        %8950 = vmatprep.subr.bf16.mxu0 0
        %8951 = vmatpush1.bf16.msra.mxu0 %v8920
        %8952 = vmatprep.subr.bf16.mxu0 0
        %8953 = vmatpush2.bf16.msra.mxu0 0
        %8954 = vmatprep.subr.bf16.mxu0 0
        %8955 = vmatpush2.bf16.msra.mxu0 0
        %8956 = vmatprep.subr.bf16.mxu0 0
        %8957 = vmatpush2.bf16.msra.mxu0 0
        %8958 = vmatprep.subr.bf16.mxu0 0
        %8959 = vmatpush2.bf16.msra.mxu0 0
        %8960 = vmatprep.subr.bf16.mxu0 0
        %8961 = vmatpush2.bf16.msra.mxu0 0
        %8962 = vmatprep.subr.bf16.mxu0 0
        %8963 = vmatpush2.bf16.msra.mxu0 0
        %8964 = vmatprep.subr.bf16.mxu0 0
        %8965 = vmatpush2.bf16.msra.mxu0 0
        %8966 = vmatprep.subr.bf16.mxu0 0
        %8967 = vmatpush2.bf16.msra.mxu0 0
        %8968 = vmatprep.mubr.bf16.mxu0 0
        %8969 = vmatmul.mubr.bf16.gmra.mxu0 %v8765
        %v8970 = vpop.f32.mrf.mxu0
        %v8971 = vadd.f32 %v8883, %v8970
        %v8972 = vpop.f32.mrf.mxu0
        %v8973 = vpop.f32.mrf.mxu0
        %v8974 = vpop.f32.mrf.mxu0
        %8975 = vdwg.mxu0
        %v8976 = vld [vmem:[#allocation3 + $0x2] sm:$0x3f]
        %v8977 = vpack.c.bf16 %v8976, %v8976
        %v8978 = vld [vmem:[%s17 + $0x80] sm:$0xf]
        %v8979 = vld [vmem:[%s17 + $0x84] sm:$0xf]
        %v8980 = vld [vmem:[%s17 + $0x88] sm:$0xf]
        %v8981 = vld [vmem:[%s17 + $0x8c] sm:$0xf]
        %v8982 = vld [vmem:[%s17 + $0x90] sm:$0xf]
        %v8983 = vld [vmem:[%s17 + $0x94] sm:$0xf]
        %v8984 = vld [vmem:[%s17 + $0x98] sm:$0xf]
        %v8985 = vld [vmem:[%s17 + $0x9c] sm:$0xf]
        %v8986 = vld [vmem:[%s17 + $0xa0] sm:$0xf]
        %v8987 = vld [vmem:[%s17 + $0xa4] sm:$0xf]
        %v8988 = vld [vmem:[%s17 + $0xa8] sm:$0xf]
        %v8989 = vld [vmem:[%s17 + $0xac] sm:$0xf]
        %v8990 = vld [vmem:[%s17 + $0xb0] sm:$0xf]
        %v8991 = vld [vmem:[%s17 + $0xb4] sm:$0xf]
        %v8992 = vld [vmem:[%s17 + $0xb8] sm:$0xf]
        %v8993 = vld [vmem:[%s17 + $0xbc] sm:$0xf]
        %v9010 = vunpack.c.l.b16 %v8978
        %v9011 = vunpack.c.l.b16 %v8979
        %v9012 = vunpack.c.l.b16 %v8980
        %v9013 = vunpack.c.l.b16 %v8981
        %v9014 = vunpack.c.l.b16 %v8982
        %v9015 = vunpack.c.l.b16 %v8983
        %v9016 = vunpack.c.l.b16 %v8984
        %v9017 = vunpack.c.l.b16 %v8985
        %v9018 = vunpack.c.l.b16 %v8986
        %v9019 = vunpack.c.l.b16 %v8987
        %v9020 = vunpack.c.l.b16 %v8988
        %v9021 = vunpack.c.l.b16 %v8989
        %v9022 = vunpack.c.l.b16 %v8990
        %v9023 = vunpack.c.l.b16 %v8991
        %v9024 = vunpack.c.l.b16 %v8992
        %v9025 = vunpack.c.l.b16 %v8993
        %v9026 = vpack.c.b16 %v9011, %v9010
        %v9027 = vpack.c.b16 %v9013, %v9012
        %v9028 = vpack.c.b16 %v9015, %v9014
        %v9029 = vpack.c.b16 %v9017, %v9016
        %v9030 = vpack.c.b16 %v9019, %v9018
        %v9031 = vpack.c.b16 %v9021, %v9020
        %v9032 = vpack.c.b16 %v9023, %v9022
        %v9033 = vpack.c.b16 %v9025, %v9024
        %9042 = vmatprep.subr.bf16.mxu0 0
        %9043 = vmatpush1.bf16.msra.mxu0 %v9033
        %9044 = vmatprep.subr.bf16.mxu0 0
        %9045 = vmatpush1.bf16.msra.mxu0 %v9032
        %9046 = vmatprep.subr.bf16.mxu0 0
        %9047 = vmatpush1.bf16.msra.mxu0 %v9031
        %9048 = vmatprep.subr.bf16.mxu0 0
        %9049 = vmatpush1.bf16.msra.mxu0 %v9030
        %9050 = vmatprep.subr.bf16.mxu0 0
        %9051 = vmatpush1.bf16.msra.mxu0 %v9029
        %9052 = vmatprep.subr.bf16.mxu0 0
        %9053 = vmatpush1.bf16.msra.mxu0 %v9028
        %9054 = vmatprep.subr.bf16.mxu0 0
        %9055 = vmatpush1.bf16.msra.mxu0 %v9027
        %9056 = vmatprep.subr.bf16.mxu0 0
        %9057 = vmatpush1.bf16.msra.mxu0 %v9026
        %9058 = vmatprep.subr.bf16.mxu0 0
        %9059 = vmatpush2.bf16.msra.mxu0 0
        %9060 = vmatprep.subr.bf16.mxu0 0
        %9061 = vmatpush2.bf16.msra.mxu0 0
        %9062 = vmatprep.subr.bf16.mxu0 0
        %9063 = vmatpush2.bf16.msra.mxu0 0
        %9064 = vmatprep.subr.bf16.mxu0 0
        %9065 = vmatpush2.bf16.msra.mxu0 0
        %9066 = vmatprep.subr.bf16.mxu0 0
        %9067 = vmatpush2.bf16.msra.mxu0 0
        %9068 = vmatprep.subr.bf16.mxu0 0
        %9069 = vmatpush2.bf16.msra.mxu0 0
        %9070 = vmatprep.subr.bf16.mxu0 0
        %9071 = vmatpush2.bf16.msra.mxu0 0
        %9072 = vmatprep.subr.bf16.mxu0 0
        %9073 = vmatpush2.bf16.msra.mxu0 0
        %9074 = vmatprep.mubr.bf16.mxu0 0
        %9075 = vmatmul.mubr.bf16.gmra.mxu0 %v8977
        %v9076 = vpop.f32.mrf.mxu0
        %v9077 = vadd.f32 0.0, %v9076
        %v9078 = vpop.f32.mrf.mxu0
        %v9079 = vpop.f32.mrf.mxu0
        %v9080 = vpop.f32.mrf.mxu0
        %9081 = vdwg.mxu0
        %v9082 = vadd.f32 %v8971, %v9077
        %v9083 = vld [vmem:[#allocation3 + $0x4] sm:$0x3f]
        %v9084 = vpack.c.bf16 %v9083, %v9083
        %v9085 = vld [vmem:[%s17 + $0xc0] sm:$0xf]
        %v9086 = vld [vmem:[%s17 + $0xc4] sm:$0xf]
        %v9087 = vld [vmem:[%s17 + $0xc8] sm:$0xf]
        %v9088 = vld [vmem:[%s17 + $0xcc] sm:$0xf]
        %v9089 = vld [vmem:[%s17 + $0xd0] sm:$0xf]
        %v9090 = vld [vmem:[%s17 + $0xd4] sm:$0xf]
        %v9091 = vld [vmem:[%s17 + $0xd8] sm:$0xf]
        %v9092 = vld [vmem:[%s17 + $0xdc] sm:$0xf]
        %v9093 = vld [vmem:[%s17 + $0xe0] sm:$0xf]
        %v9094 = vld [vmem:[%s17 + $0xe4] sm:$0xf]
        %v9095 = vld [vmem:[%s17 + $0xe8] sm:$0xf]
        %v9096 = vld [vmem:[%s17 + $0xec] sm:$0xf]
        %v9097 = vld [vmem:[%s17 + $0xf0] sm:$0xf]
        %v9098 = vld [vmem:[%s17 + $0xf4] sm:$0xf]
        %v9099 = vld [vmem:[%s17 + $0xf8] sm:$0xf]
        %v9100 = vld [vmem:[%s17 + $0xfc] sm:$0xf]
        %v9117 = vunpack.c.l.b16 %v9085
        %v9118 = vunpack.c.l.b16 %v9086
        %v9119 = vunpack.c.l.b16 %v9087
        %v9120 = vunpack.c.l.b16 %v9088
        %v9121 = vunpack.c.l.b16 %v9089
        %v9122 = vunpack.c.l.b16 %v9090
        %v9123 = vunpack.c.l.b16 %v9091
        %v9124 = vunpack.c.l.b16 %v9092
        %v9125 = vunpack.c.l.b16 %v9093
        %v9126 = vunpack.c.l.b16 %v9094
        %v9127 = vunpack.c.l.b16 %v9095
        %v9128 = vunpack.c.l.b16 %v9096
        %v9129 = vunpack.c.l.b16 %v9097
        %v9130 = vunpack.c.l.b16 %v9098
        %v9131 = vunpack.c.l.b16 %v9099
        %v9132 = vunpack.c.l.b16 %v9100
        %v9133 = vpack.c.b16 %v9118, %v9117
        %v9134 = vpack.c.b16 %v9120, %v9119
        %v9135 = vpack.c.b16 %v9122, %v9121
        %v9136 = vpack.c.b16 %v9124, %v9123
        %v9137 = vpack.c.b16 %v9126, %v9125
        %v9138 = vpack.c.b16 %v9128, %v9127
        %v9139 = vpack.c.b16 %v9130, %v9129
        %v9140 = vpack.c.b16 %v9132, %v9131
        %9149 = vmatprep.subr.bf16.mxu0 0
        %9150 = vmatpush1.bf16.msra.mxu0 %v9140
        %9151 = vmatprep.subr.bf16.mxu0 0
        %9152 = vmatpush1.bf16.msra.mxu0 %v9139
        %9153 = vmatprep.subr.bf16.mxu0 0
        %9154 = vmatpush1.bf16.msra.mxu0 %v9138
        %9155 = vmatprep.subr.bf16.mxu0 0
        %9156 = vmatpush1.bf16.msra.mxu0 %v9137
        %9157 = vmatprep.subr.bf16.mxu0 0
        %9158 = vmatpush1.bf16.msra.mxu0 %v9136
        %9159 = vmatprep.subr.bf16.mxu0 0
        %9160 = vmatpush1.bf16.msra.mxu0 %v9135
        %9161 = vmatprep.subr.bf16.mxu0 0
        %9162 = vmatpush1.bf16.msra.mxu0 %v9134
        %9163 = vmatprep.subr.bf16.mxu0 0
        %9164 = vmatpush1.bf16.msra.mxu0 %v9133
        %9165 = vmatprep.subr.bf16.mxu0 0
        %9166 = vmatpush2.bf16.msra.mxu0 0
        %9167 = vmatprep.subr.bf16.mxu0 0
        %9168 = vmatpush2.bf16.msra.mxu0 0
        %9169 = vmatprep.subr.bf16.mxu0 0
        %9170 = vmatpush2.bf16.msra.mxu0 0
        %9171 = vmatprep.subr.bf16.mxu0 0
        %9172 = vmatpush2.bf16.msra.mxu0 0
        %9173 = vmatprep.subr.bf16.mxu0 0
        %9174 = vmatpush2.bf16.msra.mxu0 0
        %9175 = vmatprep.subr.bf16.mxu0 0
        %9176 = vmatpush2.bf16.msra.mxu0 0
        %9177 = vmatprep.subr.bf16.mxu0 0
        %9178 = vmatpush2.bf16.msra.mxu0 0
        %9179 = vmatprep.subr.bf16.mxu0 0
        %9180 = vmatpush2.bf16.msra.mxu0 0
        %9181 = vmatprep.mubr.bf16.mxu0 0
        %9182 = vmatmul.mubr.bf16.gmra.mxu0 %v9084
        %v9183 = vpop.f32.mrf.mxu0
        %v9184 = vadd.f32 0.0, %v9183
        %v9185 = vpop.f32.mrf.mxu0
        %v9186 = vpop.f32.mrf.mxu0
        %v9187 = vpop.f32.mrf.mxu0
        %9188 = vdwg.mxu0
        %v9189 = vadd.f32 %v9082, %v9184
        %v9190 = vld [vmem:[#allocation3 + $0x5] sm:$0x3f]
        %v9191 = vpack.c.bf16 %v9190, %v9190
        %v9192 = vld [vmem:[%s17 + $0x100] sm:$0xf]
        %v9193 = vld [vmem:[%s17 + $0x104] sm:$0xf]
        %v9194 = vld [vmem:[%s17 + $0x108] sm:$0xf]
        %v9195 = vld [vmem:[%s17 + $0x10c] sm:$0xf]
        %v9196 = vld [vmem:[%s17 + $0x110] sm:$0xf]
        %v9197 = vld [vmem:[%s17 + $0x114] sm:$0xf]
        %v9198 = vld [vmem:[%s17 + $0x118] sm:$0xf]
        %v9199 = vld [vmem:[%s17 + $0x11c] sm:$0xf]
        %v9200 = vld [vmem:[%s17 + $0x120] sm:$0xf]
        %v9201 = vld [vmem:[%s17 + $0x124] sm:$0xf]
        %v9202 = vld [vmem:[%s17 + $0x128] sm:$0xf]
        %v9203 = vld [vmem:[%s17 + $0x12c] sm:$0xf]
        %v9204 = vld [vmem:[%s17 + $0x130] sm:$0xf]
        %v9205 = vld [vmem:[%s17 + $0x134] sm:$0xf]
        %v9206 = vld [vmem:[%s17 + $0x138] sm:$0xf]
        %v9207 = vld [vmem:[%s17 + $0x13c] sm:$0xf]
        %v9224 = vunpack.c.l.b16 %v9192
        %v9225 = vunpack.c.l.b16 %v9193
        %v9226 = vunpack.c.l.b16 %v9194
        %v9227 = vunpack.c.l.b16 %v9195
        %v9228 = vunpack.c.l.b16 %v9196
        %v9229 = vunpack.c.l.b16 %v9197
        %v9230 = vunpack.c.l.b16 %v9198
        %v9231 = vunpack.c.l.b16 %v9199
        %v9232 = vunpack.c.l.b16 %v9200
        %v9233 = vunpack.c.l.b16 %v9201
        %v9234 = vunpack.c.l.b16 %v9202
        %v9235 = vunpack.c.l.b16 %v9203
        %v9236 = vunpack.c.l.b16 %v9204
        %v9237 = vunpack.c.l.b16 %v9205
        %v9238 = vunpack.c.l.b16 %v9206
        %v9239 = vunpack.c.l.b16 %v9207
        %v9240 = vpack.c.b16 %v9225, %v9224
        %v9241 = vpack.c.b16 %v9227, %v9226
        %v9242 = vpack.c.b16 %v9229, %v9228
        %v9243 = vpack.c.b16 %v9231, %v9230
        %v9244 = vpack.c.b16 %v9233, %v9232
        %v9245 = vpack.c.b16 %v9235, %v9234
        %v9246 = vpack.c.b16 %v9237, %v9236
        %v9247 = vpack.c.b16 %v9239, %v9238
        %9256 = vmatprep.subr.bf16.mxu0 0
        %9257 = vmatpush1.bf16.msra.mxu0 %v9247
        %9258 = vmatprep.subr.bf16.mxu0 0
        %9259 = vmatpush1.bf16.msra.mxu0 %v9246
        %9260 = vmatprep.subr.bf16.mxu0 0
        %9261 = vmatpush1.bf16.msra.mxu0 %v9245
        %9262 = vmatprep.subr.bf16.mxu0 0
        %9263 = vmatpush1.bf16.msra.mxu0 %v9244
        %9264 = vmatprep.subr.bf16.mxu0 0
        %9265 = vmatpush1.bf16.msra.mxu0 %v9243
        %9266 = vmatprep.subr.bf16.mxu0 0
        %9267 = vmatpush1.bf16.msra.mxu0 %v9242
        %9268 = vmatprep.subr.bf16.mxu0 0
        %9269 = vmatpush1.bf16.msra.mxu0 %v9241
        %9270 = vmatprep.subr.bf16.mxu0 0
        %9271 = vmatpush1.bf16.msra.mxu0 %v9240
        %9272 = vmatprep.subr.bf16.mxu0 0
        %9273 = vmatpush2.bf16.msra.mxu0 0
        %9274 = vmatprep.subr.bf16.mxu0 0
        %9275 = vmatpush2.bf16.msra.mxu0 0
        %9276 = vmatprep.subr.bf16.mxu0 0
        %9277 = vmatpush2.bf16.msra.mxu0 0
        %9278 = vmatprep.subr.bf16.mxu0 0
        %9279 = vmatpush2.bf16.msra.mxu0 0
        %9280 = vmatprep.subr.bf16.mxu0 0
        %9281 = vmatpush2.bf16.msra.mxu0 0
        %9282 = vmatprep.subr.bf16.mxu0 0
        %9283 = vmatpush2.bf16.msra.mxu0 0
        %9284 = vmatprep.subr.bf16.mxu0 0
        %9285 = vmatpush2.bf16.msra.mxu0 0
        %9286 = vmatprep.subr.bf16.mxu0 0
        %9287 = vmatpush2.bf16.msra.mxu0 0
        %9288 = vmatprep.mubr.bf16.mxu0 0
        %9289 = vmatmul.mubr.bf16.gmra.mxu0 %v9191
        %v9290 = vpop.f32.mrf.mxu0
        %v9291 = vadd.f32 0.0, %v9290
        %v9292 = vpop.f32.mrf.mxu0
        %v9293 = vpop.f32.mrf.mxu0
        %v9294 = vpop.f32.mrf.mxu0
        %9295 = vdwg.mxu0
        %v9296 = vadd.f32 %v9189, %v9291
        %v9297 = vld [vmem:[#allocation3 + $0x6] sm:$0x3f]
        %v9298 = vpack.c.bf16 %v9297, %v9297
        %v9299 = vld [vmem:[%s17 + $0x140] sm:$0xf]
        %v9300 = vld [vmem:[%s17 + $0x144] sm:$0xf]
        %v9301 = vld [vmem:[%s17 + $0x148] sm:$0xf]
        %v9302 = vld [vmem:[%s17 + $0x14c] sm:$0xf]
        %v9303 = vld [vmem:[%s17 + $0x150] sm:$0xf]
        %v9304 = vld [vmem:[%s17 + $0x154] sm:$0xf]
        %v9305 = vld [vmem:[%s17 + $0x158] sm:$0xf]
        %v9306 = vld [vmem:[%s17 + $0x15c] sm:$0xf]
        %v9307 = vld [vmem:[%s17 + $0x160] sm:$0xf]
        %v9308 = vld [vmem:[%s17 + $0x164] sm:$0xf]
        %v9309 = vld [vmem:[%s17 + $0x168] sm:$0xf]
        %v9310 = vld [vmem:[%s17 + $0x16c] sm:$0xf]
        %v9311 = vld [vmem:[%s17 + $0x170] sm:$0xf]
        %v9312 = vld [vmem:[%s17 + $0x174] sm:$0xf]
        %v9313 = vld [vmem:[%s17 + $0x178] sm:$0xf]
        %v9314 = vld [vmem:[%s17 + $0x17c] sm:$0xf]
        %v9331 = vunpack.c.l.b16 %v9299
        %v9332 = vunpack.c.l.b16 %v9300
        %v9333 = vunpack.c.l.b16 %v9301
        %v9334 = vunpack.c.l.b16 %v9302
        %v9335 = vunpack.c.l.b16 %v9303
        %v9336 = vunpack.c.l.b16 %v9304
        %v9337 = vunpack.c.l.b16 %v9305
        %v9338 = vunpack.c.l.b16 %v9306
        %v9339 = vunpack.c.l.b16 %v9307
        %v9340 = vunpack.c.l.b16 %v9308
        %v9341 = vunpack.c.l.b16 %v9309
        %v9342 = vunpack.c.l.b16 %v9310
        %v9343 = vunpack.c.l.b16 %v9311
        %v9344 = vunpack.c.l.b16 %v9312
        %v9345 = vunpack.c.l.b16 %v9313
        %v9346 = vunpack.c.l.b16 %v9314
        %v9347 = vpack.c.b16 %v9332, %v9331
        %v9348 = vpack.c.b16 %v9334, %v9333
        %v9349 = vpack.c.b16 %v9336, %v9335
        %v9350 = vpack.c.b16 %v9338, %v9337
        %v9351 = vpack.c.b16 %v9340, %v9339
        %v9352 = vpack.c.b16 %v9342, %v9341
        %v9353 = vpack.c.b16 %v9344, %v9343
        %v9354 = vpack.c.b16 %v9346, %v9345
        %9363 = vmatprep.subr.bf16.mxu0 0
        %9364 = vmatpush1.bf16.msra.mxu0 %v9354
        %9365 = vmatprep.subr.bf16.mxu0 0
        %9366 = vmatpush1.bf16.msra.mxu0 %v9353
        %9367 = vmatprep.subr.bf16.mxu0 0
        %9368 = vmatpush1.bf16.msra.mxu0 %v9352
        %9369 = vmatprep.subr.bf16.mxu0 0
        %9370 = vmatpush1.bf16.msra.mxu0 %v9351
        %9371 = vmatprep.subr.bf16.mxu0 0
        %9372 = vmatpush1.bf16.msra.mxu0 %v9350
        %9373 = vmatprep.subr.bf16.mxu0 0
        %9374 = vmatpush1.bf16.msra.mxu0 %v9349
        %9375 = vmatprep.subr.bf16.mxu0 0
        %9376 = vmatpush1.bf16.msra.mxu0 %v9348
        %9377 = vmatprep.subr.bf16.mxu0 0
        %9378 = vmatpush1.bf16.msra.mxu0 %v9347
        %9379 = vmatprep.subr.bf16.mxu0 0
        %9380 = vmatpush2.bf16.msra.mxu0 0
        %9381 = vmatprep.subr.bf16.mxu0 0
        %9382 = vmatpush2.bf16.msra.mxu0 0
        %9383 = vmatprep.subr.bf16.mxu0 0
        %9384 = vmatpush2.bf16.msra.mxu0 0
        %9385 = vmatprep.subr.bf16.mxu0 0
        %9386 = vmatpush2.bf16.msra.mxu0 0
        %9387 = vmatprep.subr.bf16.mxu0 0
        %9388 = vmatpush2.bf16.msra.mxu0 0
        %9389 = vmatprep.subr.bf16.mxu0 0
        %9390 = vmatpush2.bf16.msra.mxu0 0
        %9391 = vmatprep.subr.bf16.mxu0 0
        %9392 = vmatpush2.bf16.msra.mxu0 0
        %9393 = vmatprep.subr.bf16.mxu0 0
        %9394 = vmatpush2.bf16.msra.mxu0 0
        %9395 = vmatprep.mubr.bf16.mxu0 0
        %9396 = vmatmul.mubr.bf16.gmra.mxu0 %v9298
        %v9397 = vpop.f32.mrf.mxu0
        %v9398 = vadd.f32 0.0, %v9397
        %v9399 = vpop.f32.mrf.mxu0
        %v9400 = vpop.f32.mrf.mxu0
        %v9401 = vpop.f32.mrf.mxu0
        %9402 = vdwg.mxu0
        %v9403 = vadd.f32 %v9296, %v9398
        %v9404 = vld [vmem:[#allocation3 + $0x8] sm:$0x3f]
        %v9405 = vpack.c.bf16 %v9404, %v9404
        %v9406 = vld [vmem:[%s17 + $0x180] sm:$0xf]
        %v9407 = vld [vmem:[%s17 + $0x184] sm:$0xf]
        %v9408 = vld [vmem:[%s17 + $0x188] sm:$0xf]
        %v9409 = vld [vmem:[%s17 + $0x18c] sm:$0xf]
        %v9410 = vld [vmem:[%s17 + $0x190] sm:$0xf]
        %v9411 = vld [vmem:[%s17 + $0x194] sm:$0xf]
        %v9412 = vld [vmem:[%s17 + $0x198] sm:$0xf]
        %v9413 = vld [vmem:[%s17 + $0x19c] sm:$0xf]
        %v9414 = vld [vmem:[%s17 + $0x1a0] sm:$0xf]
        %v9415 = vld [vmem:[%s17 + $0x1a4] sm:$0xf]
        %v9416 = vld [vmem:[%s17 + $0x1a8] sm:$0xf]
        %v9417 = vld [vmem:[%s17 + $0x1ac] sm:$0xf]
        %v9418 = vld [vmem:[%s17 + $0x1b0] sm:$0xf]
        %v9419 = vld [vmem:[%s17 + $0x1b4] sm:$0xf]
        %v9420 = vld [vmem:[%s17 + $0x1b8] sm:$0xf]
        %v9421 = vld [vmem:[%s17 + $0x1bc] sm:$0xf]
        %v9438 = vunpack.c.l.b16 %v9406
        %v9439 = vunpack.c.l.b16 %v9407
        %v9440 = vunpack.c.l.b16 %v9408
        %v9441 = vunpack.c.l.b16 %v9409
        %v9442 = vunpack.c.l.b16 %v9410
        %v9443 = vunpack.c.l.b16 %v9411
        %v9444 = vunpack.c.l.b16 %v9412
        %v9445 = vunpack.c.l.b16 %v9413
        %v9446 = vunpack.c.l.b16 %v9414
        %v9447 = vunpack.c.l.b16 %v9415
        %v9448 = vunpack.c.l.b16 %v9416
        %v9449 = vunpack.c.l.b16 %v9417
        %v9450 = vunpack.c.l.b16 %v9418
        %v9451 = vunpack.c.l.b16 %v9419
        %v9452 = vunpack.c.l.b16 %v9420
        %v9453 = vunpack.c.l.b16 %v9421
        %v9454 = vpack.c.b16 %v9439, %v9438
        %v9455 = vpack.c.b16 %v9441, %v9440
        %v9456 = vpack.c.b16 %v9443, %v9442
        %v9457 = vpack.c.b16 %v9445, %v9444
        %v9458 = vpack.c.b16 %v9447, %v9446
        %v9459 = vpack.c.b16 %v9449, %v9448
        %v9460 = vpack.c.b16 %v9451, %v9450
        %v9461 = vpack.c.b16 %v9453, %v9452
        %9470 = vmatprep.subr.bf16.mxu0 0
        %9471 = vmatpush1.bf16.msra.mxu0 %v9461
        %9472 = vmatprep.subr.bf16.mxu0 0
        %9473 = vmatpush1.bf16.msra.mxu0 %v9460
        %9474 = vmatprep.subr.bf16.mxu0 0
        %9475 = vmatpush1.bf16.msra.mxu0 %v9459
        %9476 = vmatprep.subr.bf16.mxu0 0
        %9477 = vmatpush1.bf16.msra.mxu0 %v9458
        %9478 = vmatprep.subr.bf16.mxu0 0
        %9479 = vmatpush1.bf16.msra.mxu0 %v9457
        %9480 = vmatprep.subr.bf16.mxu0 0
        %9481 = vmatpush1.bf16.msra.mxu0 %v9456
        %9482 = vmatprep.subr.bf16.mxu0 0
        %9483 = vmatpush1.bf16.msra.mxu0 %v9455
        %9484 = vmatprep.subr.bf16.mxu0 0
        %9485 = vmatpush1.bf16.msra.mxu0 %v9454
        %9486 = vmatprep.subr.bf16.mxu0 0
        %9487 = vmatpush2.bf16.msra.mxu0 0
        %9488 = vmatprep.subr.bf16.mxu0 0
        %9489 = vmatpush2.bf16.msra.mxu0 0
        %9490 = vmatprep.subr.bf16.mxu0 0
        %9491 = vmatpush2.bf16.msra.mxu0 0
        %9492 = vmatprep.subr.bf16.mxu0 0
        %9493 = vmatpush2.bf16.msra.mxu0 0
        %9494 = vmatprep.subr.bf16.mxu0 0
        %9495 = vmatpush2.bf16.msra.mxu0 0
        %9496 = vmatprep.subr.bf16.mxu0 0
        %9497 = vmatpush2.bf16.msra.mxu0 0
        %9498 = vmatprep.subr.bf16.mxu0 0
        %9499 = vmatpush2.bf16.msra.mxu0 0
        %9500 = vmatprep.subr.bf16.mxu0 0
        %9501 = vmatpush2.bf16.msra.mxu0 0
        %9502 = vmatprep.mubr.bf16.mxu0 0
        %9503 = vmatmul.mubr.bf16.gmra.mxu0 %v9405
        %v9504 = vpop.f32.mrf.mxu0
        %v9505 = vadd.f32 0.0, %v9504
        %v9506 = vpop.f32.mrf.mxu0
        %v9507 = vpop.f32.mrf.mxu0
        %v9508 = vpop.f32.mrf.mxu0
        %9509 = vdwg.mxu0
        %v9510 = vadd.f32 %v9403, %v9505
        %v9511 = vld [vmem:[#allocation3 + $0x9] sm:$0x3f]
        %v9512 = vpack.c.bf16 %v9511, %v9511
        %v9513 = vld [vmem:[%s17 + $0x1c0] sm:$0xf]
        %v9514 = vld [vmem:[%s17 + $0x1c4] sm:$0xf]
        %v9515 = vld [vmem:[%s17 + $0x1c8] sm:$0xf]
        %v9516 = vld [vmem:[%s17 + $0x1cc] sm:$0xf]
        %v9517 = vld [vmem:[%s17 + $0x1d0] sm:$0xf]
        %v9518 = vld [vmem:[%s17 + $0x1d4] sm:$0xf]
        %v9519 = vld [vmem:[%s17 + $0x1d8] sm:$0xf]
        %v9520 = vld [vmem:[%s17 + $0x1dc] sm:$0xf]
        %v9521 = vld [vmem:[%s17 + $0x1e0] sm:$0xf]
        %v9522 = vld [vmem:[%s17 + $0x1e4] sm:$0xf]
        %v9523 = vld [vmem:[%s17 + $0x1e8] sm:$0xf]
        %v9524 = vld [vmem:[%s17 + $0x1ec] sm:$0xf]
        %v9525 = vld [vmem:[%s17 + $0x1f0] sm:$0xf]
        %v9526 = vld [vmem:[%s17 + $0x1f4] sm:$0xf]
        %v9527 = vld [vmem:[%s17 + $0x1f8] sm:$0xf]
        %v9528 = vld [vmem:[%s17 + $0x1fc] sm:$0xf]
        %v9545 = vunpack.c.l.b16 %v9513
        %v9546 = vunpack.c.l.b16 %v9514
        %v9547 = vunpack.c.l.b16 %v9515
        %v9548 = vunpack.c.l.b16 %v9516
        %v9549 = vunpack.c.l.b16 %v9517
        %v9550 = vunpack.c.l.b16 %v9518
        %v9551 = vunpack.c.l.b16 %v9519
        %v9552 = vunpack.c.l.b16 %v9520
        %v9553 = vunpack.c.l.b16 %v9521
        %v9554 = vunpack.c.l.b16 %v9522
        %v9555 = vunpack.c.l.b16 %v9523
        %v9556 = vunpack.c.l.b16 %v9524
        %v9557 = vunpack.c.l.b16 %v9525
        %v9558 = vunpack.c.l.b16 %v9526
        %v9559 = vunpack.c.l.b16 %v9527
        %v9560 = vunpack.c.l.b16 %v9528
        %v9561 = vpack.c.b16 %v9546, %v9545
        %v9562 = vpack.c.b16 %v9548, %v9547
        %v9563 = vpack.c.b16 %v9550, %v9549
        %v9564 = vpack.c.b16 %v9552, %v9551
        %v9565 = vpack.c.b16 %v9554, %v9553
        %v9566 = vpack.c.b16 %v9556, %v9555
        %v9567 = vpack.c.b16 %v9558, %v9557
        %v9568 = vpack.c.b16 %v9560, %v9559
        %9577 = vmatprep.subr.bf16.mxu0 0
        %9578 = vmatpush1.bf16.msra.mxu0 %v9568
        %9579 = vmatprep.subr.bf16.mxu0 0
        %9580 = vmatpush1.bf16.msra.mxu0 %v9567
        %9581 = vmatprep.subr.bf16.mxu0 0
        %9582 = vmatpush1.bf16.msra.mxu0 %v9566
        %9583 = vmatprep.subr.bf16.mxu0 0
        %9584 = vmatpush1.bf16.msra.mxu0 %v9565
        %9585 = vmatprep.subr.bf16.mxu0 0
        %9586 = vmatpush1.bf16.msra.mxu0 %v9564
        %9587 = vmatprep.subr.bf16.mxu0 0
        %9588 = vmatpush1.bf16.msra.mxu0 %v9563
        %9589 = vmatprep.subr.bf16.mxu0 0
        %9590 = vmatpush1.bf16.msra.mxu0 %v9562
        %9591 = vmatprep.subr.bf16.mxu0 0
        %9592 = vmatpush1.bf16.msra.mxu0 %v9561
        %9593 = vmatprep.subr.bf16.mxu0 0
        %9594 = vmatpush2.bf16.msra.mxu0 0
        %9595 = vmatprep.subr.bf16.mxu0 0
        %9596 = vmatpush2.bf16.msra.mxu0 0
        %9597 = vmatprep.subr.bf16.mxu0 0
        %9598 = vmatpush2.bf16.msra.mxu0 0
        %9599 = vmatprep.subr.bf16.mxu0 0
        %9600 = vmatpush2.bf16.msra.mxu0 0
        %9601 = vmatprep.subr.bf16.mxu0 0
        %9602 = vmatpush2.bf16.msra.mxu0 0
        %9603 = vmatprep.subr.bf16.mxu0 0
        %9604 = vmatpush2.bf16.msra.mxu0 0
        %9605 = vmatprep.subr.bf16.mxu0 0
        %9606 = vmatpush2.bf16.msra.mxu0 0
        %9607 = vmatprep.subr.bf16.mxu0 0
        %9608 = vmatpush2.bf16.msra.mxu0 0
        %9609 = vmatprep.mubr.bf16.mxu0 0
        %9610 = vmatmul.mubr.bf16.gmra.mxu0 %v9512
        %v9611 = vpop.f32.mrf.mxu0
        %v9612 = vadd.f32 0.0, %v9611
        %v9613 = vpop.f32.mrf.mxu0
        %v9614 = vpop.f32.mrf.mxu0
        %v9615 = vpop.f32.mrf.mxu0
        %9616 = vdwg.mxu0
        %v9617 = vadd.f32 %v9510, %v9612
        %v9618 = vld [vmem:[#allocation3 + $0xa] sm:$0x3f]
        %v9619 = vpack.c.bf16 %v9618, %v9618
        %v9620 = vld [vmem:[%s17 + $0x200] sm:$0xf]
        %v9621 = vld [vmem:[%s17 + $0x204] sm:$0xf]
        %v9622 = vld [vmem:[%s17 + $0x208] sm:$0xf]
        %v9623 = vld [vmem:[%s17 + $0x20c] sm:$0xf]
        %v9624 = vld [vmem:[%s17 + $0x210] sm:$0xf]
        %v9625 = vld [vmem:[%s17 + $0x214] sm:$0xf]
        %v9626 = vld [vmem:[%s17 + $0x218] sm:$0xf]
        %v9627 = vld [vmem:[%s17 + $0x21c] sm:$0xf]
        %v9628 = vld [vmem:[%s17 + $0x220] sm:$0xf]
        %v9629 = vld [vmem:[%s17 + $0x224] sm:$0xf]
        %v9630 = vld [vmem:[%s17 + $0x228] sm:$0xf]
        %v9631 = vld [vmem:[%s17 + $0x22c] sm:$0xf]
        %v9632 = vld [vmem:[%s17 + $0x230] sm:$0xf]
        %v9633 = vld [vmem:[%s17 + $0x234] sm:$0xf]
        %v9634 = vld [vmem:[%s17 + $0x238] sm:$0xf]
        %v9635 = vld [vmem:[%s17 + $0x23c] sm:$0xf]
        %v9652 = vunpack.c.l.b16 %v9620
        %v9653 = vunpack.c.l.b16 %v9621
        %v9654 = vunpack.c.l.b16 %v9622
        %v9655 = vunpack.c.l.b16 %v9623
        %v9656 = vunpack.c.l.b16 %v9624
        %v9657 = vunpack.c.l.b16 %v9625
        %v9658 = vunpack.c.l.b16 %v9626
        %v9659 = vunpack.c.l.b16 %v9627
        %v9660 = vunpack.c.l.b16 %v9628
        %v9661 = vunpack.c.l.b16 %v9629
        %v9662 = vunpack.c.l.b16 %v9630
        %v9663 = vunpack.c.l.b16 %v9631
        %v9664 = vunpack.c.l.b16 %v9632
        %v9665 = vunpack.c.l.b16 %v9633
        %v9666 = vunpack.c.l.b16 %v9634
        %v9667 = vunpack.c.l.b16 %v9635
        %v9668 = vpack.c.b16 %v9653, %v9652
        %v9669 = vpack.c.b16 %v9655, %v9654
        %v9670 = vpack.c.b16 %v9657, %v9656
        %v9671 = vpack.c.b16 %v9659, %v9658
        %v9672 = vpack.c.b16 %v9661, %v9660
        %v9673 = vpack.c.b16 %v9663, %v9662
        %v9674 = vpack.c.b16 %v9665, %v9664
        %v9675 = vpack.c.b16 %v9667, %v9666
        %9684 = vmatprep.subr.bf16.mxu0 0
        %9685 = vmatpush1.bf16.msra.mxu0 %v9675
        %9686 = vmatprep.subr.bf16.mxu0 0
        %9687 = vmatpush1.bf16.msra.mxu0 %v9674
        %9688 = vmatprep.subr.bf16.mxu0 0
        %9689 = vmatpush1.bf16.msra.mxu0 %v9673
        %9690 = vmatprep.subr.bf16.mxu0 0
        %9691 = vmatpush1.bf16.msra.mxu0 %v9672
        %9692 = vmatprep.subr.bf16.mxu0 0
        %9693 = vmatpush1.bf16.msra.mxu0 %v9671
        %9694 = vmatprep.subr.bf16.mxu0 0
        %9695 = vmatpush1.bf16.msra.mxu0 %v9670
        %9696 = vmatprep.subr.bf16.mxu0 0
        %9697 = vmatpush1.bf16.msra.mxu0 %v9669
        %9698 = vmatprep.subr.bf16.mxu0 0
        %9699 = vmatpush1.bf16.msra.mxu0 %v9668
        %9700 = vmatprep.subr.bf16.mxu0 0
        %9701 = vmatpush2.bf16.msra.mxu0 0
        %9702 = vmatprep.subr.bf16.mxu0 0
        %9703 = vmatpush2.bf16.msra.mxu0 0
        %9704 = vmatprep.subr.bf16.mxu0 0
        %9705 = vmatpush2.bf16.msra.mxu0 0
        %9706 = vmatprep.subr.bf16.mxu0 0
        %9707 = vmatpush2.bf16.msra.mxu0 0
        %9708 = vmatprep.subr.bf16.mxu0 0
        %9709 = vmatpush2.bf16.msra.mxu0 0
        %9710 = vmatprep.subr.bf16.mxu0 0
        %9711 = vmatpush2.bf16.msra.mxu0 0
        %9712 = vmatprep.subr.bf16.mxu0 0
        %9713 = vmatpush2.bf16.msra.mxu0 0
        %9714 = vmatprep.subr.bf16.mxu0 0
        %9715 = vmatpush2.bf16.msra.mxu0 0
        %9716 = vmatprep.mubr.bf16.mxu0 0
        %9717 = vmatmul.mubr.bf16.gmra.mxu0 %v9619
        %v9718 = vpop.f32.mrf.mxu0
        %v9719 = vadd.f32 0.0, %v9718
        %v9720 = vpop.f32.mrf.mxu0
        %v9721 = vpop.f32.mrf.mxu0
        %v9722 = vpop.f32.mrf.mxu0
        %9723 = vdwg.mxu0
        %v9724 = vadd.f32 %v9617, %v9719
        %v9726 = vrot.slane %v9724, 2
        %v9728 = vsel %vm879, %v9724, %v9726
        %v9729 = vld [vmem:[%s18] sm:$0x1]
        %v9731 = vlaneseq
        %v9732 = vshrl.u32 %v9731, 7
        %v9733 = vsub.s32 0, %v9732
        %v9734 = vrot.slane %v9729, %v9733
        %v9736 = vadd.f32 %v9728, %v9734
        %v9737 = vadd.f32 %v9736, %v7775
        %v9738 = vmax.f32 %v9737, 0.0
        %9739 = vst [vmem:[%s595] sm:$0xf] %v9738
        %s9740 = sand.u32 %s445, 1
        %s9741 = scalar_lea.sflag [#allocation5], %s9740
        %s9742 = sand.u32 %s445, 1
        %s9743 = smul.addr %s9742, 4
        %s9744 = scalar_lea.vmem [#allocation4], %s9743
        // Predicated region
        $region97: #{stem_forward.1} parent=95 // pred_check
          %p9745 = pneg %p455
        $region98: #{stem_forward.1} parent=95 // pred_check_branch
          %9747 = sbr.rel (%p9745) target = $region100
        $region99: #{stem_forward.1} parent=95 // pred_region
          %s9749 = ssub.s32 64, 64
          %9750 = vsyncadd %s9741, %s9749
          %s9751 = smul.addr %s33, 64
          %s9752 = scalar_lea.hbm %s19, %s9751
          %s9754 = sshll.u32 %s9744, 4
          %s9755 = int_to_ptr.vmem [resolvable:$true] %s9754
          %9757 = dma.vmem_to_hbm [thread:$0]  %s9755, 64, %s9752, %s9741
        $region100: #{stem_forward.1} parent=95 // pred_fallthru
          _
      $region96: #{stem_forward.1} parent=5 // pred_fallthru
        _
      %p9758 = scmp.le.s32.totalorder 2, %s28
      // Predicated region
      $region101: #{stem_forward.1} parent=5 // pred_check
        %p9759 = pneg %p9758
      $region102: #{stem_forward.1} parent=5 // pred_check_branch
        %9761 = sbr.rel (%p9759) target = $region104
      $region103: #{stem_forward.1} parent=5 // pred_region
        %s9762 = ssub.s32 %s28, 2
        // Predicated region
        $region105: #{stem_forward.1} parent=103 // pred_check
          %p9763 = pneg %p461
        $region106: #{stem_forward.1} parent=103 // pred_check_branch
          %9765 = sbr.rel (%p9763) target = $region108
        $region107: #{stem_forward.1} parent=103 // pred_region
          %s9766 = sand.u32 %s446, 1
          %s9767 = scalar_lea.sflag [#allocation5], %s9766
          %s9768 = sand.u32 %s446, 1
          %s9769 = smul.addr %s9768, 4
          %s9770 = scalar_lea.vmem [#allocation4], %s9769
          %9771 = dma.done %s9767, 64
        $region108: #{stem_forward.1} parent=103 // pred_fallthru
          _
      $region104: #{stem_forward.1} parent=5 // pred_fallthru
        _
    $region6: #{stem_forward.1} parent=1 // loop_footer
      %s32 = sadd.s32 1, %s28
    $region7: #{stem_forward.1} parent=1 // loop_footer_branch
      %27 = sbr.rel target = $region3
    $region8: #{stem_forward.1} parent=1 // loop_exit
      _
    %9772 = vsyncpa [#allocation5], 1
    %s9773 = scalar_lea.sflag [#allocation5], 1
    %9774 = vsyncpa %s9773, 1

</llo_original>
